<compile_context>
chip_gen: v6e
topology: v6e:2x2x1
jax: 0.10.0
libtpu: 0.0.40
codegen_flags: <defaults>
</compile_context>

<pallas_src>
import functools
import math

import jax
import jax.numpy as jnp
from jax.experimental import pallas as pl
from jax.experimental.pallas import tpu as pltpu

# ----------------------------- model hyper-params -----------------------------
HIDDEN = 32
NUM_HEADS = 4
HEAD_DIM = HIDDEN // NUM_HEADS
MLP_DIM = 4 * HIDDEN          # 128 -> lane-dense MLP intermediate
PROJ_DIM = 128                # visual projection dim -> lane-dense output
PATCH = 8                     # 16x16 image => 2x2 = 4 patches (+ CLS)
LN_EPS = 1e-5
QKV_PAD = 128                 # 3*HIDDEN = 96 zero-padded to a lane-dense 128


def _ln(x, g, b):
    mu = jnp.mean(x, axis=-1, keepdims=True)
    var = jnp.mean(jnp.square(x - mu), axis=-1, keepdims=True)
    return (x - mu) * jax.lax.rsqrt(var + LN_EPS) * g + b


# ================================ Pallas kernel ================================

def _vision_encoder_kernel(
    tok_ref,                     # (Nb*SP, patch_dim) bf16; row 0 of each image = CLS slot (zeros)
    posbias_ref,                 # (SP, D) f32; row0 = cls+pos0, rows i = patch_b+pos_i, pad rows = 0
    patch_w_ref,                 # (patch_dim, D) bf16
    pre_g_ref, pre_b_ref,        # (1, D) f32
    ln1_g_ref, ln1_b_ref,        # (1, D) f32
    wqkv_ref, bqkv_ref,          # (D, 128) bf16 / (1, 128) f32  (zero-padded cols 96:128)
    wo_ref, bo_ref,              # (D, D) f32 / (1, D) f32
    ln2_g_ref, ln2_b_ref,        # (1, D) f32
    w1_ref, b1_ref,              # (D, 4D) bf16 / (1, 4D) f32
    w2_ref, b2_ref,              # (4D, D) bf16 / (1, D) f32
    post_g_ref, post_b_ref,      # (1, D) f32
    proj_w_ref,                  # (D, PROJ_DIM) bf16
    out_ref,                     # (Nb, PROJ_DIM) f32
    *, seq_len,
):
    f32, bf16 = jnp.float32, jnp.bfloat16
    SP, D = posbias_ref.shape
    NB = out_ref.shape[0]
    R = NB * SP
    qkv_pad = wqkv_ref.shape[1]
    scale = 1.0 / math.sqrt(HEAD_DIM)

    # --- patch embedding: one 2-D MXU matmul over all Nb*SP token rows ---
    e2 = jnp.dot(tok_ref[...], patch_w_ref[...], preferred_element_type=f32)   # (R, D)
    # sublane-aligned (R, D) -> (NB, 8, D) reshape (layout no-op) to add posbias
    x3 = e2.reshape(NB, SP, D) + posbias_ref[...][None]
    x2 = _ln(x3, pre_g_ref[...], pre_b_ref[...]).reshape(R, D)                 # pre layernorm

    # --- self-attention (pre-LN), fused lane-dense QKV projection ---
    h2 = _ln(x2, ln1_g_ref[...], ln1_b_ref[...])
    qkv = jnp.dot(h2.astype(bf16), wqkv_ref[...],
                  preferred_element_type=f32) + bqkv_ref[...]                  # (R, 128)
    qkv = qkv.reshape(NB, SP, qkv_pad)

    # pad tokens (index >= seq_len) must never receive attention weight
    kbias = jnp.where(
        jax.lax.broadcasted_iota(jnp.int32, (1, 1, SP), 2) < seq_len,
        0.0, -1e30).astype(f32)

    attn2 = jnp.zeros((R, D), f32)
    for hh in range(NUM_HEADS):               # unrolled; instruction count O(heads), not O(Nb)
        lo, hi = hh * HEAD_DIM, (hh + 1) * HEAD_DIM
        qh = qkv[..., lo:hi]                  # f32 — no bf16 round-trips for micro-K matmuls
        kh = qkv[..., D + lo:D + hi]
        vh = qkv[..., 2 * D + lo:2 * D + hi]
        s = jnp.einsum("nqd,nkd->nqk", qh, kh,
                       preferred_element_type=f32) * scale + kbias             # (NB, SP, SP)
        s = s - jnp.max(s, axis=-1, keepdims=True)
        p = jnp.exp(s)
        # approx reciprocal: attention rows sum to 1 within ~2^-12 (documented deviation)
        p = p * pl.reciprocal(jnp.sum(p, axis=-1, keepdims=True), approx=True)
        oh = jnp.einsum("nqk,nkd->nqd", p, vh,
                        preferred_element_type=f32)                            # (NB, SP, Dh)
        # concat(heads) @ Wo  ==  sum_h head_h @ Wo[rows of head h]
        attn2 = attn2 + jnp.dot(oh.reshape(R, HEAD_DIM), wo_ref[lo:hi, :],
                                preferred_element_type=f32)
    x2 = x2 + attn2 + bo_ref[...]

    # --- MLP with quick-gelu ---
    h2 = _ln(x2, ln2_g_ref[...], ln2_b_ref[...])
    h2 = jnp.dot(h2.astype(bf16), w1_ref[...],
                 preferred_element_type=f32) + b1_ref[...]                     # (R, 4D)
    h2 = h2 * jax.nn.sigmoid(1.702 * h2)                                       # quick-gelu
    h2 = jnp.dot(h2.astype(bf16), w2_ref[...],
                 preferred_element_type=f32) + b2_ref[...]                     # (R, D)
    x2 = x2 + h2

    # --- pooled CLS (token 0 of each image) -> post-LN -> visual projection ---
    cls_sel = (jax.lax.broadcasted_iota(jnp.int32, (1, SP, 1), 1) == 0).astype(f32)
    cls = jnp.sum(x2.reshape(NB, SP, D) * cls_sel, axis=1)                     # (NB, D)
    cls = _ln(cls, post_g_ref[...], post_b_ref[...])
    out_ref[...] = jnp.dot(cls.astype(bf16), proj_w_ref[...],
                           preferred_element_type=f32).astype(out_ref.dtype)   # (NB, 128)


# ============================ mini-CLIP image features =========================

@functools.partial(jax.jit, static_argnames=("images_per_step",))
def clip_get_image_features(params, pixel_values, images_per_step=None):
    """pixel_values NCHW (N, C, H, W) -> image embeddings (N, PROJ_DIM)."""
    N, C, H, W = pixel_values.shape
    gh, gw = H // PATCH, W // PATCH
    n_patches = gh * gw
    S = 1 + n_patches                      # real tokens per image (CLS + patches)
    SP = ((S + 7) // 8) * 8                # sublane-aligned tokens per image
    patch_dim = C * PATCH * PATCH

    if images_per_step is None:
        # Target ~256 images/step, keep >=2 grid steps (v7x megacore),
        # and keep the sublane dim of the output block a multiple of 8.
        images_per_step = max(8, min(256, ((pl.cdiv(N, 2) + 7) // 8) * 8))
    NB = images_per_step
    n_steps = pl.cdiv(N, NB)
    N_pad = n_steps * NB

    v = params["vision"]
    lyr = v["layer"]

    # im2col glue: Conv2d(kernel=stride=PATCH) == per-patch flatten @ weight.
    p = pixel_values.reshape(N, C, gh, PATCH, gw, PATCH)
    p = p.transpose(0, 2, 4, 1, 3, 5).reshape(N, n_patches, patch_dim)
    # Row 0 = zero CLS slot (fused cls+pos bias supplied by posbias row 0),
    # rows S..SP-1 = zero pad tokens, extra images = zero pad (sliced off).
    tok = jnp.concatenate(
        [jnp.zeros((N, 1, patch_dim), p.dtype), p,
         jnp.zeros((N, SP - S, patch_dim), p.dtype)], axis=1)
    if N_pad != N:
        tok = jnp.concatenate(
            [tok, jnp.zeros((N_pad - N, SP, patch_dim), tok.dtype)], axis=0)
    tok = tok.reshape(N_pad * SP, patch_dim).astype(jnp.bfloat16)

    posbias = jnp.concatenate(
        [(v["cls"] + v["pos_emb"][0])[None, :],
         v["patch_b"][None, :] + v["pos_emb"][1:],
         jnp.zeros((SP - S, HIDDEN), jnp.float32)], axis=0).astype(jnp.float32)

    # lane-dense fused QKV: pad (32, 96) -> (32, 128) with zero columns
    wqkv = jnp.concatenate(
        [lyr["wqkv"],
         jnp.zeros((HIDDEN, QKV_PAD - 3 * HIDDEN), lyr["wqkv"].dtype)],
        axis=1).astype(jnp.bfloat16)
    bqkv = jnp.concatenate(
        [lyr["bqkv"], jnp.zeros((QKV_PAD - 3 * HIDDEN,), lyr["bqkv"].dtype)]
    ).reshape(1, QKV_PAD).astype(jnp.float32)

    row = lambda a: a.reshape(1, -1).astype(jnp.float32)
    w16 = lambda a: a.astype(jnp.bfloat16)

    inputs = [
        tok,                                        # 0: per-step (NB*SP, patch_dim) block
        posbias,                                    # 1
        w16(v["patch_w"]),                          # 2
        row(v["pre_g"]), row(v["pre_b"]),           # 3, 4
        row(lyr["ln1_g"]), row(lyr["ln1_b"]),       # 5, 6
        wqkv, bqkv,                                 # 7, 8
        lyr["wo"].astype(jnp.float32), row(lyr["bo"]),   # 9, 10 (f32 — used in micro-K matmuls)
        row(lyr["ln2_g"]), row(lyr["ln2_b"]),       # 11, 12
        w16(lyr["w1"]), row(lyr["b1"]),             # 13, 14
        w16(lyr["w2"]), row(lyr["b2"]),             # 15, 16
        row(v["post_g"]), row(v["post_b"]),         # 17, 18
        w16(v["proj_w"]),                           # 19
    ]

    def _resident(a):   # full-array block, constant index -> stays VMEM-resident
        return pl.BlockSpec(a.shape, lambda i: (0, 0))

    in_specs = [pl.BlockSpec((NB * SP, patch_dim), lambda i: (i, 0))]
    in_specs += [_resident(a) for a in inputs[1:]]

    weight_bytes = sum(int(a.size) * a.dtype.itemsize for a in inputs[1:])
    flops = N_pad * (
        2 * SP * (patch_dim * HIDDEN + HIDDEN * QKV_PAD
                  + NUM_HEADS * 2 * SP * HEAD_DIM + HIDDEN * HIDDEN
                  + 2 * HIDDEN * MLP_DIM)
        + 2 * HIDDEN * PROJ_DIM)
    cost = pl.CostEstimate(
        flops=int(flops),
        transcendentals=int(N_pad * (NUM_HEADS * SP * SP + SP * MLP_DIM + 8 * SP)),
        bytes_accessed=int(tok.size * tok.dtype.itemsize
                           + N_pad * PROJ_DIM * 4 + weight_bytes))

    out = pl.pallas_call(
        functools.partial(_vision_encoder_kernel, seq_len=S),
        out_shape=jax.ShapeDtypeStruct((N_pad, PROJ_DIM), jnp.float32),
        grid=(n_steps,),
        in_specs=in_specs,
        out_specs=pl.BlockSpec((NB, PROJ_DIM), lambda i: (i, 0)),
        compiler_params=pltpu.CompilerParams(
            dimension_semantics=("parallel",),
            vmem_limit_bytes=32 * 1024 * 1024),
        cost_estimate=cost,
    )(*inputs)
    return out[:N]


# ======================= pure-JAX f32 reference (for testing) ==================

def _clip_reference(params, pixel_values):
    N, C, H, W = pixel_values.shape
    gh, gw = H // PATCH, W // PATCH
    patch_dim = C * PATCH * PATCH
    v = params["vision"]
    lyr = v["layer"]

    p = pixel_values.reshape(N, C, gh, PATCH, gw, PATCH)
    p = p.transpose(0, 2, 4, 1, 3, 5).reshape(N, gh * gw, patch_dim)
    emb = jnp.einsum("npd,dh->nph", p, v["patch_w"]) + v["patch_b"]
    cls = jnp.broadcast_to(v["cls"], (N, 1, HIDDEN))
    x = jnp.concatenate([cls, emb], axis=1) + v["pos_emb"][None]
    S = x.shape[1]

    ln = lambda t, g, b: ((t - jnp.mean(t, -1, keepdims=True))
                          * jax.lax.rsqrt(jnp.var(t, -1, keepdims=True) + LN_EPS)
                          * g + b)
    x = ln(x, v["pre_g"], v["pre_b"])

    h = ln(x, lyr["ln1_g"], lyr["ln1_b"])
    qkv = jnp.einsum("nsd,de->nse", h, lyr["wqkv"]) + lyr["bqkv"]
    q, k, vv = jnp.split(qkv, 3, axis=-1)
    q = q.reshape(N, S, NUM_HEADS, HEAD_DIM)
    k = k.reshape(N, S, NUM_HEADS, HEAD_DIM)
    vv = vv.reshape(N, S, NUM_HEADS, HEAD_DIM)
    s = jnp.einsum("nqhd,nkhd->nhqk", q, k) / math.sqrt(HEAD_DIM)
    pr = jax.nn.softmax(s, axis=-1)
    o = jnp.einsum("nhqk,nkhd->nqhd", pr, vv).reshape(N, S, HIDDEN)
    x = x + jnp.einsum("nsd,de->nse", o, lyr["wo"]) + lyr["bo"]

    h = ln(x, lyr["ln2_g"], lyr["ln2_b"])
    h = jnp.einsum("nsd,de->nse", h, lyr["w1"]) + lyr["b1"]
    h = h * jax.nn.sigmoid(1.702 * h)
    h = jnp.einsum("nse,ed->nsd", h, lyr["w2"]) + lyr["b2"]
    x = x + h

    cls_t = ln(x[:, 0, :], v["post_g"], v["post_b"])
    return cls_t @ v["proj_w"]


# ============================== synthetic weights ==============================

def _init(key, shape, scale=0.02):
    return (jax.random.normal(key, shape) * scale).astype(jnp.float32)


def init_params(key, *, img_hw, channels):
    n_patches = (img_hw // PATCH) * (img_hw // PATCH)
    patch_dim = channels * PATCH * PATCH
    ks = jax.random.split(key, 8)
    ones = lambda n: jnp.ones((n,), jnp.float32)
    zeros = lambda n: jnp.zeros((n,), jnp.float32)
    layer = dict(
        ln1_g=ones(HIDDEN), ln1_b=zeros(HIDDEN),
        wqkv=_init(ks[0], (HIDDEN, 3 * HIDDEN)), bqkv=zeros(3 * HIDDEN),
        wo=_init(ks[1], (HIDDEN, HIDDEN)), bo=zeros(HIDDEN),
        ln2_g=ones(HIDDEN), ln2_b=zeros(HIDDEN),
        w1=_init(ks[2], (HIDDEN, MLP_DIM)), b1=zeros(MLP_DIM),
        w2=_init(ks[3], (MLP_DIM, HIDDEN)), b2=zeros(HIDDEN),
    )
    vision = dict(
        patch_w=_init(ks[4], (patch_dim, HIDDEN)), patch_b=zeros(HIDDEN),
        cls=_init(ks[5], (HIDDEN,)),
        pos_emb=_init(ks[6], (1 + n_patches, HIDDEN)),
        pre_g=ones(HIDDEN), pre_b=zeros(HIDDEN),
        layer=layer,
        post_g=ones(HIDDEN), post_b=zeros(HIDDEN),
        proj_w=_init(ks[7], (HIDDEN, PROJ_DIM)),
    )
    # TODO(synk): pretrained HF CLIPModel weights replaced by a deterministic
    # single-block mini-CLIP with synthetic weights (same op structure).
    return dict(vision=vision)


# =========================== Encoder.forward port ==============================

def image_level_image_encoder_forward(params, pixel_values,
                                      mention_entity_image_mask=None, *,
                                      max_mention_image_num=1,
                                      max_entity_image_num=2):
    del mention_entity_image_mask  # unused by the reference forward as well
    batch_size, entity_image_num, num_channels, height, width = pixel_values.shape
    reshaped_pixel_values = pixel_values.reshape(
        batch_size * entity_image_num, num_channels, height, width)

    # encode_input == clip_model.get_image_features (fused Pallas kernel)
    mention_entity_img_embed = clip_get_image_features(params, reshaped_pixel_values)

    original = mention_entity_img_embed.reshape(batch_size, entity_image_num, -1)

    # split_mention_entity_image_embed
    mention_image_embed = original[:, 0:max_mention_image_num, :]
    entity_image_embeds = original[:, max_mention_image_num:, :]
    real_sequence_num = int((entity_image_num - max_mention_image_num)
                            / max_entity_image_num)
    mention_image_embed = mention_image_embed.reshape(batch_size, 1, -1)
    entity_image_embeds = entity_image_embeds.reshape(batch_size, real_sequence_num, -1)
    return mention_image_embed, entity_image_embeds, batch_size


# ==================================== main =====================================

if __name__ == "__main__":
    B = 2
    MAX_MENTION_IMG = 1
    MAX_ENTITY_IMG = 2
    NUM_CANDIDATES = 2
    Sn = MAX_MENTION_IMG + NUM_CANDIDATES * MAX_ENTITY_IMG   # 5 images per example
    C, H, W = 3, 16, 16

    key = jax.random.PRNGKey(0)
    kp, kx = jax.random.split(key)
    params = init_params(kp, img_hw=H, channels=C)
    pixel_values = jax.random.normal(kx, (B, Sn, C, H, W), jnp.float32)

    mention_image_embed, entity_image_embeds, bs = image_level_image_encoder_forward(
        params, pixel_values,
        max_mention_image_num=MAX_MENTION_IMG,
        max_entity_image_num=MAX_ENTITY_IMG)
    jax.block_until_ready((mention_image_embed, entity_image_embeds))

    assert mention_image_embed.shape == (B, 1, MAX_MENTION_IMG * PROJ_DIM)
    assert entity_image_embeds.shape == (B, NUM_CANDIDATES, MAX_ENTITY_IMG * PROJ_DIM)
    assert int(bs) == B
    assert bool(jnp.all(jnp.isfinite(mention_image_embed)))
    assert bool(jnp.all(jnp.isfinite(entity_image_embeds)))

    # numerical check of the fused kernel against a pure-JAX f32 reference
    # (bf16 weights + approx-reciprocal softmax -> small, documented deviation)
    rpv = pixel_values.reshape(B * Sn, C, H, W)
    kernel_emb = clip_get_image_features(params, rpv)
    ref_emb = _clip_reference(params, rpv)
    max_err = float(jnp.max(jnp.abs(kernel_emb - ref_emb)))
    assert max_err < 5e-2, f"kernel/reference mismatch: max abs err {max_err}"

    print("KERNEL_OK")
</pallas_src>

<mosaic_0001>
module attributes {stable_mosaic.version = 11 : i64} {
  func.func @_vision_encoder_kernel(%arg0: i32, %arg1: memref<64x192xbf16, #tpu.memory_space<vmem>>, %arg2: memref<8x32xf32, #tpu.memory_space<vmem>>, %arg3: memref<192x32xbf16, #tpu.memory_space<vmem>>, %arg4: memref<1x32xf32, #tpu.memory_space<vmem>>, %arg5: memref<1x32xf32, #tpu.memory_space<vmem>>, %arg6: memref<1x32xf32, #tpu.memory_space<vmem>>, %arg7: memref<1x32xf32, #tpu.memory_space<vmem>>, %arg8: memref<32x128xbf16, #tpu.memory_space<vmem>>, %arg9: memref<1x128xf32, #tpu.memory_space<vmem>>, %arg10: memref<32x32xf32, #tpu.memory_space<vmem>>, %arg11: memref<1x32xf32, #tpu.memory_space<vmem>>, %arg12: memref<1x32xf32, #tpu.memory_space<vmem>>, %arg13: memref<1x32xf32, #tpu.memory_space<vmem>>, %arg14: memref<32x128xbf16, #tpu.memory_space<vmem>>, %arg15: memref<1x128xf32, #tpu.memory_space<vmem>>, %arg16: memref<128x32xbf16, #tpu.memory_space<vmem>>, %arg17: memref<1x32xf32, #tpu.memory_space<vmem>>, %arg18: memref<1x32xf32, #tpu.memory_space<vmem>>, %arg19: memref<1x32xf32, #tpu.memory_space<vmem>>, %arg20: memref<32x128xbf16, #tpu.memory_space<vmem>>, %arg21: memref<8x128xf32, #tpu.memory_space<vmem>>) attributes {dimension_semantics = [#tpu.dimension_semantics<parallel>], iteration_bounds = array<i64: 2>, scalar_prefetch = 0 : i64, scratch_operands = 0 : i64, tpu.core_type = #tpu.core_type<tc>, window_params = [{transform_indices = @transform_0, window_bounds = array<i64: 64, 192>}, {pipeline_mode = #tpu.pipeline_mode<synchronous>, transform_indices = @transform_1, window_bounds = array<i64: 8, 32>}, {pipeline_mode = #tpu.pipeline_mode<synchronous>, transform_indices = @transform_2, window_bounds = array<i64: 192, 32>}, {pipeline_mode = #tpu.pipeline_mode<synchronous>, transform_indices = @transform_3, window_bounds = array<i64: 1, 32>}, {pipeline_mode = #tpu.pipeline_mode<synchronous>, transform_indices = @transform_4, window_bounds = array<i64: 1, 32>}, {pipeline_mode = #tpu.pipeline_mode<synchronous>, transform_indices = @transform_5, window_bounds = array<i64: 1, 32>}, {pipeline_mode = #tpu.pipeline_mode<synchronous>, transform_indices = @transform_6, window_bounds = array<i64: 1, 32>}, {pipeline_mode = #tpu.pipeline_mode<synchronous>, transform_indices = @transform_7, window_bounds = array<i64: 32, 128>}, {pipeline_mode = #tpu.pipeline_mode<synchronous>, transform_indices = @transform_8, window_bounds = array<i64: 1, 128>}, {pipeline_mode = #tpu.pipeline_mode<synchronous>, transform_indices = @transform_9, window_bounds = array<i64: 32, 32>}, {pipeline_mode = #tpu.pipeline_mode<synchronous>, transform_indices = @transform_10, window_bounds = array<i64: 1, 32>}, {pipeline_mode = #tpu.pipeline_mode<synchronous>, transform_indices = @transform_11, window_bounds = array<i64: 1, 32>}, {pipeline_mode = #tpu.pipeline_mode<synchronous>, transform_indices = @transform_12, window_bounds = array<i64: 1, 32>}, {pipeline_mode = #tpu.pipeline_mode<synchronous>, transform_indices = @transform_13, window_bounds = array<i64: 32, 128>}, {pipeline_mode = #tpu.pipeline_mode<synchronous>, transform_indices = @transform_14, window_bounds = array<i64: 1, 128>}, {pipeline_mode = #tpu.pipeline_mode<synchronous>, transform_indices = @transform_15, window_bounds = array<i64: 128, 32>}, {pipeline_mode = #tpu.pipeline_mode<synchronous>, transform_indices = @transform_16, window_bounds = array<i64: 1, 32>}, {pipeline_mode = #tpu.pipeline_mode<synchronous>, transform_indices = @transform_17, window_bounds = array<i64: 1, 32>}, {pipeline_mode = #tpu.pipeline_mode<synchronous>, transform_indices = @transform_18, window_bounds = array<i64: 1, 32>}, {pipeline_mode = #tpu.pipeline_mode<synchronous>, transform_indices = @transform_19, window_bounds = array<i64: 32, 128>}, {transform_indices = @transform_20, window_bounds = array<i64: 8, 128>}]} {
    %c0 = arith.constant 0 : index
    %c0_0 = arith.constant 0 : index
    %0 = vector.load %arg1[%c0, %c0_0] : memref<64x192xbf16, #tpu.memory_space<vmem>>, vector<64x192xbf16>
    %c0_1 = arith.constant 0 : index
    %c0_2 = arith.constant 0 : index
    %1 = vector.load %arg3[%c0_1, %c0_2] : memref<192x32xbf16, #tpu.memory_space<vmem>>, vector<192x32xbf16>
    %cst = arith.constant dense<0.000000e+00> : vector<64x32xf32>
    %2 = tpu.matmul %0, %1, %cst {dimension_numbers = #tpu.dot_dimension_numbers<[1], [0], [0], [1], [0, 0, 1, 1], [], []>} : vector<64x192xbf16>, vector<192x32xbf16>, vector<64x32xf32> -> vector<64x32xf32>
    %3 = vector.shape_cast %2 : vector<64x32xf32> to vector<8x8x32xf32>
    %c0_3 = arith.constant 0 : index
    %c0_4 = arith.constant 0 : index
    %4 = vector.load %arg2[%c0_3, %c0_4] : memref<8x32xf32, #tpu.memory_space<vmem>>, vector<8x32xf32>
    %5 = vector.shape_cast %4 : vector<8x32xf32> to vector<1x8x32xf32>
    %6 = vector.broadcast %5 : vector<1x8x32xf32> to vector<8x8x32xf32>
    %7 = arith.addf %3, %6 : vector<8x8x32xf32>
    %c0_5 = arith.constant 0 : index
    %c0_6 = arith.constant 0 : index
    %8 = vector.load %arg4[%c0_5, %c0_6] : memref<1x32xf32, #tpu.memory_space<vmem>>, vector<1x32xf32>
    %c0_7 = arith.constant 0 : index
    %c0_8 = arith.constant 0 : index
    %9 = vector.load %arg5[%c0_7, %c0_8] : memref<1x32xf32, #tpu.memory_space<vmem>>, vector<1x32xf32>
    %cst_9 = arith.constant dense<0.000000e+00> : vector<8x8xf32>
    %10 = vector.multi_reduction <add>, %7, %cst_9 [2] : vector<8x8x32xf32> to vector<8x8xf32>
    %11 = vector.shape_cast %10 : vector<8x8xf32> to vector<8x8x1xf32>
    %cst_10 = arith.constant 3.200000e+01 : f32
    %12 = vector.broadcast %cst_10 : f32 to vector<8x8x1xf32>
    %13 = arith.divf %11, %12 : vector<8x8x1xf32>
    %14 = vector.broadcast %13 : vector<8x8x1xf32> to vector<8x8x32xf32>
    %15 = arith.subf %7, %14 : vector<8x8x32xf32>
    %16 = arith.mulf %15, %15 : vector<8x8x32xf32>
    %cst_11 = arith.constant dense<0.000000e+00> : vector<8x8xf32>
    %17 = vector.multi_reduction <add>, %16, %cst_11 [2] : vector<8x8x32xf32> to vector<8x8xf32>
    %18 = vector.shape_cast %17 : vector<8x8xf32> to vector<8x8x1xf32>
    %cst_12 = arith.constant 3.200000e+01 : f32
    %19 = vector.broadcast %cst_12 : f32 to vector<8x8x1xf32>
    %20 = arith.divf %18, %19 : vector<8x8x1xf32>
    %21 = vector.broadcast %13 : vector<8x8x1xf32> to vector<8x8x32xf32>
    %22 = arith.subf %7, %21 : vector<8x8x32xf32>
    %cst_13 = arith.constant 9.99999974E-6 : f32
    %23 = vector.broadcast %cst_13 : f32 to vector<8x8x1xf32>
    %24 = arith.addf %20, %23 : vector<8x8x1xf32>
    %25 = math.rsqrt %24 : vector<8x8x1xf32>
    %26 = vector.broadcast %25 : vector<8x8x1xf32> to vector<8x8x32xf32>
    %27 = arith.mulf %22, %26 : vector<8x8x32xf32>
    %28 = vector.shape_cast %8 : vector<1x32xf32> to vector<1x1x32xf32>
    %29 = vector.broadcast %28 : vector<1x1x32xf32> to vector<8x8x32xf32>
    %30 = arith.mulf %27, %29 : vector<8x8x32xf32>
    %31 = vector.shape_cast %9 : vector<1x32xf32> to vector<1x1x32xf32>
    %32 = vector.broadcast %31 : vector<1x1x32xf32> to vector<8x8x32xf32>
    %33 = arith.addf %30, %32 : vector<8x8x32xf32>
    %34 = vector.shape_cast %33 : vector<8x8x32xf32> to vector<64x32xf32>
    %c0_14 = arith.constant 0 : index
    %c0_15 = arith.constant 0 : index
    %35 = vector.load %arg6[%c0_14, %c0_15] : memref<1x32xf32, #tpu.memory_space<vmem>>, vector<1x32xf32>
    %c0_16 = arith.constant 0 : index
    %c0_17 = arith.constant 0 : index
    %36 = vector.load %arg7[%c0_16, %c0_17] : memref<1x32xf32, #tpu.memory_space<vmem>>, vector<1x32xf32>
    %cst_18 = arith.constant dense<0.000000e+00> : vector<64xf32>
    %37 = vector.multi_reduction <add>, %34, %cst_18 [1] : vector<64x32xf32> to vector<64xf32>
    %38 = vector.shape_cast %37 : vector<64xf32> to vector<64x1xf32>
    %cst_19 = arith.constant 3.200000e+01 : f32
    %39 = vector.broadcast %cst_19 : f32 to vector<64x1xf32>
    %40 = arith.divf %38, %39 : vector<64x1xf32>
    %41 = vector.broadcast %40 : vector<64x1xf32> to vector<64x32xf32>
    %42 = arith.subf %34, %41 : vector<64x32xf32>
    %43 = arith.mulf %42, %42 : vector<64x32xf32>
    %cst_20 = arith.constant dense<0.000000e+00> : vector<64xf32>
    %44 = vector.multi_reduction <add>, %43, %cst_20 [1] : vector<64x32xf32> to vector<64xf32>
    %45 = vector.shape_cast %44 : vector<64xf32> to vector<64x1xf32>
    %cst_21 = arith.constant 3.200000e+01 : f32
    %46 = vector.broadcast %cst_21 : f32 to vector<64x1xf32>
    %47 = arith.divf %45, %46 : vector<64x1xf32>
    %48 = vector.broadcast %40 : vector<64x1xf32> to vector<64x32xf32>
    %49 = arith.subf %34, %48 : vector<64x32xf32>
    %cst_22 = arith.constant 9.99999974E-6 : f32
    %50 = vector.broadcast %cst_22 : f32 to vector<64x1xf32>
    %51 = arith.addf %47, %50 : vector<64x1xf32>
    %52 = math.rsqrt %51 : vector<64x1xf32>
    %53 = vector.broadcast %52 : vector<64x1xf32> to vector<64x32xf32>
    %54 = arith.mulf %49, %53 : vector<64x32xf32>
    %55 = vector.broadcast %35 : vector<1x32xf32> to vector<64x32xf32>
    %56 = arith.mulf %54, %55 : vector<64x32xf32>
    %57 = vector.broadcast %36 : vector<1x32xf32> to vector<64x32xf32>
    %58 = arith.addf %56, %57 : vector<64x32xf32>
    %59 = arith.truncf %58 : vector<64x32xf32> to vector<64x32xbf16>
    %c0_23 = arith.constant 0 : index
    %c0_24 = arith.constant 0 : index
    %60 = vector.load %arg8[%c0_23, %c0_24] : memref<32x128xbf16, #tpu.memory_space<vmem>>, vector<32x128xbf16>
    %cst_25 = arith.constant dense<0.000000e+00> : vector<64x128xf32>
    %61 = tpu.matmul %59, %60, %cst_25 {dimension_numbers = #tpu.dot_dimension_numbers<[1], [0], [0], [1], [0, 0, 1, 1], [], []>} : vector<64x32xbf16>, vector<32x128xbf16>, vector<64x128xf32> -> vector<64x128xf32>
    %c0_26 = arith.constant 0 : index
    %c0_27 = arith.constant 0 : index
    %62 = vector.load %arg9[%c0_26, %c0_27] : memref<1x128xf32, #tpu.memory_space<vmem>>, vector<1x128xf32>
    %63 = vector.broadcast %62 : vector<1x128xf32> to vector<64x128xf32>
    %64 = arith.addf %61, %63 : vector<64x128xf32>
    %65 = vector.shape_cast %64 : vector<64x128xf32> to vector<8x8x128xf32>
    %66 = tpu.iota {dimensions = array<i32: 2>} : vector<1x1x8xi32>
    %c5_i32 = arith.constant 5 : i32
    %67 = vector.broadcast %c5_i32 : i32 to vector<1x1x8xi32>
    %68 = arith.cmpi slt, %66, %67 : vector<1x1x8xi32>
    %cst_28 = arith.constant 0.000000e+00 : f32
    %cst_29 = arith.constant -1.000000e+30 : f32
    %69 = vector.broadcast %cst_28 : f32 to vector<1x1x8xf32>
    %70 = vector.broadcast %cst_29 : f32 to vector<1x1x8xf32>
    %71 = arith.select %68, %69, %70 : vector<1x1x8xi1>, vector<1x1x8xf32>
    %cst_30 = arith.constant 0.000000e+00 : f32
    %72 = vector.broadcast %cst_30 : f32 to vector<64x32xf32>
    %73 = vector.extract_strided_slice %65 {offsets = [0, 0, 0], sizes = [8, 8, 8], strides = [1, 1, 1]} : vector<8x8x128xf32> to vector<8x8x8xf32>
    %74 = vector.extract_strided_slice %65 {offsets = [0, 0, 32], sizes = [8, 8, 8], strides = [1, 1, 1]} : vector<8x8x128xf32> to vector<8x8x8xf32>
    %75 = vector.extract_strided_slice %65 {offsets = [0, 0, 64], sizes = [8, 8, 8], strides = [1, 1, 1]} : vector<8x8x128xf32> to vector<8x8x8xf32>
    "tpu.trace_start"() <{level = 10 : i32, message = "nqd,nkd->nqk"}> : () -> ()
    %cst_31 = arith.constant dense<0.000000e+00> : vector<8x8x8xf32>
    %76 = tpu.matmul %73, %74, %cst_31 {dimension_numbers = #tpu.dot_dimension_numbers<[2], [2], [1], [1], [0, 0, 0, 1, 1, 1], [0], [0]>} : vector<8x8x8xf32>, vector<8x8x8xf32>, vector<8x8x8xf32> -> vector<8x8x8xf32>
    "tpu.trace_stop"() : () -> ()
    %cst_32 = arith.constant 0.353553385 : f32
    %77 = vector.broadcast %cst_32 : f32 to vector<8x8x8xf32>
    %78 = arith.mulf %76, %77 : vector<8x8x8xf32>
    %79 = vector.broadcast %71 : vector<1x1x8xf32> to vector<8x8x8xf32>
    %80 = arith.addf %78, %79 : vector<8x8x8xf32>
    %cst_33 = arith.constant dense<0xFF800000> : vector<8x8xf32>
    %81 = vector.multi_reduction <maximumf>, %80, %cst_33 [2] : vector<8x8x8xf32> to vector<8x8xf32>
    %82 = vector.shape_cast %81 : vector<8x8xf32> to vector<8x8x1xf32>
    %83 = vector.broadcast %82 : vector<8x8x1xf32> to vector<8x8x8xf32>
    %84 = arith.subf %80, %83 : vector<8x8x8xf32>
    %85 = math.exp %84 : vector<8x8x8xf32>
    %cst_34 = arith.constant dense<0.000000e+00> : vector<8x8xf32>
    %86 = vector.multi_reduction <add>, %85, %cst_34 [2] : vector<8x8x8xf32> to vector<8x8xf32>
    %87 = vector.shape_cast %86 : vector<8x8xf32> to vector<8x8x1xf32>
    %88 = tpu.reciprocal %87 {approx = true} : vector<8x8x1xf32> -> vector<8x8x1xf32>
    %89 = vector.broadcast %88 : vector<8x8x1xf32> to vector<8x8x8xf32>
    %90 = arith.mulf %85, %89 : vector<8x8x8xf32>
    "tpu.trace_start"() <{level = 10 : i32, message = "nqk,nkd->nqd"}> : () -> ()
    %cst_35 = arith.constant dense<0.000000e+00> : vector<8x8x8xf32>
    %91 = tpu.matmul %90, %75, %cst_35 {dimension_numbers = #tpu.dot_dimension_numbers<[2], [1], [1], [2], [0, 0, 0, 1, 1, 2], [0], [0]>} : vector<8x8x8xf32>, vector<8x8x8xf32>, vector<8x8x8xf32> -> vector<8x8x8xf32>
    "tpu.trace_stop"() : () -> ()
    %92 = vector.shape_cast %91 : vector<8x8x8xf32> to vector<64x8xf32>
    %c0_36 = arith.constant 0 : index
    %c0_37 = arith.constant 0 : index
    %93 = vector.load %arg10[%c0_36, %c0_37] : memref<32x32xf32, #tpu.memory_space<vmem>>, vector<8x32xf32>
    %cst_38 = arith.constant dense<0.000000e+00> : vector<64x32xf32>
    %94 = tpu.matmul %92, %93, %cst_38 {dimension_numbers = #tpu.dot_dimension_numbers<[1], [0], [0], [1], [0, 0, 1, 1], [], []>} : vector<64x8xf32>, vector<8x32xf32>, vector<64x32xf32> -> vector<64x32xf32>
    %95 = arith.addf %72, %94 : vector<64x32xf32>
    %96 = vector.extract_strided_slice %65 {offsets = [0, 0, 8], sizes = [8, 8, 8], strides = [1, 1, 1]} : vector<8x8x128xf32> to vector<8x8x8xf32>
    %97 = vector.extract_strided_slice %65 {offsets = [0, 0, 40], sizes = [8, 8, 8], strides = [1, 1, 1]} : vector<8x8x128xf32> to vector<8x8x8xf32>
    %98 = vector.extract_strided_slice %65 {offsets = [0, 0, 72], sizes = [8, 8, 8], strides = [1, 1, 1]} : vector<8x8x128xf32> to vector<8x8x8xf32>
    "tpu.trace_start"() <{level = 10 : i32, message = "nqd,nkd->nqk"}> : () -> ()
    %cst_39 = arith.constant dense<0.000000e+00> : vector<8x8x8xf32>
    %99 = tpu.matmul %96, %97, %cst_39 {dimension_numbers = #tpu.dot_dimension_numbers<[2], [2], [1], [1], [0, 0, 0, 1, 1, 1], [0], [0]>} : vector<8x8x8xf32>, vector<8x8x8xf32>, vector<8x8x8xf32> -> vector<8x8x8xf32>
    "tpu.trace_stop"() : () -> ()
    %cst_40 = arith.constant 0.353553385 : f32
    %100 = vector.broadcast %cst_40 : f32 to vector<8x8x8xf32>
    %101 = arith.mulf %99, %100 : vector<8x8x8xf32>
    %102 = vector.broadcast %71 : vector<1x1x8xf32> to vector<8x8x8xf32>
    %103 = arith.addf %101, %102 : vector<8x8x8xf32>
    %cst_41 = arith.constant dense<0xFF800000> : vector<8x8xf32>
    %104 = vector.multi_reduction <maximumf>, %103, %cst_41 [2] : vector<8x8x8xf32> to vector<8x8xf32>
    %105 = vector.shape_cast %104 : vector<8x8xf32> to vector<8x8x1xf32>
    %106 = vector.broadcast %105 : vector<8x8x1xf32> to vector<8x8x8xf32>
    %107 = arith.subf %103, %106 : vector<8x8x8xf32>
    %108 = math.exp %107 : vector<8x8x8xf32>
    %cst_42 = arith.constant dense<0.000000e+00> : vector<8x8xf32>
    %109 = vector.multi_reduction <add>, %108, %cst_42 [2] : vector<8x8x8xf32> to vector<8x8xf32>
    %110 = vector.shape_cast %109 : vector<8x8xf32> to vector<8x8x1xf32>
    %111 = tpu.reciprocal %110 {approx = true} : vector<8x8x1xf32> -> vector<8x8x1xf32>
    %112 = vector.broadcast %111 : vector<8x8x1xf32> to vector<8x8x8xf32>
    %113 = arith.mulf %108, %112 : vector<8x8x8xf32>
    "tpu.trace_start"() <{level = 10 : i32, message = "nqk,nkd->nqd"}> : () -> ()
    %cst_43 = arith.constant dense<0.000000e+00> : vector<8x8x8xf32>
    %114 = tpu.matmul %113, %98, %cst_43 {dimension_numbers = #tpu.dot_dimension_numbers<[2], [1], [1], [2], [0, 0, 0, 1, 1, 2], [0], [0]>} : vector<8x8x8xf32>, vector<8x8x8xf32>, vector<8x8x8xf32> -> vector<8x8x8xf32>
    "tpu.trace_stop"() : () -> ()
    %115 = vector.shape_cast %114 : vector<8x8x8xf32> to vector<64x8xf32>
    %c8 = arith.constant 8 : index
    %c0_44 = arith.constant 0 : index
    %116 = vector.load %arg10[%c8, %c0_44] : memref<32x32xf32, #tpu.memory_space<vmem>>, vector<8x32xf32>
    %cst_45 = arith.constant dense<0.000000e+00> : vector<64x32xf32>
    %117 = tpu.matmul %115, %116, %cst_45 {dimension_numbers = #tpu.dot_dimension_numbers<[1], [0], [0], [1], [0, 0, 1, 1], [], []>} : vector<64x8xf32>, vector<8x32xf32>, vector<64x32xf32> -> vector<64x32xf32>
    %118 = arith.addf %95, %117 : vector<64x32xf32>
    %119 = vector.extract_strided_slice %65 {offsets = [0, 0, 16], sizes = [8, 8, 8], strides = [1, 1, 1]} : vector<8x8x128xf32> to vector<8x8x8xf32>
    %120 = vector.extract_strided_slice %65 {offsets = [0, 0, 48], sizes = [8, 8, 8], strides = [1, 1, 1]} : vector<8x8x128xf32> to vector<8x8x8xf32>
    %121 = vector.extract_strided_slice %65 {offsets = [0, 0, 80], sizes = [8, 8, 8], strides = [1, 1, 1]} : vector<8x8x128xf32> to vector<8x8x8xf32>
    "tpu.trace_start"() <{level = 10 : i32, message = "nqd,nkd->nqk"}> : () -> ()
    %cst_46 = arith.constant dense<0.000000e+00> : vector<8x8x8xf32>
    %122 = tpu.matmul %119, %120, %cst_46 {dimension_numbers = #tpu.dot_dimension_numbers<[2], [2], [1], [1], [0, 0, 0, 1, 1, 1], [0], [0]>} : vector<8x8x8xf32>, vector<8x8x8xf32>, vector<8x8x8xf32> -> vector<8x8x8xf32>
    "tpu.trace_stop"() : () -> ()
    %cst_47 = arith.constant 0.353553385 : f32
    %123 = vector.broadcast %cst_47 : f32 to vector<8x8x8xf32>
    %124 = arith.mulf %122, %123 : vector<8x8x8xf32>
    %125 = vector.broadcast %71 : vector<1x1x8xf32> to vector<8x8x8xf32>
    %126 = arith.addf %124, %125 : vector<8x8x8xf32>
    %cst_48 = arith.constant dense<0xFF800000> : vector<8x8xf32>
    %127 = vector.multi_reduction <maximumf>, %126, %cst_48 [2] : vector<8x8x8xf32> to vector<8x8xf32>
    %128 = vector.shape_cast %127 : vector<8x8xf32> to vector<8x8x1xf32>
    %129 = vector.broadcast %128 : vector<8x8x1xf32> to vector<8x8x8xf32>
    %130 = arith.subf %126, %129 : vector<8x8x8xf32>
    %131 = math.exp %130 : vector<8x8x8xf32>
    %cst_49 = arith.constant dense<0.000000e+00> : vector<8x8xf32>
    %132 = vector.multi_reduction <add>, %131, %cst_49 [2] : vector<8x8x8xf32> to vector<8x8xf32>
    %133 = vector.shape_cast %132 : vector<8x8xf32> to vector<8x8x1xf32>
    %134 = tpu.reciprocal %133 {approx = true} : vector<8x8x1xf32> -> vector<8x8x1xf32>
    %135 = vector.broadcast %134 : vector<8x8x1xf32> to vector<8x8x8xf32>
    %136 = arith.mulf %131, %135 : vector<8x8x8xf32>
    "tpu.trace_start"() <{level = 10 : i32, message = "nqk,nkd->nqd"}> : () -> ()
    %cst_50 = arith.constant dense<0.000000e+00> : vector<8x8x8xf32>
    %137 = tpu.matmul %136, %121, %cst_50 {dimension_numbers = #tpu.dot_dimension_numbers<[2], [1], [1], [2], [0, 0, 0, 1, 1, 2], [0], [0]>} : vector<8x8x8xf32>, vector<8x8x8xf32>, vector<8x8x8xf32> -> vector<8x8x8xf32>
    "tpu.trace_stop"() : () -> ()
    %138 = vector.shape_cast %137 : vector<8x8x8xf32> to vector<64x8xf32>
    %c16 = arith.constant 16 : index
    %c0_51 = arith.constant 0 : index
    %139 = vector.load %arg10[%c16, %c0_51] : memref<32x32xf32, #tpu.memory_space<vmem>>, vector<8x32xf32>
    %cst_52 = arith.constant dense<0.000000e+00> : vector<64x32xf32>
    %140 = tpu.matmul %138, %139, %cst_52 {dimension_numbers = #tpu.dot_dimension_numbers<[1], [0], [0], [1], [0, 0, 1, 1], [], []>} : vector<64x8xf32>, vector<8x32xf32>, vector<64x32xf32> -> vector<64x32xf32>
    %141 = arith.addf %118, %140 : vector<64x32xf32>
    %142 = vector.extract_strided_slice %65 {offsets = [0, 0, 24], sizes = [8, 8, 8], strides = [1, 1, 1]} : vector<8x8x128xf32> to vector<8x8x8xf32>
    %143 = vector.extract_strided_slice %65 {offsets = [0, 0, 56], sizes = [8, 8, 8], strides = [1, 1, 1]} : vector<8x8x128xf32> to vector<8x8x8xf32>
    %144 = vector.extract_strided_slice %65 {offsets = [0, 0, 88], sizes = [8, 8, 8], strides = [1, 1, 1]} : vector<8x8x128xf32> to vector<8x8x8xf32>
    "tpu.trace_start"() <{level = 10 : i32, message = "nqd,nkd->nqk"}> : () -> ()
    %cst_53 = arith.constant dense<0.000000e+00> : vector<8x8x8xf32>
    %145 = tpu.matmul %142, %143, %cst_53 {dimension_numbers = #tpu.dot_dimension_numbers<[2], [2], [1], [1], [0, 0, 0, 1, 1, 1], [0], [0]>} : vector<8x8x8xf32>, vector<8x8x8xf32>, vector<8x8x8xf32> -> vector<8x8x8xf32>
    "tpu.trace_stop"() : () -> ()
    %cst_54 = arith.constant 0.353553385 : f32
    %146 = vector.broadcast %cst_54 : f32 to vector<8x8x8xf32>
    %147 = arith.mulf %145, %146 : vector<8x8x8xf32>
    %148 = vector.broadcast %71 : vector<1x1x8xf32> to vector<8x8x8xf32>
    %149 = arith.addf %147, %148 : vector<8x8x8xf32>
    %cst_55 = arith.constant dense<0xFF800000> : vector<8x8xf32>
    %150 = vector.multi_reduction <maximumf>, %149, %cst_55 [2] : vector<8x8x8xf32> to vector<8x8xf32>
    %151 = vector.shape_cast %150 : vector<8x8xf32> to vector<8x8x1xf32>
    %152 = vector.broadcast %151 : vector<8x8x1xf32> to vector<8x8x8xf32>
    %153 = arith.subf %149, %152 : vector<8x8x8xf32>
    %154 = math.exp %153 : vector<8x8x8xf32>
    %cst_56 = arith.constant dense<0.000000e+00> : vector<8x8xf32>
    %155 = vector.multi_reduction <add>, %154, %cst_56 [2] : vector<8x8x8xf32> to vector<8x8xf32>
    %156 = vector.shape_cast %155 : vector<8x8xf32> to vector<8x8x1xf32>
    %157 = tpu.reciprocal %156 {approx = true} : vector<8x8x1xf32> -> vector<8x8x1xf32>
    %158 = vector.broadcast %157 : vector<8x8x1xf32> to vector<8x8x8xf32>
    %159 = arith.mulf %154, %158 : vector<8x8x8xf32>
    "tpu.trace_start"() <{level = 10 : i32, message = "nqk,nkd->nqd"}> : () -> ()
    %cst_57 = arith.constant dense<0.000000e+00> : vector<8x8x8xf32>
    %160 = tpu.matmul %159, %144, %cst_57 {dimension_numbers = #tpu.dot_dimension_numbers<[2], [1], [1], [2], [0, 0, 0, 1, 1, 2], [0], [0]>} : vector<8x8x8xf32>, vector<8x8x8xf32>, vector<8x8x8xf32> -> vector<8x8x8xf32>
    "tpu.trace_stop"() : () -> ()
    %161 = vector.shape_cast %160 : vector<8x8x8xf32> to vector<64x8xf32>
    %c24 = arith.constant 24 : index
    %c0_58 = arith.constant 0 : index
    %162 = vector.load %arg10[%c24, %c0_58] : memref<32x32xf32, #tpu.memory_space<vmem>>, vector<8x32xf32>
    %cst_59 = arith.constant dense<0.000000e+00> : vector<64x32xf32>
    %163 = tpu.matmul %161, %162, %cst_59 {dimension_numbers = #tpu.dot_dimension_numbers<[1], [0], [0], [1], [0, 0, 1, 1], [], []>} : vector<64x8xf32>, vector<8x32xf32>, vector<64x32xf32> -> vector<64x32xf32>
    %164 = arith.addf %141, %163 : vector<64x32xf32>
    %165 = arith.addf %34, %164 : vector<64x32xf32>
    %c0_60 = arith.constant 0 : index
    %c0_61 = arith.constant 0 : index
    %166 = vector.load %arg11[%c0_60, %c0_61] : memref<1x32xf32, #tpu.memory_space<vmem>>, vector<1x32xf32>
    %167 = vector.broadcast %166 : vector<1x32xf32> to vector<64x32xf32>
    %168 = arith.addf %165, %167 : vector<64x32xf32>
    %c0_62 = arith.constant 0 : index
    %c0_63 = arith.constant 0 : index
    %169 = vector.load %arg12[%c0_62, %c0_63] : memref<1x32xf32, #tpu.memory_space<vmem>>, vector<1x32xf32>
    %c0_64 = arith.constant 0 : index
    %c0_65 = arith.constant 0 : index
    %170 = vector.load %arg13[%c0_64, %c0_65] : memref<1x32xf32, #tpu.memory_space<vmem>>, vector<1x32xf32>
    %cst_66 = arith.constant dense<0.000000e+00> : vector<64xf32>
    %171 = vector.multi_reduction <add>, %168, %cst_66 [1] : vector<64x32xf32> to vector<64xf32>
    %172 = vector.shape_cast %171 : vector<64xf32> to vector<64x1xf32>
    %cst_67 = arith.constant 3.200000e+01 : f32
    %173 = vector.broadcast %cst_67 : f32 to vector<64x1xf32>
    %174 = arith.divf %172, %173 : vector<64x1xf32>
    %175 = vector.broadcast %174 : vector<64x1xf32> to vector<64x32xf32>
    %176 = arith.subf %168, %175 : vector<64x32xf32>
    %177 = arith.mulf %176, %176 : vector<64x32xf32>
    %cst_68 = arith.constant dense<0.000000e+00> : vector<64xf32>
    %178 = vector.multi_reduction <add>, %177, %cst_68 [1] : vector<64x32xf32> to vector<64xf32>
    %179 = vector.shape_cast %178 : vector<64xf32> to vector<64x1xf32>
    %cst_69 = arith.constant 3.200000e+01 : f32
    %180 = vector.broadcast %cst_69 : f32 to vector<64x1xf32>
    %181 = arith.divf %179, %180 : vector<64x1xf32>
    %182 = vector.broadcast %174 : vector<64x1xf32> to vector<64x32xf32>
    %183 = arith.subf %168, %182 : vector<64x32xf32>
    %cst_70 = arith.constant 9.99999974E-6 : f32
    %184 = vector.broadcast %cst_70 : f32 to vector<64x1xf32>
    %185 = arith.addf %181, %184 : vector<64x1xf32>
    %186 = math.rsqrt %185 : vector<64x1xf32>
    %187 = vector.broadcast %186 : vector<64x1xf32> to vector<64x32xf32>
    %188 = arith.mulf %183, %187 : vector<64x32xf32>
    %189 = vector.broadcast %169 : vector<1x32xf32> to vector<64x32xf32>
    %190 = arith.mulf %188, %189 : vector<64x32xf32>
    %191 = vector.broadcast %170 : vector<1x32xf32> to vector<64x32xf32>
    %192 = arith.addf %190, %191 : vector<64x32xf32>
    %193 = arith.truncf %192 : vector<64x32xf32> to vector<64x32xbf16>
    %c0_71 = arith.constant 0 : index
    %c0_72 = arith.constant 0 : index
    %194 = vector.load %arg14[%c0_71, %c0_72] : memref<32x128xbf16, #tpu.memory_space<vmem>>, vector<32x128xbf16>
    %cst_73 = arith.constant dense<0.000000e+00> : vector<64x128xf32>
    %195 = tpu.matmul %193, %194, %cst_73 {dimension_numbers = #tpu.dot_dimension_numbers<[1], [0], [0], [1], [0, 0, 1, 1], [], []>} : vector<64x32xbf16>, vector<32x128xbf16>, vector<64x128xf32> -> vector<64x128xf32>
    %c0_74 = arith.constant 0 : index
    %c0_75 = arith.constant 0 : index
    %196 = vector.load %arg15[%c0_74, %c0_75] : memref<1x128xf32, #tpu.memory_space<vmem>>, vector<1x128xf32>
    %197 = vector.broadcast %196 : vector<1x128xf32> to vector<64x128xf32>
    %198 = arith.addf %195, %197 : vector<64x128xf32>
    %cst_76 = arith.constant 1.702000e+00 : f32
    %199 = vector.broadcast %cst_76 : f32 to vector<64x128xf32>
    %200 = arith.mulf %199, %198 : vector<64x128xf32>
    %201 = arith.negf %200 : vector<64x128xf32>
    %202 = math.exp %201 : vector<64x128xf32>
    %cst_77 = arith.constant 1.000000e+00 : f32
    %203 = vector.broadcast %cst_77 : f32 to vector<64x128xf32>
    %204 = arith.addf %203, %202 : vector<64x128xf32>
    %205 = arith.divf %203, %204 : vector<64x128xf32>
    %206 = arith.mulf %198, %205 : vector<64x128xf32>
    %207 = arith.truncf %206 : vector<64x128xf32> to vector<64x128xbf16>
    %c0_78 = arith.constant 0 : index
    %c0_79 = arith.constant 0 : index
    %208 = vector.load %arg16[%c0_78, %c0_79] : memref<128x32xbf16, #tpu.memory_space<vmem>>, vector<128x32xbf16>
    %cst_80 = arith.constant dense<0.000000e+00> : vector<64x32xf32>
    %209 = tpu.matmul %207, %208, %cst_80 {dimension_numbers = #tpu.dot_dimension_numbers<[1], [0], [0], [1], [0, 0, 1, 1], [], []>} : vector<64x128xbf16>, vector<128x32xbf16>, vector<64x32xf32> -> vector<64x32xf32>
    %c0_81 = arith.constant 0 : index
    %c0_82 = arith.constant 0 : index
    %210 = vector.load %arg17[%c0_81, %c0_82] : memref<1x32xf32, #tpu.memory_space<vmem>>, vector<1x32xf32>
    %211 = vector.broadcast %210 : vector<1x32xf32> to vector<64x32xf32>
    %212 = arith.addf %209, %211 : vector<64x32xf32>
    %213 = arith.addf %168, %212 : vector<64x32xf32>
    %214 = tpu.iota {dimensions = array<i32: 1>} : vector<1x8x1xi32>
    %c0_i32 = arith.constant 0 : i32
    %215 = vector.broadcast %c0_i32 : i32 to vector<1x8x1xi32>
    %216 = arith.cmpi eq, %214, %215 : vector<1x8x1xi32>
    %217 = arith.extui %216 : vector<1x8x1xi1> to vector<1x8x1xi32>
    %218 = arith.sitofp %217 : vector<1x8x1xi32> to vector<1x8x1xf32>
    %219 = vector.shape_cast %213 : vector<64x32xf32> to vector<8x8x32xf32>
    %220 = vector.broadcast %218 : vector<1x8x1xf32> to vector<8x8x32xf32>
    %221 = arith.mulf %219, %220 : vector<8x8x32xf32>
    %cst_83 = arith.constant dense<0.000000e+00> : vector<8x32xf32>
    %222 = vector.multi_reduction <add>, %221, %cst_83 [1] : vector<8x8x32xf32> to vector<8x32xf32>
    %c0_84 = arith.constant 0 : index
    %c0_85 = arith.constant 0 : index
    %223 = vector.load %arg18[%c0_84, %c0_85] : memref<1x32xf32, #tpu.memory_space<vmem>>, vector<1x32xf32>
    %c0_86 = arith.constant 0 : index
    %c0_87 = arith.constant 0 : index
    %224 = vector.load %arg19[%c0_86, %c0_87] : memref<1x32xf32, #tpu.memory_space<vmem>>, vector<1x32xf32>
    %cst_88 = arith.constant dense<0.000000e+00> : vector<8xf32>
    %225 = vector.multi_reduction <add>, %222, %cst_88 [1] : vector<8x32xf32> to vector<8xf32>
    %226 = vector.shape_cast %225 : vector<8xf32> to vector<8x1xf32>
    %cst_89 = arith.constant 3.200000e+01 : f32
    %227 = vector.broadcast %cst_89 : f32 to vector<8x1xf32>
    %228 = arith.divf %226, %227 : vector<8x1xf32>
    %229 = vector.broadcast %228 : vector<8x1xf32> to vector<8x32xf32>
    %230 = arith.subf %222, %229 : vector<8x32xf32>
    %231 = arith.mulf %230, %230 : vector<8x32xf32>
    %cst_90 = arith.constant dense<0.000000e+00> : vector<8xf32>
    %232 = vector.multi_reduction <add>, %231, %cst_90 [1] : vector<8x32xf32> to vector<8xf32>
    %233 = vector.shape_cast %232 : vector<8xf32> to vector<8x1xf32>
    %cst_91 = arith.constant 3.200000e+01 : f32
    %234 = vector.broadcast %cst_91 : f32 to vector<8x1xf32>
    %235 = arith.divf %233, %234 : vector<8x1xf32>
    %236 = vector.broadcast %228 : vector<8x1xf32> to vector<8x32xf32>
    %237 = arith.subf %222, %236 : vector<8x32xf32>
    %cst_92 = arith.constant 9.99999974E-6 : f32
    %238 = vector.broadcast %cst_92 : f32 to vector<8x1xf32>
    %239 = arith.addf %235, %238 : vector<8x1xf32>
    %240 = math.rsqrt %239 : vector<8x1xf32>
    %241 = vector.broadcast %240 : vector<8x1xf32> to vector<8x32xf32>
    %242 = arith.mulf %237, %241 : vector<8x32xf32>
    %243 = vector.broadcast %223 : vector<1x32xf32> to vector<8x32xf32>
    %244 = arith.mulf %242, %243 : vector<8x32xf32>
    %245 = vector.broadcast %224 : vector<1x32xf32> to vector<8x32xf32>
    %246 = arith.addf %244, %245 : vector<8x32xf32>
    %247 = arith.truncf %246 : vector<8x32xf32> to vector<8x32xbf16>
    %c0_93 = arith.constant 0 : index
    %c0_94 = arith.constant 0 : index
    %248 = vector.load %arg20[%c0_93, %c0_94] : memref<32x128xbf16, #tpu.memory_space<vmem>>, vector<32x128xbf16>
    %cst_95 = arith.constant dense<0.000000e+00> : vector<8x128xf32>
    %249 = tpu.matmul %247, %248, %cst_95 {dimension_numbers = #tpu.dot_dimension_numbers<[1], [0], [0], [1], [0, 0, 1, 1], [], []>} : vector<8x32xbf16>, vector<32x128xbf16>, vector<8x128xf32> -> vector<8x128xf32>
    %c0_96 = arith.constant 0 : index
    %c0_97 = arith.constant 0 : index
    %250 = vector.load %arg21[%c0_96, %c0_97] : memref<8x128xf32, #tpu.memory_space<vmem>>, vector<8x128xf32>
    tpu.vector_store %arg21[%c0_96, %c0_97], %249 {strides = array<i32>} : memref<8x128xf32, #tpu.memory_space<vmem>>, vector<8x128xf32>,
    return
  }
  func.func @transform_0(%arg0: i32) -> (i32, i32) {
    %c0_i32 = arith.constant 0 : i32
    %c0_i32_0 = arith.constant 0 : i32
    return %arg0, %c0_i32 : i32, i32
  }
  func.func @transform_1(%arg0: i32) -> (i32, i32) {
    %c0_i32 = arith.constant 0 : i32
    %c0_i32_0 = arith.constant 0 : i32
    %c0_i32_1 = arith.constant 0 : i32
    return %c0_i32, %c0_i32_0 : i32, i32
  }
  func.func @transform_2(%arg0: i32) -> (i32, i32) {
    %c0_i32 = arith.constant 0 : i32
    %c0_i32_0 = arith.constant 0 : i32
    %c0_i32_1 = arith.constant 0 : i32
    return %c0_i32, %c0_i32_0 : i32, i32
  }
  func.func @transform_3(%arg0: i32) -> (i32, i32) {
    %c0_i32 = arith.constant 0 : i32
    %c0_i32_0 = arith.constant 0 : i32
    %c0_i32_1 = arith.constant 0 : i32
    return %c0_i32, %c0_i32_0 : i32, i32
  }
  func.func @transform_4(%arg0: i32) -> (i32, i32) {
    %c0_i32 = arith.constant 0 : i32
    %c0_i32_0 = arith.constant 0 : i32
    %c0_i32_1 = arith.constant 0 : i32
    return %c0_i32, %c0_i32_0 : i32, i32
  }
  func.func @transform_5(%arg0: i32) -> (i32, i32) {
    %c0_i32 = arith.constant 0 : i32
    %c0_i32_0 = arith.constant 0 : i32
    %c0_i32_1 = arith.constant 0 : i32
    return %c0_i32, %c0_i32_0 : i32, i32
  }
  func.func @transform_6(%arg0: i32) -> (i32, i32) {
    %c0_i32 = arith.constant 0 : i32
    %c0_i32_0 = arith.constant 0 : i32
    %c0_i32_1 = arith.constant 0 : i32
    return %c0_i32, %c0_i32_0 : i32, i32
  }
  func.func @transform_7(%arg0: i32) -> (i32, i32) {
    %c0_i32 = arith.constant 0 : i32
    %c0_i32_0 = arith.constant 0 : i32
    %c0_i32_1 = arith.constant 0 : i32
    return %c0_i32, %c0_i32_0 : i32, i32
  }
  func.func @transform_8(%arg0: i32) -> (i32, i32) {
    %c0_i32 = arith.constant 0 : i32
    %c0_i32_0 = arith.constant 0 : i32
    %c0_i32_1 = arith.constant 0 : i32
    return %c0_i32, %c0_i32_0 : i32, i32
  }
  func.func @transform_9(%arg0: i32) -> (i32, i32) {
    %c0_i32 = arith.constant 0 : i32
    %c0_i32_0 = arith.constant 0 : i32
    %c0_i32_1 = arith.constant 0 : i32
    return %c0_i32, %c0_i32_0 : i32, i32
  }
  func.func @transform_10(%arg0: i32) -> (i32, i32) {
    %c0_i32 = arith.constant 0 : i32
    %c0_i32_0 = arith.constant 0 : i32
    %c0_i32_1 = arith.constant 0 : i32
    return %c0_i32, %c0_i32_0 : i32, i32
  }
  func.func @transform_11(%arg0: i32) -> (i32, i32) {
    %c0_i32 = arith.constant 0 : i32
    %c0_i32_0 = arith.constant 0 : i32
    %c0_i32_1 = arith.constant 0 : i32
    return %c0_i32, %c0_i32_0 : i32, i32
  }
  func.func @transform_12(%arg0: i32) -> (i32, i32) {
    %c0_i32 = arith.constant 0 : i32
    %c0_i32_0 = arith.constant 0 : i32
    %c0_i32_1 = arith.constant 0 : i32
    return %c0_i32, %c0_i32_0 : i32, i32
  }
  func.func @transform_13(%arg0: i32) -> (i32, i32) {
    %c0_i32 = arith.constant 0 : i32
    %c0_i32_0 = arith.constant 0 : i32
    %c0_i32_1 = arith.constant 0 : i32
    return %c0_i32, %c0_i32_0 : i32, i32
  }
  func.func @transform_14(%arg0: i32) -> (i32, i32) {
    %c0_i32 = arith.constant 0 : i32
    %c0_i32_0 = arith.constant 0 : i32
    %c0_i32_1 = arith.constant 0 : i32
    return %c0_i32, %c0_i32_0 : i32, i32
  }
  func.func @transform_15(%arg0: i32) -> (i32, i32) {
    %c0_i32 = arith.constant 0 : i32
    %c0_i32_0 = arith.constant 0 : i32
    %c0_i32_1 = arith.constant 0 : i32
    return %c0_i32, %c0_i32_0 : i32, i32
  }
  func.func @transform_16(%arg0: i32) -> (i32, i32) {
    %c0_i32 = arith.constant 0 : i32
    %c0_i32_0 = arith.constant 0 : i32
    %c0_i32_1 = arith.constant 0 : i32
    return %c0_i32, %c0_i32_0 : i32, i32
  }
  func.func @transform_17(%arg0: i32) -> (i32, i32) {
    %c0_i32 = arith.constant 0 : i32
    %c0_i32_0 = arith.constant 0 : i32
    %c0_i32_1 = arith.constant 0 : i32
    return %c0_i32, %c0_i32_0 : i32, i32
  }
  func.func @transform_18(%arg0: i32) -> (i32, i32) {
    %c0_i32 = arith.constant 0 : i32
    %c0_i32_0 = arith.constant 0 : i32
    %c0_i32_1 = arith.constant 0 : i32
    return %c0_i32, %c0_i32_0 : i32, i32
  }
  func.func @transform_19(%arg0: i32) -> (i32, i32) {
    %c0_i32 = arith.constant 0 : i32
    %c0_i32_0 = arith.constant 0 : i32
    %c0_i32_1 = arith.constant 0 : i32
    return %c0_i32, %c0_i32_0 : i32, i32
  }
  func.func @transform_20(%arg0: i32) -> (i32, i32) {
    %c0_i32 = arith.constant 0 : i32
    %c0_i32_0 = arith.constant 0 : i32
    return %arg0, %c0_i32 : i32, i32
  }
}

</mosaic_0001>

<llo_original>
// kernel: clip_get_image_features.1
$region0: #{clip_get_image_features.1}
  #allocation0 [shape = 'u32[]', space=smem, size = 0x4, offset = 0x4, fixed_abs, tag = 'smem constant byte address 0x4 - core index']
  #allocation1 [shape = 'u32[144,128]{1,0:T(1,128)}', space=vmem, size = 0x12000, scoped, tag = 'internal scratch']
  %s0 = inlined_call_operand.vmem [shape: bf16[128,192], index: 0, kind: input, shape index: {}]
  %s1 = inlined_call_operand.vmem [shape: f32[8,32], index: 1, kind: input, shape index: {}]
  %s2 = inlined_call_operand.vmem [shape: bf16[192,32], index: 2, kind: input, shape index: {}]
  %s3 = inlined_call_operand.vmem [shape: f32[1,32], index: 3, kind: input, shape index: {}]
  %s4 = inlined_call_operand.vmem [shape: f32[1,32], index: 4, kind: input, shape index: {}]
  %s5 = inlined_call_operand.vmem [shape: f32[1,32], index: 5, kind: input, shape index: {}]
  %s6 = inlined_call_operand.vmem [shape: f32[1,32], index: 6, kind: input, shape index: {}]
  %s7 = inlined_call_operand.vmem [shape: bf16[32,128], index: 7, kind: input, shape index: {}]
  %s8 = inlined_call_operand.vmem [shape: f32[1,128], index: 8, kind: input, shape index: {}]
  %s9 = inlined_call_operand.vmem [shape: f32[32,32], index: 9, kind: input, shape index: {}]
  %s10 = inlined_call_operand.vmem [shape: f32[1,32], index: 10, kind: input, shape index: {}]
  %s11 = inlined_call_operand.vmem [shape: f32[1,32], index: 11, kind: input, shape index: {}]
  %s12 = inlined_call_operand.vmem [shape: f32[1,32], index: 12, kind: input, shape index: {}]
  %s13 = inlined_call_operand.vmem [shape: bf16[32,128], index: 13, kind: input, shape index: {}]
  %s14 = inlined_call_operand.vmem [shape: f32[1,128], index: 14, kind: input, shape index: {}]
  %s15 = inlined_call_operand.vmem [shape: bf16[128,32], index: 15, kind: input, shape index: {}]
  %s16 = inlined_call_operand.vmem [shape: f32[1,32], index: 16, kind: input, shape index: {}]
  %s17 = inlined_call_operand.vmem [shape: f32[1,32], index: 17, kind: input, shape index: {}]
  %s18 = inlined_call_operand.vmem [shape: f32[1,32], index: 18, kind: input, shape index: {}]
  %s19 = inlined_call_operand.vmem [shape: bf16[32,128], index: 19, kind: input, shape index: {}]
  %s20 = inlined_call_operand.hbm [shape: f32[16,128], index: 20, kind: output, shape index: {}]
  %s21 = sld [smem:[#allocation0]]
  $region113: #{clip_get_image_features.1} parent=0
    _
  %s23 = ssub.s32 1, %s21
  %s24 = scalar_select 0, %s23, %s21
  $region1: #{clip_get_image_features.1} parent=0
    #allocation2 [shape = 'u8[8192]{0}', space=vmem, size = 0x2000, scoped, tag = 'output window, operand 0']
    #allocation3 [shape = 's32[2]{0}', space=sflag, size = 0x8, scoped, tag = 'scoped memory for clip_get_image_features.1']
    %25 = vsyncpa [#allocation3], 0
    %s26 = scalar_lea.sflag [#allocation3], 1
    %27 = vsyncpa %s26, 0
    loop: start=0, step=1, limit=4
    $region2: #{clip_get_image_features.1} parent=1 // loop_pre_header
      _
    $region3: #{clip_get_image_features.1} parent=1 // loop_header
      %s29 = sphi 0, %s33
      %p30 = scmp.ge.s32.totalorder %s29, 4
      %s39 = sphi 0, %s41
      %s42 = sphi 0, %s39
      %s43 = sphi 0, %s42
      %s59 = sphi 0, %s43
      %s63 = sphi 0, %s63
      %s65 = sphi 0, %s63
      %s66 = sphi 0, %s65
      %s80 = sphi 0, %s66
      %s84 = sphi 0, %s84
      %s86 = sphi 0, %s84
      %s87 = sphi 0, %s86
      %s101 = sphi 0, %s87
      %s105 = sphi 0, %s105
      %s107 = sphi 0, %s105
      %s108 = sphi 0, %s107
      %s122 = sphi 0, %s108
      %s126 = sphi 0, %s126
      %s128 = sphi 0, %s126
      %s129 = sphi 0, %s128
      %s143 = sphi 0, %s129
      %s147 = sphi 0, %s147
      %s149 = sphi 0, %s147
      %s150 = sphi 0, %s149
      %s164 = sphi 0, %s150
      %s168 = sphi 0, %s168
      %s170 = sphi 0, %s168
      %s171 = sphi 0, %s170
      %s185 = sphi 0, %s171
      %s189 = sphi 0, %s189
      %s191 = sphi 0, %s189
      %s192 = sphi 0, %s191
      %s206 = sphi 0, %s192
      %s210 = sphi 0, %s210
      %s212 = sphi 0, %s210
      %s213 = sphi 0, %s212
      %s227 = sphi 0, %s213
      %s231 = sphi 0, %s231
      %s233 = sphi 0, %s231
      %s234 = sphi 0, %s233
      %s248 = sphi 0, %s234
      %s252 = sphi 0, %s252
      %s254 = sphi 0, %s252
      %s255 = sphi 0, %s254
      %s269 = sphi 0, %s255
      %s273 = sphi 0, %s273
      %s275 = sphi 0, %s273
      %s276 = sphi 0, %s275
      %s290 = sphi 0, %s276
      %s294 = sphi 0, %s294
      %s296 = sphi 0, %s294
      %s297 = sphi 0, %s296
      %s311 = sphi 0, %s297
      %s315 = sphi 0, %s315
      %s317 = sphi 0, %s315
      %s318 = sphi 0, %s317
      %s332 = sphi 0, %s318
      %s336 = sphi 0, %s336
      %s338 = sphi 0, %s336
      %s339 = sphi 0, %s338
      %s353 = sphi 0, %s339
      %s357 = sphi 0, %s357
      %s359 = sphi 0, %s357
      %s360 = sphi 0, %s359
      %s374 = sphi 0, %s360
      %s378 = sphi 0, %s378
      %s380 = sphi 0, %s378
      %s381 = sphi 0, %s380
      %s395 = sphi 0, %s381
      %s399 = sphi 0, %s399
      %s401 = sphi 0, %s399
      %s402 = sphi 0, %s401
      %s416 = sphi 0, %s402
      %s420 = sphi 0, %s420
      %s422 = sphi 0, %s420
      %s423 = sphi 0, %s422
      %s437 = sphi 0, %s423
      %s441 = sphi 0, %s441
      %s443 = sphi 0, %s441
      %s444 = sphi 0, %s443
      %s458 = sphi 0, %s444
      %s464 = sphi 0, %s466
      %s467 = sphi 0, %s464
      %s468 = sphi 0, %s467
      %s484 = sphi 0, %s468
    $region4: #{clip_get_image_features.1} parent=1 // loop_header_branch
      %32 = sbr.rel (%p30) target = $region8
    $region5: #{clip_get_image_features.1} parent=1 // loop_body
      %s34 = ssub.s32 %s29, 1
      %s35 = ssub.s32 %s29, 2
      %s36 = sadd.s32 %s29, 1
      %s37 = ssub.s32 %s29, %s36
      %p38 = scmp.eq.s32.totalorder %s37, 0
      %s40 = sadd.s32 %s39, 1
      %s41 = scalar_select %p38, %s39, %s40
      %p44 = pneg %p38
      %p45 = scmp.eq.s32.totalorder %s29, 1
      %p46 = por %p44, %p45
      %p47 = scmp.ne.s32.totalorder %s39, %s42
      %p48 = scmp.eq.s32.totalorder %s29, 0
      %p49 = por %p47, %p48
      %p50 = scmp.ne.s32.totalorder %s39, %s42
      %p51 = scmp.eq.s32.totalorder %s34, 1
      %p52 = por %p50, %p51
      %p53 = scmp.ne.s32.totalorder %s42, %s43
      %p54 = scmp.eq.s32.totalorder %s34, 0
      %p55 = por %p53, %p54
      %p56 = scmp.ne.s32.totalorder %s42, %s43
      %p57 = scmp.eq.s32.totalorder %s35, 1
      %p58 = por %p56, %p57
      %p60 = scmp.ne.s32.totalorder %s43, %s59
      %p61 = scmp.eq.s32.totalorder %s35, 0
      %p62 = por %p60, %p61
      %s64 = sadd.s32 %s63, 1
      %p67 = scmp.eq.s32.totalorder %s29, 1
      %p68 = scmp.ne.s32.totalorder %s63, %s65
      %p69 = scmp.eq.s32.totalorder %s29, 0
      %p70 = por %p68, %p69
      %p71 = scmp.ne.s32.totalorder %s63, %s65
      %p72 = scmp.eq.s32.totalorder %s34, 1
      %p73 = por %p71, %p72
      %p74 = scmp.ne.s32.totalorder %s65, %s66
      %p75 = scmp.eq.s32.totalorder %s34, 0
      %p76 = por %p74, %p75
      %p77 = scmp.ne.s32.totalorder %s65, %s66
      %p78 = scmp.eq.s32.totalorder %s35, 1
      %p79 = por %p77, %p78
      %p81 = scmp.ne.s32.totalorder %s66, %s80
      %p82 = scmp.eq.s32.totalorder %s35, 0
      %p83 = por %p81, %p82
      %s85 = sadd.s32 %s84, 1
      %p88 = scmp.eq.s32.totalorder %s29, 1
      %p89 = scmp.ne.s32.totalorder %s84, %s86
      %p90 = scmp.eq.s32.totalorder %s29, 0
      %p91 = por %p89, %p90
      %p92 = scmp.ne.s32.totalorder %s84, %s86
      %p93 = scmp.eq.s32.totalorder %s34, 1
      %p94 = por %p92, %p93
      %p95 = scmp.ne.s32.totalorder %s86, %s87
      %p96 = scmp.eq.s32.totalorder %s34, 0
      %p97 = por %p95, %p96
      %p98 = scmp.ne.s32.totalorder %s86, %s87
      %p99 = scmp.eq.s32.totalorder %s35, 1
      %p100 = por %p98, %p99
      %p102 = scmp.ne.s32.totalorder %s87, %s101
      %p103 = scmp.eq.s32.totalorder %s35, 0
      %p104 = por %p102, %p103
      %s106 = sadd.s32 %s105, 1
      %p109 = scmp.eq.s32.totalorder %s29, 1
      %p110 = scmp.ne.s32.totalorder %s105, %s107
      %p111 = scmp.eq.s32.totalorder %s29, 0
      %p112 = por %p110, %p111
      %p113 = scmp.ne.s32.totalorder %s105, %s107
      %p114 = scmp.eq.s32.totalorder %s34, 1
      %p115 = por %p113, %p114
      %p116 = scmp.ne.s32.totalorder %s107, %s108
      %p117 = scmp.eq.s32.totalorder %s34, 0
      %p118 = por %p116, %p117
      %p119 = scmp.ne.s32.totalorder %s107, %s108
      %p120 = scmp.eq.s32.totalorder %s35, 1
      %p121 = por %p119, %p120
      %p123 = scmp.ne.s32.totalorder %s108, %s122
      %p124 = scmp.eq.s32.totalorder %s35, 0
      %p125 = por %p123, %p124
      %s127 = sadd.s32 %s126, 1
      %p130 = scmp.eq.s32.totalorder %s29, 1
      %p131 = scmp.ne.s32.totalorder %s126, %s128
      %p132 = scmp.eq.s32.totalorder %s29, 0
      %p133 = por %p131, %p132
      %p134 = scmp.ne.s32.totalorder %s126, %s128
      %p135 = scmp.eq.s32.totalorder %s34, 1
      %p136 = por %p134, %p135
      %p137 = scmp.ne.s32.totalorder %s128, %s129
      %p138 = scmp.eq.s32.totalorder %s34, 0
      %p139 = por %p137, %p138
      %p140 = scmp.ne.s32.totalorder %s128, %s129
      %p141 = scmp.eq.s32.totalorder %s35, 1
      %p142 = por %p140, %p141
      %p144 = scmp.ne.s32.totalorder %s129, %s143
      %p145 = scmp.eq.s32.totalorder %s35, 0
      %p146 = por %p144, %p145
      %s148 = sadd.s32 %s147, 1
      %p151 = scmp.eq.s32.totalorder %s29, 1
      %p152 = scmp.ne.s32.totalorder %s147, %s149
      %p153 = scmp.eq.s32.totalorder %s29, 0
      %p154 = por %p152, %p153
      %p155 = scmp.ne.s32.totalorder %s147, %s149
      %p156 = scmp.eq.s32.totalorder %s34, 1
      %p157 = por %p155, %p156
      %p158 = scmp.ne.s32.totalorder %s149, %s150
      %p159 = scmp.eq.s32.totalorder %s34, 0
      %p160 = por %p158, %p159
      %p161 = scmp.ne.s32.totalorder %s149, %s150
      %p162 = scmp.eq.s32.totalorder %s35, 1
      %p163 = por %p161, %p162
      %p165 = scmp.ne.s32.totalorder %s150, %s164
      %p166 = scmp.eq.s32.totalorder %s35, 0
      %p167 = por %p165, %p166
      %s169 = sadd.s32 %s168, 1
      %p172 = scmp.eq.s32.totalorder %s29, 1
      %p173 = scmp.ne.s32.totalorder %s168, %s170
      %p174 = scmp.eq.s32.totalorder %s29, 0
      %p175 = por %p173, %p174
      %p176 = scmp.ne.s32.totalorder %s168, %s170
      %p177 = scmp.eq.s32.totalorder %s34, 1
      %p178 = por %p176, %p177
      %p179 = scmp.ne.s32.totalorder %s170, %s171
      %p180 = scmp.eq.s32.totalorder %s34, 0
      %p181 = por %p179, %p180
      %p182 = scmp.ne.s32.totalorder %s170, %s171
      %p183 = scmp.eq.s32.totalorder %s35, 1
      %p184 = por %p182, %p183
      %p186 = scmp.ne.s32.totalorder %s171, %s185
      %p187 = scmp.eq.s32.totalorder %s35, 0
      %p188 = por %p186, %p187
      %s190 = sadd.s32 %s189, 1
      %p193 = scmp.eq.s32.totalorder %s29, 1
      %p194 = scmp.ne.s32.totalorder %s189, %s191
      %p195 = scmp.eq.s32.totalorder %s29, 0
      %p196 = por %p194, %p195
      %p197 = scmp.ne.s32.totalorder %s189, %s191
      %p198 = scmp.eq.s32.totalorder %s34, 1
      %p199 = por %p197, %p198
      %p200 = scmp.ne.s32.totalorder %s191, %s192
      %p201 = scmp.eq.s32.totalorder %s34, 0
      %p202 = por %p200, %p201
      %p203 = scmp.ne.s32.totalorder %s191, %s192
      %p204 = scmp.eq.s32.totalorder %s35, 1
      %p205 = por %p203, %p204
      %p207 = scmp.ne.s32.totalorder %s192, %s206
      %p208 = scmp.eq.s32.totalorder %s35, 0
      %p209 = por %p207, %p208
      %s211 = sadd.s32 %s210, 1
      %p214 = scmp.eq.s32.totalorder %s29, 1
      %p215 = scmp.ne.s32.totalorder %s210, %s212
      %p216 = scmp.eq.s32.totalorder %s29, 0
      %p217 = por %p215, %p216
      %p218 = scmp.ne.s32.totalorder %s210, %s212
      %p219 = scmp.eq.s32.totalorder %s34, 1
      %p220 = por %p218, %p219
      %p221 = scmp.ne.s32.totalorder %s212, %s213
      %p222 = scmp.eq.s32.totalorder %s34, 0
      %p223 = por %p221, %p222
      %p224 = scmp.ne.s32.totalorder %s212, %s213
      %p225 = scmp.eq.s32.totalorder %s35, 1
      %p226 = por %p224, %p225
      %p228 = scmp.ne.s32.totalorder %s213, %s227
      %p229 = scmp.eq.s32.totalorder %s35, 0
      %p230 = por %p228, %p229
      %s232 = sadd.s32 %s231, 1
      %p235 = scmp.eq.s32.totalorder %s29, 1
      %p236 = scmp.ne.s32.totalorder %s231, %s233
      %p237 = scmp.eq.s32.totalorder %s29, 0
      %p238 = por %p236, %p237
      %p239 = scmp.ne.s32.totalorder %s231, %s233
      %p240 = scmp.eq.s32.totalorder %s34, 1
      %p241 = por %p239, %p240
      %p242 = scmp.ne.s32.totalorder %s233, %s234
      %p243 = scmp.eq.s32.totalorder %s34, 0
      %p244 = por %p242, %p243
      %p245 = scmp.ne.s32.totalorder %s233, %s234
      %p246 = scmp.eq.s32.totalorder %s35, 1
      %p247 = por %p245, %p246
      %p249 = scmp.ne.s32.totalorder %s234, %s248
      %p250 = scmp.eq.s32.totalorder %s35, 0
      %p251 = por %p249, %p250
      %s253 = sadd.s32 %s252, 1
      %p256 = scmp.eq.s32.totalorder %s29, 1
      %p257 = scmp.ne.s32.totalorder %s252, %s254
      %p258 = scmp.eq.s32.totalorder %s29, 0
      %p259 = por %p257, %p258
      %p260 = scmp.ne.s32.totalorder %s252, %s254
      %p261 = scmp.eq.s32.totalorder %s34, 1
      %p262 = por %p260, %p261
      %p263 = scmp.ne.s32.totalorder %s254, %s255
      %p264 = scmp.eq.s32.totalorder %s34, 0
      %p265 = por %p263, %p264
      %p266 = scmp.ne.s32.totalorder %s254, %s255
      %p267 = scmp.eq.s32.totalorder %s35, 1
      %p268 = por %p266, %p267
      %p270 = scmp.ne.s32.totalorder %s255, %s269
      %p271 = scmp.eq.s32.totalorder %s35, 0
      %p272 = por %p270, %p271
      %s274 = sadd.s32 %s273, 1
      %p277 = scmp.eq.s32.totalorder %s29, 1
      %p278 = scmp.ne.s32.totalorder %s273, %s275
      %p279 = scmp.eq.s32.totalorder %s29, 0
      %p280 = por %p278, %p279
      %p281 = scmp.ne.s32.totalorder %s273, %s275
      %p282 = scmp.eq.s32.totalorder %s34, 1
      %p283 = por %p281, %p282
      %p284 = scmp.ne.s32.totalorder %s275, %s276
      %p285 = scmp.eq.s32.totalorder %s34, 0
      %p286 = por %p284, %p285
      %p287 = scmp.ne.s32.totalorder %s275, %s276
      %p288 = scmp.eq.s32.totalorder %s35, 1
      %p289 = por %p287, %p288
      %p291 = scmp.ne.s32.totalorder %s276, %s290
      %p292 = scmp.eq.s32.totalorder %s35, 0
      %p293 = por %p291, %p292
      %s295 = sadd.s32 %s294, 1
      %p298 = scmp.eq.s32.totalorder %s29, 1
      %p299 = scmp.ne.s32.totalorder %s294, %s296
      %p300 = scmp.eq.s32.totalorder %s29, 0
      %p301 = por %p299, %p300
      %p302 = scmp.ne.s32.totalorder %s294, %s296
      %p303 = scmp.eq.s32.totalorder %s34, 1
      %p304 = por %p302, %p303
      %p305 = scmp.ne.s32.totalorder %s296, %s297
      %p306 = scmp.eq.s32.totalorder %s34, 0
      %p307 = por %p305, %p306
      %p308 = scmp.ne.s32.totalorder %s296, %s297
      %p309 = scmp.eq.s32.totalorder %s35, 1
      %p310 = por %p308, %p309
      %p312 = scmp.ne.s32.totalorder %s297, %s311
      %p313 = scmp.eq.s32.totalorder %s35, 0
      %p314 = por %p312, %p313
      %s316 = sadd.s32 %s315, 1
      %p319 = scmp.eq.s32.totalorder %s29, 1
      %p320 = scmp.ne.s32.totalorder %s315, %s317
      %p321 = scmp.eq.s32.totalorder %s29, 0
      %p322 = por %p320, %p321
      %p323 = scmp.ne.s32.totalorder %s315, %s317
      %p324 = scmp.eq.s32.totalorder %s34, 1
      %p325 = por %p323, %p324
      %p326 = scmp.ne.s32.totalorder %s317, %s318
      %p327 = scmp.eq.s32.totalorder %s34, 0
      %p328 = por %p326, %p327
      %p329 = scmp.ne.s32.totalorder %s317, %s318
      %p330 = scmp.eq.s32.totalorder %s35, 1
      %p331 = por %p329, %p330
      %p333 = scmp.ne.s32.totalorder %s318, %s332
      %p334 = scmp.eq.s32.totalorder %s35, 0
      %p335 = por %p333, %p334
      %s337 = sadd.s32 %s336, 1
      %p340 = scmp.eq.s32.totalorder %s29, 1
      %p341 = scmp.ne.s32.totalorder %s336, %s338
      %p342 = scmp.eq.s32.totalorder %s29, 0
      %p343 = por %p341, %p342
      %p344 = scmp.ne.s32.totalorder %s336, %s338
      %p345 = scmp.eq.s32.totalorder %s34, 1
      %p346 = por %p344, %p345
      %p347 = scmp.ne.s32.totalorder %s338, %s339
      %p348 = scmp.eq.s32.totalorder %s34, 0
      %p349 = por %p347, %p348
      %p350 = scmp.ne.s32.totalorder %s338, %s339
      %p351 = scmp.eq.s32.totalorder %s35, 1
      %p352 = por %p350, %p351
      %p354 = scmp.ne.s32.totalorder %s339, %s353
      %p355 = scmp.eq.s32.totalorder %s35, 0
      %p356 = por %p354, %p355
      %s358 = sadd.s32 %s357, 1
      %p361 = scmp.eq.s32.totalorder %s29, 1
      %p362 = scmp.ne.s32.totalorder %s357, %s359
      %p363 = scmp.eq.s32.totalorder %s29, 0
      %p364 = por %p362, %p363
      %p365 = scmp.ne.s32.totalorder %s357, %s359
      %p366 = scmp.eq.s32.totalorder %s34, 1
      %p367 = por %p365, %p366
      %p368 = scmp.ne.s32.totalorder %s359, %s360
      %p369 = scmp.eq.s32.totalorder %s34, 0
      %p370 = por %p368, %p369
      %p371 = scmp.ne.s32.totalorder %s359, %s360
      %p372 = scmp.eq.s32.totalorder %s35, 1
      %p373 = por %p371, %p372
      %p375 = scmp.ne.s32.totalorder %s360, %s374
      %p376 = scmp.eq.s32.totalorder %s35, 0
      %p377 = por %p375, %p376
      %s379 = sadd.s32 %s378, 1
      %p382 = scmp.eq.s32.totalorder %s29, 1
      %p383 = scmp.ne.s32.totalorder %s378, %s380
      %p384 = scmp.eq.s32.totalorder %s29, 0
      %p385 = por %p383, %p384
      %p386 = scmp.ne.s32.totalorder %s378, %s380
      %p387 = scmp.eq.s32.totalorder %s34, 1
      %p388 = por %p386, %p387
      %p389 = scmp.ne.s32.totalorder %s380, %s381
      %p390 = scmp.eq.s32.totalorder %s34, 0
      %p391 = por %p389, %p390
      %p392 = scmp.ne.s32.totalorder %s380, %s381
      %p393 = scmp.eq.s32.totalorder %s35, 1
      %p394 = por %p392, %p393
      %p396 = scmp.ne.s32.totalorder %s381, %s395
      %p397 = scmp.eq.s32.totalorder %s35, 0
      %p398 = por %p396, %p397
      %s400 = sadd.s32 %s399, 1
      %p403 = scmp.eq.s32.totalorder %s29, 1
      %p404 = scmp.ne.s32.totalorder %s399, %s401
      %p405 = scmp.eq.s32.totalorder %s29, 0
      %p406 = por %p404, %p405
      %p407 = scmp.ne.s32.totalorder %s399, %s401
      %p408 = scmp.eq.s32.totalorder %s34, 1
      %p409 = por %p407, %p408
      %p410 = scmp.ne.s32.totalorder %s401, %s402
      %p411 = scmp.eq.s32.totalorder %s34, 0
      %p412 = por %p410, %p411
      %p413 = scmp.ne.s32.totalorder %s401, %s402
      %p414 = scmp.eq.s32.totalorder %s35, 1
      %p415 = por %p413, %p414
      %p417 = scmp.ne.s32.totalorder %s402, %s416
      %p418 = scmp.eq.s32.totalorder %s35, 0
      %p419 = por %p417, %p418
      %s421 = sadd.s32 %s420, 1
      %p424 = scmp.eq.s32.totalorder %s29, 1
      %p425 = scmp.ne.s32.totalorder %s420, %s422
      %p426 = scmp.eq.s32.totalorder %s29, 0
      %p427 = por %p425, %p426
      %p428 = scmp.ne.s32.totalorder %s420, %s422
      %p429 = scmp.eq.s32.totalorder %s34, 1
      %p430 = por %p428, %p429
      %p431 = scmp.ne.s32.totalorder %s422, %s423
      %p432 = scmp.eq.s32.totalorder %s34, 0
      %p433 = por %p431, %p432
      %p434 = scmp.ne.s32.totalorder %s422, %s423
      %p435 = scmp.eq.s32.totalorder %s35, 1
      %p436 = por %p434, %p435
      %p438 = scmp.ne.s32.totalorder %s423, %s437
      %p439 = scmp.eq.s32.totalorder %s35, 0
      %p440 = por %p438, %p439
      %s442 = sadd.s32 %s441, 1
      %p445 = scmp.eq.s32.totalorder %s29, 1
      %p446 = scmp.ne.s32.totalorder %s441, %s443
      %p447 = scmp.eq.s32.totalorder %s29, 0
      %p448 = por %p446, %p447
      %p449 = scmp.ne.s32.totalorder %s441, %s443
      %p450 = scmp.eq.s32.totalorder %s34, 1
      %p451 = por %p449, %p450
      %p452 = scmp.ne.s32.totalorder %s443, %s444
      %p453 = scmp.eq.s32.totalorder %s34, 0
      %p454 = por %p452, %p453
      %p455 = scmp.ne.s32.totalorder %s443, %s444
      %p456 = scmp.eq.s32.totalorder %s35, 1
      %p457 = por %p455, %p456
      %p459 = scmp.ne.s32.totalorder %s444, %s458
      %p460 = scmp.eq.s32.totalorder %s35, 0
      %p461 = por %p459, %p460
      %s462 = ssub.s32 %s29, %s36
      %p463 = scmp.eq.s32.totalorder %s462, 0
      %s465 = sadd.s32 %s464, 1
      %s466 = scalar_select %p463, %s464, %s465
      %p469 = pneg %p463
      %p470 = scmp.eq.s32.totalorder %s29, 1
      %p471 = por %p469, %p470
      %p472 = scmp.ne.s32.totalorder %s464, %s467
      %p473 = scmp.eq.s32.totalorder %s29, 0
      %p474 = por %p472, %p473
      %p475 = scmp.ne.s32.totalorder %s464, %s467
      %p476 = scmp.eq.s32.totalorder %s34, 1
      %p477 = por %p475, %p476
      %p478 = scmp.ne.s32.totalorder %s467, %s468
      %p479 = scmp.eq.s32.totalorder %s34, 0
      %p480 = por %p478, %p479
      %p481 = scmp.ne.s32.totalorder %s467, %s468
      %p482 = scmp.eq.s32.totalorder %s35, 1
      %p483 = por %p481, %p482
      %p485 = scmp.ne.s32.totalorder %s468, %s484
      %p486 = scmp.eq.s32.totalorder %s35, 0
      %p487 = por %p485, %p486
      %p488 = scmp.le.s32.totalorder 1, %s29
      %p489 = scmp.lt.s32.totalorder %s29, 3
      %p490 = pnand %p488, %p489
      %p491 = pneg %p490
      // Predicated region
      $region9: #{clip_get_image_features.1} parent=5 // pred_check
        _
      $region10: #{clip_get_image_features.1} parent=5 // pred_check_branch
        %493 = sbr.rel (%p490) target = $region12
      $region11: #{clip_get_image_features.1} parent=5 // pred_region
        %s494 = ssub.s32 %s29, 1
        // Predicated region
        $region13: #{clip_get_image_features.1} parent=11 // pred_check
          %p495 = pneg %p76
        $region14: #{clip_get_image_features.1} parent=11 // pred_check_branch
          %497 = sbr.rel (%p495) target = $region16
        $region15: #{clip_get_image_features.1} parent=11 // pred_region
          _
        $region16: #{clip_get_image_features.1} parent=11 // pred_fallthru
          _
        // Predicated region
        $region17: #{clip_get_image_features.1} parent=11 // pred_check
          %p498 = pneg %p97
        $region18: #{clip_get_image_features.1} parent=11 // pred_check_branch
          %500 = sbr.rel (%p498) target = $region20
        $region19: #{clip_get_image_features.1} parent=11 // pred_region
          _
        $region20: #{clip_get_image_features.1} parent=11 // pred_fallthru
          _
        // Predicated region
        $region21: #{clip_get_image_features.1} parent=11 // pred_check
          %p501 = pneg %p118
        $region22: #{clip_get_image_features.1} parent=11 // pred_check_branch
          %503 = sbr.rel (%p501) target = $region24
        $region23: #{clip_get_image_features.1} parent=11 // pred_region
          _
        $region24: #{clip_get_image_features.1} parent=11 // pred_fallthru
          _
        // Predicated region
        $region25: #{clip_get_image_features.1} parent=11 // pred_check
          %p504 = pneg %p139
        $region26: #{clip_get_image_features.1} parent=11 // pred_check_branch
          %506 = sbr.rel (%p504) target = $region28
        $region27: #{clip_get_image_features.1} parent=11 // pred_region
          _
        $region28: #{clip_get_image_features.1} parent=11 // pred_fallthru
          _
        // Predicated region
        $region29: #{clip_get_image_features.1} parent=11 // pred_check
          %p507 = pneg %p160
        $region30: #{clip_get_image_features.1} parent=11 // pred_check_branch
          %509 = sbr.rel (%p507) target = $region32
        $region31: #{clip_get_image_features.1} parent=11 // pred_region
          _
        $region32: #{clip_get_image_features.1} parent=11 // pred_fallthru
          _
        // Predicated region
        $region33: #{clip_get_image_features.1} parent=11 // pred_check
          %p510 = pneg %p181
        $region34: #{clip_get_image_features.1} parent=11 // pred_check_branch
          %512 = sbr.rel (%p510) target = $region36
        $region35: #{clip_get_image_features.1} parent=11 // pred_region
          _
        $region36: #{clip_get_image_features.1} parent=11 // pred_fallthru
          _
        // Predicated region
        $region37: #{clip_get_image_features.1} parent=11 // pred_check
          %p513 = pneg %p202
        $region38: #{clip_get_image_features.1} parent=11 // pred_check_branch
          %515 = sbr.rel (%p513) target = $region40
        $region39: #{clip_get_image_features.1} parent=11 // pred_region
          _
        $region40: #{clip_get_image_features.1} parent=11 // pred_fallthru
          _
        // Predicated region
        $region41: #{clip_get_image_features.1} parent=11 // pred_check
          %p516 = pneg %p223
        $region42: #{clip_get_image_features.1} parent=11 // pred_check_branch
          %518 = sbr.rel (%p516) target = $region44
        $region43: #{clip_get_image_features.1} parent=11 // pred_region
          _
        $region44: #{clip_get_image_features.1} parent=11 // pred_fallthru
          _
        // Predicated region
        $region45: #{clip_get_image_features.1} parent=11 // pred_check
          %p519 = pneg %p244
        $region46: #{clip_get_image_features.1} parent=11 // pred_check_branch
          %521 = sbr.rel (%p519) target = $region48
        $region47: #{clip_get_image_features.1} parent=11 // pred_region
          _
        $region48: #{clip_get_image_features.1} parent=11 // pred_fallthru
          _
        // Predicated region
        $region49: #{clip_get_image_features.1} parent=11 // pred_check
          %p522 = pneg %p265
        $region50: #{clip_get_image_features.1} parent=11 // pred_check_branch
          %524 = sbr.rel (%p522) target = $region52
        $region51: #{clip_get_image_features.1} parent=11 // pred_region
          _
        $region52: #{clip_get_image_features.1} parent=11 // pred_fallthru
          _
        // Predicated region
        $region53: #{clip_get_image_features.1} parent=11 // pred_check
          %p525 = pneg %p286
        $region54: #{clip_get_image_features.1} parent=11 // pred_check_branch
          %527 = sbr.rel (%p525) target = $region56
        $region55: #{clip_get_image_features.1} parent=11 // pred_region
          _
        $region56: #{clip_get_image_features.1} parent=11 // pred_fallthru
          _
        // Predicated region
        $region57: #{clip_get_image_features.1} parent=11 // pred_check
          %p528 = pneg %p307
        $region58: #{clip_get_image_features.1} parent=11 // pred_check_branch
          %530 = sbr.rel (%p528) target = $region60
        $region59: #{clip_get_image_features.1} parent=11 // pred_region
          _
        $region60: #{clip_get_image_features.1} parent=11 // pred_fallthru
          _
        // Predicated region
        $region61: #{clip_get_image_features.1} parent=11 // pred_check
          %p531 = pneg %p328
        $region62: #{clip_get_image_features.1} parent=11 // pred_check_branch
          %533 = sbr.rel (%p531) target = $region64
        $region63: #{clip_get_image_features.1} parent=11 // pred_region
          _
        $region64: #{clip_get_image_features.1} parent=11 // pred_fallthru
          _
        // Predicated region
        $region65: #{clip_get_image_features.1} parent=11 // pred_check
          %p534 = pneg %p349
        $region66: #{clip_get_image_features.1} parent=11 // pred_check_branch
          %536 = sbr.rel (%p534) target = $region68
        $region67: #{clip_get_image_features.1} parent=11 // pred_region
          _
        $region68: #{clip_get_image_features.1} parent=11 // pred_fallthru
          _
        // Predicated region
        $region69: #{clip_get_image_features.1} parent=11 // pred_check
          %p537 = pneg %p370
        $region70: #{clip_get_image_features.1} parent=11 // pred_check_branch
          %539 = sbr.rel (%p537) target = $region72
        $region71: #{clip_get_image_features.1} parent=11 // pred_region
          _
        $region72: #{clip_get_image_features.1} parent=11 // pred_fallthru
          _
        // Predicated region
        $region73: #{clip_get_image_features.1} parent=11 // pred_check
          %p540 = pneg %p391
        $region74: #{clip_get_image_features.1} parent=11 // pred_check_branch
          %542 = sbr.rel (%p540) target = $region76
        $region75: #{clip_get_image_features.1} parent=11 // pred_region
          _
        $region76: #{clip_get_image_features.1} parent=11 // pred_fallthru
          _
        // Predicated region
        $region77: #{clip_get_image_features.1} parent=11 // pred_check
          %p543 = pneg %p412
        $region78: #{clip_get_image_features.1} parent=11 // pred_check_branch
          %545 = sbr.rel (%p543) target = $region80
        $region79: #{clip_get_image_features.1} parent=11 // pred_region
          _
        $region80: #{clip_get_image_features.1} parent=11 // pred_fallthru
          _
        // Predicated region
        $region81: #{clip_get_image_features.1} parent=11 // pred_check
          %p546 = pneg %p433
        $region82: #{clip_get_image_features.1} parent=11 // pred_check_branch
          %548 = sbr.rel (%p546) target = $region84
        $region83: #{clip_get_image_features.1} parent=11 // pred_region
          _
        $region84: #{clip_get_image_features.1} parent=11 // pred_fallthru
          _
        // Predicated region
        $region85: #{clip_get_image_features.1} parent=11 // pred_check
          %p549 = pneg %p454
        $region86: #{clip_get_image_features.1} parent=11 // pred_check_branch
          %551 = sbr.rel (%p549) target = $region88
        $region87: #{clip_get_image_features.1} parent=11 // pred_region
          _
        $region88: #{clip_get_image_features.1} parent=11 // pred_fallthru
          _
      $region12: #{clip_get_image_features.1} parent=5 // pred_fallthru
        _
      %p552 = scmp.lt.s32.totalorder %s29, 2
      // Predicated region
      $region89: #{clip_get_image_features.1} parent=5 // pred_check
        %p553 = pneg %p552
      $region90: #{clip_get_image_features.1} parent=5 // pred_check_branch
        %555 = sbr.rel (%p553) target = $region92
      $region91: #{clip_get_image_features.1} parent=5 // pred_region
        // Predicated region
        $region93: #{clip_get_image_features.1} parent=91 // pred_check
          %p556 = pneg %p49
        $region94: #{clip_get_image_features.1} parent=91 // pred_check_branch
          %558 = sbr.rel (%p556) target = $region96
        $region95: #{clip_get_image_features.1} parent=91 // pred_region
          %s559 = smul.u32 8, %s29
          %p560 = scmp.lt.s32.totalorder %s559, 15
          %s561 = scalar_select %p560, %s559, 15
          %s562 = smul.addr %s561, 2
          %s563 = smul.addr %s562, 4
          %s564 = scalar_lea.vmem %s0, %s563
          %s565 = smul.u32 8, %s29
        $region96: #{clip_get_image_features.1} parent=91 // pred_fallthru
          _
      $region92: #{clip_get_image_features.1} parent=5 // pred_fallthru
        _
      %p566 = scmp.le.s32.totalorder 1, %s29
      %p567 = scmp.lt.s32.totalorder %s29, 3
      %p568 = pnand %p566, %p567
      %p569 = pneg %p568
      // Predicated region
      $region97: #{clip_get_image_features.1} parent=5 // pred_check
        _
      $region98: #{clip_get_image_features.1} parent=5 // pred_check_branch
        %571 = sbr.rel (%p568) target = $region100
      $region99: #{clip_get_image_features.1} parent=5 // pred_region
        %s572 = ssub.s32 %s29, 1
        %s573 = smul.u32 8, %s34
        %p574 = scmp.lt.s32.totalorder %s573, 15
        %s575 = scalar_select %p574, %s573, 15
        %s576 = smul.addr %s575, 2
        %s577 = smul.addr %s576, 4
        %s578 = scalar_lea.vmem %s0, %s577
        %p579 = pneg %p55
        %p580 = pneg %p52
        %p581 = pneg %p76
        %p582 = pneg %p73
        %p583 = pneg %p97
        %p584 = pneg %p94
        %p585 = pneg %p118
        %p586 = pneg %p115
        %p587 = pneg %p139
        %p588 = pneg %p136
        %p589 = pneg %p160
        %p590 = pneg %p157
        %p591 = pneg %p181
        %p592 = pneg %p178
        %p593 = pneg %p202
        %p594 = pneg %p199
        %p595 = pneg %p223
        %p596 = pneg %p220
        %p597 = pneg %p244
        %p598 = pneg %p241
        %p599 = pneg %p265
        %p600 = pneg %p262
        %p601 = pneg %p286
        %p602 = pneg %p283
        %p603 = pneg %p307
        %p604 = pneg %p304
        %p605 = pneg %p328
        %p606 = pneg %p325
        %p607 = pneg %p349
        %p608 = pneg %p346
        %p609 = pneg %p370
        %p610 = pneg %p367
        %p611 = pneg %p391
        %p612 = pneg %p388
        %p613 = pneg %p412
        %p614 = pneg %p409
        %p615 = pneg %p433
        %p616 = pneg %p430
        %p617 = pneg %p454
        %p618 = pneg %p451
        %p619 = pneg %p480
        %p620 = pneg %p477
        %s621 = sand.u32 %s467, 1
        %s622 = scalar_lea.sflag [#allocation3], %s621
        %s623 = sand.u32 %s467, 1
        %s624 = smul.addr %s623, 8
        %s625 = scalar_lea.vmem [#allocation2], %s624
        %s626 = smul.u32 8, %s34
        %p627 = scmp.lt.s32.totalorder %s626, 15
        %s628 = scalar_select %p627, %s626, 15
        %s629 = smul.addr %s628, 2
        %s630 = smul.addr %s629, 4
        %s631 = scalar_lea.vmem %s0, %s630
        %s632 = smul.u32 8, %s34
        %v634 = vld [vmem:[%s631] sm:$0xff]
        %v635 = vld [vmem:[%s631 + $0x8] sm:$0xff]
        %v636 = vld [vmem:[%s631 + $0x10] sm:$0xff]
        %v637 = vld [vmem:[%s631 + $0x18] sm:$0xff]
        %v638 = vld [vmem:[%s631 + $0x20] sm:$0xff]
        %v639 = vld [vmem:[%s631 + $0x28] sm:$0xff]
        %v640 = vld [vmem:[%s631 + $0x30] sm:$0xff]
        %v641 = vld [vmem:[%s631 + $0x38] sm:$0xff]
        %v642 = vld [vmem:[%s2] sm:$0xf]
        %v643 = vld [vmem:[%s2 + $0x4] sm:$0xf]
        %v644 = vld [vmem:[%s2 + $0x8] sm:$0xf]
        %v645 = vld [vmem:[%s2 + $0xc] sm:$0xf]
        %v646 = vld [vmem:[%s2 + $0x10] sm:$0xf]
        %v647 = vld [vmem:[%s2 + $0x14] sm:$0xf]
        %v648 = vld [vmem:[%s2 + $0x18] sm:$0xf]
        %v649 = vld [vmem:[%s2 + $0x1c] sm:$0xf]
        %v650 = vld [vmem:[%s2 + $0x20] sm:$0xf]
        %v651 = vld [vmem:[%s2 + $0x24] sm:$0xf]
        %v652 = vld [vmem:[%s2 + $0x28] sm:$0xf]
        %v653 = vld [vmem:[%s2 + $0x2c] sm:$0xf]
        %v654 = vld [vmem:[%s2 + $0x30] sm:$0xf]
        %v655 = vld [vmem:[%s2 + $0x34] sm:$0xf]
        %v656 = vld [vmem:[%s2 + $0x38] sm:$0xf]
        %v657 = vld [vmem:[%s2 + $0x3c] sm:$0xf]
        %v658 = vld [vmem:[%s2 + $0x40] sm:$0xf]
        %v659 = vld [vmem:[%s2 + $0x44] sm:$0xf]
        %v660 = vld [vmem:[%s2 + $0x48] sm:$0xf]
        %v661 = vld [vmem:[%s2 + $0x4c] sm:$0xf]
        %v662 = vld [vmem:[%s2 + $0x50] sm:$0xf]
        %v663 = vld [vmem:[%s2 + $0x54] sm:$0xf]
        %v664 = vld [vmem:[%s2 + $0x58] sm:$0xf]
        %v665 = vld [vmem:[%s2 + $0x5c] sm:$0xf]
        %v674 = vunpack.c.l.b16 %v634
        %v675 = vunpack.c.h.b16 %v634
        %v676 = vunpack.c.l.b16 %v635
        %v677 = vunpack.c.h.b16 %v635
        %v678 = vunpack.c.l.b16 %v636
        %v679 = vunpack.c.h.b16 %v636
        %v680 = vunpack.c.l.b16 %v637
        %v681 = vunpack.c.h.b16 %v637
        %v682 = vunpack.c.l.b16 %v638
        %v683 = vunpack.c.h.b16 %v638
        %v684 = vunpack.c.l.b16 %v639
        %v685 = vunpack.c.h.b16 %v639
        %v686 = vunpack.c.l.b16 %v640
        %v687 = vunpack.c.h.b16 %v640
        %v688 = vunpack.c.l.b16 %v641
        %v689 = vunpack.c.h.b16 %v641
        %v690 = vpack.c.b16 %v676, %v674
        %v691 = vpack.c.b16 %v677, %v675
        %v692 = vpack.c.b16 %v680, %v678
        %v693 = vpack.c.b16 %v681, %v679
        %v694 = vpack.c.b16 %v684, %v682
        %v695 = vpack.c.b16 %v685, %v683
        %v696 = vpack.c.b16 %v688, %v686
        %v697 = vpack.c.b16 %v689, %v687
        %v726 = vunpack.c.l.b16 %v642
        %v727 = vunpack.c.l.b16 %v643
        %v728 = vunpack.c.l.b16 %v644
        %v729 = vunpack.c.l.b16 %v645
        %v730 = vunpack.c.l.b16 %v646
        %v731 = vunpack.c.l.b16 %v647
        %v732 = vunpack.c.l.b16 %v648
        %v733 = vunpack.c.l.b16 %v649
        %v734 = vunpack.c.l.b16 %v650
        %v735 = vunpack.c.l.b16 %v651
        %v736 = vunpack.c.l.b16 %v652
        %v737 = vunpack.c.l.b16 %v653
        %v738 = vunpack.c.l.b16 %v654
        %v739 = vunpack.c.l.b16 %v655
        %v740 = vunpack.c.l.b16 %v656
        %v741 = vunpack.c.l.b16 %v657
        %v742 = vunpack.c.l.b16 %v658
        %v743 = vunpack.c.l.b16 %v659
        %v744 = vunpack.c.l.b16 %v660
        %v745 = vunpack.c.l.b16 %v661
        %v746 = vunpack.c.l.b16 %v662
        %v747 = vunpack.c.l.b16 %v663
        %v748 = vunpack.c.l.b16 %v664
        %v749 = vunpack.c.l.b16 %v665
        %v750 = vpack.c.b16 %v727, %v726
        %v751 = vpack.c.b16 %v729, %v728
        %v752 = vpack.c.b16 %v731, %v730
        %v753 = vpack.c.b16 %v733, %v732
        %v754 = vpack.c.b16 %v735, %v734
        %v755 = vpack.c.b16 %v737, %v736
        %v756 = vpack.c.b16 %v739, %v738
        %v757 = vpack.c.b16 %v741, %v740
        %v758 = vpack.c.b16 %v743, %v742
        %v759 = vpack.c.b16 %v745, %v744
        %v760 = vpack.c.b16 %v747, %v746
        %v761 = vpack.c.b16 %v749, %v748
        %vm774 = vcmask 523264
        %v776 = vsel %vm774, %v691, 0
        %v779 = vsel %vm774, %v693, 0
        %v782 = vsel %vm774, %v695, 0
        %v785 = vsel %vm774, %v697, 0
        %787 = vmatprep.subr.bf16.mxu0 0
        %788 = vmatpush1.bf16.msra.mxu0 %v757
        %789 = vmatprep.subr.bf16.mxu0 0
        %790 = vmatpush1.bf16.msra.mxu0 %v756
        %791 = vmatprep.subr.bf16.mxu0 0
        %792 = vmatpush1.bf16.msra.mxu0 %v755
        %793 = vmatprep.subr.bf16.mxu0 0
        %794 = vmatpush1.bf16.msra.mxu0 %v754
        %795 = vmatprep.subr.bf16.mxu0 0
        %796 = vmatpush1.bf16.msra.mxu0 %v753
        %797 = vmatprep.subr.bf16.mxu0 0
        %798 = vmatpush1.bf16.msra.mxu0 %v752
        %799 = vmatprep.subr.bf16.mxu0 0
        %800 = vmatpush1.bf16.msra.mxu0 %v751
        %801 = vmatprep.subr.bf16.mxu0 0
        %802 = vmatpush1.bf16.msra.mxu0 %v750
        %803 = vmatprep.subr.bf16.mxu0 0
        %804 = vmatpush2.bf16.msra.mxu0 0
        %805 = vmatprep.subr.bf16.mxu0 0
        %806 = vmatpush2.bf16.msra.mxu0 0
        %807 = vmatprep.subr.bf16.mxu0 0
        %808 = vmatpush2.bf16.msra.mxu0 0
        %809 = vmatprep.subr.bf16.mxu0 0
        %810 = vmatpush2.bf16.msra.mxu0 0
        %811 = vmatprep.subr.bf16.mxu0 0
        %812 = vmatpush2.bf16.msra.mxu0 %v761
        %813 = vmatprep.subr.bf16.mxu0 0
        %814 = vmatpush2.bf16.msra.mxu0 %v760
        %815 = vmatprep.subr.bf16.mxu0 0
        %816 = vmatpush2.bf16.msra.mxu0 %v759
        %817 = vmatprep.subr.bf16.mxu0 0
        %818 = vmatpush2.bf16.msra.mxu0 %v758
        %819 = vmatprep.mubr.bf16.mxu0 %v776
        %820 = vmatmul.mubr.bf16.gmra.mxu0 %v690
        %v821 = vpop.f32.mrf.mxu0
        %v822 = vadd.f32 0.0, %v821
        %v823 = vpop.f32.mrf.mxu0
        %v824 = vpop.f32.mrf.mxu0
        %v825 = vadd.f32 0.0, %v824
        %v826 = vpop.f32.mrf.mxu0
        %827 = vmatprep.mubr.bf16.mxu0 %v779
        %828 = vmatmul.mubr.bf16.gmra.mxu0 %v692
        %v829 = vpop.f32.mrf.mxu0
        %v830 = vadd.f32 0.0, %v829
        %v831 = vpop.f32.mrf.mxu0
        %v832 = vpop.f32.mrf.mxu0
        %v833 = vadd.f32 0.0, %v832
        %v834 = vpop.f32.mrf.mxu0
        %835 = vmatprep.mubr.bf16.mxu0 %v782
        %836 = vmatmul.mubr.bf16.gmra.mxu0 %v694
        %v837 = vpop.f32.mrf.mxu0
        %v838 = vadd.f32 0.0, %v837
        %v839 = vpop.f32.mrf.mxu0
        %v840 = vpop.f32.mrf.mxu0
        %v841 = vadd.f32 0.0, %v840
        %v842 = vpop.f32.mrf.mxu0
        %843 = vmatprep.mubr.bf16.mxu0 %v785
        %844 = vmatmul.mubr.bf16.gmra.mxu0 %v696
        %v845 = vpop.f32.mrf.mxu0
        %v846 = vadd.f32 0.0, %v845
        %v847 = vpop.f32.mrf.mxu0
        %v848 = vpop.f32.mrf.mxu0
        %v849 = vadd.f32 0.0, %v848
        %v850 = vpop.f32.mrf.mxu0
        %851 = vdwg.mxu0
        %v852 = vld [vmem:[%s1] sm:$0xff]
        %v853 = vadd.f32 %v822, %v852
        %v854 = vadd.f32 %v825, %v852
        %v855 = vadd.f32 %v830, %v852
        %v856 = vadd.f32 %v833, %v852
        %v857 = vadd.f32 %v838, %v852
        %v858 = vadd.f32 %v841, %v852
        %v859 = vadd.f32 %v846, %v852
        %v860 = vadd.f32 %v849, %v852
        %v861 = vld [vmem:[%s3] sm:$0x1]
        %v862 = vld [vmem:[%s4] sm:$0x1]
        %vm863 = vcmask 261120
        %v864 = vsel %vm863, %v853, 0.0
        %865 = vadd.xlane.f32.xlu0 %v864
        %v866 = vpop.xlane.xlu0 %865
        %v867 = vsel %vm863, %v854, 0.0
        %868 = vadd.xlane.f32.xlu0 %v867
        %v869 = vpop.xlane.xlu0 %868
        %v870 = vsel %vm863, %v855, 0.0
        %871 = vadd.xlane.f32.xlu0 %v870
        %v872 = vpop.xlane.xlu0 %871
        %v873 = vsel %vm863, %v856, 0.0
        %874 = vadd.xlane.f32.xlu0 %v873
        %v875 = vpop.xlane.xlu0 %874
        %v876 = vsel %vm863, %v857, 0.0
        %877 = vadd.xlane.f32.xlu0 %v876
        %v878 = vpop.xlane.xlu0 %877
        %v879 = vsel %vm863, %v858, 0.0
        %880 = vadd.xlane.f32.xlu0 %v879
        %v881 = vpop.xlane.xlu0 %880
        %v882 = vsel %vm863, %v859, 0.0
        %883 = vadd.xlane.f32.xlu0 %v882
        %v884 = vpop.xlane.xlu0 %883
        %v885 = vsel %vm863, %v860, 0.0
        %886 = vadd.xlane.f32.xlu0 %v885
        %v887 = vpop.xlane.xlu0 %886
        %v888 = vrcp.pop 32.0
        %v889 = vmul.f32 %v866, %v888
        %v890 = vmul.f32 %v869, %v888
        %v891 = vmul.f32 %v872, %v888
        %v892 = vmul.f32 %v875, %v888
        %v893 = vmul.f32 %v878, %v888
        %v894 = vmul.f32 %v881, %v888
        %v895 = vmul.f32 %v884, %v888
        %v896 = vmul.f32 %v887, %v888
        %v897 = vsub.f32 %v853, %v889
        %v898 = vsub.f32 %v854, %v890
        %v899 = vsub.f32 %v855, %v891
        %v900 = vsub.f32 %v856, %v892
        %v901 = vsub.f32 %v857, %v893
        %v902 = vsub.f32 %v858, %v894
        %v903 = vsub.f32 %v859, %v895
        %v904 = vsub.f32 %v860, %v896
        %v905 = vmul.f32 %v897, %v897
        %v906 = vmul.f32 %v898, %v898
        %v907 = vmul.f32 %v899, %v899
        %v908 = vmul.f32 %v900, %v900
        %v909 = vmul.f32 %v901, %v901
        %v910 = vmul.f32 %v902, %v902
        %v911 = vmul.f32 %v903, %v903
        %v912 = vmul.f32 %v904, %v904
        %v913 = vsel %vm863, %v905, 0.0
        %914 = vadd.xlane.f32.xlu0 %v913
        %v915 = vpop.xlane.xlu0 %914
        %v916 = vsel %vm863, %v906, 0.0
        %917 = vadd.xlane.f32.xlu0 %v916
        %v918 = vpop.xlane.xlu0 %917
        %v919 = vsel %vm863, %v907, 0.0
        %920 = vadd.xlane.f32.xlu0 %v919
        %v921 = vpop.xlane.xlu0 %920
        %v922 = vsel %vm863, %v908, 0.0
        %923 = vadd.xlane.f32.xlu0 %v922
        %v924 = vpop.xlane.xlu0 %923
        %v925 = vsel %vm863, %v909, 0.0
        %926 = vadd.xlane.f32.xlu0 %v925
        %v927 = vpop.xlane.xlu0 %926
        %v928 = vsel %vm863, %v910, 0.0
        %929 = vadd.xlane.f32.xlu0 %v928
        %v930 = vpop.xlane.xlu0 %929
        %v931 = vsel %vm863, %v911, 0.0
        %932 = vadd.xlane.f32.xlu0 %v931
        %v933 = vpop.xlane.xlu0 %932
        %v934 = vsel %vm863, %v912, 0.0
        %935 = vadd.xlane.f32.xlu0 %v934
        %v936 = vpop.xlane.xlu0 %935
        %v937 = vmul.f32 %v915, %v888
        %v938 = vmul.f32 %v918, %v888
        %v939 = vmul.f32 %v921, %v888
        %v940 = vmul.f32 %v924, %v888
        %v941 = vmul.f32 %v927, %v888
        %v942 = vmul.f32 %v930, %v888
        %v943 = vmul.f32 %v933, %v888
        %v944 = vmul.f32 %v936, %v888
        %v945 = vadd.f32 %v937, 1e-05
        %v946 = vadd.f32 %v938, 1e-05
        %v947 = vadd.f32 %v939, 1e-05
        %v948 = vadd.f32 %v940, 1e-05
        %v949 = vadd.f32 %v941, 1e-05
        %v950 = vadd.f32 %v942, 1e-05
        %v951 = vadd.f32 %v943, 1e-05
        %v952 = vadd.f32 %v944, 1e-05
        %v953 = vrsqrt.pop %v945
        %v954 = vrsqrt.pop %v946
        %v955 = vrsqrt.pop %v947
        %v956 = vrsqrt.pop %v948
        %v957 = vrsqrt.pop %v949
        %v958 = vrsqrt.pop %v950
        %v959 = vrsqrt.pop %v951
        %v960 = vrsqrt.pop %v952
        %v961 = vmul.f32 %v897, %v953
        %v962 = vmul.f32 %v898, %v954
        %v963 = vmul.f32 %v899, %v955
        %v964 = vmul.f32 %v900, %v956
        %v965 = vmul.f32 %v901, %v957
        %v966 = vmul.f32 %v902, %v958
        %v967 = vmul.f32 %v903, %v959
        %v968 = vmul.f32 %v904, %v960
        %v970 = vlaneseq
        %v971 = vshrl.u32 %v970, 7
        %v972 = vsub.s32 0, %v971
        %v973 = vrot.slane %v861, %v972
        %v975 = vmul.f32 %v961, %v973
        %v976 = vmul.f32 %v962, %v973
        %v977 = vmul.f32 %v963, %v973
        %v978 = vmul.f32 %v964, %v973
        %v979 = vmul.f32 %v965, %v973
        %v980 = vmul.f32 %v966, %v973
        %v981 = vmul.f32 %v967, %v973
        %v982 = vmul.f32 %v968, %v973
        %v984 = vlaneseq
        %v985 = vshrl.u32 %v984, 7
        %v986 = vsub.s32 0, %v985
        %v987 = vrot.slane %v862, %v986
        %v989 = vadd.f32 %v975, %v987
        %v990 = vadd.f32 %v976, %v987
        %v991 = vadd.f32 %v977, %v987
        %v992 = vadd.f32 %v978, %v987
        %v993 = vadd.f32 %v979, %v987
        %v994 = vadd.f32 %v980, %v987
        %v995 = vadd.f32 %v981, %v987
        %v996 = vadd.f32 %v982, %v987
        %v997 = vld [vmem:[%s5] sm:$0x1]
        %v998 = vld [vmem:[%s6] sm:$0x1]
        %v999 = vsel %vm863, %v989, 0.0
        %1000 = vadd.xlane.f32.xlu0 %v999
        %v1001 = vpop.xlane.xlu0 %1000
        %v1002 = vsel %vm863, %v990, 0.0
        %1003 = vadd.xlane.f32.xlu0 %v1002
        %v1004 = vpop.xlane.xlu0 %1003
        %v1005 = vsel %vm863, %v991, 0.0
        %1006 = vadd.xlane.f32.xlu0 %v1005
        %v1007 = vpop.xlane.xlu0 %1006
        %v1008 = vsel %vm863, %v992, 0.0
        %1009 = vadd.xlane.f32.xlu0 %v1008
        %v1010 = vpop.xlane.xlu0 %1009
        %v1011 = vsel %vm863, %v993, 0.0
        %1012 = vadd.xlane.f32.xlu0 %v1011
        %v1013 = vpop.xlane.xlu0 %1012
        %v1014 = vsel %vm863, %v994, 0.0
        %1015 = vadd.xlane.f32.xlu0 %v1014
        %v1016 = vpop.xlane.xlu0 %1015
        %v1017 = vsel %vm863, %v995, 0.0
        %1018 = vadd.xlane.f32.xlu0 %v1017
        %v1019 = vpop.xlane.xlu0 %1018
        %v1020 = vsel %vm863, %v996, 0.0
        %1021 = vadd.xlane.f32.xlu0 %v1020
        %v1022 = vpop.xlane.xlu0 %1021
        %v1023 = vmul.f32 %v1001, %v888
        %v1024 = vmul.f32 %v1004, %v888
        %v1025 = vmul.f32 %v1007, %v888
        %v1026 = vmul.f32 %v1010, %v888
        %v1027 = vmul.f32 %v1013, %v888
        %v1028 = vmul.f32 %v1016, %v888
        %v1029 = vmul.f32 %v1019, %v888
        %v1030 = vmul.f32 %v1022, %v888
        %v1031 = vsub.f32 %v989, %v1023
        %v1032 = vsub.f32 %v990, %v1024
        %v1033 = vsub.f32 %v991, %v1025
        %v1034 = vsub.f32 %v992, %v1026
        %v1035 = vsub.f32 %v993, %v1027
        %v1036 = vsub.f32 %v994, %v1028
        %v1037 = vsub.f32 %v995, %v1029
        %v1038 = vsub.f32 %v996, %v1030
        %v1039 = vmul.f32 %v1031, %v1031
        %v1040 = vmul.f32 %v1032, %v1032
        %v1041 = vmul.f32 %v1033, %v1033
        %v1042 = vmul.f32 %v1034, %v1034
        %v1043 = vmul.f32 %v1035, %v1035
        %v1044 = vmul.f32 %v1036, %v1036
        %v1045 = vmul.f32 %v1037, %v1037
        %v1046 = vmul.f32 %v1038, %v1038
        %v1047 = vsel %vm863, %v1039, 0.0
        %1048 = vadd.xlane.f32.xlu0 %v1047
        %v1049 = vpop.xlane.xlu0 %1048
        %v1050 = vsel %vm863, %v1040, 0.0
        %1051 = vadd.xlane.f32.xlu0 %v1050
        %v1052 = vpop.xlane.xlu0 %1051
        %v1053 = vsel %vm863, %v1041, 0.0
        %1054 = vadd.xlane.f32.xlu0 %v1053
        %v1055 = vpop.xlane.xlu0 %1054
        %v1056 = vsel %vm863, %v1042, 0.0
        %1057 = vadd.xlane.f32.xlu0 %v1056
        %v1058 = vpop.xlane.xlu0 %1057
        %v1059 = vsel %vm863, %v1043, 0.0
        %1060 = vadd.xlane.f32.xlu0 %v1059
        %v1061 = vpop.xlane.xlu0 %1060
        %v1062 = vsel %vm863, %v1044, 0.0
        %1063 = vadd.xlane.f32.xlu0 %v1062
        %v1064 = vpop.xlane.xlu0 %1063
        %v1065 = vsel %vm863, %v1045, 0.0
        %1066 = vadd.xlane.f32.xlu0 %v1065
        %v1067 = vpop.xlane.xlu0 %1066
        %v1068 = vsel %vm863, %v1046, 0.0
        %1069 = vadd.xlane.f32.xlu0 %v1068
        %v1070 = vpop.xlane.xlu0 %1069
        %v1071 = vmul.f32 %v1049, %v888
        %v1072 = vmul.f32 %v1052, %v888
        %v1073 = vmul.f32 %v1055, %v888
        %v1074 = vmul.f32 %v1058, %v888
        %v1075 = vmul.f32 %v1061, %v888
        %v1076 = vmul.f32 %v1064, %v888
        %v1077 = vmul.f32 %v1067, %v888
        %v1078 = vmul.f32 %v1070, %v888
        %v1079 = vadd.f32 %v1071, 1e-05
        %v1080 = vadd.f32 %v1072, 1e-05
        %v1081 = vadd.f32 %v1073, 1e-05
        %v1082 = vadd.f32 %v1074, 1e-05
        %v1083 = vadd.f32 %v1075, 1e-05
        %v1084 = vadd.f32 %v1076, 1e-05
        %v1085 = vadd.f32 %v1077, 1e-05
        %v1086 = vadd.f32 %v1078, 1e-05
        %v1087 = vrsqrt.pop %v1079
        %v1088 = vrsqrt.pop %v1080
        %v1089 = vrsqrt.pop %v1081
        %v1090 = vrsqrt.pop %v1082
        %v1091 = vrsqrt.pop %v1083
        %v1092 = vrsqrt.pop %v1084
        %v1093 = vrsqrt.pop %v1085
        %v1094 = vrsqrt.pop %v1086
        %v1095 = vmul.f32 %v1031, %v1087
        %v1096 = vmul.f32 %v1032, %v1088
        %v1097 = vmul.f32 %v1033, %v1089
        %v1098 = vmul.f32 %v1034, %v1090
        %v1099 = vmul.f32 %v1035, %v1091
        %v1100 = vmul.f32 %v1036, %v1092
        %v1101 = vmul.f32 %v1037, %v1093
        %v1102 = vmul.f32 %v1038, %v1094
        %v1104 = vlaneseq
        %v1105 = vshrl.u32 %v1104, 7
        %v1106 = vsub.s32 0, %v1105
        %v1107 = vrot.slane %v997, %v1106
        %v1109 = vmul.f32 %v1095, %v1107
        %v1110 = vmul.f32 %v1096, %v1107
        %v1111 = vmul.f32 %v1097, %v1107
        %v1112 = vmul.f32 %v1098, %v1107
        %v1113 = vmul.f32 %v1099, %v1107
        %v1114 = vmul.f32 %v1100, %v1107
        %v1115 = vmul.f32 %v1101, %v1107
        %v1116 = vmul.f32 %v1102, %v1107
        %v1118 = vlaneseq
        %v1119 = vshrl.u32 %v1118, 7
        %v1120 = vsub.s32 0, %v1119
        %v1121 = vrot.slane %v998, %v1120
        %v1123 = vadd.f32 %v1109, %v1121
        %v1124 = vadd.f32 %v1110, %v1121
        %v1125 = vadd.f32 %v1111, %v1121
        %v1126 = vadd.f32 %v1112, %v1121
        %v1127 = vadd.f32 %v1113, %v1121
        %v1128 = vadd.f32 %v1114, %v1121
        %v1129 = vadd.f32 %v1115, %v1121
        %v1130 = vadd.f32 %v1116, %v1121
        %v1131 = vpack.c.bf16 %v1124, %v1123
        %v1132 = vpack.c.bf16 %v1126, %v1125
        %v1133 = vpack.c.bf16 %v1128, %v1127
        %v1134 = vpack.c.bf16 %v1130, %v1129
        %v1135 = vld [vmem:[%s7] sm:$0xf]
        %v1136 = vld [vmem:[%s7 + $0x4] sm:$0xf]
        %v1137 = vld [vmem:[%s7 + $0x8] sm:$0xf]
        %v1138 = vld [vmem:[%s7 + $0xc] sm:$0xf]
        %v1139 = vld [vmem:[%s8] sm:$0x1]
        %v1141 = vlaneseq
        %v1142 = vshrl.u32 %v1141, 7
        %v1143 = vsub.s32 0, %v1142
        %v1144 = vrot.slane %v1139, %v1143
        %v1150 = vunpack.c.l.b16 %v1135
        %v1151 = vunpack.c.l.b16 %v1136
        %v1152 = vunpack.c.l.b16 %v1137
        %v1153 = vunpack.c.l.b16 %v1138
        %v1154 = vpack.c.b16 %v1151, %v1150
        %v1155 = vpack.c.b16 %v1153, %v1152
        %v1159 = vsel %vm863, %v1131, 0
        %v1162 = vsel %vm863, %v1132, 0
        %v1165 = vsel %vm863, %v1133, 0
        %v1168 = vsel %vm863, %v1134, 0
        %1170 = vmatprep.subr.bf16.mxu0 0
        %1171 = vmatpush1.bf16.msra.mxu0 0
        %1172 = vmatprep.subr.bf16.mxu0 0
        %1173 = vmatpush1.bf16.msra.mxu0 0
        %1174 = vmatprep.subr.bf16.mxu0 0
        %1175 = vmatpush1.bf16.msra.mxu0 0
        %1176 = vmatprep.subr.bf16.mxu0 0
        %1177 = vmatpush1.bf16.msra.mxu0 0
        %1178 = vmatprep.subr.bf16.mxu0 0
        %1179 = vmatpush1.bf16.msra.mxu0 0
        %1180 = vmatprep.subr.bf16.mxu0 0
        %1181 = vmatpush1.bf16.msra.mxu0 0
        %1182 = vmatprep.subr.bf16.mxu0 0
        %1183 = vmatpush1.bf16.msra.mxu0 %v1155
        %1184 = vmatprep.subr.bf16.mxu0 0
        %1185 = vmatpush1.bf16.msra.mxu0 %v1154
        %1186 = vmatprep.subr.bf16.mxu0 0
        %1187 = vmatpush2.bf16.msra.mxu0 0
        %1188 = vmatprep.subr.bf16.mxu0 0
        %1189 = vmatpush2.bf16.msra.mxu0 0
        %1190 = vmatprep.subr.bf16.mxu0 0
        %1191 = vmatpush2.bf16.msra.mxu0 0
        %1192 = vmatprep.subr.bf16.mxu0 0
        %1193 = vmatpush2.bf16.msra.mxu0 0
        %1194 = vmatprep.subr.bf16.mxu0 0
        %1195 = vmatpush2.bf16.msra.mxu0 0
        %1196 = vmatprep.subr.bf16.mxu0 0
        %1197 = vmatpush2.bf16.msra.mxu0 0
        %1198 = vmatprep.subr.bf16.mxu0 0
        %1199 = vmatpush2.bf16.msra.mxu0 0
        %1200 = vmatprep.subr.bf16.mxu0 0
        %1201 = vmatpush2.bf16.msra.mxu0 0
        %1202 = vmatprep.mubr.bf16.mxu0 0
        %1203 = vmatmul.mubr.bf16.gmra.mxu0 %v1159
        %v1204 = vpop.f32.mrf.mxu0
        %v1205 = vadd.f32 %v1144, %v1204
        %v1206 = vpop.f32.mrf.mxu0
        %v1207 = vpop.f32.mrf.mxu0
        %v1208 = vadd.f32 %v1144, %v1207
        %v1209 = vpop.f32.mrf.mxu0
        %1210 = vmatprep.mubr.bf16.mxu0 0
        %1211 = vmatmul.mubr.bf16.gmra.mxu0 %v1162
        %v1212 = vpop.f32.mrf.mxu0
        %v1213 = vadd.f32 %v1144, %v1212
        %v1214 = vpop.f32.mrf.mxu0
        %v1215 = vpop.f32.mrf.mxu0
        %v1216 = vadd.f32 %v1144, %v1215
        %v1217 = vpop.f32.mrf.mxu0
        %1218 = vmatprep.mubr.bf16.mxu0 0
        %1219 = vmatmul.mubr.bf16.gmra.mxu0 %v1165
        %v1220 = vpop.f32.mrf.mxu0
        %v1221 = vadd.f32 %v1144, %v1220
        %v1222 = vpop.f32.mrf.mxu0
        %v1223 = vpop.f32.mrf.mxu0
        %v1224 = vadd.f32 %v1144, %v1223
        %v1225 = vpop.f32.mrf.mxu0
        %1226 = vmatprep.mubr.bf16.mxu0 0
        %1227 = vmatmul.mubr.bf16.gmra.mxu0 %v1168
        %v1228 = vpop.f32.mrf.mxu0
        %v1229 = vadd.f32 %v1144, %v1228
        %v1230 = vpop.f32.mrf.mxu0
        %v1231 = vpop.f32.mrf.mxu0
        %v1232 = vadd.f32 %v1144, %v1231
        %v1233 = vpop.f32.mrf.mxu0
        %1234 = vdwg.mxu0
        %v1235 = vlaneseq
        %v1236 = vand.u32 %v1235, 127
        %vm1237 = vcmp.lt.s32.totalorder %v1236, 5
        %v1238 = vsel %vm1237, 0.0, -1e+30
        %1240 = vrot.lane.b32.xlu0 %v1205, 96
        %v1241 = vpop.permute.xlu0 %1240
        %vm1242 = vcmask 64512
        %v1243 = vsel %vm1242, %v1205, 0
        %v1245 = vsel %vm1242, %v1241, 0
        %1247 = vmatprep.subr.mxu0 0.0
        %1248 = vmatpush1.xpose.msra.mxu0 0.0
        %1249 = vmatprep.subr.mxu0 0.0
        %1250 = vmatpush1.xpose.msra.mxu0 0.0
        %1251 = vmatprep.subr.mxu0 0.0
        %1252 = vmatpush1.xpose.msra.mxu0 0.0
        %1253 = vmatprep.subr.mxu0 0.0
        %1254 = vmatpush1.xpose.msra.mxu0 0.0
        %1255 = vmatprep.subr.mxu0 0.0
        %1256 = vmatpush1.xpose.msra.mxu0 0.0
        %1257 = vmatprep.subr.mxu0 0.0
        %1258 = vmatpush1.xpose.msra.mxu0 0.0
        %1259 = vmatprep.subr.mxu0 0.0
        %1260 = vmatpush1.xpose.msra.mxu0 0.0
        %1261 = vmatprep.subr.mxu0 0.0
        %1262 = vmatpush1.xpose.msra.mxu0 0.0
        %1263 = vmatprep.subr.mxu0 0.0
        %1264 = vmatpush1.xpose.msra.mxu0 0.0
        %1265 = vmatprep.subr.mxu0 0.0
        %1266 = vmatpush1.xpose.msra.mxu0 0.0
        %1267 = vmatprep.subr.mxu0 0.0
        %1268 = vmatpush1.xpose.msra.mxu0 0.0
        %1269 = vmatprep.subr.mxu0 0.0
        %1270 = vmatpush1.xpose.msra.mxu0 0.0
        %1271 = vmatprep.subr.mxu0 0.0
        %1272 = vmatpush1.xpose.msra.mxu0 0.0
        %1273 = vmatprep.subr.mxu0 0.0
        %1274 = vmatpush1.xpose.msra.mxu0 0.0
        %1275 = vmatprep.subr.mxu0 0.0
        %1276 = vmatpush1.xpose.msra.mxu0 0.0
        %1277 = vmatprep.subr.mxu0 0.0
        %1278 = vmatpush1.xpose.msra.mxu0 %v1245
        %1279 = vmatprep.subr.mxu0 0.0
        %1280 = vmatpush2.xpose.msra.mxu0 0.0
        %1281 = vmatprep.subr.mxu0 0.0
        %1282 = vmatpush2.xpose.msra.mxu0 0.0
        %1283 = vmatprep.subr.mxu0 0.0
        %1284 = vmatpush2.xpose.msra.mxu0 0.0
        %1285 = vmatprep.subr.mxu0 0.0
        %1286 = vmatpush2.xpose.msra.mxu0 0.0
        %1287 = vmatprep.subr.mxu0 0.0
        %1288 = vmatpush2.xpose.msra.mxu0 0.0
        %1289 = vmatprep.subr.mxu0 0.0
        %1290 = vmatpush2.xpose.msra.mxu0 0.0
        %1291 = vmatprep.subr.mxu0 0.0
        %1292 = vmatpush2.xpose.msra.mxu0 0.0
        %1293 = vmatprep.subr.mxu0 0.0
        %1294 = vmatpush2.xpose.msra.mxu0 0.0
        %1295 = vmatprep.subr.mxu0 0.0
        %1296 = vmatpush2.xpose.msra.mxu0 0.0
        %1297 = vmatprep.subr.mxu0 0.0
        %1298 = vmatpush2.xpose.msra.mxu0 0.0
        %1299 = vmatprep.subr.mxu0 0.0
        %1300 = vmatpush2.xpose.msra.mxu0 0.0
        %1301 = vmatprep.subr.mxu0 0.0
        %1302 = vmatpush2.xpose.msra.mxu0 0.0
        %1303 = vmatprep.subr.mxu0 0.0
        %1304 = vmatpush2.xpose.msra.mxu0 0.0
        %1305 = vmatprep.subr.mxu0 0.0
        %1306 = vmatpush2.xpose.msra.mxu0 0.0
        %1307 = vmatprep.subr.mxu0 0.0
        %1308 = vmatpush2.xpose.msra.mxu0 0.0
        %1309 = vmatprep.subr.mxu0 0.0
        %1310 = vmatpush2.xpose.msra.mxu0 0.0
        %1311 = vmatprep.mubr.f32.mxu0 0.0
        %1312 = vmatmul.mubr.f32.gmra.mxu0 %v1243
        %v1313 = vpop.f32.mrf.mxu0
        %v1314 = vadd.f32 0.0, %v1313
        %v1315 = vpop.f32.mrf.mxu0
        %1316 = vdwg.mxu0
        %1318 = vrot.lane.b32.xlu0 %v1208, 96
        %v1319 = vpop.permute.xlu0 %1318
        %v1320 = vsel %vm1242, %v1208, 0
        %v1322 = vsel %vm1242, %v1319, 0
        %1324 = vmatprep.subr.mxu0 0.0
        %1325 = vmatpush1.xpose.msra.mxu0 0.0
        %1326 = vmatprep.subr.mxu0 0.0
        %1327 = vmatpush1.xpose.msra.mxu0 0.0
        %1328 = vmatprep.subr.mxu0 0.0
        %1329 = vmatpush1.xpose.msra.mxu0 0.0
        %1330 = vmatprep.subr.mxu0 0.0
        %1331 = vmatpush1.xpose.msra.mxu0 0.0
        %1332 = vmatprep.subr.mxu0 0.0
        %1333 = vmatpush1.xpose.msra.mxu0 0.0
        %1334 = vmatprep.subr.mxu0 0.0
        %1335 = vmatpush1.xpose.msra.mxu0 0.0
        %1336 = vmatprep.subr.mxu0 0.0
        %1337 = vmatpush1.xpose.msra.mxu0 0.0
        %1338 = vmatprep.subr.mxu0 0.0
        %1339 = vmatpush1.xpose.msra.mxu0 0.0
        %1340 = vmatprep.subr.mxu0 0.0
        %1341 = vmatpush1.xpose.msra.mxu0 0.0
        %1342 = vmatprep.subr.mxu0 0.0
        %1343 = vmatpush1.xpose.msra.mxu0 0.0
        %1344 = vmatprep.subr.mxu0 0.0
        %1345 = vmatpush1.xpose.msra.mxu0 0.0
        %1346 = vmatprep.subr.mxu0 0.0
        %1347 = vmatpush1.xpose.msra.mxu0 0.0
        %1348 = vmatprep.subr.mxu0 0.0
        %1349 = vmatpush1.xpose.msra.mxu0 0.0
        %1350 = vmatprep.subr.mxu0 0.0
        %1351 = vmatpush1.xpose.msra.mxu0 0.0
        %1352 = vmatprep.subr.mxu0 0.0
        %1353 = vmatpush1.xpose.msra.mxu0 0.0
        %1354 = vmatprep.subr.mxu0 0.0
        %1355 = vmatpush1.xpose.msra.mxu0 %v1322
        %1356 = vmatprep.subr.mxu0 0.0
        %1357 = vmatpush2.xpose.msra.mxu0 0.0
        %1358 = vmatprep.subr.mxu0 0.0
        %1359 = vmatpush2.xpose.msra.mxu0 0.0
        %1360 = vmatprep.subr.mxu0 0.0
        %1361 = vmatpush2.xpose.msra.mxu0 0.0
        %1362 = vmatprep.subr.mxu0 0.0
        %1363 = vmatpush2.xpose.msra.mxu0 0.0
        %1364 = vmatprep.subr.mxu0 0.0
        %1365 = vmatpush2.xpose.msra.mxu0 0.0
        %1366 = vmatprep.subr.mxu0 0.0
        %1367 = vmatpush2.xpose.msra.mxu0 0.0
        %1368 = vmatprep.subr.mxu0 0.0
        %1369 = vmatpush2.xpose.msra.mxu0 0.0
        %1370 = vmatprep.subr.mxu0 0.0
        %1371 = vmatpush2.xpose.msra.mxu0 0.0
        %1372 = vmatprep.subr.mxu0 0.0
        %1373 = vmatpush2.xpose.msra.mxu0 0.0
        %1374 = vmatprep.subr.mxu0 0.0
        %1375 = vmatpush2.xpose.msra.mxu0 0.0
        %1376 = vmatprep.subr.mxu0 0.0
        %1377 = vmatpush2.xpose.msra.mxu0 0.0
        %1378 = vmatprep.subr.mxu0 0.0
        %1379 = vmatpush2.xpose.msra.mxu0 0.0
        %1380 = vmatprep.subr.mxu0 0.0
        %1381 = vmatpush2.xpose.msra.mxu0 0.0
        %1382 = vmatprep.subr.mxu0 0.0
        %1383 = vmatpush2.xpose.msra.mxu0 0.0
        %1384 = vmatprep.subr.mxu0 0.0
        %1385 = vmatpush2.xpose.msra.mxu0 0.0
        %1386 = vmatprep.subr.mxu0 0.0
        %1387 = vmatpush2.xpose.msra.mxu0 0.0
        %1388 = vmatprep.mubr.f32.mxu0 0.0
        %1389 = vmatmul.mubr.f32.gmra.mxu0 %v1320
        %v1390 = vpop.f32.mrf.mxu0
        %v1391 = vadd.f32 0.0, %v1390
        %v1392 = vpop.f32.mrf.mxu0
        %1393 = vdwg.mxu0
        %1395 = vrot.lane.b32.xlu0 %v1213, 96
        %v1396 = vpop.permute.xlu0 %1395
        %v1397 = vsel %vm1242, %v1213, 0
        %v1399 = vsel %vm1242, %v1396, 0
        %1401 = vmatprep.subr.mxu0 0.0
        %1402 = vmatpush1.xpose.msra.mxu0 0.0
        %1403 = vmatprep.subr.mxu0 0.0
        %1404 = vmatpush1.xpose.msra.mxu0 0.0
        %1405 = vmatprep.subr.mxu0 0.0
        %1406 = vmatpush1.xpose.msra.mxu0 0.0
        %1407 = vmatprep.subr.mxu0 0.0
        %1408 = vmatpush1.xpose.msra.mxu0 0.0
        %1409 = vmatprep.subr.mxu0 0.0
        %1410 = vmatpush1.xpose.msra.mxu0 0.0
        %1411 = vmatprep.subr.mxu0 0.0
        %1412 = vmatpush1.xpose.msra.mxu0 0.0
        %1413 = vmatprep.subr.mxu0 0.0
        %1414 = vmatpush1.xpose.msra.mxu0 0.0
        %1415 = vmatprep.subr.mxu0 0.0
        %1416 = vmatpush1.xpose.msra.mxu0 0.0
        %1417 = vmatprep.subr.mxu0 0.0
        %1418 = vmatpush1.xpose.msra.mxu0 0.0
        %1419 = vmatprep.subr.mxu0 0.0
        %1420 = vmatpush1.xpose.msra.mxu0 0.0
        %1421 = vmatprep.subr.mxu0 0.0
        %1422 = vmatpush1.xpose.msra.mxu0 0.0
        %1423 = vmatprep.subr.mxu0 0.0
        %1424 = vmatpush1.xpose.msra.mxu0 0.0
        %1425 = vmatprep.subr.mxu0 0.0
        %1426 = vmatpush1.xpose.msra.mxu0 0.0
        %1427 = vmatprep.subr.mxu0 0.0
        %1428 = vmatpush1.xpose.msra.mxu0 0.0
        %1429 = vmatprep.subr.mxu0 0.0
        %1430 = vmatpush1.xpose.msra.mxu0 0.0
        %1431 = vmatprep.subr.mxu0 0.0
        %1432 = vmatpush1.xpose.msra.mxu0 %v1399
        %1433 = vmatprep.subr.mxu0 0.0
        %1434 = vmatpush2.xpose.msra.mxu0 0.0
        %1435 = vmatprep.subr.mxu0 0.0
        %1436 = vmatpush2.xpose.msra.mxu0 0.0
        %1437 = vmatprep.subr.mxu0 0.0
        %1438 = vmatpush2.xpose.msra.mxu0 0.0
        %1439 = vmatprep.subr.mxu0 0.0
        %1440 = vmatpush2.xpose.msra.mxu0 0.0
        %1441 = vmatprep.subr.mxu0 0.0
        %1442 = vmatpush2.xpose.msra.mxu0 0.0
        %1443 = vmatprep.subr.mxu0 0.0
        %1444 = vmatpush2.xpose.msra.mxu0 0.0
        %1445 = vmatprep.subr.mxu0 0.0
        %1446 = vmatpush2.xpose.msra.mxu0 0.0
        %1447 = vmatprep.subr.mxu0 0.0
        %1448 = vmatpush2.xpose.msra.mxu0 0.0
        %1449 = vmatprep.subr.mxu0 0.0
        %1450 = vmatpush2.xpose.msra.mxu0 0.0
        %1451 = vmatprep.subr.mxu0 0.0
        %1452 = vmatpush2.xpose.msra.mxu0 0.0
        %1453 = vmatprep.subr.mxu0 0.0
        %1454 = vmatpush2.xpose.msra.mxu0 0.0
        %1455 = vmatprep.subr.mxu0 0.0
        %1456 = vmatpush2.xpose.msra.mxu0 0.0
        %1457 = vmatprep.subr.mxu0 0.0
        %1458 = vmatpush2.xpose.msra.mxu0 0.0
        %1459 = vmatprep.subr.mxu0 0.0
        %1460 = vmatpush2.xpose.msra.mxu0 0.0
        %1461 = vmatprep.subr.mxu0 0.0
        %1462 = vmatpush2.xpose.msra.mxu0 0.0
        %1463 = vmatprep.subr.mxu0 0.0
        %1464 = vmatpush2.xpose.msra.mxu0 0.0
        %1465 = vmatprep.mubr.f32.mxu0 0.0
        %1466 = vmatmul.mubr.f32.gmra.mxu0 %v1397
        %v1467 = vpop.f32.mrf.mxu0
        %v1468 = vadd.f32 0.0, %v1467
        %v1469 = vpop.f32.mrf.mxu0
        %1470 = vdwg.mxu0
        %1472 = vrot.lane.b32.xlu0 %v1216, 96
        %v1473 = vpop.permute.xlu0 %1472
        %v1474 = vsel %vm1242, %v1216, 0
        %v1476 = vsel %vm1242, %v1473, 0
        %1478 = vmatprep.subr.mxu0 0.0
        %1479 = vmatpush1.xpose.msra.mxu0 0.0
        %1480 = vmatprep.subr.mxu0 0.0
        %1481 = vmatpush1.xpose.msra.mxu0 0.0
        %1482 = vmatprep.subr.mxu0 0.0
        %1483 = vmatpush1.xpose.msra.mxu0 0.0
        %1484 = vmatprep.subr.mxu0 0.0
        %1485 = vmatpush1.xpose.msra.mxu0 0.0
        %1486 = vmatprep.subr.mxu0 0.0
        %1487 = vmatpush1.xpose.msra.mxu0 0.0
        %1488 = vmatprep.subr.mxu0 0.0
        %1489 = vmatpush1.xpose.msra.mxu0 0.0
        %1490 = vmatprep.subr.mxu0 0.0
        %1491 = vmatpush1.xpose.msra.mxu0 0.0
        %1492 = vmatprep.subr.mxu0 0.0
        %1493 = vmatpush1.xpose.msra.mxu0 0.0
        %1494 = vmatprep.subr.mxu0 0.0
        %1495 = vmatpush1.xpose.msra.mxu0 0.0
        %1496 = vmatprep.subr.mxu0 0.0
        %1497 = vmatpush1.xpose.msra.mxu0 0.0
        %1498 = vmatprep.subr.mxu0 0.0
        %1499 = vmatpush1.xpose.msra.mxu0 0.0
        %1500 = vmatprep.subr.mxu0 0.0
        %1501 = vmatpush1.xpose.msra.mxu0 0.0
        %1502 = vmatprep.subr.mxu0 0.0
        %1503 = vmatpush1.xpose.msra.mxu0 0.0
        %1504 = vmatprep.subr.mxu0 0.0
        %1505 = vmatpush1.xpose.msra.mxu0 0.0
        %1506 = vmatprep.subr.mxu0 0.0
        %1507 = vmatpush1.xpose.msra.mxu0 0.0
        %1508 = vmatprep.subr.mxu0 0.0
        %1509 = vmatpush1.xpose.msra.mxu0 %v1476
        %1510 = vmatprep.subr.mxu0 0.0
        %1511 = vmatpush2.xpose.msra.mxu0 0.0
        %1512 = vmatprep.subr.mxu0 0.0
        %1513 = vmatpush2.xpose.msra.mxu0 0.0
        %1514 = vmatprep.subr.mxu0 0.0
        %1515 = vmatpush2.xpose.msra.mxu0 0.0
        %1516 = vmatprep.subr.mxu0 0.0
        %1517 = vmatpush2.xpose.msra.mxu0 0.0
        %1518 = vmatprep.subr.mxu0 0.0
        %1519 = vmatpush2.xpose.msra.mxu0 0.0
        %1520 = vmatprep.subr.mxu0 0.0
        %1521 = vmatpush2.xpose.msra.mxu0 0.0
        %1522 = vmatprep.subr.mxu0 0.0
        %1523 = vmatpush2.xpose.msra.mxu0 0.0
        %1524 = vmatprep.subr.mxu0 0.0
        %1525 = vmatpush2.xpose.msra.mxu0 0.0
        %1526 = vmatprep.subr.mxu0 0.0
        %1527 = vmatpush2.xpose.msra.mxu0 0.0
        %1528 = vmatprep.subr.mxu0 0.0
        %1529 = vmatpush2.xpose.msra.mxu0 0.0
        %1530 = vmatprep.subr.mxu0 0.0
        %1531 = vmatpush2.xpose.msra.mxu0 0.0
        %1532 = vmatprep.subr.mxu0 0.0
        %1533 = vmatpush2.xpose.msra.mxu0 0.0
        %1534 = vmatprep.subr.mxu0 0.0
        %1535 = vmatpush2.xpose.msra.mxu0 0.0
        %1536 = vmatprep.subr.mxu0 0.0
        %1537 = vmatpush2.xpose.msra.mxu0 0.0
        %1538 = vmatprep.subr.mxu0 0.0
        %1539 = vmatpush2.xpose.msra.mxu0 0.0
        %1540 = vmatprep.subr.mxu0 0.0
        %1541 = vmatpush2.xpose.msra.mxu0 0.0
        %1542 = vmatprep.mubr.f32.mxu0 0.0
        %1543 = vmatmul.mubr.f32.gmra.mxu0 %v1474
        %v1544 = vpop.f32.mrf.mxu0
        %v1545 = vadd.f32 0.0, %v1544
        %v1546 = vpop.f32.mrf.mxu0
        %1547 = vdwg.mxu0
        %1549 = vrot.lane.b32.xlu0 %v1221, 96
        %v1550 = vpop.permute.xlu0 %1549
        %v1551 = vsel %vm1242, %v1221, 0
        %v1553 = vsel %vm1242, %v1550, 0
        %1555 = vmatprep.subr.mxu0 0.0
        %1556 = vmatpush1.xpose.msra.mxu0 0.0
        %1557 = vmatprep.subr.mxu0 0.0
        %1558 = vmatpush1.xpose.msra.mxu0 0.0
        %1559 = vmatprep.subr.mxu0 0.0
        %1560 = vmatpush1.xpose.msra.mxu0 0.0
        %1561 = vmatprep.subr.mxu0 0.0
        %1562 = vmatpush1.xpose.msra.mxu0 0.0
        %1563 = vmatprep.subr.mxu0 0.0
        %1564 = vmatpush1.xpose.msra.mxu0 0.0
        %1565 = vmatprep.subr.mxu0 0.0
        %1566 = vmatpush1.xpose.msra.mxu0 0.0
        %1567 = vmatprep.subr.mxu0 0.0
        %1568 = vmatpush1.xpose.msra.mxu0 0.0
        %1569 = vmatprep.subr.mxu0 0.0
        %1570 = vmatpush1.xpose.msra.mxu0 0.0
        %1571 = vmatprep.subr.mxu0 0.0
        %1572 = vmatpush1.xpose.msra.mxu0 0.0
        %1573 = vmatprep.subr.mxu0 0.0
        %1574 = vmatpush1.xpose.msra.mxu0 0.0
        %1575 = vmatprep.subr.mxu0 0.0
        %1576 = vmatpush1.xpose.msra.mxu0 0.0
        %1577 = vmatprep.subr.mxu0 0.0
        %1578 = vmatpush1.xpose.msra.mxu0 0.0
        %1579 = vmatprep.subr.mxu0 0.0
        %1580 = vmatpush1.xpose.msra.mxu0 0.0
        %1581 = vmatprep.subr.mxu0 0.0
        %1582 = vmatpush1.xpose.msra.mxu0 0.0
        %1583 = vmatprep.subr.mxu0 0.0
        %1584 = vmatpush1.xpose.msra.mxu0 0.0
        %1585 = vmatprep.subr.mxu0 0.0
        %1586 = vmatpush1.xpose.msra.mxu0 %v1553
        %1587 = vmatprep.subr.mxu0 0.0
        %1588 = vmatpush2.xpose.msra.mxu0 0.0
        %1589 = vmatprep.subr.mxu0 0.0
        %1590 = vmatpush2.xpose.msra.mxu0 0.0
        %1591 = vmatprep.subr.mxu0 0.0
        %1592 = vmatpush2.xpose.msra.mxu0 0.0
        %1593 = vmatprep.subr.mxu0 0.0
        %1594 = vmatpush2.xpose.msra.mxu0 0.0
        %1595 = vmatprep.subr.mxu0 0.0
        %1596 = vmatpush2.xpose.msra.mxu0 0.0
        %1597 = vmatprep.subr.mxu0 0.0
        %1598 = vmatpush2.xpose.msra.mxu0 0.0
        %1599 = vmatprep.subr.mxu0 0.0
        %1600 = vmatpush2.xpose.msra.mxu0 0.0
        %1601 = vmatprep.subr.mxu0 0.0
        %1602 = vmatpush2.xpose.msra.mxu0 0.0
        %1603 = vmatprep.subr.mxu0 0.0
        %1604 = vmatpush2.xpose.msra.mxu0 0.0
        %1605 = vmatprep.subr.mxu0 0.0
        %1606 = vmatpush2.xpose.msra.mxu0 0.0
        %1607 = vmatprep.subr.mxu0 0.0
        %1608 = vmatpush2.xpose.msra.mxu0 0.0
        %1609 = vmatprep.subr.mxu0 0.0
        %1610 = vmatpush2.xpose.msra.mxu0 0.0
        %1611 = vmatprep.subr.mxu0 0.0
        %1612 = vmatpush2.xpose.msra.mxu0 0.0
        %1613 = vmatprep.subr.mxu0 0.0
        %1614 = vmatpush2.xpose.msra.mxu0 0.0
        %1615 = vmatprep.subr.mxu0 0.0
        %1616 = vmatpush2.xpose.msra.mxu0 0.0
        %1617 = vmatprep.subr.mxu0 0.0
        %1618 = vmatpush2.xpose.msra.mxu0 0.0
        %1619 = vmatprep.mubr.f32.mxu0 0.0
        %1620 = vmatmul.mubr.f32.gmra.mxu0 %v1551
        %v1621 = vpop.f32.mrf.mxu0
        %v1622 = vadd.f32 0.0, %v1621
        %v1623 = vpop.f32.mrf.mxu0
        %1624 = vdwg.mxu0
        %1626 = vrot.lane.b32.xlu0 %v1224, 96
        %v1627 = vpop.permute.xlu0 %1626
        %v1628 = vsel %vm1242, %v1224, 0
        %v1630 = vsel %vm1242, %v1627, 0
        %1632 = vmatprep.subr.mxu0 0.0
        %1633 = vmatpush1.xpose.msra.mxu0 0.0
        %1634 = vmatprep.subr.mxu0 0.0
        %1635 = vmatpush1.xpose.msra.mxu0 0.0
        %1636 = vmatprep.subr.mxu0 0.0
        %1637 = vmatpush1.xpose.msra.mxu0 0.0
        %1638 = vmatprep.subr.mxu0 0.0
        %1639 = vmatpush1.xpose.msra.mxu0 0.0
        %1640 = vmatprep.subr.mxu0 0.0
        %1641 = vmatpush1.xpose.msra.mxu0 0.0
        %1642 = vmatprep.subr.mxu0 0.0
        %1643 = vmatpush1.xpose.msra.mxu0 0.0
        %1644 = vmatprep.subr.mxu0 0.0
        %1645 = vmatpush1.xpose.msra.mxu0 0.0
        %1646 = vmatprep.subr.mxu0 0.0
        %1647 = vmatpush1.xpose.msra.mxu0 0.0
        %1648 = vmatprep.subr.mxu0 0.0
        %1649 = vmatpush1.xpose.msra.mxu0 0.0
        %1650 = vmatprep.subr.mxu0 0.0
        %1651 = vmatpush1.xpose.msra.mxu0 0.0
        %1652 = vmatprep.subr.mxu0 0.0
        %1653 = vmatpush1.xpose.msra.mxu0 0.0
        %1654 = vmatprep.subr.mxu0 0.0
        %1655 = vmatpush1.xpose.msra.mxu0 0.0
        %1656 = vmatprep.subr.mxu0 0.0
        %1657 = vmatpush1.xpose.msra.mxu0 0.0
        %1658 = vmatprep.subr.mxu0 0.0
        %1659 = vmatpush1.xpose.msra.mxu0 0.0
        %1660 = vmatprep.subr.mxu0 0.0
        %1661 = vmatpush1.xpose.msra.mxu0 0.0
        %1662 = vmatprep.subr.mxu0 0.0
        %1663 = vmatpush1.xpose.msra.mxu0 %v1630
        %1664 = vmatprep.subr.mxu0 0.0
        %1665 = vmatpush2.xpose.msra.mxu0 0.0
        %1666 = vmatprep.subr.mxu0 0.0
        %1667 = vmatpush2.xpose.msra.mxu0 0.0
        %1668 = vmatprep.subr.mxu0 0.0
        %1669 = vmatpush2.xpose.msra.mxu0 0.0
        %1670 = vmatprep.subr.mxu0 0.0
        %1671 = vmatpush2.xpose.msra.mxu0 0.0
        %1672 = vmatprep.subr.mxu0 0.0
        %1673 = vmatpush2.xpose.msra.mxu0 0.0
        %1674 = vmatprep.subr.mxu0 0.0
        %1675 = vmatpush2.xpose.msra.mxu0 0.0
        %1676 = vmatprep.subr.mxu0 0.0
        %1677 = vmatpush2.xpose.msra.mxu0 0.0
        %1678 = vmatprep.subr.mxu0 0.0
        %1679 = vmatpush2.xpose.msra.mxu0 0.0
        %1680 = vmatprep.subr.mxu0 0.0
        %1681 = vmatpush2.xpose.msra.mxu0 0.0
        %1682 = vmatprep.subr.mxu0 0.0
        %1683 = vmatpush2.xpose.msra.mxu0 0.0
        %1684 = vmatprep.subr.mxu0 0.0
        %1685 = vmatpush2.xpose.msra.mxu0 0.0
        %1686 = vmatprep.subr.mxu0 0.0
        %1687 = vmatpush2.xpose.msra.mxu0 0.0
        %1688 = vmatprep.subr.mxu0 0.0
        %1689 = vmatpush2.xpose.msra.mxu0 0.0
        %1690 = vmatprep.subr.mxu0 0.0
        %1691 = vmatpush2.xpose.msra.mxu0 0.0
        %1692 = vmatprep.subr.mxu0 0.0
        %1693 = vmatpush2.xpose.msra.mxu0 0.0
        %1694 = vmatprep.subr.mxu0 0.0
        %1695 = vmatpush2.xpose.msra.mxu0 0.0
        %1696 = vmatprep.mubr.f32.mxu0 0.0
        %1697 = vmatmul.mubr.f32.gmra.mxu0 %v1628
        %v1698 = vpop.f32.mrf.mxu0
        %v1699 = vadd.f32 0.0, %v1698
        %v1700 = vpop.f32.mrf.mxu0
        %1701 = vdwg.mxu0
        %1703 = vrot.lane.b32.xlu0 %v1229, 96
        %v1704 = vpop.permute.xlu0 %1703
        %v1705 = vsel %vm1242, %v1229, 0
        %v1707 = vsel %vm1242, %v1704, 0
        %1709 = vmatprep.subr.mxu0 0.0
        %1710 = vmatpush1.xpose.msra.mxu0 0.0
        %1711 = vmatprep.subr.mxu0 0.0
        %1712 = vmatpush1.xpose.msra.mxu0 0.0
        %1713 = vmatprep.subr.mxu0 0.0
        %1714 = vmatpush1.xpose.msra.mxu0 0.0
        %1715 = vmatprep.subr.mxu0 0.0
        %1716 = vmatpush1.xpose.msra.mxu0 0.0
        %1717 = vmatprep.subr.mxu0 0.0
        %1718 = vmatpush1.xpose.msra.mxu0 0.0
        %1719 = vmatprep.subr.mxu0 0.0
        %1720 = vmatpush1.xpose.msra.mxu0 0.0
        %1721 = vmatprep.subr.mxu0 0.0
        %1722 = vmatpush1.xpose.msra.mxu0 0.0
        %1723 = vmatprep.subr.mxu0 0.0
        %1724 = vmatpush1.xpose.msra.mxu0 0.0
        %1725 = vmatprep.subr.mxu0 0.0
        %1726 = vmatpush1.xpose.msra.mxu0 0.0
        %1727 = vmatprep.subr.mxu0 0.0
        %1728 = vmatpush1.xpose.msra.mxu0 0.0
        %1729 = vmatprep.subr.mxu0 0.0
        %1730 = vmatpush1.xpose.msra.mxu0 0.0
        %1731 = vmatprep.subr.mxu0 0.0
        %1732 = vmatpush1.xpose.msra.mxu0 0.0
        %1733 = vmatprep.subr.mxu0 0.0
        %1734 = vmatpush1.xpose.msra.mxu0 0.0
        %1735 = vmatprep.subr.mxu0 0.0
        %1736 = vmatpush1.xpose.msra.mxu0 0.0
        %1737 = vmatprep.subr.mxu0 0.0
        %1738 = vmatpush1.xpose.msra.mxu0 0.0
        %1739 = vmatprep.subr.mxu0 0.0
        %1740 = vmatpush1.xpose.msra.mxu0 %v1707
        %1741 = vmatprep.subr.mxu0 0.0
        %1742 = vmatpush2.xpose.msra.mxu0 0.0
        %1743 = vmatprep.subr.mxu0 0.0
        %1744 = vmatpush2.xpose.msra.mxu0 0.0
        %1745 = vmatprep.subr.mxu0 0.0
        %1746 = vmatpush2.xpose.msra.mxu0 0.0
        %1747 = vmatprep.subr.mxu0 0.0
        %1748 = vmatpush2.xpose.msra.mxu0 0.0
        %1749 = vmatprep.subr.mxu0 0.0
        %1750 = vmatpush2.xpose.msra.mxu0 0.0
        %1751 = vmatprep.subr.mxu0 0.0
        %1752 = vmatpush2.xpose.msra.mxu0 0.0
        %1753 = vmatprep.subr.mxu0 0.0
        %1754 = vmatpush2.xpose.msra.mxu0 0.0
        %1755 = vmatprep.subr.mxu0 0.0
        %1756 = vmatpush2.xpose.msra.mxu0 0.0
        %1757 = vmatprep.subr.mxu0 0.0
        %1758 = vmatpush2.xpose.msra.mxu0 0.0
        %1759 = vmatprep.subr.mxu0 0.0
        %1760 = vmatpush2.xpose.msra.mxu0 0.0
        %1761 = vmatprep.subr.mxu0 0.0
        %1762 = vmatpush2.xpose.msra.mxu0 0.0
        %1763 = vmatprep.subr.mxu0 0.0
        %1764 = vmatpush2.xpose.msra.mxu0 0.0
        %1765 = vmatprep.subr.mxu0 0.0
        %1766 = vmatpush2.xpose.msra.mxu0 0.0
        %1767 = vmatprep.subr.mxu0 0.0
        %1768 = vmatpush2.xpose.msra.mxu0 0.0
        %1769 = vmatprep.subr.mxu0 0.0
        %1770 = vmatpush2.xpose.msra.mxu0 0.0
        %1771 = vmatprep.subr.mxu0 0.0
        %1772 = vmatpush2.xpose.msra.mxu0 0.0
        %1773 = vmatprep.mubr.f32.mxu0 0.0
        %1774 = vmatmul.mubr.f32.gmra.mxu0 %v1705
        %v1775 = vpop.f32.mrf.mxu0
        %v1776 = vadd.f32 0.0, %v1775
        %v1777 = vpop.f32.mrf.mxu0
        %1778 = vdwg.mxu0
        %1780 = vrot.lane.b32.xlu0 %v1232, 96
        %v1781 = vpop.permute.xlu0 %1780
        %v1782 = vsel %vm1242, %v1232, 0
        %v1784 = vsel %vm1242, %v1781, 0
        %1786 = vmatprep.subr.mxu0 0.0
        %1787 = vmatpush1.xpose.msra.mxu0 0.0
        %1788 = vmatprep.subr.mxu0 0.0
        %1789 = vmatpush1.xpose.msra.mxu0 0.0
        %1790 = vmatprep.subr.mxu0 0.0
        %1791 = vmatpush1.xpose.msra.mxu0 0.0
        %1792 = vmatprep.subr.mxu0 0.0
        %1793 = vmatpush1.xpose.msra.mxu0 0.0
        %1794 = vmatprep.subr.mxu0 0.0
        %1795 = vmatpush1.xpose.msra.mxu0 0.0
        %1796 = vmatprep.subr.mxu0 0.0
        %1797 = vmatpush1.xpose.msra.mxu0 0.0
        %1798 = vmatprep.subr.mxu0 0.0
        %1799 = vmatpush1.xpose.msra.mxu0 0.0
        %1800 = vmatprep.subr.mxu0 0.0
        %1801 = vmatpush1.xpose.msra.mxu0 0.0
        %1802 = vmatprep.subr.mxu0 0.0
        %1803 = vmatpush1.xpose.msra.mxu0 0.0
        %1804 = vmatprep.subr.mxu0 0.0
        %1805 = vmatpush1.xpose.msra.mxu0 0.0
        %1806 = vmatprep.subr.mxu0 0.0
        %1807 = vmatpush1.xpose.msra.mxu0 0.0
        %1808 = vmatprep.subr.mxu0 0.0
        %1809 = vmatpush1.xpose.msra.mxu0 0.0
        %1810 = vmatprep.subr.mxu0 0.0
        %1811 = vmatpush1.xpose.msra.mxu0 0.0
        %1812 = vmatprep.subr.mxu0 0.0
        %1813 = vmatpush1.xpose.msra.mxu0 0.0
        %1814 = vmatprep.subr.mxu0 0.0
        %1815 = vmatpush1.xpose.msra.mxu0 0.0
        %1816 = vmatprep.subr.mxu0 0.0
        %1817 = vmatpush1.xpose.msra.mxu0 %v1784
        %1818 = vmatprep.subr.mxu0 0.0
        %1819 = vmatpush2.xpose.msra.mxu0 0.0
        %1820 = vmatprep.subr.mxu0 0.0
        %1821 = vmatpush2.xpose.msra.mxu0 0.0
        %1822 = vmatprep.subr.mxu0 0.0
        %1823 = vmatpush2.xpose.msra.mxu0 0.0
        %1824 = vmatprep.subr.mxu0 0.0
        %1825 = vmatpush2.xpose.msra.mxu0 0.0
        %1826 = vmatprep.subr.mxu0 0.0
        %1827 = vmatpush2.xpose.msra.mxu0 0.0
        %1828 = vmatprep.subr.mxu0 0.0
        %1829 = vmatpush2.xpose.msra.mxu0 0.0
        %1830 = vmatprep.subr.mxu0 0.0
        %1831 = vmatpush2.xpose.msra.mxu0 0.0
        %1832 = vmatprep.subr.mxu0 0.0
        %1833 = vmatpush2.xpose.msra.mxu0 0.0
        %1834 = vmatprep.subr.mxu0 0.0
        %1835 = vmatpush2.xpose.msra.mxu0 0.0
        %1836 = vmatprep.subr.mxu0 0.0
        %1837 = vmatpush2.xpose.msra.mxu0 0.0
        %1838 = vmatprep.subr.mxu0 0.0
        %1839 = vmatpush2.xpose.msra.mxu0 0.0
        %1840 = vmatprep.subr.mxu0 0.0
        %1841 = vmatpush2.xpose.msra.mxu0 0.0
        %1842 = vmatprep.subr.mxu0 0.0
        %1843 = vmatpush2.xpose.msra.mxu0 0.0
        %1844 = vmatprep.subr.mxu0 0.0
        %1845 = vmatpush2.xpose.msra.mxu0 0.0
        %1846 = vmatprep.subr.mxu0 0.0
        %1847 = vmatpush2.xpose.msra.mxu0 0.0
        %1848 = vmatprep.subr.mxu0 0.0
        %1849 = vmatpush2.xpose.msra.mxu0 0.0
        %1850 = vmatprep.mubr.f32.mxu0 0.0
        %1851 = vmatmul.mubr.f32.gmra.mxu0 %v1782
        %v1852 = vpop.f32.mrf.mxu0
        %v1853 = vadd.f32 0.0, %v1852
        %v1854 = vpop.f32.mrf.mxu0
        %1855 = vdwg.mxu0
        %v1856 = vmul.f32 %v1314, 0.35355338
        %v1857 = vmul.f32 %v1391, 0.35355338
        %v1858 = vmul.f32 %v1468, 0.35355338
        %v1859 = vmul.f32 %v1545, 0.35355338
        %v1860 = vmul.f32 %v1622, 0.35355338
        %v1861 = vmul.f32 %v1699, 0.35355338
        %v1862 = vmul.f32 %v1776, 0.35355338
        %v1863 = vmul.f32 %v1853, 0.35355338
        %v1864 = vadd.f32 %v1856, %v1238
        %v1865 = vadd.f32 %v1857, %v1238
        %v1866 = vadd.f32 %v1858, %v1238
        %v1867 = vadd.f32 %v1859, %v1238
        %v1868 = vadd.f32 %v1860, %v1238
        %v1869 = vadd.f32 %v1861, %v1238
        %v1870 = vadd.f32 %v1862, %v1238
        %v1871 = vadd.f32 %v1863, %v1238
        %v1872 = vsel %vm1242, %v1864, -inf
        %1873 = vmax.xlane.f32.xlu0 %v1872
        %v1874 = vpop.xlane.xlu0 %1873
        %v1875 = vsel %vm1242, %v1865, -inf
        %1876 = vmax.xlane.f32.xlu0 %v1875
        %v1877 = vpop.xlane.xlu0 %1876
        %v1878 = vsel %vm1242, %v1866, -inf
        %1879 = vmax.xlane.f32.xlu0 %v1878
        %v1880 = vpop.xlane.xlu0 %1879
        %v1881 = vsel %vm1242, %v1867, -inf
        %1882 = vmax.xlane.f32.xlu0 %v1881
        %v1883 = vpop.xlane.xlu0 %1882
        %v1884 = vsel %vm1242, %v1868, -inf
        %1885 = vmax.xlane.f32.xlu0 %v1884
        %v1886 = vpop.xlane.xlu0 %1885
        %v1887 = vsel %vm1242, %v1869, -inf
        %1888 = vmax.xlane.f32.xlu0 %v1887
        %v1889 = vpop.xlane.xlu0 %1888
        %v1890 = vsel %vm1242, %v1870, -inf
        %1891 = vmax.xlane.f32.xlu0 %v1890
        %v1892 = vpop.xlane.xlu0 %1891
        %v1893 = vsel %vm1242, %v1871, -inf
        %1894 = vmax.xlane.f32.xlu0 %v1893
        %v1895 = vpop.xlane.xlu0 %1894
        %v1896 = vsub.f32 %v1864, %v1874
        %v1897 = vsub.f32 %v1865, %v1877
        %v1898 = vsub.f32 %v1866, %v1880
        %v1899 = vsub.f32 %v1867, %v1883
        %v1900 = vsub.f32 %v1868, %v1886
        %v1901 = vsub.f32 %v1869, %v1889
        %v1902 = vsub.f32 %v1870, %v1892
        %v1903 = vsub.f32 %v1871, %v1895
        %v1904 = vmul.f32 %v1896, 1.442695
        %v1905 = vpow.pop %v1904
        %v1906 = vmul.f32 %v1897, 1.442695
        %v1907 = vpow.pop %v1906
        %v1908 = vmul.f32 %v1898, 1.442695
        %v1909 = vpow.pop %v1908
        %v1910 = vmul.f32 %v1899, 1.442695
        %v1911 = vpow.pop %v1910
        %v1912 = vmul.f32 %v1900, 1.442695
        %v1913 = vpow.pop %v1912
        %v1914 = vmul.f32 %v1901, 1.442695
        %v1915 = vpow.pop %v1914
        %v1916 = vmul.f32 %v1902, 1.442695
        %v1917 = vpow.pop %v1916
        %v1918 = vmul.f32 %v1903, 1.442695
        %v1919 = vpow.pop %v1918
        %v1920 = vsel %vm1242, %v1905, 0.0
        %1921 = vadd.xlane.f32.xlu0 %v1920
        %v1922 = vpop.xlane.xlu0 %1921
        %v1923 = vsel %vm1242, %v1907, 0.0
        %1924 = vadd.xlane.f32.xlu0 %v1923
        %v1925 = vpop.xlane.xlu0 %1924
        %v1926 = vsel %vm1242, %v1909, 0.0
        %1927 = vadd.xlane.f32.xlu0 %v1926
        %v1928 = vpop.xlane.xlu0 %1927
        %v1929 = vsel %vm1242, %v1911, 0.0
        %1930 = vadd.xlane.f32.xlu0 %v1929
        %v1931 = vpop.xlane.xlu0 %1930
        %v1932 = vsel %vm1242, %v1913, 0.0
        %1933 = vadd.xlane.f32.xlu0 %v1932
        %v1934 = vpop.xlane.xlu0 %1933
        %v1935 = vsel %vm1242, %v1915, 0.0
        %1936 = vadd.xlane.f32.xlu0 %v1935
        %v1937 = vpop.xlane.xlu0 %1936
        %v1938 = vsel %vm1242, %v1917, 0.0
        %1939 = vadd.xlane.f32.xlu0 %v1938
        %v1940 = vpop.xlane.xlu0 %1939
        %v1941 = vsel %vm1242, %v1919, 0.0
        %1942 = vadd.xlane.f32.xlu0 %v1941
        %v1943 = vpop.xlane.xlu0 %1942
        %v1944 = vrcp.pop %v1922
        %v1945 = vrcp.pop %v1925
        %v1946 = vrcp.pop %v1928
        %v1947 = vrcp.pop %v1931
        %v1948 = vrcp.pop %v1934
        %v1949 = vrcp.pop %v1937
        %v1950 = vrcp.pop %v1940
        %v1951 = vrcp.pop %v1943
        %v1952 = vmul.f32 %v1905, %v1944
        %v1953 = vmul.f32 %v1907, %v1945
        %v1954 = vmul.f32 %v1909, %v1946
        %v1955 = vmul.f32 %v1911, %v1947
        %v1956 = vmul.f32 %v1913, %v1948
        %v1957 = vmul.f32 %v1915, %v1949
        %v1958 = vmul.f32 %v1917, %v1950
        %v1959 = vmul.f32 %v1919, %v1951
        %1960 = vrot.lane.b32.xlu0 %v1205, 64
        %v1961 = vpop.permute.xlu0 %1960
        %v1964 = vsel %vm1242, %v1952, 0
        %1966 = vmatprep.subr.mxu0 0.0
        %1967 = vmatpush1.msra.mxu0 0.0
        %1968 = vmatprep.subr.mxu0 0.0
        %1969 = vmatpush1.msra.mxu0 0.0
        %1970 = vmatprep.subr.mxu0 0.0
        %1971 = vmatpush1.msra.mxu0 0.0
        %1972 = vmatprep.subr.mxu0 0.0
        %1973 = vmatpush1.msra.mxu0 0.0
        %1974 = vmatprep.subr.mxu0 0.0
        %1975 = vmatpush1.msra.mxu0 0.0
        %1976 = vmatprep.subr.mxu0 0.0
        %1977 = vmatpush1.msra.mxu0 0.0
        %1978 = vmatprep.subr.mxu0 0.0
        %1979 = vmatpush1.msra.mxu0 0.0
        %1980 = vmatprep.subr.mxu0 0.0
        %1981 = vmatpush1.msra.mxu0 0.0
        %1982 = vmatprep.subr.mxu0 0.0
        %1983 = vmatpush1.msra.mxu0 0.0
        %1984 = vmatprep.subr.mxu0 0.0
        %1985 = vmatpush1.msra.mxu0 0.0
        %1986 = vmatprep.subr.mxu0 0.0
        %1987 = vmatpush1.msra.mxu0 0.0
        %1988 = vmatprep.subr.mxu0 0.0
        %1989 = vmatpush1.msra.mxu0 0.0
        %1990 = vmatprep.subr.mxu0 0.0
        %1991 = vmatpush1.msra.mxu0 0.0
        %1992 = vmatprep.subr.mxu0 0.0
        %1993 = vmatpush1.msra.mxu0 0.0
        %1994 = vmatprep.subr.mxu0 0.0
        %1995 = vmatpush1.msra.mxu0 0.0
        %1996 = vmatprep.subr.mxu0 0.0
        %1997 = vmatpush1.msra.mxu0 %v1961
        %1998 = vmatprep.subr.mxu0 0.0
        %1999 = vmatpush2.msra.mxu0 0.0
        %2000 = vmatprep.subr.mxu0 0.0
        %2001 = vmatpush2.msra.mxu0 0.0
        %2002 = vmatprep.subr.mxu0 0.0
        %2003 = vmatpush2.msra.mxu0 0.0
        %2004 = vmatprep.subr.mxu0 0.0
        %2005 = vmatpush2.msra.mxu0 0.0
        %2006 = vmatprep.subr.mxu0 0.0
        %2007 = vmatpush2.msra.mxu0 0.0
        %2008 = vmatprep.subr.mxu0 0.0
        %2009 = vmatpush2.msra.mxu0 0.0
        %2010 = vmatprep.subr.mxu0 0.0
        %2011 = vmatpush2.msra.mxu0 0.0
        %2012 = vmatprep.subr.mxu0 0.0
        %2013 = vmatpush2.msra.mxu0 0.0
        %2014 = vmatprep.subr.mxu0 0.0
        %2015 = vmatpush2.msra.mxu0 0.0
        %2016 = vmatprep.subr.mxu0 0.0
        %2017 = vmatpush2.msra.mxu0 0.0
        %2018 = vmatprep.subr.mxu0 0.0
        %2019 = vmatpush2.msra.mxu0 0.0
        %2020 = vmatprep.subr.mxu0 0.0
        %2021 = vmatpush2.msra.mxu0 0.0
        %2022 = vmatprep.subr.mxu0 0.0
        %2023 = vmatpush2.msra.mxu0 0.0
        %2024 = vmatprep.subr.mxu0 0.0
        %2025 = vmatpush2.msra.mxu0 0.0
        %2026 = vmatprep.subr.mxu0 0.0
        %2027 = vmatpush2.msra.mxu0 0.0
        %2028 = vmatprep.subr.mxu0 0.0
        %2029 = vmatpush2.msra.mxu0 0.0
        %2030 = vmatprep.mubr.f32.mxu0 0.0
        %2031 = vmatmul.mubr.f32.gmra.mxu0 %v1964
        %v2032 = vpop.f32.mrf.mxu0
        %v2033 = vadd.f32 0.0, %v2032
        %v2034 = vpop.f32.mrf.mxu0
        %2035 = vdwg.mxu0
        %2036 = vrot.lane.b32.xlu0 %v1208, 64
        %v2037 = vpop.permute.xlu0 %2036
        %v2040 = vsel %vm1242, %v1953, 0
        %2042 = vmatprep.subr.mxu0 0.0
        %2043 = vmatpush1.msra.mxu0 0.0
        %2044 = vmatprep.subr.mxu0 0.0
        %2045 = vmatpush1.msra.mxu0 0.0
        %2046 = vmatprep.subr.mxu0 0.0
        %2047 = vmatpush1.msra.mxu0 0.0
        %2048 = vmatprep.subr.mxu0 0.0
        %2049 = vmatpush1.msra.mxu0 0.0
        %2050 = vmatprep.subr.mxu0 0.0
        %2051 = vmatpush1.msra.mxu0 0.0
        %2052 = vmatprep.subr.mxu0 0.0
        %2053 = vmatpush1.msra.mxu0 0.0
        %2054 = vmatprep.subr.mxu0 0.0
        %2055 = vmatpush1.msra.mxu0 0.0
        %2056 = vmatprep.subr.mxu0 0.0
        %2057 = vmatpush1.msra.mxu0 0.0
        %2058 = vmatprep.subr.mxu0 0.0
        %2059 = vmatpush1.msra.mxu0 0.0
        %2060 = vmatprep.subr.mxu0 0.0
        %2061 = vmatpush1.msra.mxu0 0.0
        %2062 = vmatprep.subr.mxu0 0.0
        %2063 = vmatpush1.msra.mxu0 0.0
        %2064 = vmatprep.subr.mxu0 0.0
        %2065 = vmatpush1.msra.mxu0 0.0
        %2066 = vmatprep.subr.mxu0 0.0
        %2067 = vmatpush1.msra.mxu0 0.0
        %2068 = vmatprep.subr.mxu0 0.0
        %2069 = vmatpush1.msra.mxu0 0.0
        %2070 = vmatprep.subr.mxu0 0.0
        %2071 = vmatpush1.msra.mxu0 0.0
        %2072 = vmatprep.subr.mxu0 0.0
        %2073 = vmatpush1.msra.mxu0 %v2037
        %2074 = vmatprep.subr.mxu0 0.0
        %2075 = vmatpush2.msra.mxu0 0.0
        %2076 = vmatprep.subr.mxu0 0.0
        %2077 = vmatpush2.msra.mxu0 0.0
        %2078 = vmatprep.subr.mxu0 0.0
        %2079 = vmatpush2.msra.mxu0 0.0
        %2080 = vmatprep.subr.mxu0 0.0
        %2081 = vmatpush2.msra.mxu0 0.0
        %2082 = vmatprep.subr.mxu0 0.0
        %2083 = vmatpush2.msra.mxu0 0.0
        %2084 = vmatprep.subr.mxu0 0.0
        %2085 = vmatpush2.msra.mxu0 0.0
        %2086 = vmatprep.subr.mxu0 0.0
        %2087 = vmatpush2.msra.mxu0 0.0
        %2088 = vmatprep.subr.mxu0 0.0
        %2089 = vmatpush2.msra.mxu0 0.0
        %2090 = vmatprep.subr.mxu0 0.0
        %2091 = vmatpush2.msra.mxu0 0.0
        %2092 = vmatprep.subr.mxu0 0.0
        %2093 = vmatpush2.msra.mxu0 0.0
        %2094 = vmatprep.subr.mxu0 0.0
        %2095 = vmatpush2.msra.mxu0 0.0
        %2096 = vmatprep.subr.mxu0 0.0
        %2097 = vmatpush2.msra.mxu0 0.0
        %2098 = vmatprep.subr.mxu0 0.0
        %2099 = vmatpush2.msra.mxu0 0.0
        %2100 = vmatprep.subr.mxu0 0.0
        %2101 = vmatpush2.msra.mxu0 0.0
        %2102 = vmatprep.subr.mxu0 0.0
        %2103 = vmatpush2.msra.mxu0 0.0
        %2104 = vmatprep.subr.mxu0 0.0
        %2105 = vmatpush2.msra.mxu0 0.0
        %2106 = vmatprep.mubr.f32.mxu0 0.0
        %2107 = vmatmul.mubr.f32.gmra.mxu0 %v2040
        %v2108 = vpop.f32.mrf.mxu0
        %v2109 = vadd.f32 0.0, %v2108
        %v2110 = vpop.f32.mrf.mxu0
        %2111 = vdwg.mxu0
        %2112 = vrot.lane.b32.xlu0 %v1213, 64
        %v2113 = vpop.permute.xlu0 %2112
        %v2116 = vsel %vm1242, %v1954, 0
        %2118 = vmatprep.subr.mxu0 0.0
        %2119 = vmatpush1.msra.mxu0 0.0
        %2120 = vmatprep.subr.mxu0 0.0
        %2121 = vmatpush1.msra.mxu0 0.0
        %2122 = vmatprep.subr.mxu0 0.0
        %2123 = vmatpush1.msra.mxu0 0.0
        %2124 = vmatprep.subr.mxu0 0.0
        %2125 = vmatpush1.msra.mxu0 0.0
        %2126 = vmatprep.subr.mxu0 0.0
        %2127 = vmatpush1.msra.mxu0 0.0
        %2128 = vmatprep.subr.mxu0 0.0
        %2129 = vmatpush1.msra.mxu0 0.0
        %2130 = vmatprep.subr.mxu0 0.0
        %2131 = vmatpush1.msra.mxu0 0.0
        %2132 = vmatprep.subr.mxu0 0.0
        %2133 = vmatpush1.msra.mxu0 0.0
        %2134 = vmatprep.subr.mxu0 0.0
        %2135 = vmatpush1.msra.mxu0 0.0
        %2136 = vmatprep.subr.mxu0 0.0
        %2137 = vmatpush1.msra.mxu0 0.0
        %2138 = vmatprep.subr.mxu0 0.0
        %2139 = vmatpush1.msra.mxu0 0.0
        %2140 = vmatprep.subr.mxu0 0.0
        %2141 = vmatpush1.msra.mxu0 0.0
        %2142 = vmatprep.subr.mxu0 0.0
        %2143 = vmatpush1.msra.mxu0 0.0
        %2144 = vmatprep.subr.mxu0 0.0
        %2145 = vmatpush1.msra.mxu0 0.0
        %2146 = vmatprep.subr.mxu0 0.0
        %2147 = vmatpush1.msra.mxu0 0.0
        %2148 = vmatprep.subr.mxu0 0.0
        %2149 = vmatpush1.msra.mxu0 %v2113
        %2150 = vmatprep.subr.mxu0 0.0
        %2151 = vmatpush2.msra.mxu0 0.0
        %2152 = vmatprep.subr.mxu0 0.0
        %2153 = vmatpush2.msra.mxu0 0.0
        %2154 = vmatprep.subr.mxu0 0.0
        %2155 = vmatpush2.msra.mxu0 0.0
        %2156 = vmatprep.subr.mxu0 0.0
        %2157 = vmatpush2.msra.mxu0 0.0
        %2158 = vmatprep.subr.mxu0 0.0
        %2159 = vmatpush2.msra.mxu0 0.0
        %2160 = vmatprep.subr.mxu0 0.0
        %2161 = vmatpush2.msra.mxu0 0.0
        %2162 = vmatprep.subr.mxu0 0.0
        %2163 = vmatpush2.msra.mxu0 0.0
        %2164 = vmatprep.subr.mxu0 0.0
        %2165 = vmatpush2.msra.mxu0 0.0
        %2166 = vmatprep.subr.mxu0 0.0
        %2167 = vmatpush2.msra.mxu0 0.0
        %2168 = vmatprep.subr.mxu0 0.0
        %2169 = vmatpush2.msra.mxu0 0.0
        %2170 = vmatprep.subr.mxu0 0.0
        %2171 = vmatpush2.msra.mxu0 0.0
        %2172 = vmatprep.subr.mxu0 0.0
        %2173 = vmatpush2.msra.mxu0 0.0
        %2174 = vmatprep.subr.mxu0 0.0
        %2175 = vmatpush2.msra.mxu0 0.0
        %2176 = vmatprep.subr.mxu0 0.0
        %2177 = vmatpush2.msra.mxu0 0.0
        %2178 = vmatprep.subr.mxu0 0.0
        %2179 = vmatpush2.msra.mxu0 0.0
        %2180 = vmatprep.subr.mxu0 0.0
        %2181 = vmatpush2.msra.mxu0 0.0
        %2182 = vmatprep.mubr.f32.mxu0 0.0
        %2183 = vmatmul.mubr.f32.gmra.mxu0 %v2116
        %v2184 = vpop.f32.mrf.mxu0
        %v2185 = vadd.f32 0.0, %v2184
        %v2186 = vpop.f32.mrf.mxu0
        %2187 = vdwg.mxu0
        %2188 = vrot.lane.b32.xlu0 %v1216, 64
        %v2189 = vpop.permute.xlu0 %2188
        %v2192 = vsel %vm1242, %v1955, 0
        %2194 = vmatprep.subr.mxu0 0.0
        %2195 = vmatpush1.msra.mxu0 0.0
        %2196 = vmatprep.subr.mxu0 0.0
        %2197 = vmatpush1.msra.mxu0 0.0
        %2198 = vmatprep.subr.mxu0 0.0
        %2199 = vmatpush1.msra.mxu0 0.0
        %2200 = vmatprep.subr.mxu0 0.0
        %2201 = vmatpush1.msra.mxu0 0.0
        %2202 = vmatprep.subr.mxu0 0.0
        %2203 = vmatpush1.msra.mxu0 0.0
        %2204 = vmatprep.subr.mxu0 0.0
        %2205 = vmatpush1.msra.mxu0 0.0
        %2206 = vmatprep.subr.mxu0 0.0
        %2207 = vmatpush1.msra.mxu0 0.0
        %2208 = vmatprep.subr.mxu0 0.0
        %2209 = vmatpush1.msra.mxu0 0.0
        %2210 = vmatprep.subr.mxu0 0.0
        %2211 = vmatpush1.msra.mxu0 0.0
        %2212 = vmatprep.subr.mxu0 0.0
        %2213 = vmatpush1.msra.mxu0 0.0
        %2214 = vmatprep.subr.mxu0 0.0
        %2215 = vmatpush1.msra.mxu0 0.0
        %2216 = vmatprep.subr.mxu0 0.0
        %2217 = vmatpush1.msra.mxu0 0.0
        %2218 = vmatprep.subr.mxu0 0.0
        %2219 = vmatpush1.msra.mxu0 0.0
        %2220 = vmatprep.subr.mxu0 0.0
        %2221 = vmatpush1.msra.mxu0 0.0
        %2222 = vmatprep.subr.mxu0 0.0
        %2223 = vmatpush1.msra.mxu0 0.0
        %2224 = vmatprep.subr.mxu0 0.0
        %2225 = vmatpush1.msra.mxu0 %v2189
        %2226 = vmatprep.subr.mxu0 0.0
        %2227 = vmatpush2.msra.mxu0 0.0
        %2228 = vmatprep.subr.mxu0 0.0
        %2229 = vmatpush2.msra.mxu0 0.0
        %2230 = vmatprep.subr.mxu0 0.0
        %2231 = vmatpush2.msra.mxu0 0.0
        %2232 = vmatprep.subr.mxu0 0.0
        %2233 = vmatpush2.msra.mxu0 0.0
        %2234 = vmatprep.subr.mxu0 0.0
        %2235 = vmatpush2.msra.mxu0 0.0
        %2236 = vmatprep.subr.mxu0 0.0
        %2237 = vmatpush2.msra.mxu0 0.0
        %2238 = vmatprep.subr.mxu0 0.0
        %2239 = vmatpush2.msra.mxu0 0.0
        %2240 = vmatprep.subr.mxu0 0.0
        %2241 = vmatpush2.msra.mxu0 0.0
        %2242 = vmatprep.subr.mxu0 0.0
        %2243 = vmatpush2.msra.mxu0 0.0
        %2244 = vmatprep.subr.mxu0 0.0
        %2245 = vmatpush2.msra.mxu0 0.0
        %2246 = vmatprep.subr.mxu0 0.0
        %2247 = vmatpush2.msra.mxu0 0.0
        %2248 = vmatprep.subr.mxu0 0.0
        %2249 = vmatpush2.msra.mxu0 0.0
        %2250 = vmatprep.subr.mxu0 0.0
        %2251 = vmatpush2.msra.mxu0 0.0
        %2252 = vmatprep.subr.mxu0 0.0
        %2253 = vmatpush2.msra.mxu0 0.0
        %2254 = vmatprep.subr.mxu0 0.0
        %2255 = vmatpush2.msra.mxu0 0.0
        %2256 = vmatprep.subr.mxu0 0.0
        %2257 = vmatpush2.msra.mxu0 0.0
        %2258 = vmatprep.mubr.f32.mxu0 0.0
        %2259 = vmatmul.mubr.f32.gmra.mxu0 %v2192
        %v2260 = vpop.f32.mrf.mxu0
        %v2261 = vadd.f32 0.0, %v2260
        %v2262 = vpop.f32.mrf.mxu0
        %2263 = vdwg.mxu0
        %2264 = vrot.lane.b32.xlu0 %v1221, 64
        %v2265 = vpop.permute.xlu0 %2264
        %v2268 = vsel %vm1242, %v1956, 0
        %2270 = vmatprep.subr.mxu0 0.0
        %2271 = vmatpush1.msra.mxu0 0.0
        %2272 = vmatprep.subr.mxu0 0.0
        %2273 = vmatpush1.msra.mxu0 0.0
        %2274 = vmatprep.subr.mxu0 0.0
        %2275 = vmatpush1.msra.mxu0 0.0
        %2276 = vmatprep.subr.mxu0 0.0
        %2277 = vmatpush1.msra.mxu0 0.0
        %2278 = vmatprep.subr.mxu0 0.0
        %2279 = vmatpush1.msra.mxu0 0.0
        %2280 = vmatprep.subr.mxu0 0.0
        %2281 = vmatpush1.msra.mxu0 0.0
        %2282 = vmatprep.subr.mxu0 0.0
        %2283 = vmatpush1.msra.mxu0 0.0
        %2284 = vmatprep.subr.mxu0 0.0
        %2285 = vmatpush1.msra.mxu0 0.0
        %2286 = vmatprep.subr.mxu0 0.0
        %2287 = vmatpush1.msra.mxu0 0.0
        %2288 = vmatprep.subr.mxu0 0.0
        %2289 = vmatpush1.msra.mxu0 0.0
        %2290 = vmatprep.subr.mxu0 0.0
        %2291 = vmatpush1.msra.mxu0 0.0
        %2292 = vmatprep.subr.mxu0 0.0
        %2293 = vmatpush1.msra.mxu0 0.0
        %2294 = vmatprep.subr.mxu0 0.0
        %2295 = vmatpush1.msra.mxu0 0.0
        %2296 = vmatprep.subr.mxu0 0.0
        %2297 = vmatpush1.msra.mxu0 0.0
        %2298 = vmatprep.subr.mxu0 0.0
        %2299 = vmatpush1.msra.mxu0 0.0
        %2300 = vmatprep.subr.mxu0 0.0
        %2301 = vmatpush1.msra.mxu0 %v2265
        %2302 = vmatprep.subr.mxu0 0.0
        %2303 = vmatpush2.msra.mxu0 0.0
        %2304 = vmatprep.subr.mxu0 0.0
        %2305 = vmatpush2.msra.mxu0 0.0
        %2306 = vmatprep.subr.mxu0 0.0
        %2307 = vmatpush2.msra.mxu0 0.0
        %2308 = vmatprep.subr.mxu0 0.0
        %2309 = vmatpush2.msra.mxu0 0.0
        %2310 = vmatprep.subr.mxu0 0.0
        %2311 = vmatpush2.msra.mxu0 0.0
        %2312 = vmatprep.subr.mxu0 0.0
        %2313 = vmatpush2.msra.mxu0 0.0
        %2314 = vmatprep.subr.mxu0 0.0
        %2315 = vmatpush2.msra.mxu0 0.0
        %2316 = vmatprep.subr.mxu0 0.0
        %2317 = vmatpush2.msra.mxu0 0.0
        %2318 = vmatprep.subr.mxu0 0.0
        %2319 = vmatpush2.msra.mxu0 0.0
        %2320 = vmatprep.subr.mxu0 0.0
        %2321 = vmatpush2.msra.mxu0 0.0
        %2322 = vmatprep.subr.mxu0 0.0
        %2323 = vmatpush2.msra.mxu0 0.0
        %2324 = vmatprep.subr.mxu0 0.0
        %2325 = vmatpush2.msra.mxu0 0.0
        %2326 = vmatprep.subr.mxu0 0.0
        %2327 = vmatpush2.msra.mxu0 0.0
        %2328 = vmatprep.subr.mxu0 0.0
        %2329 = vmatpush2.msra.mxu0 0.0
        %2330 = vmatprep.subr.mxu0 0.0
        %2331 = vmatpush2.msra.mxu0 0.0
        %2332 = vmatprep.subr.mxu0 0.0
        %2333 = vmatpush2.msra.mxu0 0.0
        %2334 = vmatprep.mubr.f32.mxu0 0.0
        %2335 = vmatmul.mubr.f32.gmra.mxu0 %v2268
        %v2336 = vpop.f32.mrf.mxu0
        %v2337 = vadd.f32 0.0, %v2336
        %v2338 = vpop.f32.mrf.mxu0
        %2339 = vdwg.mxu0
        %2340 = vrot.lane.b32.xlu0 %v1224, 64
        %v2341 = vpop.permute.xlu0 %2340
        %v2344 = vsel %vm1242, %v1957, 0
        %2346 = vmatprep.subr.mxu0 0.0
        %2347 = vmatpush1.msra.mxu0 0.0
        %2348 = vmatprep.subr.mxu0 0.0
        %2349 = vmatpush1.msra.mxu0 0.0
        %2350 = vmatprep.subr.mxu0 0.0
        %2351 = vmatpush1.msra.mxu0 0.0
        %2352 = vmatprep.subr.mxu0 0.0
        %2353 = vmatpush1.msra.mxu0 0.0
        %2354 = vmatprep.subr.mxu0 0.0
        %2355 = vmatpush1.msra.mxu0 0.0
        %2356 = vmatprep.subr.mxu0 0.0
        %2357 = vmatpush1.msra.mxu0 0.0
        %2358 = vmatprep.subr.mxu0 0.0
        %2359 = vmatpush1.msra.mxu0 0.0
        %2360 = vmatprep.subr.mxu0 0.0
        %2361 = vmatpush1.msra.mxu0 0.0
        %2362 = vmatprep.subr.mxu0 0.0
        %2363 = vmatpush1.msra.mxu0 0.0
        %2364 = vmatprep.subr.mxu0 0.0
        %2365 = vmatpush1.msra.mxu0 0.0
        %2366 = vmatprep.subr.mxu0 0.0
        %2367 = vmatpush1.msra.mxu0 0.0
        %2368 = vmatprep.subr.mxu0 0.0
        %2369 = vmatpush1.msra.mxu0 0.0
        %2370 = vmatprep.subr.mxu0 0.0
        %2371 = vmatpush1.msra.mxu0 0.0
        %2372 = vmatprep.subr.mxu0 0.0
        %2373 = vmatpush1.msra.mxu0 0.0
        %2374 = vmatprep.subr.mxu0 0.0
        %2375 = vmatpush1.msra.mxu0 0.0
        %2376 = vmatprep.subr.mxu0 0.0
        %2377 = vmatpush1.msra.mxu0 %v2341
        %2378 = vmatprep.subr.mxu0 0.0
        %2379 = vmatpush2.msra.mxu0 0.0
        %2380 = vmatprep.subr.mxu0 0.0
        %2381 = vmatpush2.msra.mxu0 0.0
        %2382 = vmatprep.subr.mxu0 0.0
        %2383 = vmatpush2.msra.mxu0 0.0
        %2384 = vmatprep.subr.mxu0 0.0
        %2385 = vmatpush2.msra.mxu0 0.0
        %2386 = vmatprep.subr.mxu0 0.0
        %2387 = vmatpush2.msra.mxu0 0.0
        %2388 = vmatprep.subr.mxu0 0.0
        %2389 = vmatpush2.msra.mxu0 0.0
        %2390 = vmatprep.subr.mxu0 0.0
        %2391 = vmatpush2.msra.mxu0 0.0
        %2392 = vmatprep.subr.mxu0 0.0
        %2393 = vmatpush2.msra.mxu0 0.0
        %2394 = vmatprep.subr.mxu0 0.0
        %2395 = vmatpush2.msra.mxu0 0.0
        %2396 = vmatprep.subr.mxu0 0.0
        %2397 = vmatpush2.msra.mxu0 0.0
        %2398 = vmatprep.subr.mxu0 0.0
        %2399 = vmatpush2.msra.mxu0 0.0
        %2400 = vmatprep.subr.mxu0 0.0
        %2401 = vmatpush2.msra.mxu0 0.0
        %2402 = vmatprep.subr.mxu0 0.0
        %2403 = vmatpush2.msra.mxu0 0.0
        %2404 = vmatprep.subr.mxu0 0.0
        %2405 = vmatpush2.msra.mxu0 0.0
        %2406 = vmatprep.subr.mxu0 0.0
        %2407 = vmatpush2.msra.mxu0 0.0
        %2408 = vmatprep.subr.mxu0 0.0
        %2409 = vmatpush2.msra.mxu0 0.0
        %2410 = vmatprep.mubr.f32.mxu0 0.0
        %2411 = vmatmul.mubr.f32.gmra.mxu0 %v2344
        %v2412 = vpop.f32.mrf.mxu0
        %v2413 = vadd.f32 0.0, %v2412
        %v2414 = vpop.f32.mrf.mxu0
        %2415 = vdwg.mxu0
        %2416 = vrot.lane.b32.xlu0 %v1229, 64
        %v2417 = vpop.permute.xlu0 %2416
        %v2420 = vsel %vm1242, %v1958, 0
        %2422 = vmatprep.subr.mxu0 0.0
        %2423 = vmatpush1.msra.mxu0 0.0
        %2424 = vmatprep.subr.mxu0 0.0
        %2425 = vmatpush1.msra.mxu0 0.0
        %2426 = vmatprep.subr.mxu0 0.0
        %2427 = vmatpush1.msra.mxu0 0.0
        %2428 = vmatprep.subr.mxu0 0.0
        %2429 = vmatpush1.msra.mxu0 0.0
        %2430 = vmatprep.subr.mxu0 0.0
        %2431 = vmatpush1.msra.mxu0 0.0
        %2432 = vmatprep.subr.mxu0 0.0
        %2433 = vmatpush1.msra.mxu0 0.0
        %2434 = vmatprep.subr.mxu0 0.0
        %2435 = vmatpush1.msra.mxu0 0.0
        %2436 = vmatprep.subr.mxu0 0.0
        %2437 = vmatpush1.msra.mxu0 0.0
        %2438 = vmatprep.subr.mxu0 0.0
        %2439 = vmatpush1.msra.mxu0 0.0
        %2440 = vmatprep.subr.mxu0 0.0
        %2441 = vmatpush1.msra.mxu0 0.0
        %2442 = vmatprep.subr.mxu0 0.0
        %2443 = vmatpush1.msra.mxu0 0.0
        %2444 = vmatprep.subr.mxu0 0.0
        %2445 = vmatpush1.msra.mxu0 0.0
        %2446 = vmatprep.subr.mxu0 0.0
        %2447 = vmatpush1.msra.mxu0 0.0
        %2448 = vmatprep.subr.mxu0 0.0
        %2449 = vmatpush1.msra.mxu0 0.0
        %2450 = vmatprep.subr.mxu0 0.0
        %2451 = vmatpush1.msra.mxu0 0.0
        %2452 = vmatprep.subr.mxu0 0.0
        %2453 = vmatpush1.msra.mxu0 %v2417
        %2454 = vmatprep.subr.mxu0 0.0
        %2455 = vmatpush2.msra.mxu0 0.0
        %2456 = vmatprep.subr.mxu0 0.0
        %2457 = vmatpush2.msra.mxu0 0.0
        %2458 = vmatprep.subr.mxu0 0.0
        %2459 = vmatpush2.msra.mxu0 0.0
        %2460 = vmatprep.subr.mxu0 0.0
        %2461 = vmatpush2.msra.mxu0 0.0
        %2462 = vmatprep.subr.mxu0 0.0
        %2463 = vmatpush2.msra.mxu0 0.0
        %2464 = vmatprep.subr.mxu0 0.0
        %2465 = vmatpush2.msra.mxu0 0.0
        %2466 = vmatprep.subr.mxu0 0.0
        %2467 = vmatpush2.msra.mxu0 0.0
        %2468 = vmatprep.subr.mxu0 0.0
        %2469 = vmatpush2.msra.mxu0 0.0
        %2470 = vmatprep.subr.mxu0 0.0
        %2471 = vmatpush2.msra.mxu0 0.0
        %2472 = vmatprep.subr.mxu0 0.0
        %2473 = vmatpush2.msra.mxu0 0.0
        %2474 = vmatprep.subr.mxu0 0.0
        %2475 = vmatpush2.msra.mxu0 0.0
        %2476 = vmatprep.subr.mxu0 0.0
        %2477 = vmatpush2.msra.mxu0 0.0
        %2478 = vmatprep.subr.mxu0 0.0
        %2479 = vmatpush2.msra.mxu0 0.0
        %2480 = vmatprep.subr.mxu0 0.0
        %2481 = vmatpush2.msra.mxu0 0.0
        %2482 = vmatprep.subr.mxu0 0.0
        %2483 = vmatpush2.msra.mxu0 0.0
        %2484 = vmatprep.subr.mxu0 0.0
        %2485 = vmatpush2.msra.mxu0 0.0
        %2486 = vmatprep.mubr.f32.mxu0 0.0
        %2487 = vmatmul.mubr.f32.gmra.mxu0 %v2420
        %v2488 = vpop.f32.mrf.mxu0
        %v2489 = vadd.f32 0.0, %v2488
        %v2490 = vpop.f32.mrf.mxu0
        %2491 = vdwg.mxu0
        %2492 = vrot.lane.b32.xlu0 %v1232, 64
        %v2493 = vpop.permute.xlu0 %2492
        %v2496 = vsel %vm1242, %v1959, 0
        %2498 = vmatprep.subr.mxu0 0.0
        %2499 = vmatpush1.msra.mxu0 0.0
        %2500 = vmatprep.subr.mxu0 0.0
        %2501 = vmatpush1.msra.mxu0 0.0
        %2502 = vmatprep.subr.mxu0 0.0
        %2503 = vmatpush1.msra.mxu0 0.0
        %2504 = vmatprep.subr.mxu0 0.0
        %2505 = vmatpush1.msra.mxu0 0.0
        %2506 = vmatprep.subr.mxu0 0.0
        %2507 = vmatpush1.msra.mxu0 0.0
        %2508 = vmatprep.subr.mxu0 0.0
        %2509 = vmatpush1.msra.mxu0 0.0
        %2510 = vmatprep.subr.mxu0 0.0
        %2511 = vmatpush1.msra.mxu0 0.0
        %2512 = vmatprep.subr.mxu0 0.0
        %2513 = vmatpush1.msra.mxu0 0.0
        %2514 = vmatprep.subr.mxu0 0.0
        %2515 = vmatpush1.msra.mxu0 0.0
        %2516 = vmatprep.subr.mxu0 0.0
        %2517 = vmatpush1.msra.mxu0 0.0
        %2518 = vmatprep.subr.mxu0 0.0
        %2519 = vmatpush1.msra.mxu0 0.0
        %2520 = vmatprep.subr.mxu0 0.0
        %2521 = vmatpush1.msra.mxu0 0.0
        %2522 = vmatprep.subr.mxu0 0.0
        %2523 = vmatpush1.msra.mxu0 0.0
        %2524 = vmatprep.subr.mxu0 0.0
        %2525 = vmatpush1.msra.mxu0 0.0
        %2526 = vmatprep.subr.mxu0 0.0
        %2527 = vmatpush1.msra.mxu0 0.0
        %2528 = vmatprep.subr.mxu0 0.0
        %2529 = vmatpush1.msra.mxu0 %v2493
        %2530 = vmatprep.subr.mxu0 0.0
        %2531 = vmatpush2.msra.mxu0 0.0
        %2532 = vmatprep.subr.mxu0 0.0
        %2533 = vmatpush2.msra.mxu0 0.0
        %2534 = vmatprep.subr.mxu0 0.0
        %2535 = vmatpush2.msra.mxu0 0.0
        %2536 = vmatprep.subr.mxu0 0.0
        %2537 = vmatpush2.msra.mxu0 0.0
        %2538 = vmatprep.subr.mxu0 0.0
        %2539 = vmatpush2.msra.mxu0 0.0
        %2540 = vmatprep.subr.mxu0 0.0
        %2541 = vmatpush2.msra.mxu0 0.0
        %2542 = vmatprep.subr.mxu0 0.0
        %2543 = vmatpush2.msra.mxu0 0.0
        %2544 = vmatprep.subr.mxu0 0.0
        %2545 = vmatpush2.msra.mxu0 0.0
        %2546 = vmatprep.subr.mxu0 0.0
        %2547 = vmatpush2.msra.mxu0 0.0
        %2548 = vmatprep.subr.mxu0 0.0
        %2549 = vmatpush2.msra.mxu0 0.0
        %2550 = vmatprep.subr.mxu0 0.0
        %2551 = vmatpush2.msra.mxu0 0.0
        %2552 = vmatprep.subr.mxu0 0.0
        %2553 = vmatpush2.msra.mxu0 0.0
        %2554 = vmatprep.subr.mxu0 0.0
        %2555 = vmatpush2.msra.mxu0 0.0
        %2556 = vmatprep.subr.mxu0 0.0
        %2557 = vmatpush2.msra.mxu0 0.0
        %2558 = vmatprep.subr.mxu0 0.0
        %2559 = vmatpush2.msra.mxu0 0.0
        %2560 = vmatprep.subr.mxu0 0.0
        %2561 = vmatpush2.msra.mxu0 0.0
        %2562 = vmatprep.mubr.f32.mxu0 0.0
        %2563 = vmatmul.mubr.f32.gmra.mxu0 %v2496
        %v2564 = vpop.f32.mrf.mxu0
        %v2565 = vadd.f32 0.0, %v2564
        %v2566 = vpop.f32.mrf.mxu0
        %2567 = vdwg.mxu0
        %v2568 = vld [vmem:[%s9] sm:$0xff]
        %2569 = vrot.lane.b32.xlu0 %v1205, 120
        %v2570 = vpop.permute.xlu0 %2569
        %2571 = vrot.lane.b32.xlu0 %v1205, 88
        %v2572 = vpop.permute.xlu0 %2571
        %v2573 = vsel %vm1242, %v2570, 0
        %v2575 = vsel %vm1242, %v2572, 0
        %2577 = vmatprep.subr.mxu0 0.0
        %2578 = vmatpush1.xpose.msra.mxu0 0.0
        %2579 = vmatprep.subr.mxu0 0.0
        %2580 = vmatpush1.xpose.msra.mxu0 0.0
        %2581 = vmatprep.subr.mxu0 0.0
        %2582 = vmatpush1.xpose.msra.mxu0 0.0
        %2583 = vmatprep.subr.mxu0 0.0
        %2584 = vmatpush1.xpose.msra.mxu0 0.0
        %2585 = vmatprep.subr.mxu0 0.0
        %2586 = vmatpush1.xpose.msra.mxu0 0.0
        %2587 = vmatprep.subr.mxu0 0.0
        %2588 = vmatpush1.xpose.msra.mxu0 0.0
        %2589 = vmatprep.subr.mxu0 0.0
        %2590 = vmatpush1.xpose.msra.mxu0 0.0
        %2591 = vmatprep.subr.mxu0 0.0
        %2592 = vmatpush1.xpose.msra.mxu0 0.0
        %2593 = vmatprep.subr.mxu0 0.0
        %2594 = vmatpush1.xpose.msra.mxu0 0.0
        %2595 = vmatprep.subr.mxu0 0.0
        %2596 = vmatpush1.xpose.msra.mxu0 0.0
        %2597 = vmatprep.subr.mxu0 0.0
        %2598 = vmatpush1.xpose.msra.mxu0 0.0
        %2599 = vmatprep.subr.mxu0 0.0
        %2600 = vmatpush1.xpose.msra.mxu0 0.0
        %2601 = vmatprep.subr.mxu0 0.0
        %2602 = vmatpush1.xpose.msra.mxu0 0.0
        %2603 = vmatprep.subr.mxu0 0.0
        %2604 = vmatpush1.xpose.msra.mxu0 0.0
        %2605 = vmatprep.subr.mxu0 0.0
        %2606 = vmatpush1.xpose.msra.mxu0 0.0
        %2607 = vmatprep.subr.mxu0 0.0
        %2608 = vmatpush1.xpose.msra.mxu0 %v2575
        %2609 = vmatprep.subr.mxu0 0.0
        %2610 = vmatpush2.xpose.msra.mxu0 0.0
        %2611 = vmatprep.subr.mxu0 0.0
        %2612 = vmatpush2.xpose.msra.mxu0 0.0
        %2613 = vmatprep.subr.mxu0 0.0
        %2614 = vmatpush2.xpose.msra.mxu0 0.0
        %2615 = vmatprep.subr.mxu0 0.0
        %2616 = vmatpush2.xpose.msra.mxu0 0.0
        %2617 = vmatprep.subr.mxu0 0.0
        %2618 = vmatpush2.xpose.msra.mxu0 0.0
        %2619 = vmatprep.subr.mxu0 0.0
        %2620 = vmatpush2.xpose.msra.mxu0 0.0
        %2621 = vmatprep.subr.mxu0 0.0
        %2622 = vmatpush2.xpose.msra.mxu0 0.0
        %2623 = vmatprep.subr.mxu0 0.0
        %2624 = vmatpush2.xpose.msra.mxu0 0.0
        %2625 = vmatprep.subr.mxu0 0.0
        %2626 = vmatpush2.xpose.msra.mxu0 0.0
        %2627 = vmatprep.subr.mxu0 0.0
        %2628 = vmatpush2.xpose.msra.mxu0 0.0
        %2629 = vmatprep.subr.mxu0 0.0
        %2630 = vmatpush2.xpose.msra.mxu0 0.0
        %2631 = vmatprep.subr.mxu0 0.0
        %2632 = vmatpush2.xpose.msra.mxu0 0.0
        %2633 = vmatprep.subr.mxu0 0.0
        %2634 = vmatpush2.xpose.msra.mxu0 0.0
        %2635 = vmatprep.subr.mxu0 0.0
        %2636 = vmatpush2.xpose.msra.mxu0 0.0
        %2637 = vmatprep.subr.mxu0 0.0
        %2638 = vmatpush2.xpose.msra.mxu0 0.0
        %2639 = vmatprep.subr.mxu0 0.0
        %2640 = vmatpush2.xpose.msra.mxu0 0.0
        %2641 = vmatprep.mubr.f32.mxu0 0.0
        %2642 = vmatmul.mubr.f32.gmra.mxu0 %v2573
        %v2643 = vpop.f32.mrf.mxu0
        %v2644 = vadd.f32 0.0, %v2643
        %v2645 = vpop.f32.mrf.mxu0
        %2646 = vdwg.mxu0
        %2647 = vrot.lane.b32.xlu0 %v1208, 120
        %v2648 = vpop.permute.xlu0 %2647
        %2649 = vrot.lane.b32.xlu0 %v1208, 88
        %v2650 = vpop.permute.xlu0 %2649
        %v2651 = vsel %vm1242, %v2648, 0
        %v2653 = vsel %vm1242, %v2650, 0
        %2655 = vmatprep.subr.mxu0 0.0
        %2656 = vmatpush1.xpose.msra.mxu0 0.0
        %2657 = vmatprep.subr.mxu0 0.0
        %2658 = vmatpush1.xpose.msra.mxu0 0.0
        %2659 = vmatprep.subr.mxu0 0.0
        %2660 = vmatpush1.xpose.msra.mxu0 0.0
        %2661 = vmatprep.subr.mxu0 0.0
        %2662 = vmatpush1.xpose.msra.mxu0 0.0
        %2663 = vmatprep.subr.mxu0 0.0
        %2664 = vmatpush1.xpose.msra.mxu0 0.0
        %2665 = vmatprep.subr.mxu0 0.0
        %2666 = vmatpush1.xpose.msra.mxu0 0.0
        %2667 = vmatprep.subr.mxu0 0.0
        %2668 = vmatpush1.xpose.msra.mxu0 0.0
        %2669 = vmatprep.subr.mxu0 0.0
        %2670 = vmatpush1.xpose.msra.mxu0 0.0
        %2671 = vmatprep.subr.mxu0 0.0
        %2672 = vmatpush1.xpose.msra.mxu0 0.0
        %2673 = vmatprep.subr.mxu0 0.0
        %2674 = vmatpush1.xpose.msra.mxu0 0.0
        %2675 = vmatprep.subr.mxu0 0.0
        %2676 = vmatpush1.xpose.msra.mxu0 0.0
        %2677 = vmatprep.subr.mxu0 0.0
        %2678 = vmatpush1.xpose.msra.mxu0 0.0
        %2679 = vmatprep.subr.mxu0 0.0
        %2680 = vmatpush1.xpose.msra.mxu0 0.0
        %2681 = vmatprep.subr.mxu0 0.0
        %2682 = vmatpush1.xpose.msra.mxu0 0.0
        %2683 = vmatprep.subr.mxu0 0.0
        %2684 = vmatpush1.xpose.msra.mxu0 0.0
        %2685 = vmatprep.subr.mxu0 0.0
        %2686 = vmatpush1.xpose.msra.mxu0 %v2653
        %2687 = vmatprep.subr.mxu0 0.0
        %2688 = vmatpush2.xpose.msra.mxu0 0.0
        %2689 = vmatprep.subr.mxu0 0.0
        %2690 = vmatpush2.xpose.msra.mxu0 0.0
        %2691 = vmatprep.subr.mxu0 0.0
        %2692 = vmatpush2.xpose.msra.mxu0 0.0
        %2693 = vmatprep.subr.mxu0 0.0
        %2694 = vmatpush2.xpose.msra.mxu0 0.0
        %2695 = vmatprep.subr.mxu0 0.0
        %2696 = vmatpush2.xpose.msra.mxu0 0.0
        %2697 = vmatprep.subr.mxu0 0.0
        %2698 = vmatpush2.xpose.msra.mxu0 0.0
        %2699 = vmatprep.subr.mxu0 0.0
        %2700 = vmatpush2.xpose.msra.mxu0 0.0
        %2701 = vmatprep.subr.mxu0 0.0
        %2702 = vmatpush2.xpose.msra.mxu0 0.0
        %2703 = vmatprep.subr.mxu0 0.0
        %2704 = vmatpush2.xpose.msra.mxu0 0.0
        %2705 = vmatprep.subr.mxu0 0.0
        %2706 = vmatpush2.xpose.msra.mxu0 0.0
        %2707 = vmatprep.subr.mxu0 0.0
        %2708 = vmatpush2.xpose.msra.mxu0 0.0
        %2709 = vmatprep.subr.mxu0 0.0
        %2710 = vmatpush2.xpose.msra.mxu0 0.0
        %2711 = vmatprep.subr.mxu0 0.0
        %2712 = vmatpush2.xpose.msra.mxu0 0.0
        %2713 = vmatprep.subr.mxu0 0.0
        %2714 = vmatpush2.xpose.msra.mxu0 0.0
        %2715 = vmatprep.subr.mxu0 0.0
        %2716 = vmatpush2.xpose.msra.mxu0 0.0
        %2717 = vmatprep.subr.mxu0 0.0
        %2718 = vmatpush2.xpose.msra.mxu0 0.0
        %2719 = vmatprep.mubr.f32.mxu0 0.0
        %2720 = vmatmul.mubr.f32.gmra.mxu0 %v2651
        %v2721 = vpop.f32.mrf.mxu0
        %v2722 = vadd.f32 0.0, %v2721
        %v2723 = vpop.f32.mrf.mxu0
        %2724 = vdwg.mxu0
        %2725 = vrot.lane.b32.xlu0 %v1213, 120
        %v2726 = vpop.permute.xlu0 %2725
        %2727 = vrot.lane.b32.xlu0 %v1213, 88
        %v2728 = vpop.permute.xlu0 %2727
        %v2729 = vsel %vm1242, %v2726, 0
        %v2731 = vsel %vm1242, %v2728, 0
        %2733 = vmatprep.subr.mxu0 0.0
        %2734 = vmatpush1.xpose.msra.mxu0 0.0
        %2735 = vmatprep.subr.mxu0 0.0
        %2736 = vmatpush1.xpose.msra.mxu0 0.0
        %2737 = vmatprep.subr.mxu0 0.0
        %2738 = vmatpush1.xpose.msra.mxu0 0.0
        %2739 = vmatprep.subr.mxu0 0.0
        %2740 = vmatpush1.xpose.msra.mxu0 0.0
        %2741 = vmatprep.subr.mxu0 0.0
        %2742 = vmatpush1.xpose.msra.mxu0 0.0
        %2743 = vmatprep.subr.mxu0 0.0
        %2744 = vmatpush1.xpose.msra.mxu0 0.0
        %2745 = vmatprep.subr.mxu0 0.0
        %2746 = vmatpush1.xpose.msra.mxu0 0.0
        %2747 = vmatprep.subr.mxu0 0.0
        %2748 = vmatpush1.xpose.msra.mxu0 0.0
        %2749 = vmatprep.subr.mxu0 0.0
        %2750 = vmatpush1.xpose.msra.mxu0 0.0
        %2751 = vmatprep.subr.mxu0 0.0
        %2752 = vmatpush1.xpose.msra.mxu0 0.0
        %2753 = vmatprep.subr.mxu0 0.0
        %2754 = vmatpush1.xpose.msra.mxu0 0.0
        %2755 = vmatprep.subr.mxu0 0.0
        %2756 = vmatpush1.xpose.msra.mxu0 0.0
        %2757 = vmatprep.subr.mxu0 0.0
        %2758 = vmatpush1.xpose.msra.mxu0 0.0
        %2759 = vmatprep.subr.mxu0 0.0
        %2760 = vmatpush1.xpose.msra.mxu0 0.0
        %2761 = vmatprep.subr.mxu0 0.0
        %2762 = vmatpush1.xpose.msra.mxu0 0.0
        %2763 = vmatprep.subr.mxu0 0.0
        %2764 = vmatpush1.xpose.msra.mxu0 %v2731
        %2765 = vmatprep.subr.mxu0 0.0
        %2766 = vmatpush2.xpose.msra.mxu0 0.0
        %2767 = vmatprep.subr.mxu0 0.0
        %2768 = vmatpush2.xpose.msra.mxu0 0.0
        %2769 = vmatprep.subr.mxu0 0.0
        %2770 = vmatpush2.xpose.msra.mxu0 0.0
        %2771 = vmatprep.subr.mxu0 0.0
        %2772 = vmatpush2.xpose.msra.mxu0 0.0
        %2773 = vmatprep.subr.mxu0 0.0
        %2774 = vmatpush2.xpose.msra.mxu0 0.0
        %2775 = vmatprep.subr.mxu0 0.0
        %2776 = vmatpush2.xpose.msra.mxu0 0.0
        %2777 = vmatprep.subr.mxu0 0.0
        %2778 = vmatpush2.xpose.msra.mxu0 0.0
        %2779 = vmatprep.subr.mxu0 0.0
        %2780 = vmatpush2.xpose.msra.mxu0 0.0
        %2781 = vmatprep.subr.mxu0 0.0
        %2782 = vmatpush2.xpose.msra.mxu0 0.0
        %2783 = vmatprep.subr.mxu0 0.0
        %2784 = vmatpush2.xpose.msra.mxu0 0.0
        %2785 = vmatprep.subr.mxu0 0.0
        %2786 = vmatpush2.xpose.msra.mxu0 0.0
        %2787 = vmatprep.subr.mxu0 0.0
        %2788 = vmatpush2.xpose.msra.mxu0 0.0
        %2789 = vmatprep.subr.mxu0 0.0
        %2790 = vmatpush2.xpose.msra.mxu0 0.0
        %2791 = vmatprep.subr.mxu0 0.0
        %2792 = vmatpush2.xpose.msra.mxu0 0.0
        %2793 = vmatprep.subr.mxu0 0.0
        %2794 = vmatpush2.xpose.msra.mxu0 0.0
        %2795 = vmatprep.subr.mxu0 0.0
        %2796 = vmatpush2.xpose.msra.mxu0 0.0
        %2797 = vmatprep.mubr.f32.mxu0 0.0
        %2798 = vmatmul.mubr.f32.gmra.mxu0 %v2729
        %v2799 = vpop.f32.mrf.mxu0
        %v2800 = vadd.f32 0.0, %v2799
        %v2801 = vpop.f32.mrf.mxu0
        %2802 = vdwg.mxu0
        %2803 = vrot.lane.b32.xlu0 %v1216, 120
        %v2804 = vpop.permute.xlu0 %2803
        %2805 = vrot.lane.b32.xlu0 %v1216, 88
        %v2806 = vpop.permute.xlu0 %2805
        %v2807 = vsel %vm1242, %v2804, 0
        %v2809 = vsel %vm1242, %v2806, 0
        %2811 = vmatprep.subr.mxu0 0.0
        %2812 = vmatpush1.xpose.msra.mxu0 0.0
        %2813 = vmatprep.subr.mxu0 0.0
        %2814 = vmatpush1.xpose.msra.mxu0 0.0
        %2815 = vmatprep.subr.mxu0 0.0
        %2816 = vmatpush1.xpose.msra.mxu0 0.0
        %2817 = vmatprep.subr.mxu0 0.0
        %2818 = vmatpush1.xpose.msra.mxu0 0.0
        %2819 = vmatprep.subr.mxu0 0.0
        %2820 = vmatpush1.xpose.msra.mxu0 0.0
        %2821 = vmatprep.subr.mxu0 0.0
        %2822 = vmatpush1.xpose.msra.mxu0 0.0
        %2823 = vmatprep.subr.mxu0 0.0
        %2824 = vmatpush1.xpose.msra.mxu0 0.0
        %2825 = vmatprep.subr.mxu0 0.0
        %2826 = vmatpush1.xpose.msra.mxu0 0.0
        %2827 = vmatprep.subr.mxu0 0.0
        %2828 = vmatpush1.xpose.msra.mxu0 0.0
        %2829 = vmatprep.subr.mxu0 0.0
        %2830 = vmatpush1.xpose.msra.mxu0 0.0
        %2831 = vmatprep.subr.mxu0 0.0
        %2832 = vmatpush1.xpose.msra.mxu0 0.0
        %2833 = vmatprep.subr.mxu0 0.0
        %2834 = vmatpush1.xpose.msra.mxu0 0.0
        %2835 = vmatprep.subr.mxu0 0.0
        %2836 = vmatpush1.xpose.msra.mxu0 0.0
        %2837 = vmatprep.subr.mxu0 0.0
        %2838 = vmatpush1.xpose.msra.mxu0 0.0
        %2839 = vmatprep.subr.mxu0 0.0
        %2840 = vmatpush1.xpose.msra.mxu0 0.0
        %2841 = vmatprep.subr.mxu0 0.0
        %2842 = vmatpush1.xpose.msra.mxu0 %v2809
        %2843 = vmatprep.subr.mxu0 0.0
        %2844 = vmatpush2.xpose.msra.mxu0 0.0
        %2845 = vmatprep.subr.mxu0 0.0
        %2846 = vmatpush2.xpose.msra.mxu0 0.0
        %2847 = vmatprep.subr.mxu0 0.0
        %2848 = vmatpush2.xpose.msra.mxu0 0.0
        %2849 = vmatprep.subr.mxu0 0.0
        %2850 = vmatpush2.xpose.msra.mxu0 0.0
        %2851 = vmatprep.subr.mxu0 0.0
        %2852 = vmatpush2.xpose.msra.mxu0 0.0
        %2853 = vmatprep.subr.mxu0 0.0
        %2854 = vmatpush2.xpose.msra.mxu0 0.0
        %2855 = vmatprep.subr.mxu0 0.0
        %2856 = vmatpush2.xpose.msra.mxu0 0.0
        %2857 = vmatprep.subr.mxu0 0.0
        %2858 = vmatpush2.xpose.msra.mxu0 0.0
        %2859 = vmatprep.subr.mxu0 0.0
        %2860 = vmatpush2.xpose.msra.mxu0 0.0
        %2861 = vmatprep.subr.mxu0 0.0
        %2862 = vmatpush2.xpose.msra.mxu0 0.0
        %2863 = vmatprep.subr.mxu0 0.0
        %2864 = vmatpush2.xpose.msra.mxu0 0.0
        %2865 = vmatprep.subr.mxu0 0.0
        %2866 = vmatpush2.xpose.msra.mxu0 0.0
        %2867 = vmatprep.subr.mxu0 0.0
        %2868 = vmatpush2.xpose.msra.mxu0 0.0
        %2869 = vmatprep.subr.mxu0 0.0
        %2870 = vmatpush2.xpose.msra.mxu0 0.0
        %2871 = vmatprep.subr.mxu0 0.0
        %2872 = vmatpush2.xpose.msra.mxu0 0.0
        %2873 = vmatprep.subr.mxu0 0.0
        %2874 = vmatpush2.xpose.msra.mxu0 0.0
        %2875 = vmatprep.mubr.f32.mxu0 0.0
        %2876 = vmatmul.mubr.f32.gmra.mxu0 %v2807
        %v2877 = vpop.f32.mrf.mxu0
        %v2878 = vadd.f32 0.0, %v2877
        %v2879 = vpop.f32.mrf.mxu0
        %2880 = vdwg.mxu0
        %2881 = vrot.lane.b32.xlu0 %v1221, 120
        %v2882 = vpop.permute.xlu0 %2881
        %2883 = vrot.lane.b32.xlu0 %v1221, 88
        %v2884 = vpop.permute.xlu0 %2883
        %v2885 = vsel %vm1242, %v2882, 0
        %v2887 = vsel %vm1242, %v2884, 0
        %2889 = vmatprep.subr.mxu0 0.0
        %2890 = vmatpush1.xpose.msra.mxu0 0.0
        %2891 = vmatprep.subr.mxu0 0.0
        %2892 = vmatpush1.xpose.msra.mxu0 0.0
        %2893 = vmatprep.subr.mxu0 0.0
        %2894 = vmatpush1.xpose.msra.mxu0 0.0
        %2895 = vmatprep.subr.mxu0 0.0
        %2896 = vmatpush1.xpose.msra.mxu0 0.0
        %2897 = vmatprep.subr.mxu0 0.0
        %2898 = vmatpush1.xpose.msra.mxu0 0.0
        %2899 = vmatprep.subr.mxu0 0.0
        %2900 = vmatpush1.xpose.msra.mxu0 0.0
        %2901 = vmatprep.subr.mxu0 0.0
        %2902 = vmatpush1.xpose.msra.mxu0 0.0
        %2903 = vmatprep.subr.mxu0 0.0
        %2904 = vmatpush1.xpose.msra.mxu0 0.0
        %2905 = vmatprep.subr.mxu0 0.0
        %2906 = vmatpush1.xpose.msra.mxu0 0.0
        %2907 = vmatprep.subr.mxu0 0.0
        %2908 = vmatpush1.xpose.msra.mxu0 0.0
        %2909 = vmatprep.subr.mxu0 0.0
        %2910 = vmatpush1.xpose.msra.mxu0 0.0
        %2911 = vmatprep.subr.mxu0 0.0
        %2912 = vmatpush1.xpose.msra.mxu0 0.0
        %2913 = vmatprep.subr.mxu0 0.0
        %2914 = vmatpush1.xpose.msra.mxu0 0.0
        %2915 = vmatprep.subr.mxu0 0.0
        %2916 = vmatpush1.xpose.msra.mxu0 0.0
        %2917 = vmatprep.subr.mxu0 0.0
        %2918 = vmatpush1.xpose.msra.mxu0 0.0
        %2919 = vmatprep.subr.mxu0 0.0
        %2920 = vmatpush1.xpose.msra.mxu0 %v2887
        %2921 = vmatprep.subr.mxu0 0.0
        %2922 = vmatpush2.xpose.msra.mxu0 0.0
        %2923 = vmatprep.subr.mxu0 0.0
        %2924 = vmatpush2.xpose.msra.mxu0 0.0
        %2925 = vmatprep.subr.mxu0 0.0
        %2926 = vmatpush2.xpose.msra.mxu0 0.0
        %2927 = vmatprep.subr.mxu0 0.0
        %2928 = vmatpush2.xpose.msra.mxu0 0.0
        %2929 = vmatprep.subr.mxu0 0.0
        %2930 = vmatpush2.xpose.msra.mxu0 0.0
        %2931 = vmatprep.subr.mxu0 0.0
        %2932 = vmatpush2.xpose.msra.mxu0 0.0
        %2933 = vmatprep.subr.mxu0 0.0
        %2934 = vmatpush2.xpose.msra.mxu0 0.0
        %2935 = vmatprep.subr.mxu0 0.0
        %2936 = vmatpush2.xpose.msra.mxu0 0.0
        %2937 = vmatprep.subr.mxu0 0.0
        %2938 = vmatpush2.xpose.msra.mxu0 0.0
        %2939 = vmatprep.subr.mxu0 0.0
        %2940 = vmatpush2.xpose.msra.mxu0 0.0
        %2941 = vmatprep.subr.mxu0 0.0
        %2942 = vmatpush2.xpose.msra.mxu0 0.0
        %2943 = vmatprep.subr.mxu0 0.0
        %2944 = vmatpush2.xpose.msra.mxu0 0.0
        %2945 = vmatprep.subr.mxu0 0.0
        %2946 = vmatpush2.xpose.msra.mxu0 0.0
        %2947 = vmatprep.subr.mxu0 0.0
        %2948 = vmatpush2.xpose.msra.mxu0 0.0
        %2949 = vmatprep.subr.mxu0 0.0
        %2950 = vmatpush2.xpose.msra.mxu0 0.0
        %2951 = vmatprep.subr.mxu0 0.0
        %2952 = vmatpush2.xpose.msra.mxu0 0.0
        %2953 = vmatprep.mubr.f32.mxu0 0.0
        %2954 = vmatmul.mubr.f32.gmra.mxu0 %v2885
        %v2955 = vpop.f32.mrf.mxu0
        %v2956 = vadd.f32 0.0, %v2955
        %v2957 = vpop.f32.mrf.mxu0
        %2958 = vdwg.mxu0
        %2959 = vrot.lane.b32.xlu0 %v1224, 120
        %v2960 = vpop.permute.xlu0 %2959
        %2961 = vrot.lane.b32.xlu0 %v1224, 88
        %v2962 = vpop.permute.xlu0 %2961
        %v2963 = vsel %vm1242, %v2960, 0
        %v2965 = vsel %vm1242, %v2962, 0
        %2967 = vmatprep.subr.mxu0 0.0
        %2968 = vmatpush1.xpose.msra.mxu0 0.0
        %2969 = vmatprep.subr.mxu0 0.0
        %2970 = vmatpush1.xpose.msra.mxu0 0.0
        %2971 = vmatprep.subr.mxu0 0.0
        %2972 = vmatpush1.xpose.msra.mxu0 0.0
        %2973 = vmatprep.subr.mxu0 0.0
        %2974 = vmatpush1.xpose.msra.mxu0 0.0
        %2975 = vmatprep.subr.mxu0 0.0
        %2976 = vmatpush1.xpose.msra.mxu0 0.0
        %2977 = vmatprep.subr.mxu0 0.0
        %2978 = vmatpush1.xpose.msra.mxu0 0.0
        %2979 = vmatprep.subr.mxu0 0.0
        %2980 = vmatpush1.xpose.msra.mxu0 0.0
        %2981 = vmatprep.subr.mxu0 0.0
        %2982 = vmatpush1.xpose.msra.mxu0 0.0
        %2983 = vmatprep.subr.mxu0 0.0
        %2984 = vmatpush1.xpose.msra.mxu0 0.0
        %2985 = vmatprep.subr.mxu0 0.0
        %2986 = vmatpush1.xpose.msra.mxu0 0.0
        %2987 = vmatprep.subr.mxu0 0.0
        %2988 = vmatpush1.xpose.msra.mxu0 0.0
        %2989 = vmatprep.subr.mxu0 0.0
        %2990 = vmatpush1.xpose.msra.mxu0 0.0
        %2991 = vmatprep.subr.mxu0 0.0
        %2992 = vmatpush1.xpose.msra.mxu0 0.0
        %2993 = vmatprep.subr.mxu0 0.0
        %2994 = vmatpush1.xpose.msra.mxu0 0.0
        %2995 = vmatprep.subr.mxu0 0.0
        %2996 = vmatpush1.xpose.msra.mxu0 0.0
        %2997 = vmatprep.subr.mxu0 0.0
        %2998 = vmatpush1.xpose.msra.mxu0 %v2965
        %2999 = vmatprep.subr.mxu0 0.0
        %3000 = vmatpush2.xpose.msra.mxu0 0.0
        %3001 = vmatprep.subr.mxu0 0.0
        %3002 = vmatpush2.xpose.msra.mxu0 0.0
        %3003 = vmatprep.subr.mxu0 0.0
        %3004 = vmatpush2.xpose.msra.mxu0 0.0
        %3005 = vmatprep.subr.mxu0 0.0
        %3006 = vmatpush2.xpose.msra.mxu0 0.0
        %3007 = vmatprep.subr.mxu0 0.0
        %3008 = vmatpush2.xpose.msra.mxu0 0.0
        %3009 = vmatprep.subr.mxu0 0.0
        %3010 = vmatpush2.xpose.msra.mxu0 0.0
        %3011 = vmatprep.subr.mxu0 0.0
        %3012 = vmatpush2.xpose.msra.mxu0 0.0
        %3013 = vmatprep.subr.mxu0 0.0
        %3014 = vmatpush2.xpose.msra.mxu0 0.0
        %3015 = vmatprep.subr.mxu0 0.0
        %3016 = vmatpush2.xpose.msra.mxu0 0.0
        %3017 = vmatprep.subr.mxu0 0.0
        %3018 = vmatpush2.xpose.msra.mxu0 0.0
        %3019 = vmatprep.subr.mxu0 0.0
        %3020 = vmatpush2.xpose.msra.mxu0 0.0
        %3021 = vmatprep.subr.mxu0 0.0
        %3022 = vmatpush2.xpose.msra.mxu0 0.0
        %3023 = vmatprep.subr.mxu0 0.0
        %3024 = vmatpush2.xpose.msra.mxu0 0.0
        %3025 = vmatprep.subr.mxu0 0.0
        %3026 = vmatpush2.xpose.msra.mxu0 0.0
        %3027 = vmatprep.subr.mxu0 0.0
        %3028 = vmatpush2.xpose.msra.mxu0 0.0
        %3029 = vmatprep.subr.mxu0 0.0
        %3030 = vmatpush2.xpose.msra.mxu0 0.0
        %3031 = vmatprep.mubr.f32.mxu0 0.0
        %3032 = vmatmul.mubr.f32.gmra.mxu0 %v2963
        %v3033 = vpop.f32.mrf.mxu0
        %v3034 = vadd.f32 0.0, %v3033
        %v3035 = vpop.f32.mrf.mxu0
        %3036 = vdwg.mxu0
        %3037 = vrot.lane.b32.xlu0 %v1229, 120
        %v3038 = vpop.permute.xlu0 %3037
        %3039 = vrot.lane.b32.xlu0 %v1229, 88
        %v3040 = vpop.permute.xlu0 %3039
        %v3041 = vsel %vm1242, %v3038, 0
        %v3043 = vsel %vm1242, %v3040, 0
        %3045 = vmatprep.subr.mxu0 0.0
        %3046 = vmatpush1.xpose.msra.mxu0 0.0
        %3047 = vmatprep.subr.mxu0 0.0
        %3048 = vmatpush1.xpose.msra.mxu0 0.0
        %3049 = vmatprep.subr.mxu0 0.0
        %3050 = vmatpush1.xpose.msra.mxu0 0.0
        %3051 = vmatprep.subr.mxu0 0.0
        %3052 = vmatpush1.xpose.msra.mxu0 0.0
        %3053 = vmatprep.subr.mxu0 0.0
        %3054 = vmatpush1.xpose.msra.mxu0 0.0
        %3055 = vmatprep.subr.mxu0 0.0
        %3056 = vmatpush1.xpose.msra.mxu0 0.0
        %3057 = vmatprep.subr.mxu0 0.0
        %3058 = vmatpush1.xpose.msra.mxu0 0.0
        %3059 = vmatprep.subr.mxu0 0.0
        %3060 = vmatpush1.xpose.msra.mxu0 0.0
        %3061 = vmatprep.subr.mxu0 0.0
        %3062 = vmatpush1.xpose.msra.mxu0 0.0
        %3063 = vmatprep.subr.mxu0 0.0
        %3064 = vmatpush1.xpose.msra.mxu0 0.0
        %3065 = vmatprep.subr.mxu0 0.0
        %3066 = vmatpush1.xpose.msra.mxu0 0.0
        %3067 = vmatprep.subr.mxu0 0.0
        %3068 = vmatpush1.xpose.msra.mxu0 0.0
        %3069 = vmatprep.subr.mxu0 0.0
        %3070 = vmatpush1.xpose.msra.mxu0 0.0
        %3071 = vmatprep.subr.mxu0 0.0
        %3072 = vmatpush1.xpose.msra.mxu0 0.0
        %3073 = vmatprep.subr.mxu0 0.0
        %3074 = vmatpush1.xpose.msra.mxu0 0.0
        %3075 = vmatprep.subr.mxu0 0.0
        %3076 = vmatpush1.xpose.msra.mxu0 %v3043
        %3077 = vmatprep.subr.mxu0 0.0
        %3078 = vmatpush2.xpose.msra.mxu0 0.0
        %3079 = vmatprep.subr.mxu0 0.0
        %3080 = vmatpush2.xpose.msra.mxu0 0.0
        %3081 = vmatprep.subr.mxu0 0.0
        %3082 = vmatpush2.xpose.msra.mxu0 0.0
        %3083 = vmatprep.subr.mxu0 0.0
        %3084 = vmatpush2.xpose.msra.mxu0 0.0
        %3085 = vmatprep.subr.mxu0 0.0
        %3086 = vmatpush2.xpose.msra.mxu0 0.0
        %3087 = vmatprep.subr.mxu0 0.0
        %3088 = vmatpush2.xpose.msra.mxu0 0.0
        %3089 = vmatprep.subr.mxu0 0.0
        %3090 = vmatpush2.xpose.msra.mxu0 0.0
        %3091 = vmatprep.subr.mxu0 0.0
        %3092 = vmatpush2.xpose.msra.mxu0 0.0
        %3093 = vmatprep.subr.mxu0 0.0
        %3094 = vmatpush2.xpose.msra.mxu0 0.0
        %3095 = vmatprep.subr.mxu0 0.0
        %3096 = vmatpush2.xpose.msra.mxu0 0.0
        %3097 = vmatprep.subr.mxu0 0.0
        %3098 = vmatpush2.xpose.msra.mxu0 0.0
        %3099 = vmatprep.subr.mxu0 0.0
        %3100 = vmatpush2.xpose.msra.mxu0 0.0
        %3101 = vmatprep.subr.mxu0 0.0
        %3102 = vmatpush2.xpose.msra.mxu0 0.0
        %3103 = vmatprep.subr.mxu0 0.0
        %3104 = vmatpush2.xpose.msra.mxu0 0.0
        %3105 = vmatprep.subr.mxu0 0.0
        %3106 = vmatpush2.xpose.msra.mxu0 0.0
        %3107 = vmatprep.subr.mxu0 0.0
        %3108 = vmatpush2.xpose.msra.mxu0 0.0
        %3109 = vmatprep.mubr.f32.mxu0 0.0
        %3110 = vmatmul.mubr.f32.gmra.mxu0 %v3041
        %v3111 = vpop.f32.mrf.mxu0
        %v3112 = vadd.f32 0.0, %v3111
        %v3113 = vpop.f32.mrf.mxu0
        %3114 = vdwg.mxu0
        %3115 = vrot.lane.b32.xlu0 %v1232, 120
        %v3116 = vpop.permute.xlu0 %3115
        %3117 = vrot.lane.b32.xlu0 %v1232, 88
        %v3118 = vpop.permute.xlu0 %3117
        %v3119 = vsel %vm1242, %v3116, 0
        %v3121 = vsel %vm1242, %v3118, 0
        %3123 = vmatprep.subr.mxu0 0.0
        %3124 = vmatpush1.xpose.msra.mxu0 0.0
        %3125 = vmatprep.subr.mxu0 0.0
        %3126 = vmatpush1.xpose.msra.mxu0 0.0
        %3127 = vmatprep.subr.mxu0 0.0
        %3128 = vmatpush1.xpose.msra.mxu0 0.0
        %3129 = vmatprep.subr.mxu0 0.0
        %3130 = vmatpush1.xpose.msra.mxu0 0.0
        %3131 = vmatprep.subr.mxu0 0.0
        %3132 = vmatpush1.xpose.msra.mxu0 0.0
        %3133 = vmatprep.subr.mxu0 0.0
        %3134 = vmatpush1.xpose.msra.mxu0 0.0
        %3135 = vmatprep.subr.mxu0 0.0
        %3136 = vmatpush1.xpose.msra.mxu0 0.0
        %3137 = vmatprep.subr.mxu0 0.0
        %3138 = vmatpush1.xpose.msra.mxu0 0.0
        %3139 = vmatprep.subr.mxu0 0.0
        %3140 = vmatpush1.xpose.msra.mxu0 0.0
        %3141 = vmatprep.subr.mxu0 0.0
        %3142 = vmatpush1.xpose.msra.mxu0 0.0
        %3143 = vmatprep.subr.mxu0 0.0
        %3144 = vmatpush1.xpose.msra.mxu0 0.0
        %3145 = vmatprep.subr.mxu0 0.0
        %3146 = vmatpush1.xpose.msra.mxu0 0.0
        %3147 = vmatprep.subr.mxu0 0.0
        %3148 = vmatpush1.xpose.msra.mxu0 0.0
        %3149 = vmatprep.subr.mxu0 0.0
        %3150 = vmatpush1.xpose.msra.mxu0 0.0
        %3151 = vmatprep.subr.mxu0 0.0
        %3152 = vmatpush1.xpose.msra.mxu0 0.0
        %3153 = vmatprep.subr.mxu0 0.0
        %3154 = vmatpush1.xpose.msra.mxu0 %v3121
        %3155 = vmatprep.subr.mxu0 0.0
        %3156 = vmatpush2.xpose.msra.mxu0 0.0
        %3157 = vmatprep.subr.mxu0 0.0
        %3158 = vmatpush2.xpose.msra.mxu0 0.0
        %3159 = vmatprep.subr.mxu0 0.0
        %3160 = vmatpush2.xpose.msra.mxu0 0.0
        %3161 = vmatprep.subr.mxu0 0.0
        %3162 = vmatpush2.xpose.msra.mxu0 0.0
        %3163 = vmatprep.subr.mxu0 0.0
        %3164 = vmatpush2.xpose.msra.mxu0 0.0
        %3165 = vmatprep.subr.mxu0 0.0
        %3166 = vmatpush2.xpose.msra.mxu0 0.0
        %3167 = vmatprep.subr.mxu0 0.0
        %3168 = vmatpush2.xpose.msra.mxu0 0.0
        %3169 = vmatprep.subr.mxu0 0.0
        %3170 = vmatpush2.xpose.msra.mxu0 0.0
        %3171 = vmatprep.subr.mxu0 0.0
        %3172 = vmatpush2.xpose.msra.mxu0 0.0
        %3173 = vmatprep.subr.mxu0 0.0
        %3174 = vmatpush2.xpose.msra.mxu0 0.0
        %3175 = vmatprep.subr.mxu0 0.0
        %3176 = vmatpush2.xpose.msra.mxu0 0.0
        %3177 = vmatprep.subr.mxu0 0.0
        %3178 = vmatpush2.xpose.msra.mxu0 0.0
        %3179 = vmatprep.subr.mxu0 0.0
        %3180 = vmatpush2.xpose.msra.mxu0 0.0
        %3181 = vmatprep.subr.mxu0 0.0
        %3182 = vmatpush2.xpose.msra.mxu0 0.0
        %3183 = vmatprep.subr.mxu0 0.0
        %3184 = vmatpush2.xpose.msra.mxu0 0.0
        %3185 = vmatprep.subr.mxu0 0.0
        %3186 = vmatpush2.xpose.msra.mxu0 0.0
        %3187 = vmatprep.mubr.f32.mxu0 0.0
        %3188 = vmatmul.mubr.f32.gmra.mxu0 %v3119
        %v3189 = vpop.f32.mrf.mxu0
        %v3190 = vadd.f32 0.0, %v3189
        %v3191 = vpop.f32.mrf.mxu0
        %3192 = vdwg.mxu0
        %v3193 = vmul.f32 %v2644, 0.35355338
        %v3194 = vmul.f32 %v2722, 0.35355338
        %v3195 = vmul.f32 %v2800, 0.35355338
        %v3196 = vmul.f32 %v2878, 0.35355338
        %v3197 = vmul.f32 %v2956, 0.35355338
        %v3198 = vmul.f32 %v3034, 0.35355338
        %v3199 = vmul.f32 %v3112, 0.35355338
        %v3200 = vmul.f32 %v3190, 0.35355338
        %v3201 = vadd.f32 %v3193, %v1238
        %v3202 = vadd.f32 %v3194, %v1238
        %v3203 = vadd.f32 %v3195, %v1238
        %v3204 = vadd.f32 %v3196, %v1238
        %v3205 = vadd.f32 %v3197, %v1238
        %v3206 = vadd.f32 %v3198, %v1238
        %v3207 = vadd.f32 %v3199, %v1238
        %v3208 = vadd.f32 %v3200, %v1238
        %v3209 = vsel %vm1242, %v3201, -inf
        %3210 = vmax.xlane.f32.xlu0 %v3209
        %v3211 = vpop.xlane.xlu0 %3210
        %v3212 = vsel %vm1242, %v3202, -inf
        %3213 = vmax.xlane.f32.xlu0 %v3212
        %v3214 = vpop.xlane.xlu0 %3213
        %v3215 = vsel %vm1242, %v3203, -inf
        %3216 = vmax.xlane.f32.xlu0 %v3215
        %v3217 = vpop.xlane.xlu0 %3216
        %v3218 = vsel %vm1242, %v3204, -inf
        %3219 = vmax.xlane.f32.xlu0 %v3218
        %v3220 = vpop.xlane.xlu0 %3219
        %v3221 = vsel %vm1242, %v3205, -inf
        %3222 = vmax.xlane.f32.xlu0 %v3221
        %v3223 = vpop.xlane.xlu0 %3222
        %v3224 = vsel %vm1242, %v3206, -inf
        %3225 = vmax.xlane.f32.xlu0 %v3224
        %v3226 = vpop.xlane.xlu0 %3225
        %v3227 = vsel %vm1242, %v3207, -inf
        %3228 = vmax.xlane.f32.xlu0 %v3227
        %v3229 = vpop.xlane.xlu0 %3228
        %v3230 = vsel %vm1242, %v3208, -inf
        %3231 = vmax.xlane.f32.xlu0 %v3230
        %v3232 = vpop.xlane.xlu0 %3231
        %v3233 = vsub.f32 %v3201, %v3211
        %v3234 = vsub.f32 %v3202, %v3214
        %v3235 = vsub.f32 %v3203, %v3217
        %v3236 = vsub.f32 %v3204, %v3220
        %v3237 = vsub.f32 %v3205, %v3223
        %v3238 = vsub.f32 %v3206, %v3226
        %v3239 = vsub.f32 %v3207, %v3229
        %v3240 = vsub.f32 %v3208, %v3232
        %v3241 = vmul.f32 %v3233, 1.442695
        %v3242 = vpow.pop %v3241
        %v3243 = vmul.f32 %v3234, 1.442695
        %v3244 = vpow.pop %v3243
        %v3245 = vmul.f32 %v3235, 1.442695
        %v3246 = vpow.pop %v3245
        %v3247 = vmul.f32 %v3236, 1.442695
        %v3248 = vpow.pop %v3247
        %v3249 = vmul.f32 %v3237, 1.442695
        %v3250 = vpow.pop %v3249
        %v3251 = vmul.f32 %v3238, 1.442695
        %v3252 = vpow.pop %v3251
        %v3253 = vmul.f32 %v3239, 1.442695
        %v3254 = vpow.pop %v3253
        %v3255 = vmul.f32 %v3240, 1.442695
        %v3256 = vpow.pop %v3255
        %v3257 = vsel %vm1242, %v3242, 0.0
        %3258 = vadd.xlane.f32.xlu0 %v3257
        %v3259 = vpop.xlane.xlu0 %3258
        %v3260 = vsel %vm1242, %v3244, 0.0
        %3261 = vadd.xlane.f32.xlu0 %v3260
        %v3262 = vpop.xlane.xlu0 %3261
        %v3263 = vsel %vm1242, %v3246, 0.0
        %3264 = vadd.xlane.f32.xlu0 %v3263
        %v3265 = vpop.xlane.xlu0 %3264
        %v3266 = vsel %vm1242, %v3248, 0.0
        %3267 = vadd.xlane.f32.xlu0 %v3266
        %v3268 = vpop.xlane.xlu0 %3267
        %v3269 = vsel %vm1242, %v3250, 0.0
        %3270 = vadd.xlane.f32.xlu0 %v3269
        %v3271 = vpop.xlane.xlu0 %3270
        %v3272 = vsel %vm1242, %v3252, 0.0
        %3273 = vadd.xlane.f32.xlu0 %v3272
        %v3274 = vpop.xlane.xlu0 %3273
        %v3275 = vsel %vm1242, %v3254, 0.0
        %3276 = vadd.xlane.f32.xlu0 %v3275
        %v3277 = vpop.xlane.xlu0 %3276
        %v3278 = vsel %vm1242, %v3256, 0.0
        %3279 = vadd.xlane.f32.xlu0 %v3278
        %v3280 = vpop.xlane.xlu0 %3279
        %v3281 = vrcp.pop %v3259
        %v3282 = vrcp.pop %v3262
        %v3283 = vrcp.pop %v3265
        %v3284 = vrcp.pop %v3268
        %v3285 = vrcp.pop %v3271
        %v3286 = vrcp.pop %v3274
        %v3287 = vrcp.pop %v3277
        %v3288 = vrcp.pop %v3280
        %v3289 = vmul.f32 %v3242, %v3281
        %v3290 = vmul.f32 %v3244, %v3282
        %v3291 = vmul.f32 %v3246, %v3283
        %v3292 = vmul.f32 %v3248, %v3284
        %v3293 = vmul.f32 %v3250, %v3285
        %v3294 = vmul.f32 %v3252, %v3286
        %v3295 = vmul.f32 %v3254, %v3287
        %v3296 = vmul.f32 %v3256, %v3288
        %3297 = vrot.lane.b32.xlu0 %v1205, 56
        %v3298 = vpop.permute.xlu0 %3297
        %v3301 = vsel %vm1242, %v3289, 0
        %3303 = vmatprep.subr.mxu0 0.0
        %3304 = vmatpush1.msra.mxu0 0.0
        %3305 = vmatprep.subr.mxu0 0.0
        %3306 = vmatpush1.msra.mxu0 0.0
        %3307 = vmatprep.subr.mxu0 0.0
        %3308 = vmatpush1.msra.mxu0 0.0
        %3309 = vmatprep.subr.mxu0 0.0
        %3310 = vmatpush1.msra.mxu0 0.0
        %3311 = vmatprep.subr.mxu0 0.0
        %3312 = vmatpush1.msra.mxu0 0.0
        %3313 = vmatprep.subr.mxu0 0.0
        %3314 = vmatpush1.msra.mxu0 0.0
        %3315 = vmatprep.subr.mxu0 0.0
        %3316 = vmatpush1.msra.mxu0 0.0
        %3317 = vmatprep.subr.mxu0 0.0
        %3318 = vmatpush1.msra.mxu0 0.0
        %3319 = vmatprep.subr.mxu0 0.0
        %3320 = vmatpush1.msra.mxu0 0.0
        %3321 = vmatprep.subr.mxu0 0.0
        %3322 = vmatpush1.msra.mxu0 0.0
        %3323 = vmatprep.subr.mxu0 0.0
        %3324 = vmatpush1.msra.mxu0 0.0
        %3325 = vmatprep.subr.mxu0 0.0
        %3326 = vmatpush1.msra.mxu0 0.0
        %3327 = vmatprep.subr.mxu0 0.0
        %3328 = vmatpush1.msra.mxu0 0.0
        %3329 = vmatprep.subr.mxu0 0.0
        %3330 = vmatpush1.msra.mxu0 0.0
        %3331 = vmatprep.subr.mxu0 0.0
        %3332 = vmatpush1.msra.mxu0 0.0
        %3333 = vmatprep.subr.mxu0 0.0
        %3334 = vmatpush1.msra.mxu0 %v3298
        %3335 = vmatprep.subr.mxu0 0.0
        %3336 = vmatpush2.msra.mxu0 0.0
        %3337 = vmatprep.subr.mxu0 0.0
        %3338 = vmatpush2.msra.mxu0 0.0
        %3339 = vmatprep.subr.mxu0 0.0
        %3340 = vmatpush2.msra.mxu0 0.0
        %3341 = vmatprep.subr.mxu0 0.0
        %3342 = vmatpush2.msra.mxu0 0.0
        %3343 = vmatprep.subr.mxu0 0.0
        %3344 = vmatpush2.msra.mxu0 0.0
        %3345 = vmatprep.subr.mxu0 0.0
        %3346 = vmatpush2.msra.mxu0 0.0
        %3347 = vmatprep.subr.mxu0 0.0
        %3348 = vmatpush2.msra.mxu0 0.0
        %3349 = vmatprep.subr.mxu0 0.0
        %3350 = vmatpush2.msra.mxu0 0.0
        %3351 = vmatprep.subr.mxu0 0.0
        %3352 = vmatpush2.msra.mxu0 0.0
        %3353 = vmatprep.subr.mxu0 0.0
        %3354 = vmatpush2.msra.mxu0 0.0
        %3355 = vmatprep.subr.mxu0 0.0
        %3356 = vmatpush2.msra.mxu0 0.0
        %3357 = vmatprep.subr.mxu0 0.0
        %3358 = vmatpush2.msra.mxu0 0.0
        %3359 = vmatprep.subr.mxu0 0.0
        %3360 = vmatpush2.msra.mxu0 0.0
        %3361 = vmatprep.subr.mxu0 0.0
        %3362 = vmatpush2.msra.mxu0 0.0
        %3363 = vmatprep.subr.mxu0 0.0
        %3364 = vmatpush2.msra.mxu0 0.0
        %3365 = vmatprep.subr.mxu0 0.0
        %3366 = vmatpush2.msra.mxu0 0.0
        %3367 = vmatprep.mubr.f32.mxu0 0.0
        %3368 = vmatmul.mubr.f32.gmra.mxu0 %v3301
        %v3369 = vpop.f32.mrf.mxu0
        %v3370 = vadd.f32 0.0, %v3369
        %v3371 = vpop.f32.mrf.mxu0
        %3372 = vdwg.mxu0
        %3373 = vrot.lane.b32.xlu0 %v1208, 56
        %v3374 = vpop.permute.xlu0 %3373
        %v3377 = vsel %vm1242, %v3290, 0
        %3379 = vmatprep.subr.mxu0 0.0
        %3380 = vmatpush1.msra.mxu0 0.0
        %3381 = vmatprep.subr.mxu0 0.0
        %3382 = vmatpush1.msra.mxu0 0.0
        %3383 = vmatprep.subr.mxu0 0.0
        %3384 = vmatpush1.msra.mxu0 0.0
        %3385 = vmatprep.subr.mxu0 0.0
        %3386 = vmatpush1.msra.mxu0 0.0
        %3387 = vmatprep.subr.mxu0 0.0
        %3388 = vmatpush1.msra.mxu0 0.0
        %3389 = vmatprep.subr.mxu0 0.0
        %3390 = vmatpush1.msra.mxu0 0.0
        %3391 = vmatprep.subr.mxu0 0.0
        %3392 = vmatpush1.msra.mxu0 0.0
        %3393 = vmatprep.subr.mxu0 0.0
        %3394 = vmatpush1.msra.mxu0 0.0
        %3395 = vmatprep.subr.mxu0 0.0
        %3396 = vmatpush1.msra.mxu0 0.0
        %3397 = vmatprep.subr.mxu0 0.0
        %3398 = vmatpush1.msra.mxu0 0.0
        %3399 = vmatprep.subr.mxu0 0.0
        %3400 = vmatpush1.msra.mxu0 0.0
        %3401 = vmatprep.subr.mxu0 0.0
        %3402 = vmatpush1.msra.mxu0 0.0
        %3403 = vmatprep.subr.mxu0 0.0
        %3404 = vmatpush1.msra.mxu0 0.0
        %3405 = vmatprep.subr.mxu0 0.0
        %3406 = vmatpush1.msra.mxu0 0.0
        %3407 = vmatprep.subr.mxu0 0.0
        %3408 = vmatpush1.msra.mxu0 0.0
        %3409 = vmatprep.subr.mxu0 0.0
        %3410 = vmatpush1.msra.mxu0 %v3374
        %3411 = vmatprep.subr.mxu0 0.0
        %3412 = vmatpush2.msra.mxu0 0.0
        %3413 = vmatprep.subr.mxu0 0.0
        %3414 = vmatpush2.msra.mxu0 0.0
        %3415 = vmatprep.subr.mxu0 0.0
        %3416 = vmatpush2.msra.mxu0 0.0
        %3417 = vmatprep.subr.mxu0 0.0
        %3418 = vmatpush2.msra.mxu0 0.0
        %3419 = vmatprep.subr.mxu0 0.0
        %3420 = vmatpush2.msra.mxu0 0.0
        %3421 = vmatprep.subr.mxu0 0.0
        %3422 = vmatpush2.msra.mxu0 0.0
        %3423 = vmatprep.subr.mxu0 0.0
        %3424 = vmatpush2.msra.mxu0 0.0
        %3425 = vmatprep.subr.mxu0 0.0
        %3426 = vmatpush2.msra.mxu0 0.0
        %3427 = vmatprep.subr.mxu0 0.0
        %3428 = vmatpush2.msra.mxu0 0.0
        %3429 = vmatprep.subr.mxu0 0.0
        %3430 = vmatpush2.msra.mxu0 0.0
        %3431 = vmatprep.subr.mxu0 0.0
        %3432 = vmatpush2.msra.mxu0 0.0
        %3433 = vmatprep.subr.mxu0 0.0
        %3434 = vmatpush2.msra.mxu0 0.0
        %3435 = vmatprep.subr.mxu0 0.0
        %3436 = vmatpush2.msra.mxu0 0.0
        %3437 = vmatprep.subr.mxu0 0.0
        %3438 = vmatpush2.msra.mxu0 0.0
        %3439 = vmatprep.subr.mxu0 0.0
        %3440 = vmatpush2.msra.mxu0 0.0
        %3441 = vmatprep.subr.mxu0 0.0
        %3442 = vmatpush2.msra.mxu0 0.0
        %3443 = vmatprep.mubr.f32.mxu0 0.0
        %3444 = vmatmul.mubr.f32.gmra.mxu0 %v3377
        %v3445 = vpop.f32.mrf.mxu0
        %v3446 = vadd.f32 0.0, %v3445
        %v3447 = vpop.f32.mrf.mxu0
        %3448 = vdwg.mxu0
        %3449 = vrot.lane.b32.xlu0 %v1213, 56
        %v3450 = vpop.permute.xlu0 %3449
        %v3453 = vsel %vm1242, %v3291, 0
        %3455 = vmatprep.subr.mxu0 0.0
        %3456 = vmatpush1.msra.mxu0 0.0
        %3457 = vmatprep.subr.mxu0 0.0
        %3458 = vmatpush1.msra.mxu0 0.0
        %3459 = vmatprep.subr.mxu0 0.0
        %3460 = vmatpush1.msra.mxu0 0.0
        %3461 = vmatprep.subr.mxu0 0.0
        %3462 = vmatpush1.msra.mxu0 0.0
        %3463 = vmatprep.subr.mxu0 0.0
        %3464 = vmatpush1.msra.mxu0 0.0
        %3465 = vmatprep.subr.mxu0 0.0
        %3466 = vmatpush1.msra.mxu0 0.0
        %3467 = vmatprep.subr.mxu0 0.0
        %3468 = vmatpush1.msra.mxu0 0.0
        %3469 = vmatprep.subr.mxu0 0.0
        %3470 = vmatpush1.msra.mxu0 0.0
        %3471 = vmatprep.subr.mxu0 0.0
        %3472 = vmatpush1.msra.mxu0 0.0
        %3473 = vmatprep.subr.mxu0 0.0
        %3474 = vmatpush1.msra.mxu0 0.0
        %3475 = vmatprep.subr.mxu0 0.0
        %3476 = vmatpush1.msra.mxu0 0.0
        %3477 = vmatprep.subr.mxu0 0.0
        %3478 = vmatpush1.msra.mxu0 0.0
        %3479 = vmatprep.subr.mxu0 0.0
        %3480 = vmatpush1.msra.mxu0 0.0
        %3481 = vmatprep.subr.mxu0 0.0
        %3482 = vmatpush1.msra.mxu0 0.0
        %3483 = vmatprep.subr.mxu0 0.0
        %3484 = vmatpush1.msra.mxu0 0.0
        %3485 = vmatprep.subr.mxu0 0.0
        %3486 = vmatpush1.msra.mxu0 %v3450
        %3487 = vmatprep.subr.mxu0 0.0
        %3488 = vmatpush2.msra.mxu0 0.0
        %3489 = vmatprep.subr.mxu0 0.0
        %3490 = vmatpush2.msra.mxu0 0.0
        %3491 = vmatprep.subr.mxu0 0.0
        %3492 = vmatpush2.msra.mxu0 0.0
        %3493 = vmatprep.subr.mxu0 0.0
        %3494 = vmatpush2.msra.mxu0 0.0
        %3495 = vmatprep.subr.mxu0 0.0
        %3496 = vmatpush2.msra.mxu0 0.0
        %3497 = vmatprep.subr.mxu0 0.0
        %3498 = vmatpush2.msra.mxu0 0.0
        %3499 = vmatprep.subr.mxu0 0.0
        %3500 = vmatpush2.msra.mxu0 0.0
        %3501 = vmatprep.subr.mxu0 0.0
        %3502 = vmatpush2.msra.mxu0 0.0
        %3503 = vmatprep.subr.mxu0 0.0
        %3504 = vmatpush2.msra.mxu0 0.0
        %3505 = vmatprep.subr.mxu0 0.0
        %3506 = vmatpush2.msra.mxu0 0.0
        %3507 = vmatprep.subr.mxu0 0.0
        %3508 = vmatpush2.msra.mxu0 0.0
        %3509 = vmatprep.subr.mxu0 0.0
        %3510 = vmatpush2.msra.mxu0 0.0
        %3511 = vmatprep.subr.mxu0 0.0
        %3512 = vmatpush2.msra.mxu0 0.0
        %3513 = vmatprep.subr.mxu0 0.0
        %3514 = vmatpush2.msra.mxu0 0.0
        %3515 = vmatprep.subr.mxu0 0.0
        %3516 = vmatpush2.msra.mxu0 0.0
        %3517 = vmatprep.subr.mxu0 0.0
        %3518 = vmatpush2.msra.mxu0 0.0
        %3519 = vmatprep.mubr.f32.mxu0 0.0
        %3520 = vmatmul.mubr.f32.gmra.mxu0 %v3453
        %v3521 = vpop.f32.mrf.mxu0
        %v3522 = vadd.f32 0.0, %v3521
        %v3523 = vpop.f32.mrf.mxu0
        %3524 = vdwg.mxu0
        %3525 = vrot.lane.b32.xlu0 %v1216, 56
        %v3526 = vpop.permute.xlu0 %3525
        %v3529 = vsel %vm1242, %v3292, 0
        %3531 = vmatprep.subr.mxu0 0.0
        %3532 = vmatpush1.msra.mxu0 0.0
        %3533 = vmatprep.subr.mxu0 0.0
        %3534 = vmatpush1.msra.mxu0 0.0
        %3535 = vmatprep.subr.mxu0 0.0
        %3536 = vmatpush1.msra.mxu0 0.0
        %3537 = vmatprep.subr.mxu0 0.0
        %3538 = vmatpush1.msra.mxu0 0.0
        %3539 = vmatprep.subr.mxu0 0.0
        %3540 = vmatpush1.msra.mxu0 0.0
        %3541 = vmatprep.subr.mxu0 0.0
        %3542 = vmatpush1.msra.mxu0 0.0
        %3543 = vmatprep.subr.mxu0 0.0
        %3544 = vmatpush1.msra.mxu0 0.0
        %3545 = vmatprep.subr.mxu0 0.0
        %3546 = vmatpush1.msra.mxu0 0.0
        %3547 = vmatprep.subr.mxu0 0.0
        %3548 = vmatpush1.msra.mxu0 0.0
        %3549 = vmatprep.subr.mxu0 0.0
        %3550 = vmatpush1.msra.mxu0 0.0
        %3551 = vmatprep.subr.mxu0 0.0
        %3552 = vmatpush1.msra.mxu0 0.0
        %3553 = vmatprep.subr.mxu0 0.0
        %3554 = vmatpush1.msra.mxu0 0.0
        %3555 = vmatprep.subr.mxu0 0.0
        %3556 = vmatpush1.msra.mxu0 0.0
        %3557 = vmatprep.subr.mxu0 0.0
        %3558 = vmatpush1.msra.mxu0 0.0
        %3559 = vmatprep.subr.mxu0 0.0
        %3560 = vmatpush1.msra.mxu0 0.0
        %3561 = vmatprep.subr.mxu0 0.0
        %3562 = vmatpush1.msra.mxu0 %v3526
        %3563 = vmatprep.subr.mxu0 0.0
        %3564 = vmatpush2.msra.mxu0 0.0
        %3565 = vmatprep.subr.mxu0 0.0
        %3566 = vmatpush2.msra.mxu0 0.0
        %3567 = vmatprep.subr.mxu0 0.0
        %3568 = vmatpush2.msra.mxu0 0.0
        %3569 = vmatprep.subr.mxu0 0.0
        %3570 = vmatpush2.msra.mxu0 0.0
        %3571 = vmatprep.subr.mxu0 0.0
        %3572 = vmatpush2.msra.mxu0 0.0
        %3573 = vmatprep.subr.mxu0 0.0
        %3574 = vmatpush2.msra.mxu0 0.0
        %3575 = vmatprep.subr.mxu0 0.0
        %3576 = vmatpush2.msra.mxu0 0.0
        %3577 = vmatprep.subr.mxu0 0.0
        %3578 = vmatpush2.msra.mxu0 0.0
        %3579 = vmatprep.subr.mxu0 0.0
        %3580 = vmatpush2.msra.mxu0 0.0
        %3581 = vmatprep.subr.mxu0 0.0
        %3582 = vmatpush2.msra.mxu0 0.0
        %3583 = vmatprep.subr.mxu0 0.0
        %3584 = vmatpush2.msra.mxu0 0.0
        %3585 = vmatprep.subr.mxu0 0.0
        %3586 = vmatpush2.msra.mxu0 0.0
        %3587 = vmatprep.subr.mxu0 0.0
        %3588 = vmatpush2.msra.mxu0 0.0
        %3589 = vmatprep.subr.mxu0 0.0
        %3590 = vmatpush2.msra.mxu0 0.0
        %3591 = vmatprep.subr.mxu0 0.0
        %3592 = vmatpush2.msra.mxu0 0.0
        %3593 = vmatprep.subr.mxu0 0.0
        %3594 = vmatpush2.msra.mxu0 0.0
        %3595 = vmatprep.mubr.f32.mxu0 0.0
        %3596 = vmatmul.mubr.f32.gmra.mxu0 %v3529
        %v3597 = vpop.f32.mrf.mxu0
        %v3598 = vadd.f32 0.0, %v3597
        %v3599 = vpop.f32.mrf.mxu0
        %3600 = vdwg.mxu0
        %3601 = vrot.lane.b32.xlu0 %v1221, 56
        %v3602 = vpop.permute.xlu0 %3601
        %v3605 = vsel %vm1242, %v3293, 0
        %3607 = vmatprep.subr.mxu0 0.0
        %3608 = vmatpush1.msra.mxu0 0.0
        %3609 = vmatprep.subr.mxu0 0.0
        %3610 = vmatpush1.msra.mxu0 0.0
        %3611 = vmatprep.subr.mxu0 0.0
        %3612 = vmatpush1.msra.mxu0 0.0
        %3613 = vmatprep.subr.mxu0 0.0
        %3614 = vmatpush1.msra.mxu0 0.0
        %3615 = vmatprep.subr.mxu0 0.0
        %3616 = vmatpush1.msra.mxu0 0.0
        %3617 = vmatprep.subr.mxu0 0.0
        %3618 = vmatpush1.msra.mxu0 0.0
        %3619 = vmatprep.subr.mxu0 0.0
        %3620 = vmatpush1.msra.mxu0 0.0
        %3621 = vmatprep.subr.mxu0 0.0
        %3622 = vmatpush1.msra.mxu0 0.0
        %3623 = vmatprep.subr.mxu0 0.0
        %3624 = vmatpush1.msra.mxu0 0.0
        %3625 = vmatprep.subr.mxu0 0.0
        %3626 = vmatpush1.msra.mxu0 0.0
        %3627 = vmatprep.subr.mxu0 0.0
        %3628 = vmatpush1.msra.mxu0 0.0
        %3629 = vmatprep.subr.mxu0 0.0
        %3630 = vmatpush1.msra.mxu0 0.0
        %3631 = vmatprep.subr.mxu0 0.0
        %3632 = vmatpush1.msra.mxu0 0.0
        %3633 = vmatprep.subr.mxu0 0.0
        %3634 = vmatpush1.msra.mxu0 0.0
        %3635 = vmatprep.subr.mxu0 0.0
        %3636 = vmatpush1.msra.mxu0 0.0
        %3637 = vmatprep.subr.mxu0 0.0
        %3638 = vmatpush1.msra.mxu0 %v3602
        %3639 = vmatprep.subr.mxu0 0.0
        %3640 = vmatpush2.msra.mxu0 0.0
        %3641 = vmatprep.subr.mxu0 0.0
        %3642 = vmatpush2.msra.mxu0 0.0
        %3643 = vmatprep.subr.mxu0 0.0
        %3644 = vmatpush2.msra.mxu0 0.0
        %3645 = vmatprep.subr.mxu0 0.0
        %3646 = vmatpush2.msra.mxu0 0.0
        %3647 = vmatprep.subr.mxu0 0.0
        %3648 = vmatpush2.msra.mxu0 0.0
        %3649 = vmatprep.subr.mxu0 0.0
        %3650 = vmatpush2.msra.mxu0 0.0
        %3651 = vmatprep.subr.mxu0 0.0
        %3652 = vmatpush2.msra.mxu0 0.0
        %3653 = vmatprep.subr.mxu0 0.0
        %3654 = vmatpush2.msra.mxu0 0.0
        %3655 = vmatprep.subr.mxu0 0.0
        %3656 = vmatpush2.msra.mxu0 0.0
        %3657 = vmatprep.subr.mxu0 0.0
        %3658 = vmatpush2.msra.mxu0 0.0
        %3659 = vmatprep.subr.mxu0 0.0
        %3660 = vmatpush2.msra.mxu0 0.0
        %3661 = vmatprep.subr.mxu0 0.0
        %3662 = vmatpush2.msra.mxu0 0.0
        %3663 = vmatprep.subr.mxu0 0.0
        %3664 = vmatpush2.msra.mxu0 0.0
        %3665 = vmatprep.subr.mxu0 0.0
        %3666 = vmatpush2.msra.mxu0 0.0
        %3667 = vmatprep.subr.mxu0 0.0
        %3668 = vmatpush2.msra.mxu0 0.0
        %3669 = vmatprep.subr.mxu0 0.0
        %3670 = vmatpush2.msra.mxu0 0.0
        %3671 = vmatprep.mubr.f32.mxu0 0.0
        %3672 = vmatmul.mubr.f32.gmra.mxu0 %v3605
        %v3673 = vpop.f32.mrf.mxu0
        %v3674 = vadd.f32 0.0, %v3673
        %v3675 = vpop.f32.mrf.mxu0
        %3676 = vdwg.mxu0
        %3677 = vrot.lane.b32.xlu0 %v1224, 56
        %v3678 = vpop.permute.xlu0 %3677
        %v3681 = vsel %vm1242, %v3294, 0
        %3683 = vmatprep.subr.mxu0 0.0
        %3684 = vmatpush1.msra.mxu0 0.0
        %3685 = vmatprep.subr.mxu0 0.0
        %3686 = vmatpush1.msra.mxu0 0.0
        %3687 = vmatprep.subr.mxu0 0.0
        %3688 = vmatpush1.msra.mxu0 0.0
        %3689 = vmatprep.subr.mxu0 0.0
        %3690 = vmatpush1.msra.mxu0 0.0
        %3691 = vmatprep.subr.mxu0 0.0
        %3692 = vmatpush1.msra.mxu0 0.0
        %3693 = vmatprep.subr.mxu0 0.0
        %3694 = vmatpush1.msra.mxu0 0.0
        %3695 = vmatprep.subr.mxu0 0.0
        %3696 = vmatpush1.msra.mxu0 0.0
        %3697 = vmatprep.subr.mxu0 0.0
        %3698 = vmatpush1.msra.mxu0 0.0
        %3699 = vmatprep.subr.mxu0 0.0
        %3700 = vmatpush1.msra.mxu0 0.0
        %3701 = vmatprep.subr.mxu0 0.0
        %3702 = vmatpush1.msra.mxu0 0.0
        %3703 = vmatprep.subr.mxu0 0.0
        %3704 = vmatpush1.msra.mxu0 0.0
        %3705 = vmatprep.subr.mxu0 0.0
        %3706 = vmatpush1.msra.mxu0 0.0
        %3707 = vmatprep.subr.mxu0 0.0
        %3708 = vmatpush1.msra.mxu0 0.0
        %3709 = vmatprep.subr.mxu0 0.0
        %3710 = vmatpush1.msra.mxu0 0.0
        %3711 = vmatprep.subr.mxu0 0.0
        %3712 = vmatpush1.msra.mxu0 0.0
        %3713 = vmatprep.subr.mxu0 0.0
        %3714 = vmatpush1.msra.mxu0 %v3678
        %3715 = vmatprep.subr.mxu0 0.0
        %3716 = vmatpush2.msra.mxu0 0.0
        %3717 = vmatprep.subr.mxu0 0.0
        %3718 = vmatpush2.msra.mxu0 0.0
        %3719 = vmatprep.subr.mxu0 0.0
        %3720 = vmatpush2.msra.mxu0 0.0
        %3721 = vmatprep.subr.mxu0 0.0
        %3722 = vmatpush2.msra.mxu0 0.0
        %3723 = vmatprep.subr.mxu0 0.0
        %3724 = vmatpush2.msra.mxu0 0.0
        %3725 = vmatprep.subr.mxu0 0.0
        %3726 = vmatpush2.msra.mxu0 0.0
        %3727 = vmatprep.subr.mxu0 0.0
        %3728 = vmatpush2.msra.mxu0 0.0
        %3729 = vmatprep.subr.mxu0 0.0
        %3730 = vmatpush2.msra.mxu0 0.0
        %3731 = vmatprep.subr.mxu0 0.0
        %3732 = vmatpush2.msra.mxu0 0.0
        %3733 = vmatprep.subr.mxu0 0.0
        %3734 = vmatpush2.msra.mxu0 0.0
        %3735 = vmatprep.subr.mxu0 0.0
        %3736 = vmatpush2.msra.mxu0 0.0
        %3737 = vmatprep.subr.mxu0 0.0
        %3738 = vmatpush2.msra.mxu0 0.0
        %3739 = vmatprep.subr.mxu0 0.0
        %3740 = vmatpush2.msra.mxu0 0.0
        %3741 = vmatprep.subr.mxu0 0.0
        %3742 = vmatpush2.msra.mxu0 0.0
        %3743 = vmatprep.subr.mxu0 0.0
        %3744 = vmatpush2.msra.mxu0 0.0
        %3745 = vmatprep.subr.mxu0 0.0
        %3746 = vmatpush2.msra.mxu0 0.0
        %3747 = vmatprep.mubr.f32.mxu0 0.0
        %3748 = vmatmul.mubr.f32.gmra.mxu0 %v3681
        %v3749 = vpop.f32.mrf.mxu0
        %v3750 = vadd.f32 0.0, %v3749
        %v3751 = vpop.f32.mrf.mxu0
        %3752 = vdwg.mxu0
        %3753 = vrot.lane.b32.xlu0 %v1229, 56
        %v3754 = vpop.permute.xlu0 %3753
        %v3757 = vsel %vm1242, %v3295, 0
        %3759 = vmatprep.subr.mxu0 0.0
        %3760 = vmatpush1.msra.mxu0 0.0
        %3761 = vmatprep.subr.mxu0 0.0
        %3762 = vmatpush1.msra.mxu0 0.0
        %3763 = vmatprep.subr.mxu0 0.0
        %3764 = vmatpush1.msra.mxu0 0.0
        %3765 = vmatprep.subr.mxu0 0.0
        %3766 = vmatpush1.msra.mxu0 0.0
        %3767 = vmatprep.subr.mxu0 0.0
        %3768 = vmatpush1.msra.mxu0 0.0
        %3769 = vmatprep.subr.mxu0 0.0
        %3770 = vmatpush1.msra.mxu0 0.0
        %3771 = vmatprep.subr.mxu0 0.0
        %3772 = vmatpush1.msra.mxu0 0.0
        %3773 = vmatprep.subr.mxu0 0.0
        %3774 = vmatpush1.msra.mxu0 0.0
        %3775 = vmatprep.subr.mxu0 0.0
        %3776 = vmatpush1.msra.mxu0 0.0
        %3777 = vmatprep.subr.mxu0 0.0
        %3778 = vmatpush1.msra.mxu0 0.0
        %3779 = vmatprep.subr.mxu0 0.0
        %3780 = vmatpush1.msra.mxu0 0.0
        %3781 = vmatprep.subr.mxu0 0.0
        %3782 = vmatpush1.msra.mxu0 0.0
        %3783 = vmatprep.subr.mxu0 0.0
        %3784 = vmatpush1.msra.mxu0 0.0
        %3785 = vmatprep.subr.mxu0 0.0
        %3786 = vmatpush1.msra.mxu0 0.0
        %3787 = vmatprep.subr.mxu0 0.0
        %3788 = vmatpush1.msra.mxu0 0.0
        %3789 = vmatprep.subr.mxu0 0.0
        %3790 = vmatpush1.msra.mxu0 %v3754
        %3791 = vmatprep.subr.mxu0 0.0
        %3792 = vmatpush2.msra.mxu0 0.0
        %3793 = vmatprep.subr.mxu0 0.0
        %3794 = vmatpush2.msra.mxu0 0.0
        %3795 = vmatprep.subr.mxu0 0.0
        %3796 = vmatpush2.msra.mxu0 0.0
        %3797 = vmatprep.subr.mxu0 0.0
        %3798 = vmatpush2.msra.mxu0 0.0
        %3799 = vmatprep.subr.mxu0 0.0
        %3800 = vmatpush2.msra.mxu0 0.0
        %3801 = vmatprep.subr.mxu0 0.0
        %3802 = vmatpush2.msra.mxu0 0.0
        %3803 = vmatprep.subr.mxu0 0.0
        %3804 = vmatpush2.msra.mxu0 0.0
        %3805 = vmatprep.subr.mxu0 0.0
        %3806 = vmatpush2.msra.mxu0 0.0
        %3807 = vmatprep.subr.mxu0 0.0
        %3808 = vmatpush2.msra.mxu0 0.0
        %3809 = vmatprep.subr.mxu0 0.0
        %3810 = vmatpush2.msra.mxu0 0.0
        %3811 = vmatprep.subr.mxu0 0.0
        %3812 = vmatpush2.msra.mxu0 0.0
        %3813 = vmatprep.subr.mxu0 0.0
        %3814 = vmatpush2.msra.mxu0 0.0
        %3815 = vmatprep.subr.mxu0 0.0
        %3816 = vmatpush2.msra.mxu0 0.0
        %3817 = vmatprep.subr.mxu0 0.0
        %3818 = vmatpush2.msra.mxu0 0.0
        %3819 = vmatprep.subr.mxu0 0.0
        %3820 = vmatpush2.msra.mxu0 0.0
        %3821 = vmatprep.subr.mxu0 0.0
        %3822 = vmatpush2.msra.mxu0 0.0
        %3823 = vmatprep.mubr.f32.mxu0 0.0
        %3824 = vmatmul.mubr.f32.gmra.mxu0 %v3757
        %v3825 = vpop.f32.mrf.mxu0
        %v3826 = vadd.f32 0.0, %v3825
        %v3827 = vpop.f32.mrf.mxu0
        %3828 = vdwg.mxu0
        %3829 = vrot.lane.b32.xlu0 %v1232, 56
        %v3830 = vpop.permute.xlu0 %3829
        %v3833 = vsel %vm1242, %v3296, 0
        %3835 = vmatprep.subr.mxu0 0.0
        %3836 = vmatpush1.msra.mxu0 0.0
        %3837 = vmatprep.subr.mxu0 0.0
        %3838 = vmatpush1.msra.mxu0 0.0
        %3839 = vmatprep.subr.mxu0 0.0
        %3840 = vmatpush1.msra.mxu0 0.0
        %3841 = vmatprep.subr.mxu0 0.0
        %3842 = vmatpush1.msra.mxu0 0.0
        %3843 = vmatprep.subr.mxu0 0.0
        %3844 = vmatpush1.msra.mxu0 0.0
        %3845 = vmatprep.subr.mxu0 0.0
        %3846 = vmatpush1.msra.mxu0 0.0
        %3847 = vmatprep.subr.mxu0 0.0
        %3848 = vmatpush1.msra.mxu0 0.0
        %3849 = vmatprep.subr.mxu0 0.0
        %3850 = vmatpush1.msra.mxu0 0.0
        %3851 = vmatprep.subr.mxu0 0.0
        %3852 = vmatpush1.msra.mxu0 0.0
        %3853 = vmatprep.subr.mxu0 0.0
        %3854 = vmatpush1.msra.mxu0 0.0
        %3855 = vmatprep.subr.mxu0 0.0
        %3856 = vmatpush1.msra.mxu0 0.0
        %3857 = vmatprep.subr.mxu0 0.0
        %3858 = vmatpush1.msra.mxu0 0.0
        %3859 = vmatprep.subr.mxu0 0.0
        %3860 = vmatpush1.msra.mxu0 0.0
        %3861 = vmatprep.subr.mxu0 0.0
        %3862 = vmatpush1.msra.mxu0 0.0
        %3863 = vmatprep.subr.mxu0 0.0
        %3864 = vmatpush1.msra.mxu0 0.0
        %3865 = vmatprep.subr.mxu0 0.0
        %3866 = vmatpush1.msra.mxu0 %v3830
        %3867 = vmatprep.subr.mxu0 0.0
        %3868 = vmatpush2.msra.mxu0 0.0
        %3869 = vmatprep.subr.mxu0 0.0
        %3870 = vmatpush2.msra.mxu0 0.0
        %3871 = vmatprep.subr.mxu0 0.0
        %3872 = vmatpush2.msra.mxu0 0.0
        %3873 = vmatprep.subr.mxu0 0.0
        %3874 = vmatpush2.msra.mxu0 0.0
        %3875 = vmatprep.subr.mxu0 0.0
        %3876 = vmatpush2.msra.mxu0 0.0
        %3877 = vmatprep.subr.mxu0 0.0
        %3878 = vmatpush2.msra.mxu0 0.0
        %3879 = vmatprep.subr.mxu0 0.0
        %3880 = vmatpush2.msra.mxu0 0.0
        %3881 = vmatprep.subr.mxu0 0.0
        %3882 = vmatpush2.msra.mxu0 0.0
        %3883 = vmatprep.subr.mxu0 0.0
        %3884 = vmatpush2.msra.mxu0 0.0
        %3885 = vmatprep.subr.mxu0 0.0
        %3886 = vmatpush2.msra.mxu0 0.0
        %3887 = vmatprep.subr.mxu0 0.0
        %3888 = vmatpush2.msra.mxu0 0.0
        %3889 = vmatprep.subr.mxu0 0.0
        %3890 = vmatpush2.msra.mxu0 0.0
        %3891 = vmatprep.subr.mxu0 0.0
        %3892 = vmatpush2.msra.mxu0 0.0
        %3893 = vmatprep.subr.mxu0 0.0
        %3894 = vmatpush2.msra.mxu0 0.0
        %3895 = vmatprep.subr.mxu0 0.0
        %3896 = vmatpush2.msra.mxu0 0.0
        %3897 = vmatprep.subr.mxu0 0.0
        %3898 = vmatpush2.msra.mxu0 0.0
        %3899 = vmatprep.mubr.f32.mxu0 0.0
        %3900 = vmatmul.mubr.f32.gmra.mxu0 %v3833
        %v3901 = vpop.f32.mrf.mxu0
        %v3902 = vadd.f32 0.0, %v3901
        %v3903 = vpop.f32.mrf.mxu0
        %3904 = vdwg.mxu0
        %v3905 = vld [vmem:[%s9 + $0x8] sm:$0xff]
        %v3907 = vsel %vm1242, %v3370, 0
        %v3910 = vsel %vm1242, %v3446, 0
        %v3913 = vsel %vm1242, %v3522, 0
        %v3916 = vsel %vm1242, %v3598, 0
        %v3919 = vsel %vm1242, %v3674, 0
        %v3922 = vsel %vm1242, %v3750, 0
        %v3925 = vsel %vm1242, %v3826, 0
        %v3928 = vsel %vm1242, %v3902, 0
        %3930 = vmatprep.subr.mxu0 0.0
        %3931 = vmatpush1.msra.mxu0 0.0
        %3932 = vmatprep.subr.mxu0 0.0
        %3933 = vmatpush1.msra.mxu0 0.0
        %3934 = vmatprep.subr.mxu0 0.0
        %3935 = vmatpush1.msra.mxu0 0.0
        %3936 = vmatprep.subr.mxu0 0.0
        %3937 = vmatpush1.msra.mxu0 0.0
        %3938 = vmatprep.subr.mxu0 0.0
        %3939 = vmatpush1.msra.mxu0 0.0
        %3940 = vmatprep.subr.mxu0 0.0
        %3941 = vmatpush1.msra.mxu0 0.0
        %3942 = vmatprep.subr.mxu0 0.0
        %3943 = vmatpush1.msra.mxu0 0.0
        %3944 = vmatprep.subr.mxu0 0.0
        %3945 = vmatpush1.msra.mxu0 0.0
        %3946 = vmatprep.subr.mxu0 0.0
        %3947 = vmatpush1.msra.mxu0 0.0
        %3948 = vmatprep.subr.mxu0 0.0
        %3949 = vmatpush1.msra.mxu0 0.0
        %3950 = vmatprep.subr.mxu0 0.0
        %3951 = vmatpush1.msra.mxu0 0.0
        %3952 = vmatprep.subr.mxu0 0.0
        %3953 = vmatpush1.msra.mxu0 0.0
        %3954 = vmatprep.subr.mxu0 0.0
        %3955 = vmatpush1.msra.mxu0 0.0
        %3956 = vmatprep.subr.mxu0 0.0
        %3957 = vmatpush1.msra.mxu0 0.0
        %3958 = vmatprep.subr.mxu0 0.0
        %3959 = vmatpush1.msra.mxu0 0.0
        %3960 = vmatprep.subr.mxu0 0.0
        %3961 = vmatpush1.msra.mxu0 %v3905
        %3962 = vmatprep.subr.mxu0 0.0
        %3963 = vmatpush2.msra.mxu0 0.0
        %3964 = vmatprep.subr.mxu0 0.0
        %3965 = vmatpush2.msra.mxu0 0.0
        %3966 = vmatprep.subr.mxu0 0.0
        %3967 = vmatpush2.msra.mxu0 0.0
        %3968 = vmatprep.subr.mxu0 0.0
        %3969 = vmatpush2.msra.mxu0 0.0
        %3970 = vmatprep.subr.mxu0 0.0
        %3971 = vmatpush2.msra.mxu0 0.0
        %3972 = vmatprep.subr.mxu0 0.0
        %3973 = vmatpush2.msra.mxu0 0.0
        %3974 = vmatprep.subr.mxu0 0.0
        %3975 = vmatpush2.msra.mxu0 0.0
        %3976 = vmatprep.subr.mxu0 0.0
        %3977 = vmatpush2.msra.mxu0 0.0
        %3978 = vmatprep.subr.mxu0 0.0
        %3979 = vmatpush2.msra.mxu0 0.0
        %3980 = vmatprep.subr.mxu0 0.0
        %3981 = vmatpush2.msra.mxu0 0.0
        %3982 = vmatprep.subr.mxu0 0.0
        %3983 = vmatpush2.msra.mxu0 0.0
        %3984 = vmatprep.subr.mxu0 0.0
        %3985 = vmatpush2.msra.mxu0 0.0
        %3986 = vmatprep.subr.mxu0 0.0
        %3987 = vmatpush2.msra.mxu0 0.0
        %3988 = vmatprep.subr.mxu0 0.0
        %3989 = vmatpush2.msra.mxu0 0.0
        %3990 = vmatprep.subr.mxu0 0.0
        %3991 = vmatpush2.msra.mxu0 0.0
        %3992 = vmatprep.subr.mxu0 0.0
        %3993 = vmatpush2.msra.mxu0 0.0
        %3994 = vmatprep.mubr.f32.mxu0 0.0
        %3995 = vmatmul.mubr.f32.gmra.mxu0 %v3907
        %v3996 = vpop.f32.mrf.mxu0
        %v3997 = vadd.f32 0.0, %v3996
        %v3998 = vpop.f32.mrf.mxu0
        %3999 = vmatprep.mubr.f32.mxu0 0.0
        %4000 = vmatmul.mubr.f32.gmra.mxu0 %v3910
        %v4001 = vpop.f32.mrf.mxu0
        %v4002 = vadd.f32 0.0, %v4001
        %v4003 = vpop.f32.mrf.mxu0
        %4004 = vmatprep.mubr.f32.mxu0 0.0
        %4005 = vmatmul.mubr.f32.gmra.mxu0 %v3913
        %v4006 = vpop.f32.mrf.mxu0
        %v4007 = vadd.f32 0.0, %v4006
        %v4008 = vpop.f32.mrf.mxu0
        %4009 = vmatprep.mubr.f32.mxu0 0.0
        %4010 = vmatmul.mubr.f32.gmra.mxu0 %v3916
        %v4011 = vpop.f32.mrf.mxu0
        %v4012 = vadd.f32 0.0, %v4011
        %v4013 = vpop.f32.mrf.mxu0
        %4014 = vmatprep.mubr.f32.mxu0 0.0
        %4015 = vmatmul.mubr.f32.gmra.mxu0 %v3919
        %v4016 = vpop.f32.mrf.mxu0
        %v4017 = vadd.f32 0.0, %v4016
        %v4018 = vpop.f32.mrf.mxu0
        %4019 = vmatprep.mubr.f32.mxu0 0.0
        %4020 = vmatmul.mubr.f32.gmra.mxu0 %v3922
        %v4021 = vpop.f32.mrf.mxu0
        %v4022 = vadd.f32 0.0, %v4021
        %v4023 = vpop.f32.mrf.mxu0
        %4024 = vmatprep.mubr.f32.mxu0 0.0
        %4025 = vmatmul.mubr.f32.gmra.mxu0 %v3925
        %v4026 = vpop.f32.mrf.mxu0
        %v4027 = vadd.f32 0.0, %v4026
        %v4028 = vpop.f32.mrf.mxu0
        %4029 = vmatprep.mubr.f32.mxu0 0.0
        %4030 = vmatmul.mubr.f32.gmra.mxu0 %v3928
        %v4031 = vpop.f32.mrf.mxu0
        %v4032 = vadd.f32 0.0, %v4031
        %v4033 = vpop.f32.mrf.mxu0
        %4034 = vdwg.mxu0
        %v4036 = vsel %vm1242, %v2033, 0
        %v4039 = vsel %vm1242, %v2109, 0
        %v4042 = vsel %vm1242, %v2185, 0
        %v4045 = vsel %vm1242, %v2261, 0
        %v4048 = vsel %vm1242, %v2337, 0
        %v4051 = vsel %vm1242, %v2413, 0
        %v4054 = vsel %vm1242, %v2489, 0
        %v4057 = vsel %vm1242, %v2565, 0
        %4059 = vmatprep.subr.mxu0 0.0
        %4060 = vmatpush1.msra.mxu0 0.0
        %4061 = vmatprep.subr.mxu0 0.0
        %4062 = vmatpush1.msra.mxu0 0.0
        %4063 = vmatprep.subr.mxu0 0.0
        %4064 = vmatpush1.msra.mxu0 0.0
        %4065 = vmatprep.subr.mxu0 0.0
        %4066 = vmatpush1.msra.mxu0 0.0
        %4067 = vmatprep.subr.mxu0 0.0
        %4068 = vmatpush1.msra.mxu0 0.0
        %4069 = vmatprep.subr.mxu0 0.0
        %4070 = vmatpush1.msra.mxu0 0.0
        %4071 = vmatprep.subr.mxu0 0.0
        %4072 = vmatpush1.msra.mxu0 0.0
        %4073 = vmatprep.subr.mxu0 0.0
        %4074 = vmatpush1.msra.mxu0 0.0
        %4075 = vmatprep.subr.mxu0 0.0
        %4076 = vmatpush1.msra.mxu0 0.0
        %4077 = vmatprep.subr.mxu0 0.0
        %4078 = vmatpush1.msra.mxu0 0.0
        %4079 = vmatprep.subr.mxu0 0.0
        %4080 = vmatpush1.msra.mxu0 0.0
        %4081 = vmatprep.subr.mxu0 0.0
        %4082 = vmatpush1.msra.mxu0 0.0
        %4083 = vmatprep.subr.mxu0 0.0
        %4084 = vmatpush1.msra.mxu0 0.0
        %4085 = vmatprep.subr.mxu0 0.0
        %4086 = vmatpush1.msra.mxu0 0.0
        %4087 = vmatprep.subr.mxu0 0.0
        %4088 = vmatpush1.msra.mxu0 0.0
        %4089 = vmatprep.subr.mxu0 0.0
        %4090 = vmatpush1.msra.mxu0 %v2568
        %4091 = vmatprep.subr.mxu0 0.0
        %4092 = vmatpush2.msra.mxu0 0.0
        %4093 = vmatprep.subr.mxu0 0.0
        %4094 = vmatpush2.msra.mxu0 0.0
        %4095 = vmatprep.subr.mxu0 0.0
        %4096 = vmatpush2.msra.mxu0 0.0
        %4097 = vmatprep.subr.mxu0 0.0
        %4098 = vmatpush2.msra.mxu0 0.0
        %4099 = vmatprep.subr.mxu0 0.0
        %4100 = vmatpush2.msra.mxu0 0.0
        %4101 = vmatprep.subr.mxu0 0.0
        %4102 = vmatpush2.msra.mxu0 0.0
        %4103 = vmatprep.subr.mxu0 0.0
        %4104 = vmatpush2.msra.mxu0 0.0
        %4105 = vmatprep.subr.mxu0 0.0
        %4106 = vmatpush2.msra.mxu0 0.0
        %4107 = vmatprep.subr.mxu0 0.0
        %4108 = vmatpush2.msra.mxu0 0.0
        %4109 = vmatprep.subr.mxu0 0.0
        %4110 = vmatpush2.msra.mxu0 0.0
        %4111 = vmatprep.subr.mxu0 0.0
        %4112 = vmatpush2.msra.mxu0 0.0
        %4113 = vmatprep.subr.mxu0 0.0
        %4114 = vmatpush2.msra.mxu0 0.0
        %4115 = vmatprep.subr.mxu0 0.0
        %4116 = vmatpush2.msra.mxu0 0.0
        %4117 = vmatprep.subr.mxu0 0.0
        %4118 = vmatpush2.msra.mxu0 0.0
        %4119 = vmatprep.subr.mxu0 0.0
        %4120 = vmatpush2.msra.mxu0 0.0
        %4121 = vmatprep.subr.mxu0 0.0
        %4122 = vmatpush2.msra.mxu0 0.0
        %4123 = vmatprep.mubr.f32.mxu0 0.0
        %4124 = vmatmul.mubr.f32.gmra.mxu0 %v4036
        %v4125 = vpop.f32.mrf.mxu0
        %v4126 = vadd.f32 %v3997, %v4125
        %v4127 = vpop.f32.mrf.mxu0
        %4128 = vmatprep.mubr.f32.mxu0 0.0
        %4129 = vmatmul.mubr.f32.gmra.mxu0 %v4039
        %v4130 = vpop.f32.mrf.mxu0
        %v4131 = vadd.f32 %v4002, %v4130
        %v4132 = vpop.f32.mrf.mxu0
        %4133 = vmatprep.mubr.f32.mxu0 0.0
        %4134 = vmatmul.mubr.f32.gmra.mxu0 %v4042
        %v4135 = vpop.f32.mrf.mxu0
        %v4136 = vadd.f32 %v4007, %v4135
        %v4137 = vpop.f32.mrf.mxu0
        %4138 = vmatprep.mubr.f32.mxu0 0.0
        %4139 = vmatmul.mubr.f32.gmra.mxu0 %v4045
        %v4140 = vpop.f32.mrf.mxu0
        %v4141 = vadd.f32 %v4012, %v4140
        %v4142 = vpop.f32.mrf.mxu0
        %4143 = vmatprep.mubr.f32.mxu0 0.0
        %4144 = vmatmul.mubr.f32.gmra.mxu0 %v4048
        %v4145 = vpop.f32.mrf.mxu0
        %v4146 = vadd.f32 %v4017, %v4145
        %v4147 = vpop.f32.mrf.mxu0
        %4148 = vmatprep.mubr.f32.mxu0 0.0
        %4149 = vmatmul.mubr.f32.gmra.mxu0 %v4051
        %v4150 = vpop.f32.mrf.mxu0
        %v4151 = vadd.f32 %v4022, %v4150
        %v4152 = vpop.f32.mrf.mxu0
        %4153 = vmatprep.mubr.f32.mxu0 0.0
        %4154 = vmatmul.mubr.f32.gmra.mxu0 %v4054
        %v4155 = vpop.f32.mrf.mxu0
        %v4156 = vadd.f32 %v4027, %v4155
        %v4157 = vpop.f32.mrf.mxu0
        %4158 = vmatprep.mubr.f32.mxu0 0.0
        %4159 = vmatmul.mubr.f32.gmra.mxu0 %v4057
        %v4160 = vpop.f32.mrf.mxu0
        %v4161 = vadd.f32 %v4032, %v4160
        %v4162 = vpop.f32.mrf.mxu0
        %4163 = vdwg.mxu0
        %4164 = vrot.lane.b32.xlu0 %v1205, 112
        %v4165 = vpop.permute.xlu0 %4164
        %4166 = vrot.lane.b32.xlu0 %v1205, 80
        %v4167 = vpop.permute.xlu0 %4166
        %v4168 = vsel %vm1242, %v4165, 0
        %v4170 = vsel %vm1242, %v4167, 0
        %4172 = vmatprep.subr.mxu0 0.0
        %4173 = vmatpush1.xpose.msra.mxu0 0.0
        %4174 = vmatprep.subr.mxu0 0.0
        %4175 = vmatpush1.xpose.msra.mxu0 0.0
        %4176 = vmatprep.subr.mxu0 0.0
        %4177 = vmatpush1.xpose.msra.mxu0 0.0
        %4178 = vmatprep.subr.mxu0 0.0
        %4179 = vmatpush1.xpose.msra.mxu0 0.0
        %4180 = vmatprep.subr.mxu0 0.0
        %4181 = vmatpush1.xpose.msra.mxu0 0.0
        %4182 = vmatprep.subr.mxu0 0.0
        %4183 = vmatpush1.xpose.msra.mxu0 0.0
        %4184 = vmatprep.subr.mxu0 0.0
        %4185 = vmatpush1.xpose.msra.mxu0 0.0
        %4186 = vmatprep.subr.mxu0 0.0
        %4187 = vmatpush1.xpose.msra.mxu0 0.0
        %4188 = vmatprep.subr.mxu0 0.0
        %4189 = vmatpush1.xpose.msra.mxu0 0.0
        %4190 = vmatprep.subr.mxu0 0.0
        %4191 = vmatpush1.xpose.msra.mxu0 0.0
        %4192 = vmatprep.subr.mxu0 0.0
        %4193 = vmatpush1.xpose.msra.mxu0 0.0
        %4194 = vmatprep.subr.mxu0 0.0
        %4195 = vmatpush1.xpose.msra.mxu0 0.0
        %4196 = vmatprep.subr.mxu0 0.0
        %4197 = vmatpush1.xpose.msra.mxu0 0.0
        %4198 = vmatprep.subr.mxu0 0.0
        %4199 = vmatpush1.xpose.msra.mxu0 0.0
        %4200 = vmatprep.subr.mxu0 0.0
        %4201 = vmatpush1.xpose.msra.mxu0 0.0
        %4202 = vmatprep.subr.mxu0 0.0
        %4203 = vmatpush1.xpose.msra.mxu0 %v4170
        %4204 = vmatprep.subr.mxu0 0.0
        %4205 = vmatpush2.xpose.msra.mxu0 0.0
        %4206 = vmatprep.subr.mxu0 0.0
        %4207 = vmatpush2.xpose.msra.mxu0 0.0
        %4208 = vmatprep.subr.mxu0 0.0
        %4209 = vmatpush2.xpose.msra.mxu0 0.0
        %4210 = vmatprep.subr.mxu0 0.0
        %4211 = vmatpush2.xpose.msra.mxu0 0.0
        %4212 = vmatprep.subr.mxu0 0.0
        %4213 = vmatpush2.xpose.msra.mxu0 0.0
        %4214 = vmatprep.subr.mxu0 0.0
        %4215 = vmatpush2.xpose.msra.mxu0 0.0
        %4216 = vmatprep.subr.mxu0 0.0
        %4217 = vmatpush2.xpose.msra.mxu0 0.0
        %4218 = vmatprep.subr.mxu0 0.0
        %4219 = vmatpush2.xpose.msra.mxu0 0.0
        %4220 = vmatprep.subr.mxu0 0.0
        %4221 = vmatpush2.xpose.msra.mxu0 0.0
        %4222 = vmatprep.subr.mxu0 0.0
        %4223 = vmatpush2.xpose.msra.mxu0 0.0
        %4224 = vmatprep.subr.mxu0 0.0
        %4225 = vmatpush2.xpose.msra.mxu0 0.0
        %4226 = vmatprep.subr.mxu0 0.0
        %4227 = vmatpush2.xpose.msra.mxu0 0.0
        %4228 = vmatprep.subr.mxu0 0.0
        %4229 = vmatpush2.xpose.msra.mxu0 0.0
        %4230 = vmatprep.subr.mxu0 0.0
        %4231 = vmatpush2.xpose.msra.mxu0 0.0
        %4232 = vmatprep.subr.mxu0 0.0
        %4233 = vmatpush2.xpose.msra.mxu0 0.0
        %4234 = vmatprep.subr.mxu0 0.0
        %4235 = vmatpush2.xpose.msra.mxu0 0.0
        %4236 = vmatprep.mubr.f32.mxu0 0.0
        %4237 = vmatmul.mubr.f32.gmra.mxu0 %v4168
        %v4238 = vpop.f32.mrf.mxu0
        %v4239 = vadd.f32 0.0, %v4238
        %v4240 = vpop.f32.mrf.mxu0
        %4241 = vdwg.mxu0
        %4242 = vrot.lane.b32.xlu0 %v1208, 112
        %v4243 = vpop.permute.xlu0 %4242
        %4244 = vrot.lane.b32.xlu0 %v1208, 80
        %v4245 = vpop.permute.xlu0 %4244
        %v4246 = vsel %vm1242, %v4243, 0
        %v4248 = vsel %vm1242, %v4245, 0
        %4250 = vmatprep.subr.mxu0 0.0
        %4251 = vmatpush1.xpose.msra.mxu0 0.0
        %4252 = vmatprep.subr.mxu0 0.0
        %4253 = vmatpush1.xpose.msra.mxu0 0.0
        %4254 = vmatprep.subr.mxu0 0.0
        %4255 = vmatpush1.xpose.msra.mxu0 0.0
        %4256 = vmatprep.subr.mxu0 0.0
        %4257 = vmatpush1.xpose.msra.mxu0 0.0
        %4258 = vmatprep.subr.mxu0 0.0
        %4259 = vmatpush1.xpose.msra.mxu0 0.0
        %4260 = vmatprep.subr.mxu0 0.0
        %4261 = vmatpush1.xpose.msra.mxu0 0.0
        %4262 = vmatprep.subr.mxu0 0.0
        %4263 = vmatpush1.xpose.msra.mxu0 0.0
        %4264 = vmatprep.subr.mxu0 0.0
        %4265 = vmatpush1.xpose.msra.mxu0 0.0
        %4266 = vmatprep.subr.mxu0 0.0
        %4267 = vmatpush1.xpose.msra.mxu0 0.0
        %4268 = vmatprep.subr.mxu0 0.0
        %4269 = vmatpush1.xpose.msra.mxu0 0.0
        %4270 = vmatprep.subr.mxu0 0.0
        %4271 = vmatpush1.xpose.msra.mxu0 0.0
        %4272 = vmatprep.subr.mxu0 0.0
        %4273 = vmatpush1.xpose.msra.mxu0 0.0
        %4274 = vmatprep.subr.mxu0 0.0
        %4275 = vmatpush1.xpose.msra.mxu0 0.0
        %4276 = vmatprep.subr.mxu0 0.0
        %4277 = vmatpush1.xpose.msra.mxu0 0.0
        %4278 = vmatprep.subr.mxu0 0.0
        %4279 = vmatpush1.xpose.msra.mxu0 0.0
        %4280 = vmatprep.subr.mxu0 0.0
        %4281 = vmatpush1.xpose.msra.mxu0 %v4248
        %4282 = vmatprep.subr.mxu0 0.0
        %4283 = vmatpush2.xpose.msra.mxu0 0.0
        %4284 = vmatprep.subr.mxu0 0.0
        %4285 = vmatpush2.xpose.msra.mxu0 0.0
        %4286 = vmatprep.subr.mxu0 0.0
        %4287 = vmatpush2.xpose.msra.mxu0 0.0
        %4288 = vmatprep.subr.mxu0 0.0
        %4289 = vmatpush2.xpose.msra.mxu0 0.0
        %4290 = vmatprep.subr.mxu0 0.0
        %4291 = vmatpush2.xpose.msra.mxu0 0.0
        %4292 = vmatprep.subr.mxu0 0.0
        %4293 = vmatpush2.xpose.msra.mxu0 0.0
        %4294 = vmatprep.subr.mxu0 0.0
        %4295 = vmatpush2.xpose.msra.mxu0 0.0
        %4296 = vmatprep.subr.mxu0 0.0
        %4297 = vmatpush2.xpose.msra.mxu0 0.0
        %4298 = vmatprep.subr.mxu0 0.0
        %4299 = vmatpush2.xpose.msra.mxu0 0.0
        %4300 = vmatprep.subr.mxu0 0.0
        %4301 = vmatpush2.xpose.msra.mxu0 0.0
        %4302 = vmatprep.subr.mxu0 0.0
        %4303 = vmatpush2.xpose.msra.mxu0 0.0
        %4304 = vmatprep.subr.mxu0 0.0
        %4305 = vmatpush2.xpose.msra.mxu0 0.0
        %4306 = vmatprep.subr.mxu0 0.0
        %4307 = vmatpush2.xpose.msra.mxu0 0.0
        %4308 = vmatprep.subr.mxu0 0.0
        %4309 = vmatpush2.xpose.msra.mxu0 0.0
        %4310 = vmatprep.subr.mxu0 0.0
        %4311 = vmatpush2.xpose.msra.mxu0 0.0
        %4312 = vmatprep.subr.mxu0 0.0
        %4313 = vmatpush2.xpose.msra.mxu0 0.0
        %4314 = vmatprep.mubr.f32.mxu0 0.0
        %4315 = vmatmul.mubr.f32.gmra.mxu0 %v4246
        %v4316 = vpop.f32.mrf.mxu0
        %v4317 = vadd.f32 0.0, %v4316
        %v4318 = vpop.f32.mrf.mxu0
        %4319 = vdwg.mxu0
        %4320 = vrot.lane.b32.xlu0 %v1213, 112
        %v4321 = vpop.permute.xlu0 %4320
        %4322 = vrot.lane.b32.xlu0 %v1213, 80
        %v4323 = vpop.permute.xlu0 %4322
        %v4324 = vsel %vm1242, %v4321, 0
        %v4326 = vsel %vm1242, %v4323, 0
        %4328 = vmatprep.subr.mxu0 0.0
        %4329 = vmatpush1.xpose.msra.mxu0 0.0
        %4330 = vmatprep.subr.mxu0 0.0
        %4331 = vmatpush1.xpose.msra.mxu0 0.0
        %4332 = vmatprep.subr.mxu0 0.0
        %4333 = vmatpush1.xpose.msra.mxu0 0.0
        %4334 = vmatprep.subr.mxu0 0.0
        %4335 = vmatpush1.xpose.msra.mxu0 0.0
        %4336 = vmatprep.subr.mxu0 0.0
        %4337 = vmatpush1.xpose.msra.mxu0 0.0
        %4338 = vmatprep.subr.mxu0 0.0
        %4339 = vmatpush1.xpose.msra.mxu0 0.0
        %4340 = vmatprep.subr.mxu0 0.0
        %4341 = vmatpush1.xpose.msra.mxu0 0.0
        %4342 = vmatprep.subr.mxu0 0.0
        %4343 = vmatpush1.xpose.msra.mxu0 0.0
        %4344 = vmatprep.subr.mxu0 0.0
        %4345 = vmatpush1.xpose.msra.mxu0 0.0
        %4346 = vmatprep.subr.mxu0 0.0
        %4347 = vmatpush1.xpose.msra.mxu0 0.0
        %4348 = vmatprep.subr.mxu0 0.0
        %4349 = vmatpush1.xpose.msra.mxu0 0.0
        %4350 = vmatprep.subr.mxu0 0.0
        %4351 = vmatpush1.xpose.msra.mxu0 0.0
        %4352 = vmatprep.subr.mxu0 0.0
        %4353 = vmatpush1.xpose.msra.mxu0 0.0
        %4354 = vmatprep.subr.mxu0 0.0
        %4355 = vmatpush1.xpose.msra.mxu0 0.0
        %4356 = vmatprep.subr.mxu0 0.0
        %4357 = vmatpush1.xpose.msra.mxu0 0.0
        %4358 = vmatprep.subr.mxu0 0.0
        %4359 = vmatpush1.xpose.msra.mxu0 %v4326
        %4360 = vmatprep.subr.mxu0 0.0
        %4361 = vmatpush2.xpose.msra.mxu0 0.0
        %4362 = vmatprep.subr.mxu0 0.0
        %4363 = vmatpush2.xpose.msra.mxu0 0.0
        %4364 = vmatprep.subr.mxu0 0.0
        %4365 = vmatpush2.xpose.msra.mxu0 0.0
        %4366 = vmatprep.subr.mxu0 0.0
        %4367 = vmatpush2.xpose.msra.mxu0 0.0
        %4368 = vmatprep.subr.mxu0 0.0
        %4369 = vmatpush2.xpose.msra.mxu0 0.0
        %4370 = vmatprep.subr.mxu0 0.0
        %4371 = vmatpush2.xpose.msra.mxu0 0.0
        %4372 = vmatprep.subr.mxu0 0.0
        %4373 = vmatpush2.xpose.msra.mxu0 0.0
        %4374 = vmatprep.subr.mxu0 0.0
        %4375 = vmatpush2.xpose.msra.mxu0 0.0
        %4376 = vmatprep.subr.mxu0 0.0
        %4377 = vmatpush2.xpose.msra.mxu0 0.0
        %4378 = vmatprep.subr.mxu0 0.0
        %4379 = vmatpush2.xpose.msra.mxu0 0.0
        %4380 = vmatprep.subr.mxu0 0.0
        %4381 = vmatpush2.xpose.msra.mxu0 0.0
        %4382 = vmatprep.subr.mxu0 0.0
        %4383 = vmatpush2.xpose.msra.mxu0 0.0
        %4384 = vmatprep.subr.mxu0 0.0
        %4385 = vmatpush2.xpose.msra.mxu0 0.0
        %4386 = vmatprep.subr.mxu0 0.0
        %4387 = vmatpush2.xpose.msra.mxu0 0.0
        %4388 = vmatprep.subr.mxu0 0.0
        %4389 = vmatpush2.xpose.msra.mxu0 0.0
        %4390 = vmatprep.subr.mxu0 0.0
        %4391 = vmatpush2.xpose.msra.mxu0 0.0
        %4392 = vmatprep.mubr.f32.mxu0 0.0
        %4393 = vmatmul.mubr.f32.gmra.mxu0 %v4324
        %v4394 = vpop.f32.mrf.mxu0
        %v4395 = vadd.f32 0.0, %v4394
        %v4396 = vpop.f32.mrf.mxu0
        %4397 = vdwg.mxu0
        %4398 = vrot.lane.b32.xlu0 %v1216, 112
        %v4399 = vpop.permute.xlu0 %4398
        %4400 = vrot.lane.b32.xlu0 %v1216, 80
        %v4401 = vpop.permute.xlu0 %4400
        %v4402 = vsel %vm1242, %v4399, 0
        %v4404 = vsel %vm1242, %v4401, 0
        %4406 = vmatprep.subr.mxu0 0.0
        %4407 = vmatpush1.xpose.msra.mxu0 0.0
        %4408 = vmatprep.subr.mxu0 0.0
        %4409 = vmatpush1.xpose.msra.mxu0 0.0
        %4410 = vmatprep.subr.mxu0 0.0
        %4411 = vmatpush1.xpose.msra.mxu0 0.0
        %4412 = vmatprep.subr.mxu0 0.0
        %4413 = vmatpush1.xpose.msra.mxu0 0.0
        %4414 = vmatprep.subr.mxu0 0.0
        %4415 = vmatpush1.xpose.msra.mxu0 0.0
        %4416 = vmatprep.subr.mxu0 0.0
        %4417 = vmatpush1.xpose.msra.mxu0 0.0
        %4418 = vmatprep.subr.mxu0 0.0
        %4419 = vmatpush1.xpose.msra.mxu0 0.0
        %4420 = vmatprep.subr.mxu0 0.0
        %4421 = vmatpush1.xpose.msra.mxu0 0.0
        %4422 = vmatprep.subr.mxu0 0.0
        %4423 = vmatpush1.xpose.msra.mxu0 0.0
        %4424 = vmatprep.subr.mxu0 0.0
        %4425 = vmatpush1.xpose.msra.mxu0 0.0
        %4426 = vmatprep.subr.mxu0 0.0
        %4427 = vmatpush1.xpose.msra.mxu0 0.0
        %4428 = vmatprep.subr.mxu0 0.0
        %4429 = vmatpush1.xpose.msra.mxu0 0.0
        %4430 = vmatprep.subr.mxu0 0.0
        %4431 = vmatpush1.xpose.msra.mxu0 0.0
        %4432 = vmatprep.subr.mxu0 0.0
        %4433 = vmatpush1.xpose.msra.mxu0 0.0
        %4434 = vmatprep.subr.mxu0 0.0
        %4435 = vmatpush1.xpose.msra.mxu0 0.0
        %4436 = vmatprep.subr.mxu0 0.0
        %4437 = vmatpush1.xpose.msra.mxu0 %v4404
        %4438 = vmatprep.subr.mxu0 0.0
        %4439 = vmatpush2.xpose.msra.mxu0 0.0
        %4440 = vmatprep.subr.mxu0 0.0
        %4441 = vmatpush2.xpose.msra.mxu0 0.0
        %4442 = vmatprep.subr.mxu0 0.0
        %4443 = vmatpush2.xpose.msra.mxu0 0.0
        %4444 = vmatprep.subr.mxu0 0.0
        %4445 = vmatpush2.xpose.msra.mxu0 0.0
        %4446 = vmatprep.subr.mxu0 0.0
        %4447 = vmatpush2.xpose.msra.mxu0 0.0
        %4448 = vmatprep.subr.mxu0 0.0
        %4449 = vmatpush2.xpose.msra.mxu0 0.0
        %4450 = vmatprep.subr.mxu0 0.0
        %4451 = vmatpush2.xpose.msra.mxu0 0.0
        %4452 = vmatprep.subr.mxu0 0.0
        %4453 = vmatpush2.xpose.msra.mxu0 0.0
        %4454 = vmatprep.subr.mxu0 0.0
        %4455 = vmatpush2.xpose.msra.mxu0 0.0
        %4456 = vmatprep.subr.mxu0 0.0
        %4457 = vmatpush2.xpose.msra.mxu0 0.0
        %4458 = vmatprep.subr.mxu0 0.0
        %4459 = vmatpush2.xpose.msra.mxu0 0.0
        %4460 = vmatprep.subr.mxu0 0.0
        %4461 = vmatpush2.xpose.msra.mxu0 0.0
        %4462 = vmatprep.subr.mxu0 0.0
        %4463 = vmatpush2.xpose.msra.mxu0 0.0
        %4464 = vmatprep.subr.mxu0 0.0
        %4465 = vmatpush2.xpose.msra.mxu0 0.0
        %4466 = vmatprep.subr.mxu0 0.0
        %4467 = vmatpush2.xpose.msra.mxu0 0.0
        %4468 = vmatprep.subr.mxu0 0.0
        %4469 = vmatpush2.xpose.msra.mxu0 0.0
        %4470 = vmatprep.mubr.f32.mxu0 0.0
        %4471 = vmatmul.mubr.f32.gmra.mxu0 %v4402
        %v4472 = vpop.f32.mrf.mxu0
        %v4473 = vadd.f32 0.0, %v4472
        %v4474 = vpop.f32.mrf.mxu0
        %4475 = vdwg.mxu0
        %4476 = vrot.lane.b32.xlu0 %v1221, 112
        %v4477 = vpop.permute.xlu0 %4476
        %4478 = vrot.lane.b32.xlu0 %v1221, 80
        %v4479 = vpop.permute.xlu0 %4478
        %v4480 = vsel %vm1242, %v4477, 0
        %v4482 = vsel %vm1242, %v4479, 0
        %4484 = vmatprep.subr.mxu0 0.0
        %4485 = vmatpush1.xpose.msra.mxu0 0.0
        %4486 = vmatprep.subr.mxu0 0.0
        %4487 = vmatpush1.xpose.msra.mxu0 0.0
        %4488 = vmatprep.subr.mxu0 0.0
        %4489 = vmatpush1.xpose.msra.mxu0 0.0
        %4490 = vmatprep.subr.mxu0 0.0
        %4491 = vmatpush1.xpose.msra.mxu0 0.0
        %4492 = vmatprep.subr.mxu0 0.0
        %4493 = vmatpush1.xpose.msra.mxu0 0.0
        %4494 = vmatprep.subr.mxu0 0.0
        %4495 = vmatpush1.xpose.msra.mxu0 0.0
        %4496 = vmatprep.subr.mxu0 0.0
        %4497 = vmatpush1.xpose.msra.mxu0 0.0
        %4498 = vmatprep.subr.mxu0 0.0
        %4499 = vmatpush1.xpose.msra.mxu0 0.0
        %4500 = vmatprep.subr.mxu0 0.0
        %4501 = vmatpush1.xpose.msra.mxu0 0.0
        %4502 = vmatprep.subr.mxu0 0.0
        %4503 = vmatpush1.xpose.msra.mxu0 0.0
        %4504 = vmatprep.subr.mxu0 0.0
        %4505 = vmatpush1.xpose.msra.mxu0 0.0
        %4506 = vmatprep.subr.mxu0 0.0
        %4507 = vmatpush1.xpose.msra.mxu0 0.0
        %4508 = vmatprep.subr.mxu0 0.0
        %4509 = vmatpush1.xpose.msra.mxu0 0.0
        %4510 = vmatprep.subr.mxu0 0.0
        %4511 = vmatpush1.xpose.msra.mxu0 0.0
        %4512 = vmatprep.subr.mxu0 0.0
        %4513 = vmatpush1.xpose.msra.mxu0 0.0
        %4514 = vmatprep.subr.mxu0 0.0
        %4515 = vmatpush1.xpose.msra.mxu0 %v4482
        %4516 = vmatprep.subr.mxu0 0.0
        %4517 = vmatpush2.xpose.msra.mxu0 0.0
        %4518 = vmatprep.subr.mxu0 0.0
        %4519 = vmatpush2.xpose.msra.mxu0 0.0
        %4520 = vmatprep.subr.mxu0 0.0
        %4521 = vmatpush2.xpose.msra.mxu0 0.0
        %4522 = vmatprep.subr.mxu0 0.0
        %4523 = vmatpush2.xpose.msra.mxu0 0.0
        %4524 = vmatprep.subr.mxu0 0.0
        %4525 = vmatpush2.xpose.msra.mxu0 0.0
        %4526 = vmatprep.subr.mxu0 0.0
        %4527 = vmatpush2.xpose.msra.mxu0 0.0
        %4528 = vmatprep.subr.mxu0 0.0
        %4529 = vmatpush2.xpose.msra.mxu0 0.0
        %4530 = vmatprep.subr.mxu0 0.0
        %4531 = vmatpush2.xpose.msra.mxu0 0.0
        %4532 = vmatprep.subr.mxu0 0.0
        %4533 = vmatpush2.xpose.msra.mxu0 0.0
        %4534 = vmatprep.subr.mxu0 0.0
        %4535 = vmatpush2.xpose.msra.mxu0 0.0
        %4536 = vmatprep.subr.mxu0 0.0
        %4537 = vmatpush2.xpose.msra.mxu0 0.0
        %4538 = vmatprep.subr.mxu0 0.0
        %4539 = vmatpush2.xpose.msra.mxu0 0.0
        %4540 = vmatprep.subr.mxu0 0.0
        %4541 = vmatpush2.xpose.msra.mxu0 0.0
        %4542 = vmatprep.subr.mxu0 0.0
        %4543 = vmatpush2.xpose.msra.mxu0 0.0
        %4544 = vmatprep.subr.mxu0 0.0
        %4545 = vmatpush2.xpose.msra.mxu0 0.0
        %4546 = vmatprep.subr.mxu0 0.0
        %4547 = vmatpush2.xpose.msra.mxu0 0.0
        %4548 = vmatprep.mubr.f32.mxu0 0.0
        %4549 = vmatmul.mubr.f32.gmra.mxu0 %v4480
        %v4550 = vpop.f32.mrf.mxu0
        %v4551 = vadd.f32 0.0, %v4550
        %v4552 = vpop.f32.mrf.mxu0
        %4553 = vdwg.mxu0
        %4554 = vrot.lane.b32.xlu0 %v1224, 112
        %v4555 = vpop.permute.xlu0 %4554
        %4556 = vrot.lane.b32.xlu0 %v1224, 80
        %v4557 = vpop.permute.xlu0 %4556
        %v4558 = vsel %vm1242, %v4555, 0
        %v4560 = vsel %vm1242, %v4557, 0
        %4562 = vmatprep.subr.mxu0 0.0
        %4563 = vmatpush1.xpose.msra.mxu0 0.0
        %4564 = vmatprep.subr.mxu0 0.0
        %4565 = vmatpush1.xpose.msra.mxu0 0.0
        %4566 = vmatprep.subr.mxu0 0.0
        %4567 = vmatpush1.xpose.msra.mxu0 0.0
        %4568 = vmatprep.subr.mxu0 0.0
        %4569 = vmatpush1.xpose.msra.mxu0 0.0
        %4570 = vmatprep.subr.mxu0 0.0
        %4571 = vmatpush1.xpose.msra.mxu0 0.0
        %4572 = vmatprep.subr.mxu0 0.0
        %4573 = vmatpush1.xpose.msra.mxu0 0.0
        %4574 = vmatprep.subr.mxu0 0.0
        %4575 = vmatpush1.xpose.msra.mxu0 0.0
        %4576 = vmatprep.subr.mxu0 0.0
        %4577 = vmatpush1.xpose.msra.mxu0 0.0
        %4578 = vmatprep.subr.mxu0 0.0
        %4579 = vmatpush1.xpose.msra.mxu0 0.0
        %4580 = vmatprep.subr.mxu0 0.0
        %4581 = vmatpush1.xpose.msra.mxu0 0.0
        %4582 = vmatprep.subr.mxu0 0.0
        %4583 = vmatpush1.xpose.msra.mxu0 0.0
        %4584 = vmatprep.subr.mxu0 0.0
        %4585 = vmatpush1.xpose.msra.mxu0 0.0
        %4586 = vmatprep.subr.mxu0 0.0
        %4587 = vmatpush1.xpose.msra.mxu0 0.0
        %4588 = vmatprep.subr.mxu0 0.0
        %4589 = vmatpush1.xpose.msra.mxu0 0.0
        %4590 = vmatprep.subr.mxu0 0.0
        %4591 = vmatpush1.xpose.msra.mxu0 0.0
        %4592 = vmatprep.subr.mxu0 0.0
        %4593 = vmatpush1.xpose.msra.mxu0 %v4560
        %4594 = vmatprep.subr.mxu0 0.0
        %4595 = vmatpush2.xpose.msra.mxu0 0.0
        %4596 = vmatprep.subr.mxu0 0.0
        %4597 = vmatpush2.xpose.msra.mxu0 0.0
        %4598 = vmatprep.subr.mxu0 0.0
        %4599 = vmatpush2.xpose.msra.mxu0 0.0
        %4600 = vmatprep.subr.mxu0 0.0
        %4601 = vmatpush2.xpose.msra.mxu0 0.0
        %4602 = vmatprep.subr.mxu0 0.0
        %4603 = vmatpush2.xpose.msra.mxu0 0.0
        %4604 = vmatprep.subr.mxu0 0.0
        %4605 = vmatpush2.xpose.msra.mxu0 0.0
        %4606 = vmatprep.subr.mxu0 0.0
        %4607 = vmatpush2.xpose.msra.mxu0 0.0
        %4608 = vmatprep.subr.mxu0 0.0
        %4609 = vmatpush2.xpose.msra.mxu0 0.0
        %4610 = vmatprep.subr.mxu0 0.0
        %4611 = vmatpush2.xpose.msra.mxu0 0.0
        %4612 = vmatprep.subr.mxu0 0.0
        %4613 = vmatpush2.xpose.msra.mxu0 0.0
        %4614 = vmatprep.subr.mxu0 0.0
        %4615 = vmatpush2.xpose.msra.mxu0 0.0
        %4616 = vmatprep.subr.mxu0 0.0
        %4617 = vmatpush2.xpose.msra.mxu0 0.0
        %4618 = vmatprep.subr.mxu0 0.0
        %4619 = vmatpush2.xpose.msra.mxu0 0.0
        %4620 = vmatprep.subr.mxu0 0.0
        %4621 = vmatpush2.xpose.msra.mxu0 0.0
        %4622 = vmatprep.subr.mxu0 0.0
        %4623 = vmatpush2.xpose.msra.mxu0 0.0
        %4624 = vmatprep.subr.mxu0 0.0
        %4625 = vmatpush2.xpose.msra.mxu0 0.0
        %4626 = vmatprep.mubr.f32.mxu0 0.0
        %4627 = vmatmul.mubr.f32.gmra.mxu0 %v4558
        %v4628 = vpop.f32.mrf.mxu0
        %v4629 = vadd.f32 0.0, %v4628
        %v4630 = vpop.f32.mrf.mxu0
        %4631 = vdwg.mxu0
        %4632 = vrot.lane.b32.xlu0 %v1229, 112
        %v4633 = vpop.permute.xlu0 %4632
        %4634 = vrot.lane.b32.xlu0 %v1229, 80
        %v4635 = vpop.permute.xlu0 %4634
        %v4636 = vsel %vm1242, %v4633, 0
        %v4638 = vsel %vm1242, %v4635, 0
        %4640 = vmatprep.subr.mxu0 0.0
        %4641 = vmatpush1.xpose.msra.mxu0 0.0
        %4642 = vmatprep.subr.mxu0 0.0
        %4643 = vmatpush1.xpose.msra.mxu0 0.0
        %4644 = vmatprep.subr.mxu0 0.0
        %4645 = vmatpush1.xpose.msra.mxu0 0.0
        %4646 = vmatprep.subr.mxu0 0.0
        %4647 = vmatpush1.xpose.msra.mxu0 0.0
        %4648 = vmatprep.subr.mxu0 0.0
        %4649 = vmatpush1.xpose.msra.mxu0 0.0
        %4650 = vmatprep.subr.mxu0 0.0
        %4651 = vmatpush1.xpose.msra.mxu0 0.0
        %4652 = vmatprep.subr.mxu0 0.0
        %4653 = vmatpush1.xpose.msra.mxu0 0.0
        %4654 = vmatprep.subr.mxu0 0.0
        %4655 = vmatpush1.xpose.msra.mxu0 0.0
        %4656 = vmatprep.subr.mxu0 0.0
        %4657 = vmatpush1.xpose.msra.mxu0 0.0
        %4658 = vmatprep.subr.mxu0 0.0
        %4659 = vmatpush1.xpose.msra.mxu0 0.0
        %4660 = vmatprep.subr.mxu0 0.0
        %4661 = vmatpush1.xpose.msra.mxu0 0.0
        %4662 = vmatprep.subr.mxu0 0.0
        %4663 = vmatpush1.xpose.msra.mxu0 0.0
        %4664 = vmatprep.subr.mxu0 0.0
        %4665 = vmatpush1.xpose.msra.mxu0 0.0
        %4666 = vmatprep.subr.mxu0 0.0
        %4667 = vmatpush1.xpose.msra.mxu0 0.0
        %4668 = vmatprep.subr.mxu0 0.0
        %4669 = vmatpush1.xpose.msra.mxu0 0.0
        %4670 = vmatprep.subr.mxu0 0.0
        %4671 = vmatpush1.xpose.msra.mxu0 %v4638
        %4672 = vmatprep.subr.mxu0 0.0
        %4673 = vmatpush2.xpose.msra.mxu0 0.0
        %4674 = vmatprep.subr.mxu0 0.0
        %4675 = vmatpush2.xpose.msra.mxu0 0.0
        %4676 = vmatprep.subr.mxu0 0.0
        %4677 = vmatpush2.xpose.msra.mxu0 0.0
        %4678 = vmatprep.subr.mxu0 0.0
        %4679 = vmatpush2.xpose.msra.mxu0 0.0
        %4680 = vmatprep.subr.mxu0 0.0
        %4681 = vmatpush2.xpose.msra.mxu0 0.0
        %4682 = vmatprep.subr.mxu0 0.0
        %4683 = vmatpush2.xpose.msra.mxu0 0.0
        %4684 = vmatprep.subr.mxu0 0.0
        %4685 = vmatpush2.xpose.msra.mxu0 0.0
        %4686 = vmatprep.subr.mxu0 0.0
        %4687 = vmatpush2.xpose.msra.mxu0 0.0
        %4688 = vmatprep.subr.mxu0 0.0
        %4689 = vmatpush2.xpose.msra.mxu0 0.0
        %4690 = vmatprep.subr.mxu0 0.0
        %4691 = vmatpush2.xpose.msra.mxu0 0.0
        %4692 = vmatprep.subr.mxu0 0.0
        %4693 = vmatpush2.xpose.msra.mxu0 0.0
        %4694 = vmatprep.subr.mxu0 0.0
        %4695 = vmatpush2.xpose.msra.mxu0 0.0
        %4696 = vmatprep.subr.mxu0 0.0
        %4697 = vmatpush2.xpose.msra.mxu0 0.0
        %4698 = vmatprep.subr.mxu0 0.0
        %4699 = vmatpush2.xpose.msra.mxu0 0.0
        %4700 = vmatprep.subr.mxu0 0.0
        %4701 = vmatpush2.xpose.msra.mxu0 0.0
        %4702 = vmatprep.subr.mxu0 0.0
        %4703 = vmatpush2.xpose.msra.mxu0 0.0
        %4704 = vmatprep.mubr.f32.mxu0 0.0
        %4705 = vmatmul.mubr.f32.gmra.mxu0 %v4636
        %v4706 = vpop.f32.mrf.mxu0
        %v4707 = vadd.f32 0.0, %v4706
        %v4708 = vpop.f32.mrf.mxu0
        %4709 = vdwg.mxu0
        %4710 = vrot.lane.b32.xlu0 %v1232, 112
        %v4711 = vpop.permute.xlu0 %4710
        %4712 = vrot.lane.b32.xlu0 %v1232, 80
        %v4713 = vpop.permute.xlu0 %4712
        %v4714 = vsel %vm1242, %v4711, 0
        %v4716 = vsel %vm1242, %v4713, 0
        %4718 = vmatprep.subr.mxu0 0.0
        %4719 = vmatpush1.xpose.msra.mxu0 0.0
        %4720 = vmatprep.subr.mxu0 0.0
        %4721 = vmatpush1.xpose.msra.mxu0 0.0
        %4722 = vmatprep.subr.mxu0 0.0
        %4723 = vmatpush1.xpose.msra.mxu0 0.0
        %4724 = vmatprep.subr.mxu0 0.0
        %4725 = vmatpush1.xpose.msra.mxu0 0.0
        %4726 = vmatprep.subr.mxu0 0.0
        %4727 = vmatpush1.xpose.msra.mxu0 0.0
        %4728 = vmatprep.subr.mxu0 0.0
        %4729 = vmatpush1.xpose.msra.mxu0 0.0
        %4730 = vmatprep.subr.mxu0 0.0
        %4731 = vmatpush1.xpose.msra.mxu0 0.0
        %4732 = vmatprep.subr.mxu0 0.0
        %4733 = vmatpush1.xpose.msra.mxu0 0.0
        %4734 = vmatprep.subr.mxu0 0.0
        %4735 = vmatpush1.xpose.msra.mxu0 0.0
        %4736 = vmatprep.subr.mxu0 0.0
        %4737 = vmatpush1.xpose.msra.mxu0 0.0
        %4738 = vmatprep.subr.mxu0 0.0
        %4739 = vmatpush1.xpose.msra.mxu0 0.0
        %4740 = vmatprep.subr.mxu0 0.0
        %4741 = vmatpush1.xpose.msra.mxu0 0.0
        %4742 = vmatprep.subr.mxu0 0.0
        %4743 = vmatpush1.xpose.msra.mxu0 0.0
        %4744 = vmatprep.subr.mxu0 0.0
        %4745 = vmatpush1.xpose.msra.mxu0 0.0
        %4746 = vmatprep.subr.mxu0 0.0
        %4747 = vmatpush1.xpose.msra.mxu0 0.0
        %4748 = vmatprep.subr.mxu0 0.0
        %4749 = vmatpush1.xpose.msra.mxu0 %v4716
        %4750 = vmatprep.subr.mxu0 0.0
        %4751 = vmatpush2.xpose.msra.mxu0 0.0
        %4752 = vmatprep.subr.mxu0 0.0
        %4753 = vmatpush2.xpose.msra.mxu0 0.0
        %4754 = vmatprep.subr.mxu0 0.0
        %4755 = vmatpush2.xpose.msra.mxu0 0.0
        %4756 = vmatprep.subr.mxu0 0.0
        %4757 = vmatpush2.xpose.msra.mxu0 0.0
        %4758 = vmatprep.subr.mxu0 0.0
        %4759 = vmatpush2.xpose.msra.mxu0 0.0
        %4760 = vmatprep.subr.mxu0 0.0
        %4761 = vmatpush2.xpose.msra.mxu0 0.0
        %4762 = vmatprep.subr.mxu0 0.0
        %4763 = vmatpush2.xpose.msra.mxu0 0.0
        %4764 = vmatprep.subr.mxu0 0.0
        %4765 = vmatpush2.xpose.msra.mxu0 0.0
        %4766 = vmatprep.subr.mxu0 0.0
        %4767 = vmatpush2.xpose.msra.mxu0 0.0
        %4768 = vmatprep.subr.mxu0 0.0
        %4769 = vmatpush2.xpose.msra.mxu0 0.0
        %4770 = vmatprep.subr.mxu0 0.0
        %4771 = vmatpush2.xpose.msra.mxu0 0.0
        %4772 = vmatprep.subr.mxu0 0.0
        %4773 = vmatpush2.xpose.msra.mxu0 0.0
        %4774 = vmatprep.subr.mxu0 0.0
        %4775 = vmatpush2.xpose.msra.mxu0 0.0
        %4776 = vmatprep.subr.mxu0 0.0
        %4777 = vmatpush2.xpose.msra.mxu0 0.0
        %4778 = vmatprep.subr.mxu0 0.0
        %4779 = vmatpush2.xpose.msra.mxu0 0.0
        %4780 = vmatprep.subr.mxu0 0.0
        %4781 = vmatpush2.xpose.msra.mxu0 0.0
        %4782 = vmatprep.mubr.f32.mxu0 0.0
        %4783 = vmatmul.mubr.f32.gmra.mxu0 %v4714
        %v4784 = vpop.f32.mrf.mxu0
        %v4785 = vadd.f32 0.0, %v4784
        %v4786 = vpop.f32.mrf.mxu0
        %4787 = vdwg.mxu0
        %v4788 = vmul.f32 %v4239, 0.35355338
        %v4789 = vmul.f32 %v4317, 0.35355338
        %v4790 = vmul.f32 %v4395, 0.35355338
        %v4791 = vmul.f32 %v4473, 0.35355338
        %v4792 = vmul.f32 %v4551, 0.35355338
        %v4793 = vmul.f32 %v4629, 0.35355338
        %v4794 = vmul.f32 %v4707, 0.35355338
        %v4795 = vmul.f32 %v4785, 0.35355338
        %v4796 = vadd.f32 %v4788, %v1238
        %v4797 = vadd.f32 %v4789, %v1238
        %v4798 = vadd.f32 %v4790, %v1238
        %v4799 = vadd.f32 %v4791, %v1238
        %v4800 = vadd.f32 %v4792, %v1238
        %v4801 = vadd.f32 %v4793, %v1238
        %v4802 = vadd.f32 %v4794, %v1238
        %v4803 = vadd.f32 %v4795, %v1238
        %v4804 = vsel %vm1242, %v4796, -inf
        %4805 = vmax.xlane.f32.xlu0 %v4804
        %v4806 = vpop.xlane.xlu0 %4805
        %v4807 = vsel %vm1242, %v4797, -inf
        %4808 = vmax.xlane.f32.xlu0 %v4807
        %v4809 = vpop.xlane.xlu0 %4808
        %v4810 = vsel %vm1242, %v4798, -inf
        %4811 = vmax.xlane.f32.xlu0 %v4810
        %v4812 = vpop.xlane.xlu0 %4811
        %v4813 = vsel %vm1242, %v4799, -inf
        %4814 = vmax.xlane.f32.xlu0 %v4813
        %v4815 = vpop.xlane.xlu0 %4814
        %v4816 = vsel %vm1242, %v4800, -inf
        %4817 = vmax.xlane.f32.xlu0 %v4816
        %v4818 = vpop.xlane.xlu0 %4817
        %v4819 = vsel %vm1242, %v4801, -inf
        %4820 = vmax.xlane.f32.xlu0 %v4819
        %v4821 = vpop.xlane.xlu0 %4820
        %v4822 = vsel %vm1242, %v4802, -inf
        %4823 = vmax.xlane.f32.xlu0 %v4822
        %v4824 = vpop.xlane.xlu0 %4823
        %v4825 = vsel %vm1242, %v4803, -inf
        %4826 = vmax.xlane.f32.xlu0 %v4825
        %v4827 = vpop.xlane.xlu0 %4826
        %v4828 = vsub.f32 %v4796, %v4806
        %v4829 = vsub.f32 %v4797, %v4809
        %v4830 = vsub.f32 %v4798, %v4812
        %v4831 = vsub.f32 %v4799, %v4815
        %v4832 = vsub.f32 %v4800, %v4818
        %v4833 = vsub.f32 %v4801, %v4821
        %v4834 = vsub.f32 %v4802, %v4824
        %v4835 = vsub.f32 %v4803, %v4827
        %v4836 = vmul.f32 %v4828, 1.442695
        %v4837 = vpow.pop %v4836
        %v4838 = vmul.f32 %v4829, 1.442695
        %v4839 = vpow.pop %v4838
        %v4840 = vmul.f32 %v4830, 1.442695
        %v4841 = vpow.pop %v4840
        %v4842 = vmul.f32 %v4831, 1.442695
        %v4843 = vpow.pop %v4842
        %v4844 = vmul.f32 %v4832, 1.442695
        %v4845 = vpow.pop %v4844
        %v4846 = vmul.f32 %v4833, 1.442695
        %v4847 = vpow.pop %v4846
        %v4848 = vmul.f32 %v4834, 1.442695
        %v4849 = vpow.pop %v4848
        %v4850 = vmul.f32 %v4835, 1.442695
        %v4851 = vpow.pop %v4850
        %v4852 = vsel %vm1242, %v4837, 0.0
        %4853 = vadd.xlane.f32.xlu0 %v4852
        %v4854 = vpop.xlane.xlu0 %4853
        %v4855 = vsel %vm1242, %v4839, 0.0
        %4856 = vadd.xlane.f32.xlu0 %v4855
        %v4857 = vpop.xlane.xlu0 %4856
        %v4858 = vsel %vm1242, %v4841, 0.0
        %4859 = vadd.xlane.f32.xlu0 %v4858
        %v4860 = vpop.xlane.xlu0 %4859
        %v4861 = vsel %vm1242, %v4843, 0.0
        %4862 = vadd.xlane.f32.xlu0 %v4861
        %v4863 = vpop.xlane.xlu0 %4862
        %v4864 = vsel %vm1242, %v4845, 0.0
        %4865 = vadd.xlane.f32.xlu0 %v4864
        %v4866 = vpop.xlane.xlu0 %4865
        %v4867 = vsel %vm1242, %v4847, 0.0
        %4868 = vadd.xlane.f32.xlu0 %v4867
        %v4869 = vpop.xlane.xlu0 %4868
        %v4870 = vsel %vm1242, %v4849, 0.0
        %4871 = vadd.xlane.f32.xlu0 %v4870
        %v4872 = vpop.xlane.xlu0 %4871
        %v4873 = vsel %vm1242, %v4851, 0.0
        %4874 = vadd.xlane.f32.xlu0 %v4873
        %v4875 = vpop.xlane.xlu0 %4874
        %v4876 = vrcp.pop %v4854
        %v4877 = vrcp.pop %v4857
        %v4878 = vrcp.pop %v4860
        %v4879 = vrcp.pop %v4863
        %v4880 = vrcp.pop %v4866
        %v4881 = vrcp.pop %v4869
        %v4882 = vrcp.pop %v4872
        %v4883 = vrcp.pop %v4875
        %v4884 = vmul.f32 %v4837, %v4876
        %v4885 = vmul.f32 %v4839, %v4877
        %v4886 = vmul.f32 %v4841, %v4878
        %v4887 = vmul.f32 %v4843, %v4879
        %v4888 = vmul.f32 %v4845, %v4880
        %v4889 = vmul.f32 %v4847, %v4881
        %v4890 = vmul.f32 %v4849, %v4882
        %v4891 = vmul.f32 %v4851, %v4883
        %4892 = vrot.lane.b32.xlu0 %v1205, 48
        %v4893 = vpop.permute.xlu0 %4892
        %v4896 = vsel %vm1242, %v4884, 0
        %4898 = vmatprep.subr.mxu0 0.0
        %4899 = vmatpush1.msra.mxu0 0.0
        %4900 = vmatprep.subr.mxu0 0.0
        %4901 = vmatpush1.msra.mxu0 0.0
        %4902 = vmatprep.subr.mxu0 0.0
        %4903 = vmatpush1.msra.mxu0 0.0
        %4904 = vmatprep.subr.mxu0 0.0
        %4905 = vmatpush1.msra.mxu0 0.0
        %4906 = vmatprep.subr.mxu0 0.0
        %4907 = vmatpush1.msra.mxu0 0.0
        %4908 = vmatprep.subr.mxu0 0.0
        %4909 = vmatpush1.msra.mxu0 0.0
        %4910 = vmatprep.subr.mxu0 0.0
        %4911 = vmatpush1.msra.mxu0 0.0
        %4912 = vmatprep.subr.mxu0 0.0
        %4913 = vmatpush1.msra.mxu0 0.0
        %4914 = vmatprep.subr.mxu0 0.0
        %4915 = vmatpush1.msra.mxu0 0.0
        %4916 = vmatprep.subr.mxu0 0.0
        %4917 = vmatpush1.msra.mxu0 0.0
        %4918 = vmatprep.subr.mxu0 0.0
        %4919 = vmatpush1.msra.mxu0 0.0
        %4920 = vmatprep.subr.mxu0 0.0
        %4921 = vmatpush1.msra.mxu0 0.0
        %4922 = vmatprep.subr.mxu0 0.0
        %4923 = vmatpush1.msra.mxu0 0.0
        %4924 = vmatprep.subr.mxu0 0.0
        %4925 = vmatpush1.msra.mxu0 0.0
        %4926 = vmatprep.subr.mxu0 0.0
        %4927 = vmatpush1.msra.mxu0 0.0
        %4928 = vmatprep.subr.mxu0 0.0
        %4929 = vmatpush1.msra.mxu0 %v4893
        %4930 = vmatprep.subr.mxu0 0.0
        %4931 = vmatpush2.msra.mxu0 0.0
        %4932 = vmatprep.subr.mxu0 0.0
        %4933 = vmatpush2.msra.mxu0 0.0
        %4934 = vmatprep.subr.mxu0 0.0
        %4935 = vmatpush2.msra.mxu0 0.0
        %4936 = vmatprep.subr.mxu0 0.0
        %4937 = vmatpush2.msra.mxu0 0.0
        %4938 = vmatprep.subr.mxu0 0.0
        %4939 = vmatpush2.msra.mxu0 0.0
        %4940 = vmatprep.subr.mxu0 0.0
        %4941 = vmatpush2.msra.mxu0 0.0
        %4942 = vmatprep.subr.mxu0 0.0
        %4943 = vmatpush2.msra.mxu0 0.0
        %4944 = vmatprep.subr.mxu0 0.0
        %4945 = vmatpush2.msra.mxu0 0.0
        %4946 = vmatprep.subr.mxu0 0.0
        %4947 = vmatpush2.msra.mxu0 0.0
        %4948 = vmatprep.subr.mxu0 0.0
        %4949 = vmatpush2.msra.mxu0 0.0
        %4950 = vmatprep.subr.mxu0 0.0
        %4951 = vmatpush2.msra.mxu0 0.0
        %4952 = vmatprep.subr.mxu0 0.0
        %4953 = vmatpush2.msra.mxu0 0.0
        %4954 = vmatprep.subr.mxu0 0.0
        %4955 = vmatpush2.msra.mxu0 0.0
        %4956 = vmatprep.subr.mxu0 0.0
        %4957 = vmatpush2.msra.mxu0 0.0
        %4958 = vmatprep.subr.mxu0 0.0
        %4959 = vmatpush2.msra.mxu0 0.0
        %4960 = vmatprep.subr.mxu0 0.0
        %4961 = vmatpush2.msra.mxu0 0.0
        %4962 = vmatprep.mubr.f32.mxu0 0.0
        %4963 = vmatmul.mubr.f32.gmra.mxu0 %v4896
        %v4964 = vpop.f32.mrf.mxu0
        %v4965 = vadd.f32 0.0, %v4964
        %v4966 = vpop.f32.mrf.mxu0
        %4967 = vdwg.mxu0
        %4968 = vrot.lane.b32.xlu0 %v1208, 48
        %v4969 = vpop.permute.xlu0 %4968
        %v4972 = vsel %vm1242, %v4885, 0
        %4974 = vmatprep.subr.mxu0 0.0
        %4975 = vmatpush1.msra.mxu0 0.0
        %4976 = vmatprep.subr.mxu0 0.0
        %4977 = vmatpush1.msra.mxu0 0.0
        %4978 = vmatprep.subr.mxu0 0.0
        %4979 = vmatpush1.msra.mxu0 0.0
        %4980 = vmatprep.subr.mxu0 0.0
        %4981 = vmatpush1.msra.mxu0 0.0
        %4982 = vmatprep.subr.mxu0 0.0
        %4983 = vmatpush1.msra.mxu0 0.0
        %4984 = vmatprep.subr.mxu0 0.0
        %4985 = vmatpush1.msra.mxu0 0.0
        %4986 = vmatprep.subr.mxu0 0.0
        %4987 = vmatpush1.msra.mxu0 0.0
        %4988 = vmatprep.subr.mxu0 0.0
        %4989 = vmatpush1.msra.mxu0 0.0
        %4990 = vmatprep.subr.mxu0 0.0
        %4991 = vmatpush1.msra.mxu0 0.0
        %4992 = vmatprep.subr.mxu0 0.0
        %4993 = vmatpush1.msra.mxu0 0.0
        %4994 = vmatprep.subr.mxu0 0.0
        %4995 = vmatpush1.msra.mxu0 0.0
        %4996 = vmatprep.subr.mxu0 0.0
        %4997 = vmatpush1.msra.mxu0 0.0
        %4998 = vmatprep.subr.mxu0 0.0
        %4999 = vmatpush1.msra.mxu0 0.0
        %5000 = vmatprep.subr.mxu0 0.0
        %5001 = vmatpush1.msra.mxu0 0.0
        %5002 = vmatprep.subr.mxu0 0.0
        %5003 = vmatpush1.msra.mxu0 0.0
        %5004 = vmatprep.subr.mxu0 0.0
        %5005 = vmatpush1.msra.mxu0 %v4969
        %5006 = vmatprep.subr.mxu0 0.0
        %5007 = vmatpush2.msra.mxu0 0.0
        %5008 = vmatprep.subr.mxu0 0.0
        %5009 = vmatpush2.msra.mxu0 0.0
        %5010 = vmatprep.subr.mxu0 0.0
        %5011 = vmatpush2.msra.mxu0 0.0
        %5012 = vmatprep.subr.mxu0 0.0
        %5013 = vmatpush2.msra.mxu0 0.0
        %5014 = vmatprep.subr.mxu0 0.0
        %5015 = vmatpush2.msra.mxu0 0.0
        %5016 = vmatprep.subr.mxu0 0.0
        %5017 = vmatpush2.msra.mxu0 0.0
        %5018 = vmatprep.subr.mxu0 0.0
        %5019 = vmatpush2.msra.mxu0 0.0
        %5020 = vmatprep.subr.mxu0 0.0
        %5021 = vmatpush2.msra.mxu0 0.0
        %5022 = vmatprep.subr.mxu0 0.0
        %5023 = vmatpush2.msra.mxu0 0.0
        %5024 = vmatprep.subr.mxu0 0.0
        %5025 = vmatpush2.msra.mxu0 0.0
        %5026 = vmatprep.subr.mxu0 0.0
        %5027 = vmatpush2.msra.mxu0 0.0
        %5028 = vmatprep.subr.mxu0 0.0
        %5029 = vmatpush2.msra.mxu0 0.0
        %5030 = vmatprep.subr.mxu0 0.0
        %5031 = vmatpush2.msra.mxu0 0.0
        %5032 = vmatprep.subr.mxu0 0.0
        %5033 = vmatpush2.msra.mxu0 0.0
        %5034 = vmatprep.subr.mxu0 0.0
        %5035 = vmatpush2.msra.mxu0 0.0
        %5036 = vmatprep.subr.mxu0 0.0
        %5037 = vmatpush2.msra.mxu0 0.0
        %5038 = vmatprep.mubr.f32.mxu0 0.0
        %5039 = vmatmul.mubr.f32.gmra.mxu0 %v4972
        %v5040 = vpop.f32.mrf.mxu0
        %v5041 = vadd.f32 0.0, %v5040
        %v5042 = vpop.f32.mrf.mxu0
        %5043 = vdwg.mxu0
        %5044 = vrot.lane.b32.xlu0 %v1213, 48
        %v5045 = vpop.permute.xlu0 %5044
        %v5048 = vsel %vm1242, %v4886, 0
        %5050 = vmatprep.subr.mxu0 0.0
        %5051 = vmatpush1.msra.mxu0 0.0
        %5052 = vmatprep.subr.mxu0 0.0
        %5053 = vmatpush1.msra.mxu0 0.0
        %5054 = vmatprep.subr.mxu0 0.0
        %5055 = vmatpush1.msra.mxu0 0.0
        %5056 = vmatprep.subr.mxu0 0.0
        %5057 = vmatpush1.msra.mxu0 0.0
        %5058 = vmatprep.subr.mxu0 0.0
        %5059 = vmatpush1.msra.mxu0 0.0
        %5060 = vmatprep.subr.mxu0 0.0
        %5061 = vmatpush1.msra.mxu0 0.0
        %5062 = vmatprep.subr.mxu0 0.0
        %5063 = vmatpush1.msra.mxu0 0.0
        %5064 = vmatprep.subr.mxu0 0.0
        %5065 = vmatpush1.msra.mxu0 0.0
        %5066 = vmatprep.subr.mxu0 0.0
        %5067 = vmatpush1.msra.mxu0 0.0
        %5068 = vmatprep.subr.mxu0 0.0
        %5069 = vmatpush1.msra.mxu0 0.0
        %5070 = vmatprep.subr.mxu0 0.0
        %5071 = vmatpush1.msra.mxu0 0.0
        %5072 = vmatprep.subr.mxu0 0.0
        %5073 = vmatpush1.msra.mxu0 0.0
        %5074 = vmatprep.subr.mxu0 0.0
        %5075 = vmatpush1.msra.mxu0 0.0
        %5076 = vmatprep.subr.mxu0 0.0
        %5077 = vmatpush1.msra.mxu0 0.0
        %5078 = vmatprep.subr.mxu0 0.0
        %5079 = vmatpush1.msra.mxu0 0.0
        %5080 = vmatprep.subr.mxu0 0.0
        %5081 = vmatpush1.msra.mxu0 %v5045
        %5082 = vmatprep.subr.mxu0 0.0
        %5083 = vmatpush2.msra.mxu0 0.0
        %5084 = vmatprep.subr.mxu0 0.0
        %5085 = vmatpush2.msra.mxu0 0.0
        %5086 = vmatprep.subr.mxu0 0.0
        %5087 = vmatpush2.msra.mxu0 0.0
        %5088 = vmatprep.subr.mxu0 0.0
        %5089 = vmatpush2.msra.mxu0 0.0
        %5090 = vmatprep.subr.mxu0 0.0
        %5091 = vmatpush2.msra.mxu0 0.0
        %5092 = vmatprep.subr.mxu0 0.0
        %5093 = vmatpush2.msra.mxu0 0.0
        %5094 = vmatprep.subr.mxu0 0.0
        %5095 = vmatpush2.msra.mxu0 0.0
        %5096 = vmatprep.subr.mxu0 0.0
        %5097 = vmatpush2.msra.mxu0 0.0
        %5098 = vmatprep.subr.mxu0 0.0
        %5099 = vmatpush2.msra.mxu0 0.0
        %5100 = vmatprep.subr.mxu0 0.0
        %5101 = vmatpush2.msra.mxu0 0.0
        %5102 = vmatprep.subr.mxu0 0.0
        %5103 = vmatpush2.msra.mxu0 0.0
        %5104 = vmatprep.subr.mxu0 0.0
        %5105 = vmatpush2.msra.mxu0 0.0
        %5106 = vmatprep.subr.mxu0 0.0
        %5107 = vmatpush2.msra.mxu0 0.0
        %5108 = vmatprep.subr.mxu0 0.0
        %5109 = vmatpush2.msra.mxu0 0.0
        %5110 = vmatprep.subr.mxu0 0.0
        %5111 = vmatpush2.msra.mxu0 0.0
        %5112 = vmatprep.subr.mxu0 0.0
        %5113 = vmatpush2.msra.mxu0 0.0
        %5114 = vmatprep.mubr.f32.mxu0 0.0
        %5115 = vmatmul.mubr.f32.gmra.mxu0 %v5048
        %v5116 = vpop.f32.mrf.mxu0
        %v5117 = vadd.f32 0.0, %v5116
        %v5118 = vpop.f32.mrf.mxu0
        %5119 = vdwg.mxu0
        %5120 = vrot.lane.b32.xlu0 %v1216, 48
        %v5121 = vpop.permute.xlu0 %5120
        %v5124 = vsel %vm1242, %v4887, 0
        %5126 = vmatprep.subr.mxu0 0.0
        %5127 = vmatpush1.msra.mxu0 0.0
        %5128 = vmatprep.subr.mxu0 0.0
        %5129 = vmatpush1.msra.mxu0 0.0
        %5130 = vmatprep.subr.mxu0 0.0
        %5131 = vmatpush1.msra.mxu0 0.0
        %5132 = vmatprep.subr.mxu0 0.0
        %5133 = vmatpush1.msra.mxu0 0.0
        %5134 = vmatprep.subr.mxu0 0.0
        %5135 = vmatpush1.msra.mxu0 0.0
        %5136 = vmatprep.subr.mxu0 0.0
        %5137 = vmatpush1.msra.mxu0 0.0
        %5138 = vmatprep.subr.mxu0 0.0
        %5139 = vmatpush1.msra.mxu0 0.0
        %5140 = vmatprep.subr.mxu0 0.0
        %5141 = vmatpush1.msra.mxu0 0.0
        %5142 = vmatprep.subr.mxu0 0.0
        %5143 = vmatpush1.msra.mxu0 0.0
        %5144 = vmatprep.subr.mxu0 0.0
        %5145 = vmatpush1.msra.mxu0 0.0
        %5146 = vmatprep.subr.mxu0 0.0
        %5147 = vmatpush1.msra.mxu0 0.0
        %5148 = vmatprep.subr.mxu0 0.0
        %5149 = vmatpush1.msra.mxu0 0.0
        %5150 = vmatprep.subr.mxu0 0.0
        %5151 = vmatpush1.msra.mxu0 0.0
        %5152 = vmatprep.subr.mxu0 0.0
        %5153 = vmatpush1.msra.mxu0 0.0
        %5154 = vmatprep.subr.mxu0 0.0
        %5155 = vmatpush1.msra.mxu0 0.0
        %5156 = vmatprep.subr.mxu0 0.0
        %5157 = vmatpush1.msra.mxu0 %v5121
        %5158 = vmatprep.subr.mxu0 0.0
        %5159 = vmatpush2.msra.mxu0 0.0
        %5160 = vmatprep.subr.mxu0 0.0
        %5161 = vmatpush2.msra.mxu0 0.0
        %5162 = vmatprep.subr.mxu0 0.0
        %5163 = vmatpush2.msra.mxu0 0.0
        %5164 = vmatprep.subr.mxu0 0.0
        %5165 = vmatpush2.msra.mxu0 0.0
        %5166 = vmatprep.subr.mxu0 0.0
        %5167 = vmatpush2.msra.mxu0 0.0
        %5168 = vmatprep.subr.mxu0 0.0
        %5169 = vmatpush2.msra.mxu0 0.0
        %5170 = vmatprep.subr.mxu0 0.0
        %5171 = vmatpush2.msra.mxu0 0.0
        %5172 = vmatprep.subr.mxu0 0.0
        %5173 = vmatpush2.msra.mxu0 0.0
        %5174 = vmatprep.subr.mxu0 0.0
        %5175 = vmatpush2.msra.mxu0 0.0
        %5176 = vmatprep.subr.mxu0 0.0
        %5177 = vmatpush2.msra.mxu0 0.0
        %5178 = vmatprep.subr.mxu0 0.0
        %5179 = vmatpush2.msra.mxu0 0.0
        %5180 = vmatprep.subr.mxu0 0.0
        %5181 = vmatpush2.msra.mxu0 0.0
        %5182 = vmatprep.subr.mxu0 0.0
        %5183 = vmatpush2.msra.mxu0 0.0
        %5184 = vmatprep.subr.mxu0 0.0
        %5185 = vmatpush2.msra.mxu0 0.0
        %5186 = vmatprep.subr.mxu0 0.0
        %5187 = vmatpush2.msra.mxu0 0.0
        %5188 = vmatprep.subr.mxu0 0.0
        %5189 = vmatpush2.msra.mxu0 0.0
        %5190 = vmatprep.mubr.f32.mxu0 0.0
        %5191 = vmatmul.mubr.f32.gmra.mxu0 %v5124
        %v5192 = vpop.f32.mrf.mxu0
        %v5193 = vadd.f32 0.0, %v5192
        %v5194 = vpop.f32.mrf.mxu0
        %5195 = vdwg.mxu0
        %5196 = vrot.lane.b32.xlu0 %v1221, 48
        %v5197 = vpop.permute.xlu0 %5196
        %v5200 = vsel %vm1242, %v4888, 0
        %5202 = vmatprep.subr.mxu0 0.0
        %5203 = vmatpush1.msra.mxu0 0.0
        %5204 = vmatprep.subr.mxu0 0.0
        %5205 = vmatpush1.msra.mxu0 0.0
        %5206 = vmatprep.subr.mxu0 0.0
        %5207 = vmatpush1.msra.mxu0 0.0
        %5208 = vmatprep.subr.mxu0 0.0
        %5209 = vmatpush1.msra.mxu0 0.0
        %5210 = vmatprep.subr.mxu0 0.0
        %5211 = vmatpush1.msra.mxu0 0.0
        %5212 = vmatprep.subr.mxu0 0.0
        %5213 = vmatpush1.msra.mxu0 0.0
        %5214 = vmatprep.subr.mxu0 0.0
        %5215 = vmatpush1.msra.mxu0 0.0
        %5216 = vmatprep.subr.mxu0 0.0
        %5217 = vmatpush1.msra.mxu0 0.0
        %5218 = vmatprep.subr.mxu0 0.0
        %5219 = vmatpush1.msra.mxu0 0.0
        %5220 = vmatprep.subr.mxu0 0.0
        %5221 = vmatpush1.msra.mxu0 0.0
        %5222 = vmatprep.subr.mxu0 0.0
        %5223 = vmatpush1.msra.mxu0 0.0
        %5224 = vmatprep.subr.mxu0 0.0
        %5225 = vmatpush1.msra.mxu0 0.0
        %5226 = vmatprep.subr.mxu0 0.0
        %5227 = vmatpush1.msra.mxu0 0.0
        %5228 = vmatprep.subr.mxu0 0.0
        %5229 = vmatpush1.msra.mxu0 0.0
        %5230 = vmatprep.subr.mxu0 0.0
        %5231 = vmatpush1.msra.mxu0 0.0
        %5232 = vmatprep.subr.mxu0 0.0
        %5233 = vmatpush1.msra.mxu0 %v5197
        %5234 = vmatprep.subr.mxu0 0.0
        %5235 = vmatpush2.msra.mxu0 0.0
        %5236 = vmatprep.subr.mxu0 0.0
        %5237 = vmatpush2.msra.mxu0 0.0
        %5238 = vmatprep.subr.mxu0 0.0
        %5239 = vmatpush2.msra.mxu0 0.0
        %5240 = vmatprep.subr.mxu0 0.0
        %5241 = vmatpush2.msra.mxu0 0.0
        %5242 = vmatprep.subr.mxu0 0.0
        %5243 = vmatpush2.msra.mxu0 0.0
        %5244 = vmatprep.subr.mxu0 0.0
        %5245 = vmatpush2.msra.mxu0 0.0
        %5246 = vmatprep.subr.mxu0 0.0
        %5247 = vmatpush2.msra.mxu0 0.0
        %5248 = vmatprep.subr.mxu0 0.0
        %5249 = vmatpush2.msra.mxu0 0.0
        %5250 = vmatprep.subr.mxu0 0.0
        %5251 = vmatpush2.msra.mxu0 0.0
        %5252 = vmatprep.subr.mxu0 0.0
        %5253 = vmatpush2.msra.mxu0 0.0
        %5254 = vmatprep.subr.mxu0 0.0
        %5255 = vmatpush2.msra.mxu0 0.0
        %5256 = vmatprep.subr.mxu0 0.0
        %5257 = vmatpush2.msra.mxu0 0.0
        %5258 = vmatprep.subr.mxu0 0.0
        %5259 = vmatpush2.msra.mxu0 0.0
        %5260 = vmatprep.subr.mxu0 0.0
        %5261 = vmatpush2.msra.mxu0 0.0
        %5262 = vmatprep.subr.mxu0 0.0
        %5263 = vmatpush2.msra.mxu0 0.0
        %5264 = vmatprep.subr.mxu0 0.0
        %5265 = vmatpush2.msra.mxu0 0.0
        %5266 = vmatprep.mubr.f32.mxu0 0.0
        %5267 = vmatmul.mubr.f32.gmra.mxu0 %v5200
        %v5268 = vpop.f32.mrf.mxu0
        %v5269 = vadd.f32 0.0, %v5268
        %v5270 = vpop.f32.mrf.mxu0
        %5271 = vdwg.mxu0
        %5272 = vrot.lane.b32.xlu0 %v1224, 48
        %v5273 = vpop.permute.xlu0 %5272
        %v5276 = vsel %vm1242, %v4889, 0
        %5278 = vmatprep.subr.mxu0 0.0
        %5279 = vmatpush1.msra.mxu0 0.0
        %5280 = vmatprep.subr.mxu0 0.0
        %5281 = vmatpush1.msra.mxu0 0.0
        %5282 = vmatprep.subr.mxu0 0.0
        %5283 = vmatpush1.msra.mxu0 0.0
        %5284 = vmatprep.subr.mxu0 0.0
        %5285 = vmatpush1.msra.mxu0 0.0
        %5286 = vmatprep.subr.mxu0 0.0
        %5287 = vmatpush1.msra.mxu0 0.0
        %5288 = vmatprep.subr.mxu0 0.0
        %5289 = vmatpush1.msra.mxu0 0.0
        %5290 = vmatprep.subr.mxu0 0.0
        %5291 = vmatpush1.msra.mxu0 0.0
        %5292 = vmatprep.subr.mxu0 0.0
        %5293 = vmatpush1.msra.mxu0 0.0
        %5294 = vmatprep.subr.mxu0 0.0
        %5295 = vmatpush1.msra.mxu0 0.0
        %5296 = vmatprep.subr.mxu0 0.0
        %5297 = vmatpush1.msra.mxu0 0.0
        %5298 = vmatprep.subr.mxu0 0.0
        %5299 = vmatpush1.msra.mxu0 0.0
        %5300 = vmatprep.subr.mxu0 0.0
        %5301 = vmatpush1.msra.mxu0 0.0
        %5302 = vmatprep.subr.mxu0 0.0
        %5303 = vmatpush1.msra.mxu0 0.0
        %5304 = vmatprep.subr.mxu0 0.0
        %5305 = vmatpush1.msra.mxu0 0.0
        %5306 = vmatprep.subr.mxu0 0.0
        %5307 = vmatpush1.msra.mxu0 0.0
        %5308 = vmatprep.subr.mxu0 0.0
        %5309 = vmatpush1.msra.mxu0 %v5273
        %5310 = vmatprep.subr.mxu0 0.0
        %5311 = vmatpush2.msra.mxu0 0.0
        %5312 = vmatprep.subr.mxu0 0.0
        %5313 = vmatpush2.msra.mxu0 0.0
        %5314 = vmatprep.subr.mxu0 0.0
        %5315 = vmatpush2.msra.mxu0 0.0
        %5316 = vmatprep.subr.mxu0 0.0
        %5317 = vmatpush2.msra.mxu0 0.0
        %5318 = vmatprep.subr.mxu0 0.0
        %5319 = vmatpush2.msra.mxu0 0.0
        %5320 = vmatprep.subr.mxu0 0.0
        %5321 = vmatpush2.msra.mxu0 0.0
        %5322 = vmatprep.subr.mxu0 0.0
        %5323 = vmatpush2.msra.mxu0 0.0
        %5324 = vmatprep.subr.mxu0 0.0
        %5325 = vmatpush2.msra.mxu0 0.0
        %5326 = vmatprep.subr.mxu0 0.0
        %5327 = vmatpush2.msra.mxu0 0.0
        %5328 = vmatprep.subr.mxu0 0.0
        %5329 = vmatpush2.msra.mxu0 0.0
        %5330 = vmatprep.subr.mxu0 0.0
        %5331 = vmatpush2.msra.mxu0 0.0
        %5332 = vmatprep.subr.mxu0 0.0
        %5333 = vmatpush2.msra.mxu0 0.0
        %5334 = vmatprep.subr.mxu0 0.0
        %5335 = vmatpush2.msra.mxu0 0.0
        %5336 = vmatprep.subr.mxu0 0.0
        %5337 = vmatpush2.msra.mxu0 0.0
        %5338 = vmatprep.subr.mxu0 0.0
        %5339 = vmatpush2.msra.mxu0 0.0
        %5340 = vmatprep.subr.mxu0 0.0
        %5341 = vmatpush2.msra.mxu0 0.0
        %5342 = vmatprep.mubr.f32.mxu0 0.0
        %5343 = vmatmul.mubr.f32.gmra.mxu0 %v5276
        %v5344 = vpop.f32.mrf.mxu0
        %v5345 = vadd.f32 0.0, %v5344
        %v5346 = vpop.f32.mrf.mxu0
        %5347 = vdwg.mxu0
        %5348 = vrot.lane.b32.xlu0 %v1229, 48
        %v5349 = vpop.permute.xlu0 %5348
        %v5352 = vsel %vm1242, %v4890, 0
        %5354 = vmatprep.subr.mxu0 0.0
        %5355 = vmatpush1.msra.mxu0 0.0
        %5356 = vmatprep.subr.mxu0 0.0
        %5357 = vmatpush1.msra.mxu0 0.0
        %5358 = vmatprep.subr.mxu0 0.0
        %5359 = vmatpush1.msra.mxu0 0.0
        %5360 = vmatprep.subr.mxu0 0.0
        %5361 = vmatpush1.msra.mxu0 0.0
        %5362 = vmatprep.subr.mxu0 0.0
        %5363 = vmatpush1.msra.mxu0 0.0
        %5364 = vmatprep.subr.mxu0 0.0
        %5365 = vmatpush1.msra.mxu0 0.0
        %5366 = vmatprep.subr.mxu0 0.0
        %5367 = vmatpush1.msra.mxu0 0.0
        %5368 = vmatprep.subr.mxu0 0.0
        %5369 = vmatpush1.msra.mxu0 0.0
        %5370 = vmatprep.subr.mxu0 0.0
        %5371 = vmatpush1.msra.mxu0 0.0
        %5372 = vmatprep.subr.mxu0 0.0
        %5373 = vmatpush1.msra.mxu0 0.0
        %5374 = vmatprep.subr.mxu0 0.0
        %5375 = vmatpush1.msra.mxu0 0.0
        %5376 = vmatprep.subr.mxu0 0.0
        %5377 = vmatpush1.msra.mxu0 0.0
        %5378 = vmatprep.subr.mxu0 0.0
        %5379 = vmatpush1.msra.mxu0 0.0
        %5380 = vmatprep.subr.mxu0 0.0
        %5381 = vmatpush1.msra.mxu0 0.0
        %5382 = vmatprep.subr.mxu0 0.0
        %5383 = vmatpush1.msra.mxu0 0.0
        %5384 = vmatprep.subr.mxu0 0.0
        %5385 = vmatpush1.msra.mxu0 %v5349
        %5386 = vmatprep.subr.mxu0 0.0
        %5387 = vmatpush2.msra.mxu0 0.0
        %5388 = vmatprep.subr.mxu0 0.0
        %5389 = vmatpush2.msra.mxu0 0.0
        %5390 = vmatprep.subr.mxu0 0.0
        %5391 = vmatpush2.msra.mxu0 0.0
        %5392 = vmatprep.subr.mxu0 0.0
        %5393 = vmatpush2.msra.mxu0 0.0
        %5394 = vmatprep.subr.mxu0 0.0
        %5395 = vmatpush2.msra.mxu0 0.0
        %5396 = vmatprep.subr.mxu0 0.0
        %5397 = vmatpush2.msra.mxu0 0.0
        %5398 = vmatprep.subr.mxu0 0.0
        %5399 = vmatpush2.msra.mxu0 0.0
        %5400 = vmatprep.subr.mxu0 0.0
        %5401 = vmatpush2.msra.mxu0 0.0
        %5402 = vmatprep.subr.mxu0 0.0
        %5403 = vmatpush2.msra.mxu0 0.0
        %5404 = vmatprep.subr.mxu0 0.0
        %5405 = vmatpush2.msra.mxu0 0.0
        %5406 = vmatprep.subr.mxu0 0.0
        %5407 = vmatpush2.msra.mxu0 0.0
        %5408 = vmatprep.subr.mxu0 0.0
        %5409 = vmatpush2.msra.mxu0 0.0
        %5410 = vmatprep.subr.mxu0 0.0
        %5411 = vmatpush2.msra.mxu0 0.0
        %5412 = vmatprep.subr.mxu0 0.0
        %5413 = vmatpush2.msra.mxu0 0.0
        %5414 = vmatprep.subr.mxu0 0.0
        %5415 = vmatpush2.msra.mxu0 0.0
        %5416 = vmatprep.subr.mxu0 0.0
        %5417 = vmatpush2.msra.mxu0 0.0
        %5418 = vmatprep.mubr.f32.mxu0 0.0
        %5419 = vmatmul.mubr.f32.gmra.mxu0 %v5352
        %v5420 = vpop.f32.mrf.mxu0
        %v5421 = vadd.f32 0.0, %v5420
        %v5422 = vpop.f32.mrf.mxu0
        %5423 = vdwg.mxu0
        %5424 = vrot.lane.b32.xlu0 %v1232, 48
        %v5425 = vpop.permute.xlu0 %5424
        %v5428 = vsel %vm1242, %v4891, 0
        %5430 = vmatprep.subr.mxu0 0.0
        %5431 = vmatpush1.msra.mxu0 0.0
        %5432 = vmatprep.subr.mxu0 0.0
        %5433 = vmatpush1.msra.mxu0 0.0
        %5434 = vmatprep.subr.mxu0 0.0
        %5435 = vmatpush1.msra.mxu0 0.0
        %5436 = vmatprep.subr.mxu0 0.0
        %5437 = vmatpush1.msra.mxu0 0.0
        %5438 = vmatprep.subr.mxu0 0.0
        %5439 = vmatpush1.msra.mxu0 0.0
        %5440 = vmatprep.subr.mxu0 0.0
        %5441 = vmatpush1.msra.mxu0 0.0
        %5442 = vmatprep.subr.mxu0 0.0
        %5443 = vmatpush1.msra.mxu0 0.0
        %5444 = vmatprep.subr.mxu0 0.0
        %5445 = vmatpush1.msra.mxu0 0.0
        %5446 = vmatprep.subr.mxu0 0.0
        %5447 = vmatpush1.msra.mxu0 0.0
        %5448 = vmatprep.subr.mxu0 0.0
        %5449 = vmatpush1.msra.mxu0 0.0
        %5450 = vmatprep.subr.mxu0 0.0
        %5451 = vmatpush1.msra.mxu0 0.0
        %5452 = vmatprep.subr.mxu0 0.0
        %5453 = vmatpush1.msra.mxu0 0.0
        %5454 = vmatprep.subr.mxu0 0.0
        %5455 = vmatpush1.msra.mxu0 0.0
        %5456 = vmatprep.subr.mxu0 0.0
        %5457 = vmatpush1.msra.mxu0 0.0
        %5458 = vmatprep.subr.mxu0 0.0
        %5459 = vmatpush1.msra.mxu0 0.0
        %5460 = vmatprep.subr.mxu0 0.0
        %5461 = vmatpush1.msra.mxu0 %v5425
        %5462 = vmatprep.subr.mxu0 0.0
        %5463 = vmatpush2.msra.mxu0 0.0
        %5464 = vmatprep.subr.mxu0 0.0
        %5465 = vmatpush2.msra.mxu0 0.0
        %5466 = vmatprep.subr.mxu0 0.0
        %5467 = vmatpush2.msra.mxu0 0.0
        %5468 = vmatprep.subr.mxu0 0.0
        %5469 = vmatpush2.msra.mxu0 0.0
        %5470 = vmatprep.subr.mxu0 0.0
        %5471 = vmatpush2.msra.mxu0 0.0
        %5472 = vmatprep.subr.mxu0 0.0
        %5473 = vmatpush2.msra.mxu0 0.0
        %5474 = vmatprep.subr.mxu0 0.0
        %5475 = vmatpush2.msra.mxu0 0.0
        %5476 = vmatprep.subr.mxu0 0.0
        %5477 = vmatpush2.msra.mxu0 0.0
        %5478 = vmatprep.subr.mxu0 0.0
        %5479 = vmatpush2.msra.mxu0 0.0
        %5480 = vmatprep.subr.mxu0 0.0
        %5481 = vmatpush2.msra.mxu0 0.0
        %5482 = vmatprep.subr.mxu0 0.0
        %5483 = vmatpush2.msra.mxu0 0.0
        %5484 = vmatprep.subr.mxu0 0.0
        %5485 = vmatpush2.msra.mxu0 0.0
        %5486 = vmatprep.subr.mxu0 0.0
        %5487 = vmatpush2.msra.mxu0 0.0
        %5488 = vmatprep.subr.mxu0 0.0
        %5489 = vmatpush2.msra.mxu0 0.0
        %5490 = vmatprep.subr.mxu0 0.0
        %5491 = vmatpush2.msra.mxu0 0.0
        %5492 = vmatprep.subr.mxu0 0.0
        %5493 = vmatpush2.msra.mxu0 0.0
        %5494 = vmatprep.mubr.f32.mxu0 0.0
        %5495 = vmatmul.mubr.f32.gmra.mxu0 %v5428
        %v5496 = vpop.f32.mrf.mxu0
        %v5497 = vadd.f32 0.0, %v5496
        %v5498 = vpop.f32.mrf.mxu0
        %5499 = vdwg.mxu0
        %v5500 = vld [vmem:[%s9 + $0x10] sm:$0xff]
        %v5502 = vsel %vm1242, %v4965, 0
        %v5505 = vsel %vm1242, %v5041, 0
        %v5508 = vsel %vm1242, %v5117, 0
        %v5511 = vsel %vm1242, %v5193, 0
        %v5514 = vsel %vm1242, %v5269, 0
        %v5517 = vsel %vm1242, %v5345, 0
        %v5520 = vsel %vm1242, %v5421, 0
        %v5523 = vsel %vm1242, %v5497, 0
        %5525 = vmatprep.subr.mxu0 0.0
        %5526 = vmatpush1.msra.mxu0 0.0
        %5527 = vmatprep.subr.mxu0 0.0
        %5528 = vmatpush1.msra.mxu0 0.0
        %5529 = vmatprep.subr.mxu0 0.0
        %5530 = vmatpush1.msra.mxu0 0.0
        %5531 = vmatprep.subr.mxu0 0.0
        %5532 = vmatpush1.msra.mxu0 0.0
        %5533 = vmatprep.subr.mxu0 0.0
        %5534 = vmatpush1.msra.mxu0 0.0
        %5535 = vmatprep.subr.mxu0 0.0
        %5536 = vmatpush1.msra.mxu0 0.0
        %5537 = vmatprep.subr.mxu0 0.0
        %5538 = vmatpush1.msra.mxu0 0.0
        %5539 = vmatprep.subr.mxu0 0.0
        %5540 = vmatpush1.msra.mxu0 0.0
        %5541 = vmatprep.subr.mxu0 0.0
        %5542 = vmatpush1.msra.mxu0 0.0
        %5543 = vmatprep.subr.mxu0 0.0
        %5544 = vmatpush1.msra.mxu0 0.0
        %5545 = vmatprep.subr.mxu0 0.0
        %5546 = vmatpush1.msra.mxu0 0.0
        %5547 = vmatprep.subr.mxu0 0.0
        %5548 = vmatpush1.msra.mxu0 0.0
        %5549 = vmatprep.subr.mxu0 0.0
        %5550 = vmatpush1.msra.mxu0 0.0
        %5551 = vmatprep.subr.mxu0 0.0
        %5552 = vmatpush1.msra.mxu0 0.0
        %5553 = vmatprep.subr.mxu0 0.0
        %5554 = vmatpush1.msra.mxu0 0.0
        %5555 = vmatprep.subr.mxu0 0.0
        %5556 = vmatpush1.msra.mxu0 %v5500
        %5557 = vmatprep.subr.mxu0 0.0
        %5558 = vmatpush2.msra.mxu0 0.0
        %5559 = vmatprep.subr.mxu0 0.0
        %5560 = vmatpush2.msra.mxu0 0.0
        %5561 = vmatprep.subr.mxu0 0.0
        %5562 = vmatpush2.msra.mxu0 0.0
        %5563 = vmatprep.subr.mxu0 0.0
        %5564 = vmatpush2.msra.mxu0 0.0
        %5565 = vmatprep.subr.mxu0 0.0
        %5566 = vmatpush2.msra.mxu0 0.0
        %5567 = vmatprep.subr.mxu0 0.0
        %5568 = vmatpush2.msra.mxu0 0.0
        %5569 = vmatprep.subr.mxu0 0.0
        %5570 = vmatpush2.msra.mxu0 0.0
        %5571 = vmatprep.subr.mxu0 0.0
        %5572 = vmatpush2.msra.mxu0 0.0
        %5573 = vmatprep.subr.mxu0 0.0
        %5574 = vmatpush2.msra.mxu0 0.0
        %5575 = vmatprep.subr.mxu0 0.0
        %5576 = vmatpush2.msra.mxu0 0.0
        %5577 = vmatprep.subr.mxu0 0.0
        %5578 = vmatpush2.msra.mxu0 0.0
        %5579 = vmatprep.subr.mxu0 0.0
        %5580 = vmatpush2.msra.mxu0 0.0
        %5581 = vmatprep.subr.mxu0 0.0
        %5582 = vmatpush2.msra.mxu0 0.0
        %5583 = vmatprep.subr.mxu0 0.0
        %5584 = vmatpush2.msra.mxu0 0.0
        %5585 = vmatprep.subr.mxu0 0.0
        %5586 = vmatpush2.msra.mxu0 0.0
        %5587 = vmatprep.subr.mxu0 0.0
        %5588 = vmatpush2.msra.mxu0 0.0
        %5589 = vmatprep.mubr.f32.mxu0 0.0
        %5590 = vmatmul.mubr.f32.gmra.mxu0 %v5502
        %v5591 = vpop.f32.mrf.mxu0
        %v5592 = vadd.f32 0.0, %v5591
        %v5593 = vpop.f32.mrf.mxu0
        %5594 = vmatprep.mubr.f32.mxu0 0.0
        %5595 = vmatmul.mubr.f32.gmra.mxu0 %v5505
        %v5596 = vpop.f32.mrf.mxu0
        %v5597 = vadd.f32 0.0, %v5596
        %v5598 = vpop.f32.mrf.mxu0
        %5599 = vmatprep.mubr.f32.mxu0 0.0
        %5600 = vmatmul.mubr.f32.gmra.mxu0 %v5508
        %v5601 = vpop.f32.mrf.mxu0
        %v5602 = vadd.f32 0.0, %v5601
        %v5603 = vpop.f32.mrf.mxu0
        %5604 = vmatprep.mubr.f32.mxu0 0.0
        %5605 = vmatmul.mubr.f32.gmra.mxu0 %v5511
        %v5606 = vpop.f32.mrf.mxu0
        %v5607 = vadd.f32 0.0, %v5606
        %v5608 = vpop.f32.mrf.mxu0
        %5609 = vmatprep.mubr.f32.mxu0 0.0
        %5610 = vmatmul.mubr.f32.gmra.mxu0 %v5514
        %v5611 = vpop.f32.mrf.mxu0
        %v5612 = vadd.f32 0.0, %v5611
        %v5613 = vpop.f32.mrf.mxu0
        %5614 = vmatprep.mubr.f32.mxu0 0.0
        %5615 = vmatmul.mubr.f32.gmra.mxu0 %v5517
        %v5616 = vpop.f32.mrf.mxu0
        %v5617 = vadd.f32 0.0, %v5616
        %v5618 = vpop.f32.mrf.mxu0
        %5619 = vmatprep.mubr.f32.mxu0 0.0
        %5620 = vmatmul.mubr.f32.gmra.mxu0 %v5520
        %v5621 = vpop.f32.mrf.mxu0
        %v5622 = vadd.f32 0.0, %v5621
        %v5623 = vpop.f32.mrf.mxu0
        %5624 = vmatprep.mubr.f32.mxu0 0.0
        %5625 = vmatmul.mubr.f32.gmra.mxu0 %v5523
        %v5626 = vpop.f32.mrf.mxu0
        %v5627 = vadd.f32 0.0, %v5626
        %v5628 = vpop.f32.mrf.mxu0
        %5629 = vdwg.mxu0
        %v5630 = vadd.f32 %v4126, %v5592
        %v5631 = vadd.f32 %v4131, %v5597
        %v5632 = vadd.f32 %v4136, %v5602
        %v5633 = vadd.f32 %v4141, %v5607
        %v5634 = vadd.f32 %v4146, %v5612
        %v5635 = vadd.f32 %v4151, %v5617
        %v5636 = vadd.f32 %v4156, %v5622
        %v5637 = vadd.f32 %v4161, %v5627
        %5638 = vrot.lane.b32.xlu0 %v1205, 104
        %v5639 = vpop.permute.xlu0 %5638
        %5640 = vrot.lane.b32.xlu0 %v1205, 72
        %v5641 = vpop.permute.xlu0 %5640
        %v5642 = vsel %vm1242, %v5639, 0
        %v5644 = vsel %vm1242, %v5641, 0
        %5646 = vmatprep.subr.mxu0 0.0
        %5647 = vmatpush1.xpose.msra.mxu0 0.0
        %5648 = vmatprep.subr.mxu0 0.0
        %5649 = vmatpush1.xpose.msra.mxu0 0.0
        %5650 = vmatprep.subr.mxu0 0.0
        %5651 = vmatpush1.xpose.msra.mxu0 0.0
        %5652 = vmatprep.subr.mxu0 0.0
        %5653 = vmatpush1.xpose.msra.mxu0 0.0
        %5654 = vmatprep.subr.mxu0 0.0
        %5655 = vmatpush1.xpose.msra.mxu0 0.0
        %5656 = vmatprep.subr.mxu0 0.0
        %5657 = vmatpush1.xpose.msra.mxu0 0.0
        %5658 = vmatprep.subr.mxu0 0.0
        %5659 = vmatpush1.xpose.msra.mxu0 0.0
        %5660 = vmatprep.subr.mxu0 0.0
        %5661 = vmatpush1.xpose.msra.mxu0 0.0
        %5662 = vmatprep.subr.mxu0 0.0
        %5663 = vmatpush1.xpose.msra.mxu0 0.0
        %5664 = vmatprep.subr.mxu0 0.0
        %5665 = vmatpush1.xpose.msra.mxu0 0.0
        %5666 = vmatprep.subr.mxu0 0.0
        %5667 = vmatpush1.xpose.msra.mxu0 0.0
        %5668 = vmatprep.subr.mxu0 0.0
        %5669 = vmatpush1.xpose.msra.mxu0 0.0
        %5670 = vmatprep.subr.mxu0 0.0
        %5671 = vmatpush1.xpose.msra.mxu0 0.0
        %5672 = vmatprep.subr.mxu0 0.0
        %5673 = vmatpush1.xpose.msra.mxu0 0.0
        %5674 = vmatprep.subr.mxu0 0.0
        %5675 = vmatpush1.xpose.msra.mxu0 0.0
        %5676 = vmatprep.subr.mxu0 0.0
        %5677 = vmatpush1.xpose.msra.mxu0 %v5644
        %5678 = vmatprep.subr.mxu0 0.0
        %5679 = vmatpush2.xpose.msra.mxu0 0.0
        %5680 = vmatprep.subr.mxu0 0.0
        %5681 = vmatpush2.xpose.msra.mxu0 0.0
        %5682 = vmatprep.subr.mxu0 0.0
        %5683 = vmatpush2.xpose.msra.mxu0 0.0
        %5684 = vmatprep.subr.mxu0 0.0
        %5685 = vmatpush2.xpose.msra.mxu0 0.0
        %5686 = vmatprep.subr.mxu0 0.0
        %5687 = vmatpush2.xpose.msra.mxu0 0.0
        %5688 = vmatprep.subr.mxu0 0.0
        %5689 = vmatpush2.xpose.msra.mxu0 0.0
        %5690 = vmatprep.subr.mxu0 0.0
        %5691 = vmatpush2.xpose.msra.mxu0 0.0
        %5692 = vmatprep.subr.mxu0 0.0
        %5693 = vmatpush2.xpose.msra.mxu0 0.0
        %5694 = vmatprep.subr.mxu0 0.0
        %5695 = vmatpush2.xpose.msra.mxu0 0.0
        %5696 = vmatprep.subr.mxu0 0.0
        %5697 = vmatpush2.xpose.msra.mxu0 0.0
        %5698 = vmatprep.subr.mxu0 0.0
        %5699 = vmatpush2.xpose.msra.mxu0 0.0
        %5700 = vmatprep.subr.mxu0 0.0
        %5701 = vmatpush2.xpose.msra.mxu0 0.0
        %5702 = vmatprep.subr.mxu0 0.0
        %5703 = vmatpush2.xpose.msra.mxu0 0.0
        %5704 = vmatprep.subr.mxu0 0.0
        %5705 = vmatpush2.xpose.msra.mxu0 0.0
        %5706 = vmatprep.subr.mxu0 0.0
        %5707 = vmatpush2.xpose.msra.mxu0 0.0
        %5708 = vmatprep.subr.mxu0 0.0
        %5709 = vmatpush2.xpose.msra.mxu0 0.0
        %5710 = vmatprep.mubr.f32.mxu0 0.0
        %5711 = vmatmul.mubr.f32.gmra.mxu0 %v5642
        %v5712 = vpop.f32.mrf.mxu0
        %v5713 = vadd.f32 0.0, %v5712
        %v5714 = vpop.f32.mrf.mxu0
        %5715 = vdwg.mxu0
        %5716 = vrot.lane.b32.xlu0 %v1208, 104
        %v5717 = vpop.permute.xlu0 %5716
        %5718 = vrot.lane.b32.xlu0 %v1208, 72
        %v5719 = vpop.permute.xlu0 %5718
        %v5720 = vsel %vm1242, %v5717, 0
        %v5722 = vsel %vm1242, %v5719, 0
        %5724 = vmatprep.subr.mxu0 0.0
        %5725 = vmatpush1.xpose.msra.mxu0 0.0
        %5726 = vmatprep.subr.mxu0 0.0
        %5727 = vmatpush1.xpose.msra.mxu0 0.0
        %5728 = vmatprep.subr.mxu0 0.0
        %5729 = vmatpush1.xpose.msra.mxu0 0.0
        %5730 = vmatprep.subr.mxu0 0.0
        %5731 = vmatpush1.xpose.msra.mxu0 0.0
        %5732 = vmatprep.subr.mxu0 0.0
        %5733 = vmatpush1.xpose.msra.mxu0 0.0
        %5734 = vmatprep.subr.mxu0 0.0
        %5735 = vmatpush1.xpose.msra.mxu0 0.0
        %5736 = vmatprep.subr.mxu0 0.0
        %5737 = vmatpush1.xpose.msra.mxu0 0.0
        %5738 = vmatprep.subr.mxu0 0.0
        %5739 = vmatpush1.xpose.msra.mxu0 0.0
        %5740 = vmatprep.subr.mxu0 0.0
        %5741 = vmatpush1.xpose.msra.mxu0 0.0
        %5742 = vmatprep.subr.mxu0 0.0
        %5743 = vmatpush1.xpose.msra.mxu0 0.0
        %5744 = vmatprep.subr.mxu0 0.0
        %5745 = vmatpush1.xpose.msra.mxu0 0.0
        %5746 = vmatprep.subr.mxu0 0.0
        %5747 = vmatpush1.xpose.msra.mxu0 0.0
        %5748 = vmatprep.subr.mxu0 0.0
        %5749 = vmatpush1.xpose.msra.mxu0 0.0
        %5750 = vmatprep.subr.mxu0 0.0
        %5751 = vmatpush1.xpose.msra.mxu0 0.0
        %5752 = vmatprep.subr.mxu0 0.0
        %5753 = vmatpush1.xpose.msra.mxu0 0.0
        %5754 = vmatprep.subr.mxu0 0.0
        %5755 = vmatpush1.xpose.msra.mxu0 %v5722
        %5756 = vmatprep.subr.mxu0 0.0
        %5757 = vmatpush2.xpose.msra.mxu0 0.0
        %5758 = vmatprep.subr.mxu0 0.0
        %5759 = vmatpush2.xpose.msra.mxu0 0.0
        %5760 = vmatprep.subr.mxu0 0.0
        %5761 = vmatpush2.xpose.msra.mxu0 0.0
        %5762 = vmatprep.subr.mxu0 0.0
        %5763 = vmatpush2.xpose.msra.mxu0 0.0
        %5764 = vmatprep.subr.mxu0 0.0
        %5765 = vmatpush2.xpose.msra.mxu0 0.0
        %5766 = vmatprep.subr.mxu0 0.0
        %5767 = vmatpush2.xpose.msra.mxu0 0.0
        %5768 = vmatprep.subr.mxu0 0.0
        %5769 = vmatpush2.xpose.msra.mxu0 0.0
        %5770 = vmatprep.subr.mxu0 0.0
        %5771 = vmatpush2.xpose.msra.mxu0 0.0
        %5772 = vmatprep.subr.mxu0 0.0
        %5773 = vmatpush2.xpose.msra.mxu0 0.0
        %5774 = vmatprep.subr.mxu0 0.0
        %5775 = vmatpush2.xpose.msra.mxu0 0.0
        %5776 = vmatprep.subr.mxu0 0.0
        %5777 = vmatpush2.xpose.msra.mxu0 0.0
        %5778 = vmatprep.subr.mxu0 0.0
        %5779 = vmatpush2.xpose.msra.mxu0 0.0
        %5780 = vmatprep.subr.mxu0 0.0
        %5781 = vmatpush2.xpose.msra.mxu0 0.0
        %5782 = vmatprep.subr.mxu0 0.0
        %5783 = vmatpush2.xpose.msra.mxu0 0.0
        %5784 = vmatprep.subr.mxu0 0.0
        %5785 = vmatpush2.xpose.msra.mxu0 0.0
        %5786 = vmatprep.subr.mxu0 0.0
        %5787 = vmatpush2.xpose.msra.mxu0 0.0
        %5788 = vmatprep.mubr.f32.mxu0 0.0
        %5789 = vmatmul.mubr.f32.gmra.mxu0 %v5720
        %v5790 = vpop.f32.mrf.mxu0
        %v5791 = vadd.f32 0.0, %v5790
        %v5792 = vpop.f32.mrf.mxu0
        %5793 = vdwg.mxu0
        %5794 = vrot.lane.b32.xlu0 %v1213, 104
        %v5795 = vpop.permute.xlu0 %5794
        %5796 = vrot.lane.b32.xlu0 %v1213, 72
        %v5797 = vpop.permute.xlu0 %5796
        %v5798 = vsel %vm1242, %v5795, 0
        %v5800 = vsel %vm1242, %v5797, 0
        %5802 = vmatprep.subr.mxu0 0.0
        %5803 = vmatpush1.xpose.msra.mxu0 0.0
        %5804 = vmatprep.subr.mxu0 0.0
        %5805 = vmatpush1.xpose.msra.mxu0 0.0
        %5806 = vmatprep.subr.mxu0 0.0
        %5807 = vmatpush1.xpose.msra.mxu0 0.0
        %5808 = vmatprep.subr.mxu0 0.0
        %5809 = vmatpush1.xpose.msra.mxu0 0.0
        %5810 = vmatprep.subr.mxu0 0.0
        %5811 = vmatpush1.xpose.msra.mxu0 0.0
        %5812 = vmatprep.subr.mxu0 0.0
        %5813 = vmatpush1.xpose.msra.mxu0 0.0
        %5814 = vmatprep.subr.mxu0 0.0
        %5815 = vmatpush1.xpose.msra.mxu0 0.0
        %5816 = vmatprep.subr.mxu0 0.0
        %5817 = vmatpush1.xpose.msra.mxu0 0.0
        %5818 = vmatprep.subr.mxu0 0.0
        %5819 = vmatpush1.xpose.msra.mxu0 0.0
        %5820 = vmatprep.subr.mxu0 0.0
        %5821 = vmatpush1.xpose.msra.mxu0 0.0
        %5822 = vmatprep.subr.mxu0 0.0
        %5823 = vmatpush1.xpose.msra.mxu0 0.0
        %5824 = vmatprep.subr.mxu0 0.0
        %5825 = vmatpush1.xpose.msra.mxu0 0.0
        %5826 = vmatprep.subr.mxu0 0.0
        %5827 = vmatpush1.xpose.msra.mxu0 0.0
        %5828 = vmatprep.subr.mxu0 0.0
        %5829 = vmatpush1.xpose.msra.mxu0 0.0
        %5830 = vmatprep.subr.mxu0 0.0
        %5831 = vmatpush1.xpose.msra.mxu0 0.0
        %5832 = vmatprep.subr.mxu0 0.0
        %5833 = vmatpush1.xpose.msra.mxu0 %v5800
        %5834 = vmatprep.subr.mxu0 0.0
        %5835 = vmatpush2.xpose.msra.mxu0 0.0
        %5836 = vmatprep.subr.mxu0 0.0
        %5837 = vmatpush2.xpose.msra.mxu0 0.0
        %5838 = vmatprep.subr.mxu0 0.0
        %5839 = vmatpush2.xpose.msra.mxu0 0.0
        %5840 = vmatprep.subr.mxu0 0.0
        %5841 = vmatpush2.xpose.msra.mxu0 0.0
        %5842 = vmatprep.subr.mxu0 0.0
        %5843 = vmatpush2.xpose.msra.mxu0 0.0
        %5844 = vmatprep.subr.mxu0 0.0
        %5845 = vmatpush2.xpose.msra.mxu0 0.0
        %5846 = vmatprep.subr.mxu0 0.0
        %5847 = vmatpush2.xpose.msra.mxu0 0.0
        %5848 = vmatprep.subr.mxu0 0.0
        %5849 = vmatpush2.xpose.msra.mxu0 0.0
        %5850 = vmatprep.subr.mxu0 0.0
        %5851 = vmatpush2.xpose.msra.mxu0 0.0
        %5852 = vmatprep.subr.mxu0 0.0
        %5853 = vmatpush2.xpose.msra.mxu0 0.0
        %5854 = vmatprep.subr.mxu0 0.0
        %5855 = vmatpush2.xpose.msra.mxu0 0.0
        %5856 = vmatprep.subr.mxu0 0.0
        %5857 = vmatpush2.xpose.msra.mxu0 0.0
        %5858 = vmatprep.subr.mxu0 0.0
        %5859 = vmatpush2.xpose.msra.mxu0 0.0
        %5860 = vmatprep.subr.mxu0 0.0
        %5861 = vmatpush2.xpose.msra.mxu0 0.0
        %5862 = vmatprep.subr.mxu0 0.0
        %5863 = vmatpush2.xpose.msra.mxu0 0.0
        %5864 = vmatprep.subr.mxu0 0.0
        %5865 = vmatpush2.xpose.msra.mxu0 0.0
        %5866 = vmatprep.mubr.f32.mxu0 0.0
        %5867 = vmatmul.mubr.f32.gmra.mxu0 %v5798
        %v5868 = vpop.f32.mrf.mxu0
        %v5869 = vadd.f32 0.0, %v5868
        %v5870 = vpop.f32.mrf.mxu0
        %5871 = vdwg.mxu0
        %5872 = vrot.lane.b32.xlu0 %v1216, 104
        %v5873 = vpop.permute.xlu0 %5872
        %5874 = vrot.lane.b32.xlu0 %v1216, 72
        %v5875 = vpop.permute.xlu0 %5874
        %v5876 = vsel %vm1242, %v5873, 0
        %v5878 = vsel %vm1242, %v5875, 0
        %5880 = vmatprep.subr.mxu0 0.0
        %5881 = vmatpush1.xpose.msra.mxu0 0.0
        %5882 = vmatprep.subr.mxu0 0.0
        %5883 = vmatpush1.xpose.msra.mxu0 0.0
        %5884 = vmatprep.subr.mxu0 0.0
        %5885 = vmatpush1.xpose.msra.mxu0 0.0
        %5886 = vmatprep.subr.mxu0 0.0
        %5887 = vmatpush1.xpose.msra.mxu0 0.0
        %5888 = vmatprep.subr.mxu0 0.0
        %5889 = vmatpush1.xpose.msra.mxu0 0.0
        %5890 = vmatprep.subr.mxu0 0.0
        %5891 = vmatpush1.xpose.msra.mxu0 0.0
        %5892 = vmatprep.subr.mxu0 0.0
        %5893 = vmatpush1.xpose.msra.mxu0 0.0
        %5894 = vmatprep.subr.mxu0 0.0
        %5895 = vmatpush1.xpose.msra.mxu0 0.0
        %5896 = vmatprep.subr.mxu0 0.0
        %5897 = vmatpush1.xpose.msra.mxu0 0.0
        %5898 = vmatprep.subr.mxu0 0.0
        %5899 = vmatpush1.xpose.msra.mxu0 0.0
        %5900 = vmatprep.subr.mxu0 0.0
        %5901 = vmatpush1.xpose.msra.mxu0 0.0
        %5902 = vmatprep.subr.mxu0 0.0
        %5903 = vmatpush1.xpose.msra.mxu0 0.0
        %5904 = vmatprep.subr.mxu0 0.0
        %5905 = vmatpush1.xpose.msra.mxu0 0.0
        %5906 = vmatprep.subr.mxu0 0.0
        %5907 = vmatpush1.xpose.msra.mxu0 0.0
        %5908 = vmatprep.subr.mxu0 0.0
        %5909 = vmatpush1.xpose.msra.mxu0 0.0
        %5910 = vmatprep.subr.mxu0 0.0
        %5911 = vmatpush1.xpose.msra.mxu0 %v5878
        %5912 = vmatprep.subr.mxu0 0.0
        %5913 = vmatpush2.xpose.msra.mxu0 0.0
        %5914 = vmatprep.subr.mxu0 0.0
        %5915 = vmatpush2.xpose.msra.mxu0 0.0
        %5916 = vmatprep.subr.mxu0 0.0
        %5917 = vmatpush2.xpose.msra.mxu0 0.0
        %5918 = vmatprep.subr.mxu0 0.0
        %5919 = vmatpush2.xpose.msra.mxu0 0.0
        %5920 = vmatprep.subr.mxu0 0.0
        %5921 = vmatpush2.xpose.msra.mxu0 0.0
        %5922 = vmatprep.subr.mxu0 0.0
        %5923 = vmatpush2.xpose.msra.mxu0 0.0
        %5924 = vmatprep.subr.mxu0 0.0
        %5925 = vmatpush2.xpose.msra.mxu0 0.0
        %5926 = vmatprep.subr.mxu0 0.0
        %5927 = vmatpush2.xpose.msra.mxu0 0.0
        %5928 = vmatprep.subr.mxu0 0.0
        %5929 = vmatpush2.xpose.msra.mxu0 0.0
        %5930 = vmatprep.subr.mxu0 0.0
        %5931 = vmatpush2.xpose.msra.mxu0 0.0
        %5932 = vmatprep.subr.mxu0 0.0
        %5933 = vmatpush2.xpose.msra.mxu0 0.0
        %5934 = vmatprep.subr.mxu0 0.0
        %5935 = vmatpush2.xpose.msra.mxu0 0.0
        %5936 = vmatprep.subr.mxu0 0.0
        %5937 = vmatpush2.xpose.msra.mxu0 0.0
        %5938 = vmatprep.subr.mxu0 0.0
        %5939 = vmatpush2.xpose.msra.mxu0 0.0
        %5940 = vmatprep.subr.mxu0 0.0
        %5941 = vmatpush2.xpose.msra.mxu0 0.0
        %5942 = vmatprep.subr.mxu0 0.0
        %5943 = vmatpush2.xpose.msra.mxu0 0.0
        %5944 = vmatprep.mubr.f32.mxu0 0.0
        %5945 = vmatmul.mubr.f32.gmra.mxu0 %v5876
        %v5946 = vpop.f32.mrf.mxu0
        %v5947 = vadd.f32 0.0, %v5946
        %v5948 = vpop.f32.mrf.mxu0
        %5949 = vdwg.mxu0
        %5950 = vrot.lane.b32.xlu0 %v1221, 104
        %v5951 = vpop.permute.xlu0 %5950
        %5952 = vrot.lane.b32.xlu0 %v1221, 72
        %v5953 = vpop.permute.xlu0 %5952
        %v5954 = vsel %vm1242, %v5951, 0
        %v5956 = vsel %vm1242, %v5953, 0
        %5958 = vmatprep.subr.mxu0 0.0
        %5959 = vmatpush1.xpose.msra.mxu0 0.0
        %5960 = vmatprep.subr.mxu0 0.0
        %5961 = vmatpush1.xpose.msra.mxu0 0.0
        %5962 = vmatprep.subr.mxu0 0.0
        %5963 = vmatpush1.xpose.msra.mxu0 0.0
        %5964 = vmatprep.subr.mxu0 0.0
        %5965 = vmatpush1.xpose.msra.mxu0 0.0
        %5966 = vmatprep.subr.mxu0 0.0
        %5967 = vmatpush1.xpose.msra.mxu0 0.0
        %5968 = vmatprep.subr.mxu0 0.0
        %5969 = vmatpush1.xpose.msra.mxu0 0.0
        %5970 = vmatprep.subr.mxu0 0.0
        %5971 = vmatpush1.xpose.msra.mxu0 0.0
        %5972 = vmatprep.subr.mxu0 0.0
        %5973 = vmatpush1.xpose.msra.mxu0 0.0
        %5974 = vmatprep.subr.mxu0 0.0
        %5975 = vmatpush1.xpose.msra.mxu0 0.0
        %5976 = vmatprep.subr.mxu0 0.0
        %5977 = vmatpush1.xpose.msra.mxu0 0.0
        %5978 = vmatprep.subr.mxu0 0.0
        %5979 = vmatpush1.xpose.msra.mxu0 0.0
        %5980 = vmatprep.subr.mxu0 0.0
        %5981 = vmatpush1.xpose.msra.mxu0 0.0
        %5982 = vmatprep.subr.mxu0 0.0
        %5983 = vmatpush1.xpose.msra.mxu0 0.0
        %5984 = vmatprep.subr.mxu0 0.0
        %5985 = vmatpush1.xpose.msra.mxu0 0.0
        %5986 = vmatprep.subr.mxu0 0.0
        %5987 = vmatpush1.xpose.msra.mxu0 0.0
        %5988 = vmatprep.subr.mxu0 0.0
        %5989 = vmatpush1.xpose.msra.mxu0 %v5956
        %5990 = vmatprep.subr.mxu0 0.0
        %5991 = vmatpush2.xpose.msra.mxu0 0.0
        %5992 = vmatprep.subr.mxu0 0.0
        %5993 = vmatpush2.xpose.msra.mxu0 0.0
        %5994 = vmatprep.subr.mxu0 0.0
        %5995 = vmatpush2.xpose.msra.mxu0 0.0
        %5996 = vmatprep.subr.mxu0 0.0
        %5997 = vmatpush2.xpose.msra.mxu0 0.0
        %5998 = vmatprep.subr.mxu0 0.0
        %5999 = vmatpush2.xpose.msra.mxu0 0.0
        %6000 = vmatprep.subr.mxu0 0.0
        %6001 = vmatpush2.xpose.msra.mxu0 0.0
        %6002 = vmatprep.subr.mxu0 0.0
        %6003 = vmatpush2.xpose.msra.mxu0 0.0
        %6004 = vmatprep.subr.mxu0 0.0
        %6005 = vmatpush2.xpose.msra.mxu0 0.0
        %6006 = vmatprep.subr.mxu0 0.0
        %6007 = vmatpush2.xpose.msra.mxu0 0.0
        %6008 = vmatprep.subr.mxu0 0.0
        %6009 = vmatpush2.xpose.msra.mxu0 0.0
        %6010 = vmatprep.subr.mxu0 0.0
        %6011 = vmatpush2.xpose.msra.mxu0 0.0
        %6012 = vmatprep.subr.mxu0 0.0
        %6013 = vmatpush2.xpose.msra.mxu0 0.0
        %6014 = vmatprep.subr.mxu0 0.0
        %6015 = vmatpush2.xpose.msra.mxu0 0.0
        %6016 = vmatprep.subr.mxu0 0.0
        %6017 = vmatpush2.xpose.msra.mxu0 0.0
        %6018 = vmatprep.subr.mxu0 0.0
        %6019 = vmatpush2.xpose.msra.mxu0 0.0
        %6020 = vmatprep.subr.mxu0 0.0
        %6021 = vmatpush2.xpose.msra.mxu0 0.0
        %6022 = vmatprep.mubr.f32.mxu0 0.0
        %6023 = vmatmul.mubr.f32.gmra.mxu0 %v5954
        %v6024 = vpop.f32.mrf.mxu0
        %v6025 = vadd.f32 0.0, %v6024
        %v6026 = vpop.f32.mrf.mxu0
        %6027 = vdwg.mxu0
        %6028 = vrot.lane.b32.xlu0 %v1224, 104
        %v6029 = vpop.permute.xlu0 %6028
        %6030 = vrot.lane.b32.xlu0 %v1224, 72
        %v6031 = vpop.permute.xlu0 %6030
        %v6032 = vsel %vm1242, %v6029, 0
        %v6034 = vsel %vm1242, %v6031, 0
        %6036 = vmatprep.subr.mxu0 0.0
        %6037 = vmatpush1.xpose.msra.mxu0 0.0
        %6038 = vmatprep.subr.mxu0 0.0
        %6039 = vmatpush1.xpose.msra.mxu0 0.0
        %6040 = vmatprep.subr.mxu0 0.0
        %6041 = vmatpush1.xpose.msra.mxu0 0.0
        %6042 = vmatprep.subr.mxu0 0.0
        %6043 = vmatpush1.xpose.msra.mxu0 0.0
        %6044 = vmatprep.subr.mxu0 0.0
        %6045 = vmatpush1.xpose.msra.mxu0 0.0
        %6046 = vmatprep.subr.mxu0 0.0
        %6047 = vmatpush1.xpose.msra.mxu0 0.0
        %6048 = vmatprep.subr.mxu0 0.0
        %6049 = vmatpush1.xpose.msra.mxu0 0.0
        %6050 = vmatprep.subr.mxu0 0.0
        %6051 = vmatpush1.xpose.msra.mxu0 0.0
        %6052 = vmatprep.subr.mxu0 0.0
        %6053 = vmatpush1.xpose.msra.mxu0 0.0
        %6054 = vmatprep.subr.mxu0 0.0
        %6055 = vmatpush1.xpose.msra.mxu0 0.0
        %6056 = vmatprep.subr.mxu0 0.0
        %6057 = vmatpush1.xpose.msra.mxu0 0.0
        %6058 = vmatprep.subr.mxu0 0.0
        %6059 = vmatpush1.xpose.msra.mxu0 0.0
        %6060 = vmatprep.subr.mxu0 0.0
        %6061 = vmatpush1.xpose.msra.mxu0 0.0
        %6062 = vmatprep.subr.mxu0 0.0
        %6063 = vmatpush1.xpose.msra.mxu0 0.0
        %6064 = vmatprep.subr.mxu0 0.0
        %6065 = vmatpush1.xpose.msra.mxu0 0.0
        %6066 = vmatprep.subr.mxu0 0.0
        %6067 = vmatpush1.xpose.msra.mxu0 %v6034
        %6068 = vmatprep.subr.mxu0 0.0
        %6069 = vmatpush2.xpose.msra.mxu0 0.0
        %6070 = vmatprep.subr.mxu0 0.0
        %6071 = vmatpush2.xpose.msra.mxu0 0.0
        %6072 = vmatprep.subr.mxu0 0.0
        %6073 = vmatpush2.xpose.msra.mxu0 0.0
        %6074 = vmatprep.subr.mxu0 0.0
        %6075 = vmatpush2.xpose.msra.mxu0 0.0
        %6076 = vmatprep.subr.mxu0 0.0
        %6077 = vmatpush2.xpose.msra.mxu0 0.0
        %6078 = vmatprep.subr.mxu0 0.0
        %6079 = vmatpush2.xpose.msra.mxu0 0.0
        %6080 = vmatprep.subr.mxu0 0.0
        %6081 = vmatpush2.xpose.msra.mxu0 0.0
        %6082 = vmatprep.subr.mxu0 0.0
        %6083 = vmatpush2.xpose.msra.mxu0 0.0
        %6084 = vmatprep.subr.mxu0 0.0
        %6085 = vmatpush2.xpose.msra.mxu0 0.0
        %6086 = vmatprep.subr.mxu0 0.0
        %6087 = vmatpush2.xpose.msra.mxu0 0.0
        %6088 = vmatprep.subr.mxu0 0.0
        %6089 = vmatpush2.xpose.msra.mxu0 0.0
        %6090 = vmatprep.subr.mxu0 0.0
        %6091 = vmatpush2.xpose.msra.mxu0 0.0
        %6092 = vmatprep.subr.mxu0 0.0
        %6093 = vmatpush2.xpose.msra.mxu0 0.0
        %6094 = vmatprep.subr.mxu0 0.0
        %6095 = vmatpush2.xpose.msra.mxu0 0.0
        %6096 = vmatprep.subr.mxu0 0.0
        %6097 = vmatpush2.xpose.msra.mxu0 0.0
        %6098 = vmatprep.subr.mxu0 0.0
        %6099 = vmatpush2.xpose.msra.mxu0 0.0
        %6100 = vmatprep.mubr.f32.mxu0 0.0
        %6101 = vmatmul.mubr.f32.gmra.mxu0 %v6032
        %v6102 = vpop.f32.mrf.mxu0
        %v6103 = vadd.f32 0.0, %v6102
        %v6104 = vpop.f32.mrf.mxu0
        %6105 = vdwg.mxu0
        %6106 = vrot.lane.b32.xlu0 %v1229, 104
        %v6107 = vpop.permute.xlu0 %6106
        %6108 = vrot.lane.b32.xlu0 %v1229, 72
        %v6109 = vpop.permute.xlu0 %6108
        %v6110 = vsel %vm1242, %v6107, 0
        %v6112 = vsel %vm1242, %v6109, 0
        %6114 = vmatprep.subr.mxu0 0.0
        %6115 = vmatpush1.xpose.msra.mxu0 0.0
        %6116 = vmatprep.subr.mxu0 0.0
        %6117 = vmatpush1.xpose.msra.mxu0 0.0
        %6118 = vmatprep.subr.mxu0 0.0
        %6119 = vmatpush1.xpose.msra.mxu0 0.0
        %6120 = vmatprep.subr.mxu0 0.0
        %6121 = vmatpush1.xpose.msra.mxu0 0.0
        %6122 = vmatprep.subr.mxu0 0.0
        %6123 = vmatpush1.xpose.msra.mxu0 0.0
        %6124 = vmatprep.subr.mxu0 0.0
        %6125 = vmatpush1.xpose.msra.mxu0 0.0
        %6126 = vmatprep.subr.mxu0 0.0
        %6127 = vmatpush1.xpose.msra.mxu0 0.0
        %6128 = vmatprep.subr.mxu0 0.0
        %6129 = vmatpush1.xpose.msra.mxu0 0.0
        %6130 = vmatprep.subr.mxu0 0.0
        %6131 = vmatpush1.xpose.msra.mxu0 0.0
        %6132 = vmatprep.subr.mxu0 0.0
        %6133 = vmatpush1.xpose.msra.mxu0 0.0
        %6134 = vmatprep.subr.mxu0 0.0
        %6135 = vmatpush1.xpose.msra.mxu0 0.0
        %6136 = vmatprep.subr.mxu0 0.0
        %6137 = vmatpush1.xpose.msra.mxu0 0.0
        %6138 = vmatprep.subr.mxu0 0.0
        %6139 = vmatpush1.xpose.msra.mxu0 0.0
        %6140 = vmatprep.subr.mxu0 0.0
        %6141 = vmatpush1.xpose.msra.mxu0 0.0
        %6142 = vmatprep.subr.mxu0 0.0
        %6143 = vmatpush1.xpose.msra.mxu0 0.0
        %6144 = vmatprep.subr.mxu0 0.0
        %6145 = vmatpush1.xpose.msra.mxu0 %v6112
        %6146 = vmatprep.subr.mxu0 0.0
        %6147 = vmatpush2.xpose.msra.mxu0 0.0
        %6148 = vmatprep.subr.mxu0 0.0
        %6149 = vmatpush2.xpose.msra.mxu0 0.0
        %6150 = vmatprep.subr.mxu0 0.0
        %6151 = vmatpush2.xpose.msra.mxu0 0.0
        %6152 = vmatprep.subr.mxu0 0.0
        %6153 = vmatpush2.xpose.msra.mxu0 0.0
        %6154 = vmatprep.subr.mxu0 0.0
        %6155 = vmatpush2.xpose.msra.mxu0 0.0
        %6156 = vmatprep.subr.mxu0 0.0
        %6157 = vmatpush2.xpose.msra.mxu0 0.0
        %6158 = vmatprep.subr.mxu0 0.0
        %6159 = vmatpush2.xpose.msra.mxu0 0.0
        %6160 = vmatprep.subr.mxu0 0.0
        %6161 = vmatpush2.xpose.msra.mxu0 0.0
        %6162 = vmatprep.subr.mxu0 0.0
        %6163 = vmatpush2.xpose.msra.mxu0 0.0
        %6164 = vmatprep.subr.mxu0 0.0
        %6165 = vmatpush2.xpose.msra.mxu0 0.0
        %6166 = vmatprep.subr.mxu0 0.0
        %6167 = vmatpush2.xpose.msra.mxu0 0.0
        %6168 = vmatprep.subr.mxu0 0.0
        %6169 = vmatpush2.xpose.msra.mxu0 0.0
        %6170 = vmatprep.subr.mxu0 0.0
        %6171 = vmatpush2.xpose.msra.mxu0 0.0
        %6172 = vmatprep.subr.mxu0 0.0
        %6173 = vmatpush2.xpose.msra.mxu0 0.0
        %6174 = vmatprep.subr.mxu0 0.0
        %6175 = vmatpush2.xpose.msra.mxu0 0.0
        %6176 = vmatprep.subr.mxu0 0.0
        %6177 = vmatpush2.xpose.msra.mxu0 0.0
        %6178 = vmatprep.mubr.f32.mxu0 0.0
        %6179 = vmatmul.mubr.f32.gmra.mxu0 %v6110
        %v6180 = vpop.f32.mrf.mxu0
        %v6181 = vadd.f32 0.0, %v6180
        %v6182 = vpop.f32.mrf.mxu0
        %6183 = vdwg.mxu0
        %6184 = vrot.lane.b32.xlu0 %v1232, 104
        %v6185 = vpop.permute.xlu0 %6184
        %6186 = vrot.lane.b32.xlu0 %v1232, 72
        %v6187 = vpop.permute.xlu0 %6186
        %v6188 = vsel %vm1242, %v6185, 0
        %v6190 = vsel %vm1242, %v6187, 0
        %6192 = vmatprep.subr.mxu0 0.0
        %6193 = vmatpush1.xpose.msra.mxu0 0.0
        %6194 = vmatprep.subr.mxu0 0.0
        %6195 = vmatpush1.xpose.msra.mxu0 0.0
        %6196 = vmatprep.subr.mxu0 0.0
        %6197 = vmatpush1.xpose.msra.mxu0 0.0
        %6198 = vmatprep.subr.mxu0 0.0
        %6199 = vmatpush1.xpose.msra.mxu0 0.0
        %6200 = vmatprep.subr.mxu0 0.0
        %6201 = vmatpush1.xpose.msra.mxu0 0.0
        %6202 = vmatprep.subr.mxu0 0.0
        %6203 = vmatpush1.xpose.msra.mxu0 0.0
        %6204 = vmatprep.subr.mxu0 0.0
        %6205 = vmatpush1.xpose.msra.mxu0 0.0
        %6206 = vmatprep.subr.mxu0 0.0
        %6207 = vmatpush1.xpose.msra.mxu0 0.0
        %6208 = vmatprep.subr.mxu0 0.0
        %6209 = vmatpush1.xpose.msra.mxu0 0.0
        %6210 = vmatprep.subr.mxu0 0.0
        %6211 = vmatpush1.xpose.msra.mxu0 0.0
        %6212 = vmatprep.subr.mxu0 0.0
        %6213 = vmatpush1.xpose.msra.mxu0 0.0
        %6214 = vmatprep.subr.mxu0 0.0
        %6215 = vmatpush1.xpose.msra.mxu0 0.0
        %6216 = vmatprep.subr.mxu0 0.0
        %6217 = vmatpush1.xpose.msra.mxu0 0.0
        %6218 = vmatprep.subr.mxu0 0.0
        %6219 = vmatpush1.xpose.msra.mxu0 0.0
        %6220 = vmatprep.subr.mxu0 0.0
        %6221 = vmatpush1.xpose.msra.mxu0 0.0
        %6222 = vmatprep.subr.mxu0 0.0
        %6223 = vmatpush1.xpose.msra.mxu0 %v6190
        %6224 = vmatprep.subr.mxu0 0.0
        %6225 = vmatpush2.xpose.msra.mxu0 0.0
        %6226 = vmatprep.subr.mxu0 0.0
        %6227 = vmatpush2.xpose.msra.mxu0 0.0
        %6228 = vmatprep.subr.mxu0 0.0
        %6229 = vmatpush2.xpose.msra.mxu0 0.0
        %6230 = vmatprep.subr.mxu0 0.0
        %6231 = vmatpush2.xpose.msra.mxu0 0.0
        %6232 = vmatprep.subr.mxu0 0.0
        %6233 = vmatpush2.xpose.msra.mxu0 0.0
        %6234 = vmatprep.subr.mxu0 0.0
        %6235 = vmatpush2.xpose.msra.mxu0 0.0
        %6236 = vmatprep.subr.mxu0 0.0
        %6237 = vmatpush2.xpose.msra.mxu0 0.0
        %6238 = vmatprep.subr.mxu0 0.0
        %6239 = vmatpush2.xpose.msra.mxu0 0.0
        %6240 = vmatprep.subr.mxu0 0.0
        %6241 = vmatpush2.xpose.msra.mxu0 0.0
        %6242 = vmatprep.subr.mxu0 0.0
        %6243 = vmatpush2.xpose.msra.mxu0 0.0
        %6244 = vmatprep.subr.mxu0 0.0
        %6245 = vmatpush2.xpose.msra.mxu0 0.0
        %6246 = vmatprep.subr.mxu0 0.0
        %6247 = vmatpush2.xpose.msra.mxu0 0.0
        %6248 = vmatprep.subr.mxu0 0.0
        %6249 = vmatpush2.xpose.msra.mxu0 0.0
        %6250 = vmatprep.subr.mxu0 0.0
        %6251 = vmatpush2.xpose.msra.mxu0 0.0
        %6252 = vmatprep.subr.mxu0 0.0
        %6253 = vmatpush2.xpose.msra.mxu0 0.0
        %6254 = vmatprep.subr.mxu0 0.0
        %6255 = vmatpush2.xpose.msra.mxu0 0.0
        %6256 = vmatprep.mubr.f32.mxu0 0.0
        %6257 = vmatmul.mubr.f32.gmra.mxu0 %v6188
        %v6258 = vpop.f32.mrf.mxu0
        %v6259 = vadd.f32 0.0, %v6258
        %v6260 = vpop.f32.mrf.mxu0
        %6261 = vdwg.mxu0
        %v6262 = vmul.f32 %v5713, 0.35355338
        %v6263 = vmul.f32 %v5791, 0.35355338
        %v6264 = vmul.f32 %v5869, 0.35355338
        %v6265 = vmul.f32 %v5947, 0.35355338
        %v6266 = vmul.f32 %v6025, 0.35355338
        %v6267 = vmul.f32 %v6103, 0.35355338
        %v6268 = vmul.f32 %v6181, 0.35355338
        %v6269 = vmul.f32 %v6259, 0.35355338
        %v6270 = vadd.f32 %v6262, %v1238
        %v6271 = vadd.f32 %v6263, %v1238
        %v6272 = vadd.f32 %v6264, %v1238
        %v6273 = vadd.f32 %v6265, %v1238
        %v6274 = vadd.f32 %v6266, %v1238
        %v6275 = vadd.f32 %v6267, %v1238
        %v6276 = vadd.f32 %v6268, %v1238
        %v6277 = vadd.f32 %v6269, %v1238
        %v6278 = vsel %vm1242, %v6270, -inf
        %6279 = vmax.xlane.f32.xlu0 %v6278
        %v6280 = vpop.xlane.xlu0 %6279
        %v6281 = vsel %vm1242, %v6271, -inf
        %6282 = vmax.xlane.f32.xlu0 %v6281
        %v6283 = vpop.xlane.xlu0 %6282
        %v6284 = vsel %vm1242, %v6272, -inf
        %6285 = vmax.xlane.f32.xlu0 %v6284
        %v6286 = vpop.xlane.xlu0 %6285
        %v6287 = vsel %vm1242, %v6273, -inf
        %6288 = vmax.xlane.f32.xlu0 %v6287
        %v6289 = vpop.xlane.xlu0 %6288
        %v6290 = vsel %vm1242, %v6274, -inf
        %6291 = vmax.xlane.f32.xlu0 %v6290
        %v6292 = vpop.xlane.xlu0 %6291
        %v6293 = vsel %vm1242, %v6275, -inf
        %6294 = vmax.xlane.f32.xlu0 %v6293
        %v6295 = vpop.xlane.xlu0 %6294
        %v6296 = vsel %vm1242, %v6276, -inf
        %6297 = vmax.xlane.f32.xlu0 %v6296
        %v6298 = vpop.xlane.xlu0 %6297
        %v6299 = vsel %vm1242, %v6277, -inf
        %6300 = vmax.xlane.f32.xlu0 %v6299
        %v6301 = vpop.xlane.xlu0 %6300
        %v6302 = vsub.f32 %v6270, %v6280
        %v6303 = vsub.f32 %v6271, %v6283
        %v6304 = vsub.f32 %v6272, %v6286
        %v6305 = vsub.f32 %v6273, %v6289
        %v6306 = vsub.f32 %v6274, %v6292
        %v6307 = vsub.f32 %v6275, %v6295
        %v6308 = vsub.f32 %v6276, %v6298
        %v6309 = vsub.f32 %v6277, %v6301
        %v6310 = vmul.f32 %v6302, 1.442695
        %v6311 = vpow.pop %v6310
        %v6312 = vmul.f32 %v6303, 1.442695
        %v6313 = vpow.pop %v6312
        %v6314 = vmul.f32 %v6304, 1.442695
        %v6315 = vpow.pop %v6314
        %v6316 = vmul.f32 %v6305, 1.442695
        %v6317 = vpow.pop %v6316
        %v6318 = vmul.f32 %v6306, 1.442695
        %v6319 = vpow.pop %v6318
        %v6320 = vmul.f32 %v6307, 1.442695
        %v6321 = vpow.pop %v6320
        %v6322 = vmul.f32 %v6308, 1.442695
        %v6323 = vpow.pop %v6322
        %v6324 = vmul.f32 %v6309, 1.442695
        %v6325 = vpow.pop %v6324
        %v6326 = vsel %vm1242, %v6311, 0.0
        %6327 = vadd.xlane.f32.xlu0 %v6326
        %v6328 = vpop.xlane.xlu0 %6327
        %v6329 = vsel %vm1242, %v6313, 0.0
        %6330 = vadd.xlane.f32.xlu0 %v6329
        %v6331 = vpop.xlane.xlu0 %6330
        %v6332 = vsel %vm1242, %v6315, 0.0
        %6333 = vadd.xlane.f32.xlu0 %v6332
        %v6334 = vpop.xlane.xlu0 %6333
        %v6335 = vsel %vm1242, %v6317, 0.0
        %6336 = vadd.xlane.f32.xlu0 %v6335
        %v6337 = vpop.xlane.xlu0 %6336
        %v6338 = vsel %vm1242, %v6319, 0.0
        %6339 = vadd.xlane.f32.xlu0 %v6338
        %v6340 = vpop.xlane.xlu0 %6339
        %v6341 = vsel %vm1242, %v6321, 0.0
        %6342 = vadd.xlane.f32.xlu0 %v6341
        %v6343 = vpop.xlane.xlu0 %6342
        %v6344 = vsel %vm1242, %v6323, 0.0
        %6345 = vadd.xlane.f32.xlu0 %v6344
        %v6346 = vpop.xlane.xlu0 %6345
        %v6347 = vsel %vm1242, %v6325, 0.0
        %6348 = vadd.xlane.f32.xlu0 %v6347
        %v6349 = vpop.xlane.xlu0 %6348
        %v6350 = vrcp.pop %v6328
        %v6351 = vrcp.pop %v6331
        %v6352 = vrcp.pop %v6334
        %v6353 = vrcp.pop %v6337
        %v6354 = vrcp.pop %v6340
        %v6355 = vrcp.pop %v6343
        %v6356 = vrcp.pop %v6346
        %v6357 = vrcp.pop %v6349
        %v6358 = vmul.f32 %v6311, %v6350
        %v6359 = vmul.f32 %v6313, %v6351
        %v6360 = vmul.f32 %v6315, %v6352
        %v6361 = vmul.f32 %v6317, %v6353
        %v6362 = vmul.f32 %v6319, %v6354
        %v6363 = vmul.f32 %v6321, %v6355
        %v6364 = vmul.f32 %v6323, %v6356
        %v6365 = vmul.f32 %v6325, %v6357
        %6366 = vrot.lane.b32.xlu0 %v1205, 40
        %v6367 = vpop.permute.xlu0 %6366
        %v6370 = vsel %vm1242, %v6358, 0
        %6372 = vmatprep.subr.mxu0 0.0
        %6373 = vmatpush1.msra.mxu0 0.0
        %6374 = vmatprep.subr.mxu0 0.0
        %6375 = vmatpush1.msra.mxu0 0.0
        %6376 = vmatprep.subr.mxu0 0.0
        %6377 = vmatpush1.msra.mxu0 0.0
        %6378 = vmatprep.subr.mxu0 0.0
        %6379 = vmatpush1.msra.mxu0 0.0
        %6380 = vmatprep.subr.mxu0 0.0
        %6381 = vmatpush1.msra.mxu0 0.0
        %6382 = vmatprep.subr.mxu0 0.0
        %6383 = vmatpush1.msra.mxu0 0.0
        %6384 = vmatprep.subr.mxu0 0.0
        %6385 = vmatpush1.msra.mxu0 0.0
        %6386 = vmatprep.subr.mxu0 0.0
        %6387 = vmatpush1.msra.mxu0 0.0
        %6388 = vmatprep.subr.mxu0 0.0
        %6389 = vmatpush1.msra.mxu0 0.0
        %6390 = vmatprep.subr.mxu0 0.0
        %6391 = vmatpush1.msra.mxu0 0.0
        %6392 = vmatprep.subr.mxu0 0.0
        %6393 = vmatpush1.msra.mxu0 0.0
        %6394 = vmatprep.subr.mxu0 0.0
        %6395 = vmatpush1.msra.mxu0 0.0
        %6396 = vmatprep.subr.mxu0 0.0
        %6397 = vmatpush1.msra.mxu0 0.0
        %6398 = vmatprep.subr.mxu0 0.0
        %6399 = vmatpush1.msra.mxu0 0.0
        %6400 = vmatprep.subr.mxu0 0.0
        %6401 = vmatpush1.msra.mxu0 0.0
        %6402 = vmatprep.subr.mxu0 0.0
        %6403 = vmatpush1.msra.mxu0 %v6367
        %6404 = vmatprep.subr.mxu0 0.0
        %6405 = vmatpush2.msra.mxu0 0.0
        %6406 = vmatprep.subr.mxu0 0.0
        %6407 = vmatpush2.msra.mxu0 0.0
        %6408 = vmatprep.subr.mxu0 0.0
        %6409 = vmatpush2.msra.mxu0 0.0
        %6410 = vmatprep.subr.mxu0 0.0
        %6411 = vmatpush2.msra.mxu0 0.0
        %6412 = vmatprep.subr.mxu0 0.0
        %6413 = vmatpush2.msra.mxu0 0.0
        %6414 = vmatprep.subr.mxu0 0.0
        %6415 = vmatpush2.msra.mxu0 0.0
        %6416 = vmatprep.subr.mxu0 0.0
        %6417 = vmatpush2.msra.mxu0 0.0
        %6418 = vmatprep.subr.mxu0 0.0
        %6419 = vmatpush2.msra.mxu0 0.0
        %6420 = vmatprep.subr.mxu0 0.0
        %6421 = vmatpush2.msra.mxu0 0.0
        %6422 = vmatprep.subr.mxu0 0.0
        %6423 = vmatpush2.msra.mxu0 0.0
        %6424 = vmatprep.subr.mxu0 0.0
        %6425 = vmatpush2.msra.mxu0 0.0
        %6426 = vmatprep.subr.mxu0 0.0
        %6427 = vmatpush2.msra.mxu0 0.0
        %6428 = vmatprep.subr.mxu0 0.0
        %6429 = vmatpush2.msra.mxu0 0.0
        %6430 = vmatprep.subr.mxu0 0.0
        %6431 = vmatpush2.msra.mxu0 0.0
        %6432 = vmatprep.subr.mxu0 0.0
        %6433 = vmatpush2.msra.mxu0 0.0
        %6434 = vmatprep.subr.mxu0 0.0
        %6435 = vmatpush2.msra.mxu0 0.0
        %6436 = vmatprep.mubr.f32.mxu0 0.0
        %6437 = vmatmul.mubr.f32.gmra.mxu0 %v6370
        %v6438 = vpop.f32.mrf.mxu0
        %v6439 = vadd.f32 0.0, %v6438
        %v6440 = vpop.f32.mrf.mxu0
        %6441 = vdwg.mxu0
        %6442 = vrot.lane.b32.xlu0 %v1208, 40
        %v6443 = vpop.permute.xlu0 %6442
        %v6446 = vsel %vm1242, %v6359, 0
        %6448 = vmatprep.subr.mxu0 0.0
        %6449 = vmatpush1.msra.mxu0 0.0
        %6450 = vmatprep.subr.mxu0 0.0
        %6451 = vmatpush1.msra.mxu0 0.0
        %6452 = vmatprep.subr.mxu0 0.0
        %6453 = vmatpush1.msra.mxu0 0.0
        %6454 = vmatprep.subr.mxu0 0.0
        %6455 = vmatpush1.msra.mxu0 0.0
        %6456 = vmatprep.subr.mxu0 0.0
        %6457 = vmatpush1.msra.mxu0 0.0
        %6458 = vmatprep.subr.mxu0 0.0
        %6459 = vmatpush1.msra.mxu0 0.0
        %6460 = vmatprep.subr.mxu0 0.0
        %6461 = vmatpush1.msra.mxu0 0.0
        %6462 = vmatprep.subr.mxu0 0.0
        %6463 = vmatpush1.msra.mxu0 0.0
        %6464 = vmatprep.subr.mxu0 0.0
        %6465 = vmatpush1.msra.mxu0 0.0
        %6466 = vmatprep.subr.mxu0 0.0
        %6467 = vmatpush1.msra.mxu0 0.0
        %6468 = vmatprep.subr.mxu0 0.0
        %6469 = vmatpush1.msra.mxu0 0.0
        %6470 = vmatprep.subr.mxu0 0.0
        %6471 = vmatpush1.msra.mxu0 0.0
        %6472 = vmatprep.subr.mxu0 0.0
        %6473 = vmatpush1.msra.mxu0 0.0
        %6474 = vmatprep.subr.mxu0 0.0
        %6475 = vmatpush1.msra.mxu0 0.0
        %6476 = vmatprep.subr.mxu0 0.0
        %6477 = vmatpush1.msra.mxu0 0.0
        %6478 = vmatprep.subr.mxu0 0.0
        %6479 = vmatpush1.msra.mxu0 %v6443
        %6480 = vmatprep.subr.mxu0 0.0
        %6481 = vmatpush2.msra.mxu0 0.0
        %6482 = vmatprep.subr.mxu0 0.0
        %6483 = vmatpush2.msra.mxu0 0.0
        %6484 = vmatprep.subr.mxu0 0.0
        %6485 = vmatpush2.msra.mxu0 0.0
        %6486 = vmatprep.subr.mxu0 0.0
        %6487 = vmatpush2.msra.mxu0 0.0
        %6488 = vmatprep.subr.mxu0 0.0
        %6489 = vmatpush2.msra.mxu0 0.0
        %6490 = vmatprep.subr.mxu0 0.0
        %6491 = vmatpush2.msra.mxu0 0.0
        %6492 = vmatprep.subr.mxu0 0.0
        %6493 = vmatpush2.msra.mxu0 0.0
        %6494 = vmatprep.subr.mxu0 0.0
        %6495 = vmatpush2.msra.mxu0 0.0
        %6496 = vmatprep.subr.mxu0 0.0
        %6497 = vmatpush2.msra.mxu0 0.0
        %6498 = vmatprep.subr.mxu0 0.0
        %6499 = vmatpush2.msra.mxu0 0.0
        %6500 = vmatprep.subr.mxu0 0.0
        %6501 = vmatpush2.msra.mxu0 0.0
        %6502 = vmatprep.subr.mxu0 0.0
        %6503 = vmatpush2.msra.mxu0 0.0
        %6504 = vmatprep.subr.mxu0 0.0
        %6505 = vmatpush2.msra.mxu0 0.0
        %6506 = vmatprep.subr.mxu0 0.0
        %6507 = vmatpush2.msra.mxu0 0.0
        %6508 = vmatprep.subr.mxu0 0.0
        %6509 = vmatpush2.msra.mxu0 0.0
        %6510 = vmatprep.subr.mxu0 0.0
        %6511 = vmatpush2.msra.mxu0 0.0
        %6512 = vmatprep.mubr.f32.mxu0 0.0
        %6513 = vmatmul.mubr.f32.gmra.mxu0 %v6446
        %v6514 = vpop.f32.mrf.mxu0
        %v6515 = vadd.f32 0.0, %v6514
        %v6516 = vpop.f32.mrf.mxu0
        %6517 = vdwg.mxu0
        %6518 = vrot.lane.b32.xlu0 %v1213, 40
        %v6519 = vpop.permute.xlu0 %6518
        %v6522 = vsel %vm1242, %v6360, 0
        %6524 = vmatprep.subr.mxu0 0.0
        %6525 = vmatpush1.msra.mxu0 0.0
        %6526 = vmatprep.subr.mxu0 0.0
        %6527 = vmatpush1.msra.mxu0 0.0
        %6528 = vmatprep.subr.mxu0 0.0
        %6529 = vmatpush1.msra.mxu0 0.0
        %6530 = vmatprep.subr.mxu0 0.0
        %6531 = vmatpush1.msra.mxu0 0.0
        %6532 = vmatprep.subr.mxu0 0.0
        %6533 = vmatpush1.msra.mxu0 0.0
        %6534 = vmatprep.subr.mxu0 0.0
        %6535 = vmatpush1.msra.mxu0 0.0
        %6536 = vmatprep.subr.mxu0 0.0
        %6537 = vmatpush1.msra.mxu0 0.0
        %6538 = vmatprep.subr.mxu0 0.0
        %6539 = vmatpush1.msra.mxu0 0.0
        %6540 = vmatprep.subr.mxu0 0.0
        %6541 = vmatpush1.msra.mxu0 0.0
        %6542 = vmatprep.subr.mxu0 0.0
        %6543 = vmatpush1.msra.mxu0 0.0
        %6544 = vmatprep.subr.mxu0 0.0
        %6545 = vmatpush1.msra.mxu0 0.0
        %6546 = vmatprep.subr.mxu0 0.0
        %6547 = vmatpush1.msra.mxu0 0.0
        %6548 = vmatprep.subr.mxu0 0.0
        %6549 = vmatpush1.msra.mxu0 0.0
        %6550 = vmatprep.subr.mxu0 0.0
        %6551 = vmatpush1.msra.mxu0 0.0
        %6552 = vmatprep.subr.mxu0 0.0
        %6553 = vmatpush1.msra.mxu0 0.0
        %6554 = vmatprep.subr.mxu0 0.0
        %6555 = vmatpush1.msra.mxu0 %v6519
        %6556 = vmatprep.subr.mxu0 0.0
        %6557 = vmatpush2.msra.mxu0 0.0
        %6558 = vmatprep.subr.mxu0 0.0
        %6559 = vmatpush2.msra.mxu0 0.0
        %6560 = vmatprep.subr.mxu0 0.0
        %6561 = vmatpush2.msra.mxu0 0.0
        %6562 = vmatprep.subr.mxu0 0.0
        %6563 = vmatpush2.msra.mxu0 0.0
        %6564 = vmatprep.subr.mxu0 0.0
        %6565 = vmatpush2.msra.mxu0 0.0
        %6566 = vmatprep.subr.mxu0 0.0
        %6567 = vmatpush2.msra.mxu0 0.0
        %6568 = vmatprep.subr.mxu0 0.0
        %6569 = vmatpush2.msra.mxu0 0.0
        %6570 = vmatprep.subr.mxu0 0.0
        %6571 = vmatpush2.msra.mxu0 0.0
        %6572 = vmatprep.subr.mxu0 0.0
        %6573 = vmatpush2.msra.mxu0 0.0
        %6574 = vmatprep.subr.mxu0 0.0
        %6575 = vmatpush2.msra.mxu0 0.0
        %6576 = vmatprep.subr.mxu0 0.0
        %6577 = vmatpush2.msra.mxu0 0.0
        %6578 = vmatprep.subr.mxu0 0.0
        %6579 = vmatpush2.msra.mxu0 0.0
        %6580 = vmatprep.subr.mxu0 0.0
        %6581 = vmatpush2.msra.mxu0 0.0
        %6582 = vmatprep.subr.mxu0 0.0
        %6583 = vmatpush2.msra.mxu0 0.0
        %6584 = vmatprep.subr.mxu0 0.0
        %6585 = vmatpush2.msra.mxu0 0.0
        %6586 = vmatprep.subr.mxu0 0.0
        %6587 = vmatpush2.msra.mxu0 0.0
        %6588 = vmatprep.mubr.f32.mxu0 0.0
        %6589 = vmatmul.mubr.f32.gmra.mxu0 %v6522
        %v6590 = vpop.f32.mrf.mxu0
        %v6591 = vadd.f32 0.0, %v6590
        %v6592 = vpop.f32.mrf.mxu0
        %6593 = vdwg.mxu0
        %6594 = vrot.lane.b32.xlu0 %v1216, 40
        %v6595 = vpop.permute.xlu0 %6594
        %v6598 = vsel %vm1242, %v6361, 0
        %6600 = vmatprep.subr.mxu0 0.0
        %6601 = vmatpush1.msra.mxu0 0.0
        %6602 = vmatprep.subr.mxu0 0.0
        %6603 = vmatpush1.msra.mxu0 0.0
        %6604 = vmatprep.subr.mxu0 0.0
        %6605 = vmatpush1.msra.mxu0 0.0
        %6606 = vmatprep.subr.mxu0 0.0
        %6607 = vmatpush1.msra.mxu0 0.0
        %6608 = vmatprep.subr.mxu0 0.0
        %6609 = vmatpush1.msra.mxu0 0.0
        %6610 = vmatprep.subr.mxu0 0.0
        %6611 = vmatpush1.msra.mxu0 0.0
        %6612 = vmatprep.subr.mxu0 0.0
        %6613 = vmatpush1.msra.mxu0 0.0
        %6614 = vmatprep.subr.mxu0 0.0
        %6615 = vmatpush1.msra.mxu0 0.0
        %6616 = vmatprep.subr.mxu0 0.0
        %6617 = vmatpush1.msra.mxu0 0.0
        %6618 = vmatprep.subr.mxu0 0.0
        %6619 = vmatpush1.msra.mxu0 0.0
        %6620 = vmatprep.subr.mxu0 0.0
        %6621 = vmatpush1.msra.mxu0 0.0
        %6622 = vmatprep.subr.mxu0 0.0
        %6623 = vmatpush1.msra.mxu0 0.0
        %6624 = vmatprep.subr.mxu0 0.0
        %6625 = vmatpush1.msra.mxu0 0.0
        %6626 = vmatprep.subr.mxu0 0.0
        %6627 = vmatpush1.msra.mxu0 0.0
        %6628 = vmatprep.subr.mxu0 0.0
        %6629 = vmatpush1.msra.mxu0 0.0
        %6630 = vmatprep.subr.mxu0 0.0
        %6631 = vmatpush1.msra.mxu0 %v6595
        %6632 = vmatprep.subr.mxu0 0.0
        %6633 = vmatpush2.msra.mxu0 0.0
        %6634 = vmatprep.subr.mxu0 0.0
        %6635 = vmatpush2.msra.mxu0 0.0
        %6636 = vmatprep.subr.mxu0 0.0
        %6637 = vmatpush2.msra.mxu0 0.0
        %6638 = vmatprep.subr.mxu0 0.0
        %6639 = vmatpush2.msra.mxu0 0.0
        %6640 = vmatprep.subr.mxu0 0.0
        %6641 = vmatpush2.msra.mxu0 0.0
        %6642 = vmatprep.subr.mxu0 0.0
        %6643 = vmatpush2.msra.mxu0 0.0
        %6644 = vmatprep.subr.mxu0 0.0
        %6645 = vmatpush2.msra.mxu0 0.0
        %6646 = vmatprep.subr.mxu0 0.0
        %6647 = vmatpush2.msra.mxu0 0.0
        %6648 = vmatprep.subr.mxu0 0.0
        %6649 = vmatpush2.msra.mxu0 0.0
        %6650 = vmatprep.subr.mxu0 0.0
        %6651 = vmatpush2.msra.mxu0 0.0
        %6652 = vmatprep.subr.mxu0 0.0
        %6653 = vmatpush2.msra.mxu0 0.0
        %6654 = vmatprep.subr.mxu0 0.0
        %6655 = vmatpush2.msra.mxu0 0.0
        %6656 = vmatprep.subr.mxu0 0.0
        %6657 = vmatpush2.msra.mxu0 0.0
        %6658 = vmatprep.subr.mxu0 0.0
        %6659 = vmatpush2.msra.mxu0 0.0
        %6660 = vmatprep.subr.mxu0 0.0
        %6661 = vmatpush2.msra.mxu0 0.0
        %6662 = vmatprep.subr.mxu0 0.0
        %6663 = vmatpush2.msra.mxu0 0.0
        %6664 = vmatprep.mubr.f32.mxu0 0.0
        %6665 = vmatmul.mubr.f32.gmra.mxu0 %v6598
        %v6666 = vpop.f32.mrf.mxu0
        %v6667 = vadd.f32 0.0, %v6666
        %v6668 = vpop.f32.mrf.mxu0
        %6669 = vdwg.mxu0
        %6670 = vrot.lane.b32.xlu0 %v1221, 40
        %v6671 = vpop.permute.xlu0 %6670
        %v6674 = vsel %vm1242, %v6362, 0
        %6676 = vmatprep.subr.mxu0 0.0
        %6677 = vmatpush1.msra.mxu0 0.0
        %6678 = vmatprep.subr.mxu0 0.0
        %6679 = vmatpush1.msra.mxu0 0.0
        %6680 = vmatprep.subr.mxu0 0.0
        %6681 = vmatpush1.msra.mxu0 0.0
        %6682 = vmatprep.subr.mxu0 0.0
        %6683 = vmatpush1.msra.mxu0 0.0
        %6684 = vmatprep.subr.mxu0 0.0
        %6685 = vmatpush1.msra.mxu0 0.0
        %6686 = vmatprep.subr.mxu0 0.0
        %6687 = vmatpush1.msra.mxu0 0.0
        %6688 = vmatprep.subr.mxu0 0.0
        %6689 = vmatpush1.msra.mxu0 0.0
        %6690 = vmatprep.subr.mxu0 0.0
        %6691 = vmatpush1.msra.mxu0 0.0
        %6692 = vmatprep.subr.mxu0 0.0
        %6693 = vmatpush1.msra.mxu0 0.0
        %6694 = vmatprep.subr.mxu0 0.0
        %6695 = vmatpush1.msra.mxu0 0.0
        %6696 = vmatprep.subr.mxu0 0.0
        %6697 = vmatpush1.msra.mxu0 0.0
        %6698 = vmatprep.subr.mxu0 0.0
        %6699 = vmatpush1.msra.mxu0 0.0
        %6700 = vmatprep.subr.mxu0 0.0
        %6701 = vmatpush1.msra.mxu0 0.0
        %6702 = vmatprep.subr.mxu0 0.0
        %6703 = vmatpush1.msra.mxu0 0.0
        %6704 = vmatprep.subr.mxu0 0.0
        %6705 = vmatpush1.msra.mxu0 0.0
        %6706 = vmatprep.subr.mxu0 0.0
        %6707 = vmatpush1.msra.mxu0 %v6671
        %6708 = vmatprep.subr.mxu0 0.0
        %6709 = vmatpush2.msra.mxu0 0.0
        %6710 = vmatprep.subr.mxu0 0.0
        %6711 = vmatpush2.msra.mxu0 0.0
        %6712 = vmatprep.subr.mxu0 0.0
        %6713 = vmatpush2.msra.mxu0 0.0
        %6714 = vmatprep.subr.mxu0 0.0
        %6715 = vmatpush2.msra.mxu0 0.0
        %6716 = vmatprep.subr.mxu0 0.0
        %6717 = vmatpush2.msra.mxu0 0.0
        %6718 = vmatprep.subr.mxu0 0.0
        %6719 = vmatpush2.msra.mxu0 0.0
        %6720 = vmatprep.subr.mxu0 0.0
        %6721 = vmatpush2.msra.mxu0 0.0
        %6722 = vmatprep.subr.mxu0 0.0
        %6723 = vmatpush2.msra.mxu0 0.0
        %6724 = vmatprep.subr.mxu0 0.0
        %6725 = vmatpush2.msra.mxu0 0.0
        %6726 = vmatprep.subr.mxu0 0.0
        %6727 = vmatpush2.msra.mxu0 0.0
        %6728 = vmatprep.subr.mxu0 0.0
        %6729 = vmatpush2.msra.mxu0 0.0
        %6730 = vmatprep.subr.mxu0 0.0
        %6731 = vmatpush2.msra.mxu0 0.0
        %6732 = vmatprep.subr.mxu0 0.0
        %6733 = vmatpush2.msra.mxu0 0.0
        %6734 = vmatprep.subr.mxu0 0.0
        %6735 = vmatpush2.msra.mxu0 0.0
        %6736 = vmatprep.subr.mxu0 0.0
        %6737 = vmatpush2.msra.mxu0 0.0
        %6738 = vmatprep.subr.mxu0 0.0
        %6739 = vmatpush2.msra.mxu0 0.0
        %6740 = vmatprep.mubr.f32.mxu0 0.0
        %6741 = vmatmul.mubr.f32.gmra.mxu0 %v6674
        %v6742 = vpop.f32.mrf.mxu0
        %v6743 = vadd.f32 0.0, %v6742
        %v6744 = vpop.f32.mrf.mxu0
        %6745 = vdwg.mxu0
        %6746 = vrot.lane.b32.xlu0 %v1224, 40
        %v6747 = vpop.permute.xlu0 %6746
        %v6750 = vsel %vm1242, %v6363, 0
        %6752 = vmatprep.subr.mxu0 0.0
        %6753 = vmatpush1.msra.mxu0 0.0
        %6754 = vmatprep.subr.mxu0 0.0
        %6755 = vmatpush1.msra.mxu0 0.0
        %6756 = vmatprep.subr.mxu0 0.0
        %6757 = vmatpush1.msra.mxu0 0.0
        %6758 = vmatprep.subr.mxu0 0.0
        %6759 = vmatpush1.msra.mxu0 0.0
        %6760 = vmatprep.subr.mxu0 0.0
        %6761 = vmatpush1.msra.mxu0 0.0
        %6762 = vmatprep.subr.mxu0 0.0
        %6763 = vmatpush1.msra.mxu0 0.0
        %6764 = vmatprep.subr.mxu0 0.0
        %6765 = vmatpush1.msra.mxu0 0.0
        %6766 = vmatprep.subr.mxu0 0.0
        %6767 = vmatpush1.msra.mxu0 0.0
        %6768 = vmatprep.subr.mxu0 0.0
        %6769 = vmatpush1.msra.mxu0 0.0
        %6770 = vmatprep.subr.mxu0 0.0
        %6771 = vmatpush1.msra.mxu0 0.0
        %6772 = vmatprep.subr.mxu0 0.0
        %6773 = vmatpush1.msra.mxu0 0.0
        %6774 = vmatprep.subr.mxu0 0.0
        %6775 = vmatpush1.msra.mxu0 0.0
        %6776 = vmatprep.subr.mxu0 0.0
        %6777 = vmatpush1.msra.mxu0 0.0
        %6778 = vmatprep.subr.mxu0 0.0
        %6779 = vmatpush1.msra.mxu0 0.0
        %6780 = vmatprep.subr.mxu0 0.0
        %6781 = vmatpush1.msra.mxu0 0.0
        %6782 = vmatprep.subr.mxu0 0.0
        %6783 = vmatpush1.msra.mxu0 %v6747
        %6784 = vmatprep.subr.mxu0 0.0
        %6785 = vmatpush2.msra.mxu0 0.0
        %6786 = vmatprep.subr.mxu0 0.0
        %6787 = vmatpush2.msra.mxu0 0.0
        %6788 = vmatprep.subr.mxu0 0.0
        %6789 = vmatpush2.msra.mxu0 0.0
        %6790 = vmatprep.subr.mxu0 0.0
        %6791 = vmatpush2.msra.mxu0 0.0
        %6792 = vmatprep.subr.mxu0 0.0
        %6793 = vmatpush2.msra.mxu0 0.0
        %6794 = vmatprep.subr.mxu0 0.0
        %6795 = vmatpush2.msra.mxu0 0.0
        %6796 = vmatprep.subr.mxu0 0.0
        %6797 = vmatpush2.msra.mxu0 0.0
        %6798 = vmatprep.subr.mxu0 0.0
        %6799 = vmatpush2.msra.mxu0 0.0
        %6800 = vmatprep.subr.mxu0 0.0
        %6801 = vmatpush2.msra.mxu0 0.0
        %6802 = vmatprep.subr.mxu0 0.0
        %6803 = vmatpush2.msra.mxu0 0.0
        %6804 = vmatprep.subr.mxu0 0.0
        %6805 = vmatpush2.msra.mxu0 0.0
        %6806 = vmatprep.subr.mxu0 0.0
        %6807 = vmatpush2.msra.mxu0 0.0
        %6808 = vmatprep.subr.mxu0 0.0
        %6809 = vmatpush2.msra.mxu0 0.0
        %6810 = vmatprep.subr.mxu0 0.0
        %6811 = vmatpush2.msra.mxu0 0.0
        %6812 = vmatprep.subr.mxu0 0.0
        %6813 = vmatpush2.msra.mxu0 0.0
        %6814 = vmatprep.subr.mxu0 0.0
        %6815 = vmatpush2.msra.mxu0 0.0
        %6816 = vmatprep.mubr.f32.mxu0 0.0
        %6817 = vmatmul.mubr.f32.gmra.mxu0 %v6750
        %v6818 = vpop.f32.mrf.mxu0
        %v6819 = vadd.f32 0.0, %v6818
        %v6820 = vpop.f32.mrf.mxu0
        %6821 = vdwg.mxu0
        %6822 = vrot.lane.b32.xlu0 %v1229, 40
        %v6823 = vpop.permute.xlu0 %6822
        %v6826 = vsel %vm1242, %v6364, 0
        %6828 = vmatprep.subr.mxu0 0.0
        %6829 = vmatpush1.msra.mxu0 0.0
        %6830 = vmatprep.subr.mxu0 0.0
        %6831 = vmatpush1.msra.mxu0 0.0
        %6832 = vmatprep.subr.mxu0 0.0
        %6833 = vmatpush1.msra.mxu0 0.0
        %6834 = vmatprep.subr.mxu0 0.0
        %6835 = vmatpush1.msra.mxu0 0.0
        %6836 = vmatprep.subr.mxu0 0.0
        %6837 = vmatpush1.msra.mxu0 0.0
        %6838 = vmatprep.subr.mxu0 0.0
        %6839 = vmatpush1.msra.mxu0 0.0
        %6840 = vmatprep.subr.mxu0 0.0
        %6841 = vmatpush1.msra.mxu0 0.0
        %6842 = vmatprep.subr.mxu0 0.0
        %6843 = vmatpush1.msra.mxu0 0.0
        %6844 = vmatprep.subr.mxu0 0.0
        %6845 = vmatpush1.msra.mxu0 0.0
        %6846 = vmatprep.subr.mxu0 0.0
        %6847 = vmatpush1.msra.mxu0 0.0
        %6848 = vmatprep.subr.mxu0 0.0
        %6849 = vmatpush1.msra.mxu0 0.0
        %6850 = vmatprep.subr.mxu0 0.0
        %6851 = vmatpush1.msra.mxu0 0.0
        %6852 = vmatprep.subr.mxu0 0.0
        %6853 = vmatpush1.msra.mxu0 0.0
        %6854 = vmatprep.subr.mxu0 0.0
        %6855 = vmatpush1.msra.mxu0 0.0
        %6856 = vmatprep.subr.mxu0 0.0
        %6857 = vmatpush1.msra.mxu0 0.0
        %6858 = vmatprep.subr.mxu0 0.0
        %6859 = vmatpush1.msra.mxu0 %v6823
        %6860 = vmatprep.subr.mxu0 0.0
        %6861 = vmatpush2.msra.mxu0 0.0
        %6862 = vmatprep.subr.mxu0 0.0
        %6863 = vmatpush2.msra.mxu0 0.0
        %6864 = vmatprep.subr.mxu0 0.0
        %6865 = vmatpush2.msra.mxu0 0.0
        %6866 = vmatprep.subr.mxu0 0.0
        %6867 = vmatpush2.msra.mxu0 0.0
        %6868 = vmatprep.subr.mxu0 0.0
        %6869 = vmatpush2.msra.mxu0 0.0
        %6870 = vmatprep.subr.mxu0 0.0
        %6871 = vmatpush2.msra.mxu0 0.0
        %6872 = vmatprep.subr.mxu0 0.0
        %6873 = vmatpush2.msra.mxu0 0.0
        %6874 = vmatprep.subr.mxu0 0.0
        %6875 = vmatpush2.msra.mxu0 0.0
        %6876 = vmatprep.subr.mxu0 0.0
        %6877 = vmatpush2.msra.mxu0 0.0
        %6878 = vmatprep.subr.mxu0 0.0
        %6879 = vmatpush2.msra.mxu0 0.0
        %6880 = vmatprep.subr.mxu0 0.0
        %6881 = vmatpush2.msra.mxu0 0.0
        %6882 = vmatprep.subr.mxu0 0.0
        %6883 = vmatpush2.msra.mxu0 0.0
        %6884 = vmatprep.subr.mxu0 0.0
        %6885 = vmatpush2.msra.mxu0 0.0
        %6886 = vmatprep.subr.mxu0 0.0
        %6887 = vmatpush2.msra.mxu0 0.0
        %6888 = vmatprep.subr.mxu0 0.0
        %6889 = vmatpush2.msra.mxu0 0.0
        %6890 = vmatprep.subr.mxu0 0.0
        %6891 = vmatpush2.msra.mxu0 0.0
        %6892 = vmatprep.mubr.f32.mxu0 0.0
        %6893 = vmatmul.mubr.f32.gmra.mxu0 %v6826
        %v6894 = vpop.f32.mrf.mxu0
        %v6895 = vadd.f32 0.0, %v6894
        %v6896 = vpop.f32.mrf.mxu0
        %6897 = vdwg.mxu0
        %6898 = vrot.lane.b32.xlu0 %v1232, 40
        %v6899 = vpop.permute.xlu0 %6898
        %v6902 = vsel %vm1242, %v6365, 0
        %6904 = vmatprep.subr.mxu0 0.0
        %6905 = vmatpush1.msra.mxu0 0.0
        %6906 = vmatprep.subr.mxu0 0.0
        %6907 = vmatpush1.msra.mxu0 0.0
        %6908 = vmatprep.subr.mxu0 0.0
        %6909 = vmatpush1.msra.mxu0 0.0
        %6910 = vmatprep.subr.mxu0 0.0
        %6911 = vmatpush1.msra.mxu0 0.0
        %6912 = vmatprep.subr.mxu0 0.0
        %6913 = vmatpush1.msra.mxu0 0.0
        %6914 = vmatprep.subr.mxu0 0.0
        %6915 = vmatpush1.msra.mxu0 0.0
        %6916 = vmatprep.subr.mxu0 0.0
        %6917 = vmatpush1.msra.mxu0 0.0
        %6918 = vmatprep.subr.mxu0 0.0
        %6919 = vmatpush1.msra.mxu0 0.0
        %6920 = vmatprep.subr.mxu0 0.0
        %6921 = vmatpush1.msra.mxu0 0.0
        %6922 = vmatprep.subr.mxu0 0.0
        %6923 = vmatpush1.msra.mxu0 0.0
        %6924 = vmatprep.subr.mxu0 0.0
        %6925 = vmatpush1.msra.mxu0 0.0
        %6926 = vmatprep.subr.mxu0 0.0
        %6927 = vmatpush1.msra.mxu0 0.0
        %6928 = vmatprep.subr.mxu0 0.0
        %6929 = vmatpush1.msra.mxu0 0.0
        %6930 = vmatprep.subr.mxu0 0.0
        %6931 = vmatpush1.msra.mxu0 0.0
        %6932 = vmatprep.subr.mxu0 0.0
        %6933 = vmatpush1.msra.mxu0 0.0
        %6934 = vmatprep.subr.mxu0 0.0
        %6935 = vmatpush1.msra.mxu0 %v6899
        %6936 = vmatprep.subr.mxu0 0.0
        %6937 = vmatpush2.msra.mxu0 0.0
        %6938 = vmatprep.subr.mxu0 0.0
        %6939 = vmatpush2.msra.mxu0 0.0
        %6940 = vmatprep.subr.mxu0 0.0
        %6941 = vmatpush2.msra.mxu0 0.0
        %6942 = vmatprep.subr.mxu0 0.0
        %6943 = vmatpush2.msra.mxu0 0.0
        %6944 = vmatprep.subr.mxu0 0.0
        %6945 = vmatpush2.msra.mxu0 0.0
        %6946 = vmatprep.subr.mxu0 0.0
        %6947 = vmatpush2.msra.mxu0 0.0
        %6948 = vmatprep.subr.mxu0 0.0
        %6949 = vmatpush2.msra.mxu0 0.0
        %6950 = vmatprep.subr.mxu0 0.0
        %6951 = vmatpush2.msra.mxu0 0.0
        %6952 = vmatprep.subr.mxu0 0.0
        %6953 = vmatpush2.msra.mxu0 0.0
        %6954 = vmatprep.subr.mxu0 0.0
        %6955 = vmatpush2.msra.mxu0 0.0
        %6956 = vmatprep.subr.mxu0 0.0
        %6957 = vmatpush2.msra.mxu0 0.0
        %6958 = vmatprep.subr.mxu0 0.0
        %6959 = vmatpush2.msra.mxu0 0.0
        %6960 = vmatprep.subr.mxu0 0.0
        %6961 = vmatpush2.msra.mxu0 0.0
        %6962 = vmatprep.subr.mxu0 0.0
        %6963 = vmatpush2.msra.mxu0 0.0
        %6964 = vmatprep.subr.mxu0 0.0
        %6965 = vmatpush2.msra.mxu0 0.0
        %6966 = vmatprep.subr.mxu0 0.0
        %6967 = vmatpush2.msra.mxu0 0.0
        %6968 = vmatprep.mubr.f32.mxu0 0.0
        %6969 = vmatmul.mubr.f32.gmra.mxu0 %v6902
        %v6970 = vpop.f32.mrf.mxu0
        %v6971 = vadd.f32 0.0, %v6970
        %v6972 = vpop.f32.mrf.mxu0
        %6973 = vdwg.mxu0
        %v6974 = vld [vmem:[%s9 + $0x18] sm:$0xff]
        %v6976 = vsel %vm1242, %v6439, 0
        %v6979 = vsel %vm1242, %v6515, 0
        %v6982 = vsel %vm1242, %v6591, 0
        %v6985 = vsel %vm1242, %v6667, 0
        %v6988 = vsel %vm1242, %v6743, 0
        %v6991 = vsel %vm1242, %v6819, 0
        %v6994 = vsel %vm1242, %v6895, 0
        %v6997 = vsel %vm1242, %v6971, 0
        %6999 = vmatprep.subr.mxu0 0.0
        %7000 = vmatpush1.msra.mxu0 0.0
        %7001 = vmatprep.subr.mxu0 0.0
        %7002 = vmatpush1.msra.mxu0 0.0
        %7003 = vmatprep.subr.mxu0 0.0
        %7004 = vmatpush1.msra.mxu0 0.0
        %7005 = vmatprep.subr.mxu0 0.0
        %7006 = vmatpush1.msra.mxu0 0.0
        %7007 = vmatprep.subr.mxu0 0.0
        %7008 = vmatpush1.msra.mxu0 0.0
        %7009 = vmatprep.subr.mxu0 0.0
        %7010 = vmatpush1.msra.mxu0 0.0
        %7011 = vmatprep.subr.mxu0 0.0
        %7012 = vmatpush1.msra.mxu0 0.0
        %7013 = vmatprep.subr.mxu0 0.0
        %7014 = vmatpush1.msra.mxu0 0.0
        %7015 = vmatprep.subr.mxu0 0.0
        %7016 = vmatpush1.msra.mxu0 0.0
        %7017 = vmatprep.subr.mxu0 0.0
        %7018 = vmatpush1.msra.mxu0 0.0
        %7019 = vmatprep.subr.mxu0 0.0
        %7020 = vmatpush1.msra.mxu0 0.0
        %7021 = vmatprep.subr.mxu0 0.0
        %7022 = vmatpush1.msra.mxu0 0.0
        %7023 = vmatprep.subr.mxu0 0.0
        %7024 = vmatpush1.msra.mxu0 0.0
        %7025 = vmatprep.subr.mxu0 0.0
        %7026 = vmatpush1.msra.mxu0 0.0
        %7027 = vmatprep.subr.mxu0 0.0
        %7028 = vmatpush1.msra.mxu0 0.0
        %7029 = vmatprep.subr.mxu0 0.0
        %7030 = vmatpush1.msra.mxu0 %v6974
        %7031 = vmatprep.subr.mxu0 0.0
        %7032 = vmatpush2.msra.mxu0 0.0
        %7033 = vmatprep.subr.mxu0 0.0
        %7034 = vmatpush2.msra.mxu0 0.0
        %7035 = vmatprep.subr.mxu0 0.0
        %7036 = vmatpush2.msra.mxu0 0.0
        %7037 = vmatprep.subr.mxu0 0.0
        %7038 = vmatpush2.msra.mxu0 0.0
        %7039 = vmatprep.subr.mxu0 0.0
        %7040 = vmatpush2.msra.mxu0 0.0
        %7041 = vmatprep.subr.mxu0 0.0
        %7042 = vmatpush2.msra.mxu0 0.0
        %7043 = vmatprep.subr.mxu0 0.0
        %7044 = vmatpush2.msra.mxu0 0.0
        %7045 = vmatprep.subr.mxu0 0.0
        %7046 = vmatpush2.msra.mxu0 0.0
        %7047 = vmatprep.subr.mxu0 0.0
        %7048 = vmatpush2.msra.mxu0 0.0
        %7049 = vmatprep.subr.mxu0 0.0
        %7050 = vmatpush2.msra.mxu0 0.0
        %7051 = vmatprep.subr.mxu0 0.0
        %7052 = vmatpush2.msra.mxu0 0.0
        %7053 = vmatprep.subr.mxu0 0.0
        %7054 = vmatpush2.msra.mxu0 0.0
        %7055 = vmatprep.subr.mxu0 0.0
        %7056 = vmatpush2.msra.mxu0 0.0
        %7057 = vmatprep.subr.mxu0 0.0
        %7058 = vmatpush2.msra.mxu0 0.0
        %7059 = vmatprep.subr.mxu0 0.0
        %7060 = vmatpush2.msra.mxu0 0.0
        %7061 = vmatprep.subr.mxu0 0.0
        %7062 = vmatpush2.msra.mxu0 0.0
        %7063 = vmatprep.mubr.f32.mxu0 0.0
        %7064 = vmatmul.mubr.f32.gmra.mxu0 %v6976
        %v7065 = vpop.f32.mrf.mxu0
        %v7066 = vadd.f32 0.0, %v7065
        %v7067 = vpop.f32.mrf.mxu0
        %7068 = vmatprep.mubr.f32.mxu0 0.0
        %7069 = vmatmul.mubr.f32.gmra.mxu0 %v6979
        %v7070 = vpop.f32.mrf.mxu0
        %v7071 = vadd.f32 0.0, %v7070
        %v7072 = vpop.f32.mrf.mxu0
        %7073 = vmatprep.mubr.f32.mxu0 0.0
        %7074 = vmatmul.mubr.f32.gmra.mxu0 %v6982
        %v7075 = vpop.f32.mrf.mxu0
        %v7076 = vadd.f32 0.0, %v7075
        %v7077 = vpop.f32.mrf.mxu0
        %7078 = vmatprep.mubr.f32.mxu0 0.0
        %7079 = vmatmul.mubr.f32.gmra.mxu0 %v6985
        %v7080 = vpop.f32.mrf.mxu0
        %v7081 = vadd.f32 0.0, %v7080
        %v7082 = vpop.f32.mrf.mxu0
        %7083 = vmatprep.mubr.f32.mxu0 0.0
        %7084 = vmatmul.mubr.f32.gmra.mxu0 %v6988
        %v7085 = vpop.f32.mrf.mxu0
        %v7086 = vadd.f32 0.0, %v7085
        %v7087 = vpop.f32.mrf.mxu0
        %7088 = vmatprep.mubr.f32.mxu0 0.0
        %7089 = vmatmul.mubr.f32.gmra.mxu0 %v6991
        %v7090 = vpop.f32.mrf.mxu0
        %v7091 = vadd.f32 0.0, %v7090
        %v7092 = vpop.f32.mrf.mxu0
        %7093 = vmatprep.mubr.f32.mxu0 0.0
        %7094 = vmatmul.mubr.f32.gmra.mxu0 %v6994
        %v7095 = vpop.f32.mrf.mxu0
        %v7096 = vadd.f32 0.0, %v7095
        %v7097 = vpop.f32.mrf.mxu0
        %7098 = vmatprep.mubr.f32.mxu0 0.0
        %7099 = vmatmul.mubr.f32.gmra.mxu0 %v6997
        %v7100 = vpop.f32.mrf.mxu0
        %v7101 = vadd.f32 0.0, %v7100
        %v7102 = vpop.f32.mrf.mxu0
        %7103 = vdwg.mxu0
        %v7104 = vadd.f32 %v5630, %v7066
        %v7105 = vadd.f32 %v5631, %v7071
        %v7106 = vadd.f32 %v5632, %v7076
        %v7107 = vadd.f32 %v5633, %v7081
        %v7108 = vadd.f32 %v5634, %v7086
        %v7109 = vadd.f32 %v5635, %v7091
        %v7110 = vadd.f32 %v5636, %v7096
        %v7111 = vadd.f32 %v5637, %v7101
        %v7112 = vadd.f32 %v989, %v7104
        %v7113 = vadd.f32 %v990, %v7105
        %v7114 = vadd.f32 %v991, %v7106
        %v7115 = vadd.f32 %v992, %v7107
        %v7116 = vadd.f32 %v993, %v7108
        %v7117 = vadd.f32 %v994, %v7109
        %v7118 = vadd.f32 %v995, %v7110
        %v7119 = vadd.f32 %v996, %v7111
        %v7120 = vld [vmem:[%s10] sm:$0x1]
        %v7122 = vlaneseq
        %v7123 = vshrl.u32 %v7122, 7
        %v7124 = vsub.s32 0, %v7123
        %v7125 = vrot.slane %v7120, %v7124
        %v7127 = vadd.f32 %v7112, %v7125
        %v7128 = vadd.f32 %v7113, %v7125
        %v7129 = vadd.f32 %v7114, %v7125
        %v7130 = vadd.f32 %v7115, %v7125
        %v7131 = vadd.f32 %v7116, %v7125
        %v7132 = vadd.f32 %v7117, %v7125
        %v7133 = vadd.f32 %v7118, %v7125
        %v7134 = vadd.f32 %v7119, %v7125
        %v7135 = vld [vmem:[%s11] sm:$0x1]
        %v7136 = vld [vmem:[%s12] sm:$0x1]
        %v7137 = vsel %vm863, %v7127, 0.0
        %7138 = vadd.xlane.f32.xlu0 %v7137
        %v7139 = vpop.xlane.xlu0 %7138
        %v7140 = vsel %vm863, %v7128, 0.0
        %7141 = vadd.xlane.f32.xlu0 %v7140
        %v7142 = vpop.xlane.xlu0 %7141
        %v7143 = vsel %vm863, %v7129, 0.0
        %7144 = vadd.xlane.f32.xlu0 %v7143
        %v7145 = vpop.xlane.xlu0 %7144
        %v7146 = vsel %vm863, %v7130, 0.0
        %7147 = vadd.xlane.f32.xlu0 %v7146
        %v7148 = vpop.xlane.xlu0 %7147
        %v7149 = vsel %vm863, %v7131, 0.0
        %7150 = vadd.xlane.f32.xlu0 %v7149
        %v7151 = vpop.xlane.xlu0 %7150
        %v7152 = vsel %vm863, %v7132, 0.0
        %7153 = vadd.xlane.f32.xlu0 %v7152
        %v7154 = vpop.xlane.xlu0 %7153
        %v7155 = vsel %vm863, %v7133, 0.0
        %7156 = vadd.xlane.f32.xlu0 %v7155
        %v7157 = vpop.xlane.xlu0 %7156
        %v7158 = vsel %vm863, %v7134, 0.0
        %7159 = vadd.xlane.f32.xlu0 %v7158
        %v7160 = vpop.xlane.xlu0 %7159
        %v7161 = vmul.f32 %v7139, %v888
        %v7162 = vmul.f32 %v7142, %v888
        %v7163 = vmul.f32 %v7145, %v888
        %v7164 = vmul.f32 %v7148, %v888
        %v7165 = vmul.f32 %v7151, %v888
        %v7166 = vmul.f32 %v7154, %v888
        %v7167 = vmul.f32 %v7157, %v888
        %v7168 = vmul.f32 %v7160, %v888
        %v7169 = vsub.f32 %v7127, %v7161
        %v7170 = vsub.f32 %v7128, %v7162
        %v7171 = vsub.f32 %v7129, %v7163
        %v7172 = vsub.f32 %v7130, %v7164
        %v7173 = vsub.f32 %v7131, %v7165
        %v7174 = vsub.f32 %v7132, %v7166
        %v7175 = vsub.f32 %v7133, %v7167
        %v7176 = vsub.f32 %v7134, %v7168
        %v7177 = vmul.f32 %v7169, %v7169
        %v7178 = vmul.f32 %v7170, %v7170
        %v7179 = vmul.f32 %v7171, %v7171
        %v7180 = vmul.f32 %v7172, %v7172
        %v7181 = vmul.f32 %v7173, %v7173
        %v7182 = vmul.f32 %v7174, %v7174
        %v7183 = vmul.f32 %v7175, %v7175
        %v7184 = vmul.f32 %v7176, %v7176
        %v7185 = vsel %vm863, %v7177, 0.0
        %7186 = vadd.xlane.f32.xlu0 %v7185
        %v7187 = vpop.xlane.xlu0 %7186
        %v7188 = vsel %vm863, %v7178, 0.0
        %7189 = vadd.xlane.f32.xlu0 %v7188
        %v7190 = vpop.xlane.xlu0 %7189
        %v7191 = vsel %vm863, %v7179, 0.0
        %7192 = vadd.xlane.f32.xlu0 %v7191
        %v7193 = vpop.xlane.xlu0 %7192
        %v7194 = vsel %vm863, %v7180, 0.0
        %7195 = vadd.xlane.f32.xlu0 %v7194
        %v7196 = vpop.xlane.xlu0 %7195
        %v7197 = vsel %vm863, %v7181, 0.0
        %7198 = vadd.xlane.f32.xlu0 %v7197
        %v7199 = vpop.xlane.xlu0 %7198
        %v7200 = vsel %vm863, %v7182, 0.0
        %7201 = vadd.xlane.f32.xlu0 %v7200
        %v7202 = vpop.xlane.xlu0 %7201
        %v7203 = vsel %vm863, %v7183, 0.0
        %7204 = vadd.xlane.f32.xlu0 %v7203
        %v7205 = vpop.xlane.xlu0 %7204
        %v7206 = vsel %vm863, %v7184, 0.0
        %7207 = vadd.xlane.f32.xlu0 %v7206
        %v7208 = vpop.xlane.xlu0 %7207
        %v7209 = vmul.f32 %v7187, %v888
        %v7210 = vmul.f32 %v7190, %v888
        %v7211 = vmul.f32 %v7193, %v888
        %v7212 = vmul.f32 %v7196, %v888
        %v7213 = vmul.f32 %v7199, %v888
        %v7214 = vmul.f32 %v7202, %v888
        %v7215 = vmul.f32 %v7205, %v888
        %v7216 = vmul.f32 %v7208, %v888
        %v7217 = vadd.f32 %v7209, 1e-05
        %v7218 = vadd.f32 %v7210, 1e-05
        %v7219 = vadd.f32 %v7211, 1e-05
        %v7220 = vadd.f32 %v7212, 1e-05
        %v7221 = vadd.f32 %v7213, 1e-05
        %v7222 = vadd.f32 %v7214, 1e-05
        %v7223 = vadd.f32 %v7215, 1e-05
        %v7224 = vadd.f32 %v7216, 1e-05
        %v7225 = vrsqrt.pop %v7217
        %v7226 = vrsqrt.pop %v7218
        %v7227 = vrsqrt.pop %v7219
        %v7228 = vrsqrt.pop %v7220
        %v7229 = vrsqrt.pop %v7221
        %v7230 = vrsqrt.pop %v7222
        %v7231 = vrsqrt.pop %v7223
        %v7232 = vrsqrt.pop %v7224
        %v7233 = vmul.f32 %v7169, %v7225
        %v7234 = vmul.f32 %v7170, %v7226
        %v7235 = vmul.f32 %v7171, %v7227
        %v7236 = vmul.f32 %v7172, %v7228
        %v7237 = vmul.f32 %v7173, %v7229
        %v7238 = vmul.f32 %v7174, %v7230
        %v7239 = vmul.f32 %v7175, %v7231
        %v7240 = vmul.f32 %v7176, %v7232
        %v7242 = vlaneseq
        %v7243 = vshrl.u32 %v7242, 7
        %v7244 = vsub.s32 0, %v7243
        %v7245 = vrot.slane %v7135, %v7244
        %v7247 = vmul.f32 %v7233, %v7245
        %v7248 = vmul.f32 %v7234, %v7245
        %v7249 = vmul.f32 %v7235, %v7245
        %v7250 = vmul.f32 %v7236, %v7245
        %v7251 = vmul.f32 %v7237, %v7245
        %v7252 = vmul.f32 %v7238, %v7245
        %v7253 = vmul.f32 %v7239, %v7245
        %v7254 = vmul.f32 %v7240, %v7245
        %v7256 = vlaneseq
        %v7257 = vshrl.u32 %v7256, 7
        %v7258 = vsub.s32 0, %v7257
        %v7259 = vrot.slane %v7136, %v7258
        %v7261 = vadd.f32 %v7247, %v7259
        %v7262 = vadd.f32 %v7248, %v7259
        %v7263 = vadd.f32 %v7249, %v7259
        %v7264 = vadd.f32 %v7250, %v7259
        %v7265 = vadd.f32 %v7251, %v7259
        %v7266 = vadd.f32 %v7252, %v7259
        %v7267 = vadd.f32 %v7253, %v7259
        %v7268 = vadd.f32 %v7254, %v7259
        %v7269 = vpack.c.bf16 %v7262, %v7261
        %v7270 = vpack.c.bf16 %v7264, %v7263
        %v7271 = vpack.c.bf16 %v7266, %v7265
        %v7272 = vpack.c.bf16 %v7268, %v7267
        %v7273 = vld [vmem:[%s13] sm:$0xf]
        %v7274 = vld [vmem:[%s13 + $0x4] sm:$0xf]
        %v7275 = vld [vmem:[%s13 + $0x8] sm:$0xf]
        %v7276 = vld [vmem:[%s13 + $0xc] sm:$0xf]
        %v7277 = vld [vmem:[%s14] sm:$0x1]
        %v7279 = vlaneseq
        %v7280 = vshrl.u32 %v7279, 7
        %v7281 = vsub.s32 0, %v7280
        %v7282 = vrot.slane %v7277, %v7281
        %v7288 = vunpack.c.l.b16 %v7273
        %v7289 = vunpack.c.l.b16 %v7274
        %v7290 = vunpack.c.l.b16 %v7275
        %v7291 = vunpack.c.l.b16 %v7276
        %v7292 = vpack.c.b16 %v7289, %v7288
        %v7293 = vpack.c.b16 %v7291, %v7290
        %v7297 = vsel %vm863, %v7269, 0
        %v7300 = vsel %vm863, %v7270, 0
        %v7303 = vsel %vm863, %v7271, 0
        %v7306 = vsel %vm863, %v7272, 0
        %7308 = vmatprep.subr.bf16.mxu0 0
        %7309 = vmatpush1.bf16.msra.mxu0 0
        %7310 = vmatprep.subr.bf16.mxu0 0
        %7311 = vmatpush1.bf16.msra.mxu0 0
        %7312 = vmatprep.subr.bf16.mxu0 0
        %7313 = vmatpush1.bf16.msra.mxu0 0
        %7314 = vmatprep.subr.bf16.mxu0 0
        %7315 = vmatpush1.bf16.msra.mxu0 0
        %7316 = vmatprep.subr.bf16.mxu0 0
        %7317 = vmatpush1.bf16.msra.mxu0 0
        %7318 = vmatprep.subr.bf16.mxu0 0
        %7319 = vmatpush1.bf16.msra.mxu0 0
        %7320 = vmatprep.subr.bf16.mxu0 0
        %7321 = vmatpush1.bf16.msra.mxu0 %v7293
        %7322 = vmatprep.subr.bf16.mxu0 0
        %7323 = vmatpush1.bf16.msra.mxu0 %v7292
        %7324 = vmatprep.subr.bf16.mxu0 0
        %7325 = vmatpush2.bf16.msra.mxu0 0
        %7326 = vmatprep.subr.bf16.mxu0 0
        %7327 = vmatpush2.bf16.msra.mxu0 0
        %7328 = vmatprep.subr.bf16.mxu0 0
        %7329 = vmatpush2.bf16.msra.mxu0 0
        %7330 = vmatprep.subr.bf16.mxu0 0
        %7331 = vmatpush2.bf16.msra.mxu0 0
        %7332 = vmatprep.subr.bf16.mxu0 0
        %7333 = vmatpush2.bf16.msra.mxu0 0
        %7334 = vmatprep.subr.bf16.mxu0 0
        %7335 = vmatpush2.bf16.msra.mxu0 0
        %7336 = vmatprep.subr.bf16.mxu0 0
        %7337 = vmatpush2.bf16.msra.mxu0 0
        %7338 = vmatprep.subr.bf16.mxu0 0
        %7339 = vmatpush2.bf16.msra.mxu0 0
        %7340 = vmatprep.mubr.bf16.mxu0 0
        %7341 = vmatmul.mubr.bf16.gmra.mxu0 %v7297
        %v7342 = vpop.f32.mrf.mxu0
        %v7343 = vadd.f32 %v7282, %v7342
        %v7344 = vpop.f32.mrf.mxu0
        %v7345 = vpop.f32.mrf.mxu0
        %v7346 = vadd.f32 %v7282, %v7345
        %v7347 = vpop.f32.mrf.mxu0
        %7348 = vmatprep.mubr.bf16.mxu0 0
        %7349 = vmatmul.mubr.bf16.gmra.mxu0 %v7300
        %v7350 = vpop.f32.mrf.mxu0
        %v7351 = vadd.f32 %v7282, %v7350
        %v7352 = vpop.f32.mrf.mxu0
        %v7353 = vpop.f32.mrf.mxu0
        %v7354 = vadd.f32 %v7282, %v7353
        %v7355 = vpop.f32.mrf.mxu0
        %7356 = vmatprep.mubr.bf16.mxu0 0
        %7357 = vmatmul.mubr.bf16.gmra.mxu0 %v7303
        %v7358 = vpop.f32.mrf.mxu0
        %v7359 = vadd.f32 %v7282, %v7358
        %v7360 = vpop.f32.mrf.mxu0
        %v7361 = vpop.f32.mrf.mxu0
        %v7362 = vadd.f32 %v7282, %v7361
        %v7363 = vpop.f32.mrf.mxu0
        %7364 = vmatprep.mubr.bf16.mxu0 0
        %7365 = vmatmul.mubr.bf16.gmra.mxu0 %v7306
        %v7366 = vpop.f32.mrf.mxu0
        %v7367 = vadd.f32 %v7282, %v7366
        %v7368 = vpop.f32.mrf.mxu0
        %v7369 = vpop.f32.mrf.mxu0
        %v7370 = vadd.f32 %v7282, %v7369
        %v7371 = vpop.f32.mrf.mxu0
        %7372 = vdwg.mxu0
        %v7373 = vmul.f32 %v7343, 1.702
        %v7374 = vmul.f32 %v7346, 1.702
        %v7375 = vmul.f32 %v7351, 1.702
        %v7376 = vmul.f32 %v7354, 1.702
        %v7377 = vmul.f32 %v7359, 1.702
        %v7378 = vmul.f32 %v7362, 1.702
        %v7379 = vmul.f32 %v7367, 1.702
        %v7380 = vmul.f32 %v7370, 1.702
        %v7381 = vxor.u32 %v7373, 2147483648
        %v7382 = vxor.u32 %v7374, 2147483648
        %v7383 = vxor.u32 %v7375, 2147483648
        %v7384 = vxor.u32 %v7376, 2147483648
        %v7385 = vxor.u32 %v7377, 2147483648
        %v7386 = vxor.u32 %v7378, 2147483648
        %v7387 = vxor.u32 %v7379, 2147483648
        %v7388 = vxor.u32 %v7380, 2147483648
        %v7389 = vmul.f32 %v7381, 1.442695
        %v7390 = vpow.pop %v7389
        %v7391 = vmul.f32 %v7382, 1.442695
        %v7392 = vpow.pop %v7391
        %v7393 = vmul.f32 %v7383, 1.442695
        %v7394 = vpow.pop %v7393
        %v7395 = vmul.f32 %v7384, 1.442695
        %v7396 = vpow.pop %v7395
        %v7397 = vmul.f32 %v7385, 1.442695
        %v7398 = vpow.pop %v7397
        %v7399 = vmul.f32 %v7386, 1.442695
        %v7400 = vpow.pop %v7399
        %v7401 = vmul.f32 %v7387, 1.442695
        %v7402 = vpow.pop %v7401
        %v7403 = vmul.f32 %v7388, 1.442695
        %v7404 = vpow.pop %v7403
        %v7405 = vadd.f32 %v7390, 1.0
        %v7406 = vadd.f32 %v7392, 1.0
        %v7407 = vadd.f32 %v7394, 1.0
        %v7408 = vadd.f32 %v7396, 1.0
        %v7409 = vadd.f32 %v7398, 1.0
        %v7410 = vadd.f32 %v7400, 1.0
        %v7411 = vadd.f32 %v7402, 1.0
        %v7412 = vadd.f32 %v7404, 1.0
        %v7413 = vrcp.pop %v7405
        %v7414 = vmul.f32 1.0, %v7413
        %v7415 = vrcp.pop %v7406
        %v7416 = vmul.f32 1.0, %v7415
        %v7417 = vrcp.pop %v7407
        %v7418 = vmul.f32 1.0, %v7417
        %v7419 = vrcp.pop %v7408
        %v7420 = vmul.f32 1.0, %v7419
        %v7421 = vrcp.pop %v7409
        %v7422 = vmul.f32 1.0, %v7421
        %v7423 = vrcp.pop %v7410
        %v7424 = vmul.f32 1.0, %v7423
        %v7425 = vrcp.pop %v7411
        %v7426 = vmul.f32 1.0, %v7425
        %v7427 = vrcp.pop %v7412
        %v7428 = vmul.f32 1.0, %v7427
        %v7429 = vmul.f32 %v7343, %v7414
        %v7430 = vmul.f32 %v7346, %v7416
        %v7431 = vmul.f32 %v7351, %v7418
        %v7432 = vmul.f32 %v7354, %v7420
        %v7433 = vmul.f32 %v7359, %v7422
        %v7434 = vmul.f32 %v7362, %v7424
        %v7435 = vmul.f32 %v7367, %v7426
        %v7436 = vmul.f32 %v7370, %v7428
        %v7437 = vpack.c.bf16 %v7430, %v7429
        %v7438 = vpack.c.bf16 %v7432, %v7431
        %v7439 = vpack.c.bf16 %v7434, %v7433
        %v7440 = vpack.c.bf16 %v7436, %v7435
        %v7441 = vld [vmem:[%s15] sm:$0xf]
        %v7442 = vld [vmem:[%s15 + $0x4] sm:$0xf]
        %v7443 = vld [vmem:[%s15 + $0x8] sm:$0xf]
        %v7444 = vld [vmem:[%s15 + $0xc] sm:$0xf]
        %v7445 = vld [vmem:[%s15 + $0x10] sm:$0xf]
        %v7446 = vld [vmem:[%s15 + $0x14] sm:$0xf]
        %v7447 = vld [vmem:[%s15 + $0x18] sm:$0xf]
        %v7448 = vld [vmem:[%s15 + $0x1c] sm:$0xf]
        %v7449 = vld [vmem:[%s15 + $0x20] sm:$0xf]
        %v7450 = vld [vmem:[%s15 + $0x24] sm:$0xf]
        %v7451 = vld [vmem:[%s15 + $0x28] sm:$0xf]
        %v7452 = vld [vmem:[%s15 + $0x2c] sm:$0xf]
        %v7453 = vld [vmem:[%s15 + $0x30] sm:$0xf]
        %v7454 = vld [vmem:[%s15 + $0x34] sm:$0xf]
        %v7455 = vld [vmem:[%s15 + $0x38] sm:$0xf]
        %v7456 = vld [vmem:[%s15 + $0x3c] sm:$0xf]
        %v7457 = vld [vmem:[%s16] sm:$0x1]
        %v7459 = vlaneseq
        %v7460 = vshrl.u32 %v7459, 7
        %v7461 = vsub.s32 0, %v7460
        %v7462 = vrot.slane %v7457, %v7461
        %v7480 = vunpack.c.l.b16 %v7441
        %v7481 = vunpack.c.l.b16 %v7442
        %v7482 = vunpack.c.l.b16 %v7443
        %v7483 = vunpack.c.l.b16 %v7444
        %v7484 = vunpack.c.l.b16 %v7445
        %v7485 = vunpack.c.l.b16 %v7446
        %v7486 = vunpack.c.l.b16 %v7447
        %v7487 = vunpack.c.l.b16 %v7448
        %v7488 = vunpack.c.l.b16 %v7449
        %v7489 = vunpack.c.l.b16 %v7450
        %v7490 = vunpack.c.l.b16 %v7451
        %v7491 = vunpack.c.l.b16 %v7452
        %v7492 = vunpack.c.l.b16 %v7453
        %v7493 = vunpack.c.l.b16 %v7454
        %v7494 = vunpack.c.l.b16 %v7455
        %v7495 = vunpack.c.l.b16 %v7456
        %v7496 = vpack.c.b16 %v7481, %v7480
        %v7497 = vpack.c.b16 %v7483, %v7482
        %v7498 = vpack.c.b16 %v7485, %v7484
        %v7499 = vpack.c.b16 %v7487, %v7486
        %v7500 = vpack.c.b16 %v7489, %v7488
        %v7501 = vpack.c.b16 %v7491, %v7490
        %v7502 = vpack.c.b16 %v7493, %v7492
        %v7503 = vpack.c.b16 %v7495, %v7494
        %7512 = vmatprep.subr.bf16.mxu0 0
        %7513 = vmatpush1.bf16.msra.mxu0 %v7503
        %7514 = vmatprep.subr.bf16.mxu0 0
        %7515 = vmatpush1.bf16.msra.mxu0 %v7502
        %7516 = vmatprep.subr.bf16.mxu0 0
        %7517 = vmatpush1.bf16.msra.mxu0 %v7501
        %7518 = vmatprep.subr.bf16.mxu0 0
        %7519 = vmatpush1.bf16.msra.mxu0 %v7500
        %7520 = vmatprep.subr.bf16.mxu0 0
        %7521 = vmatpush1.bf16.msra.mxu0 %v7499
        %7522 = vmatprep.subr.bf16.mxu0 0
        %7523 = vmatpush1.bf16.msra.mxu0 %v7498
        %7524 = vmatprep.subr.bf16.mxu0 0
        %7525 = vmatpush1.bf16.msra.mxu0 %v7497
        %7526 = vmatprep.subr.bf16.mxu0 0
        %7527 = vmatpush1.bf16.msra.mxu0 %v7496
        %7528 = vmatprep.subr.bf16.mxu0 0
        %7529 = vmatpush2.bf16.msra.mxu0 0
        %7530 = vmatprep.subr.bf16.mxu0 0
        %7531 = vmatpush2.bf16.msra.mxu0 0
        %7532 = vmatprep.subr.bf16.mxu0 0
        %7533 = vmatpush2.bf16.msra.mxu0 0
        %7534 = vmatprep.subr.bf16.mxu0 0
        %7535 = vmatpush2.bf16.msra.mxu0 0
        %7536 = vmatprep.subr.bf16.mxu0 0
        %7537 = vmatpush2.bf16.msra.mxu0 0
        %7538 = vmatprep.subr.bf16.mxu0 0
        %7539 = vmatpush2.bf16.msra.mxu0 0
        %7540 = vmatprep.subr.bf16.mxu0 0
        %7541 = vmatpush2.bf16.msra.mxu0 0
        %7542 = vmatprep.subr.bf16.mxu0 0
        %7543 = vmatpush2.bf16.msra.mxu0 0
        %7544 = vmatprep.mubr.bf16.mxu0 0
        %7545 = vmatmul.mubr.bf16.gmra.mxu0 %v7437
        %v7546 = vpop.f32.mrf.mxu0
        %v7547 = vadd.f32 %v7462, %v7546
        %v7548 = vpop.f32.mrf.mxu0
        %v7549 = vpop.f32.mrf.mxu0
        %v7550 = vadd.f32 %v7462, %v7549
        %v7551 = vpop.f32.mrf.mxu0
        %7552 = vmatprep.mubr.bf16.mxu0 0
        %7553 = vmatmul.mubr.bf16.gmra.mxu0 %v7438
        %v7554 = vpop.f32.mrf.mxu0
        %v7555 = vadd.f32 %v7462, %v7554
        %v7556 = vpop.f32.mrf.mxu0
        %v7557 = vpop.f32.mrf.mxu0
        %v7558 = vadd.f32 %v7462, %v7557
        %v7559 = vpop.f32.mrf.mxu0
        %7560 = vmatprep.mubr.bf16.mxu0 0
        %7561 = vmatmul.mubr.bf16.gmra.mxu0 %v7439
        %v7562 = vpop.f32.mrf.mxu0
        %v7563 = vadd.f32 %v7462, %v7562
        %v7564 = vpop.f32.mrf.mxu0
        %v7565 = vpop.f32.mrf.mxu0
        %v7566 = vadd.f32 %v7462, %v7565
        %v7567 = vpop.f32.mrf.mxu0
        %7568 = vmatprep.mubr.bf16.mxu0 0
        %7569 = vmatmul.mubr.bf16.gmra.mxu0 %v7440
        %v7570 = vpop.f32.mrf.mxu0
        %v7571 = vadd.f32 %v7462, %v7570
        %v7572 = vpop.f32.mrf.mxu0
        %v7573 = vpop.f32.mrf.mxu0
        %v7574 = vadd.f32 %v7462, %v7573
        %v7575 = vpop.f32.mrf.mxu0
        %7576 = vdwg.mxu0
        %v7577 = vadd.f32 %v7127, %v7547
        %v7578 = vadd.f32 %v7128, %v7550
        %v7579 = vadd.f32 %v7129, %v7555
        %v7580 = vadd.f32 %v7130, %v7558
        %v7581 = vadd.f32 %v7131, %v7563
        %v7582 = vadd.f32 %v7132, %v7566
        %v7583 = vadd.f32 %v7133, %v7571
        %v7584 = vadd.f32 %v7134, %v7574
        %v7585 = vlaneseq
        %v7586 = vshrl.u32 %v7585, 7
        %vm7587 = vcmp.eq.s32.totalorder %v7586, 0
        %v7588 = vsel %vm7587, 1, 0
        %v7589 = vcvt.s32.f32 %v7588
        %v7590 = vmul.f32 %v7577, %v7589
        %v7591 = vmul.f32 %v7578, %v7589
        %v7592 = vmul.f32 %v7579, %v7589
        %v7593 = vmul.f32 %v7580, %v7589
        %v7594 = vmul.f32 %v7581, %v7589
        %v7595 = vmul.f32 %v7582, %v7589
        %v7596 = vmul.f32 %v7583, %v7589
        %v7597 = vmul.f32 %v7584, %v7589
        %v7598 = vsel %vm863, %v7590, 0.0
        %v7599 = vrot.slane %v7598, 4
        %v7600 = vadd.f32 %v7598, %v7599
        %v7601 = vrot.slane %v7600, 2
        %v7602 = vadd.f32 %v7600, %v7601
        %v7603 = vrot.slane %v7602, 1
        %v7604 = vadd.f32 %v7602, %v7603
        %v7605 = vsel %vm863, %v7591, 0.0
        %v7606 = vrot.slane %v7605, 4
        %v7607 = vadd.f32 %v7605, %v7606
        %v7608 = vrot.slane %v7607, 2
        %v7609 = vadd.f32 %v7607, %v7608
        %v7610 = vrot.slane %v7609, 1
        %v7611 = vadd.f32 %v7609, %v7610
        %v7612 = vsel %vm863, %v7592, 0.0
        %v7613 = vrot.slane %v7612, 4
        %v7614 = vadd.f32 %v7612, %v7613
        %v7615 = vrot.slane %v7614, 2
        %v7616 = vadd.f32 %v7614, %v7615
        %v7617 = vrot.slane %v7616, 1
        %v7618 = vadd.f32 %v7616, %v7617
        %v7619 = vsel %vm863, %v7593, 0.0
        %v7620 = vrot.slane %v7619, 4
        %v7621 = vadd.f32 %v7619, %v7620
        %v7622 = vrot.slane %v7621, 2
        %v7623 = vadd.f32 %v7621, %v7622
        %v7624 = vrot.slane %v7623, 1
        %v7625 = vadd.f32 %v7623, %v7624
        %v7626 = vsel %vm863, %v7594, 0.0
        %v7627 = vrot.slane %v7626, 4
        %v7628 = vadd.f32 %v7626, %v7627
        %v7629 = vrot.slane %v7628, 2
        %v7630 = vadd.f32 %v7628, %v7629
        %v7631 = vrot.slane %v7630, 1
        %v7632 = vadd.f32 %v7630, %v7631
        %v7633 = vsel %vm863, %v7595, 0.0
        %v7634 = vrot.slane %v7633, 4
        %v7635 = vadd.f32 %v7633, %v7634
        %v7636 = vrot.slane %v7635, 2
        %v7637 = vadd.f32 %v7635, %v7636
        %v7638 = vrot.slane %v7637, 1
        %v7639 = vadd.f32 %v7637, %v7638
        %v7640 = vsel %vm863, %v7596, 0.0
        %v7641 = vrot.slane %v7640, 4
        %v7642 = vadd.f32 %v7640, %v7641
        %v7643 = vrot.slane %v7642, 2
        %v7644 = vadd.f32 %v7642, %v7643
        %v7645 = vrot.slane %v7644, 1
        %v7646 = vadd.f32 %v7644, %v7645
        %v7647 = vsel %vm863, %v7597, 0.0
        %v7648 = vrot.slane %v7647, 4
        %v7649 = vadd.f32 %v7647, %v7648
        %v7650 = vrot.slane %v7649, 2
        %v7651 = vadd.f32 %v7649, %v7650
        %v7652 = vrot.slane %v7651, 1
        %v7653 = vadd.f32 %v7651, %v7652
        %v7654 = vld [vmem:[%s17] sm:$0x1]
        %v7655 = vld [vmem:[%s18] sm:$0x1]
        %vm7664 = vcmask 1041409
        %v7665 = vsel %vm7664, %v7611, %v7604
        %vm7666 = vcmask 1042434
        %v7667 = vsel %vm7666, %v7618, %v7665
        %vm7668 = vcmask 1043459
        %v7669 = vsel %vm7668, %v7625, %v7667
        %vm7670 = vcmask 1044484
        %v7671 = vsel %vm7670, %v7632, %v7669
        %vm7672 = vcmask 1045509
        %v7673 = vsel %vm7672, %v7639, %v7671
        %vm7674 = vcmask 1046534
        %v7675 = vsel %vm7674, %v7646, %v7673
        %vm7676 = vcmask 1047559
        %v7677 = vsel %vm7676, %v7653, %v7675
        %v7679 = vsel %vm863, %v7677, 0.0
        %7680 = vadd.xlane.f32.xlu0 %v7679
        %v7681 = vpop.xlane.xlu0 %7680
        %v7682 = vmul.f32 %v7681, %v888
        %v7684 = vrot.slane %v7682, 1
        %v7685 = vrot.slane %v7682, 2
        %v7686 = vrot.slane %v7682, 3
        %v7687 = vrot.slane %v7682, 4
        %v7688 = vrot.slane %v7682, 5
        %v7689 = vrot.slane %v7682, 6
        %v7690 = vrot.slane %v7682, 7
        %v7699 = vsub.f32 %v7604, %v7682
        %v7700 = vsub.f32 %v7611, %v7684
        %v7701 = vsub.f32 %v7618, %v7685
        %v7702 = vsub.f32 %v7625, %v7686
        %v7703 = vsub.f32 %v7632, %v7687
        %v7704 = vsub.f32 %v7639, %v7688
        %v7705 = vsub.f32 %v7646, %v7689
        %v7706 = vsub.f32 %v7653, %v7690
        %v7707 = vmul.f32 %v7699, %v7699
        %v7708 = vmul.f32 %v7700, %v7700
        %v7709 = vmul.f32 %v7701, %v7701
        %v7710 = vmul.f32 %v7702, %v7702
        %v7711 = vmul.f32 %v7703, %v7703
        %v7712 = vmul.f32 %v7704, %v7704
        %v7713 = vmul.f32 %v7705, %v7705
        %v7714 = vmul.f32 %v7706, %v7706
        %v7723 = vrot.slane %v7708, 7
        %v7724 = vsel %vm7664, %v7723, %v7707
        %v7725 = vrot.slane %v7709, 6
        %v7726 = vsel %vm7666, %v7725, %v7724
        %v7727 = vrot.slane %v7710, 5
        %v7728 = vsel %vm7668, %v7727, %v7726
        %v7729 = vrot.slane %v7711, 4
        %v7730 = vsel %vm7670, %v7729, %v7728
        %v7731 = vrot.slane %v7712, 3
        %v7732 = vsel %vm7672, %v7731, %v7730
        %v7733 = vrot.slane %v7713, 2
        %v7734 = vsel %vm7674, %v7733, %v7732
        %v7735 = vrot.slane %v7714, 1
        %v7736 = vsel %vm7676, %v7735, %v7734
        %v7738 = vsel %vm863, %v7736, 0.0
        %7739 = vadd.xlane.f32.xlu0 %v7738
        %v7740 = vpop.xlane.xlu0 %7739
        %v7741 = vmul.f32 %v7740, %v888
        %v7742 = vadd.f32 %v7741, 1e-05
        %v7743 = vrsqrt.pop %v7742
        %v7745 = vrot.slane %v7743, 1
        %v7746 = vrot.slane %v7743, 2
        %v7747 = vrot.slane %v7743, 3
        %v7748 = vrot.slane %v7743, 4
        %v7749 = vrot.slane %v7743, 5
        %v7750 = vrot.slane %v7743, 6
        %v7751 = vrot.slane %v7743, 7
        %v7760 = vmul.f32 %v7699, %v7743
        %v7761 = vmul.f32 %v7700, %v7745
        %v7762 = vmul.f32 %v7701, %v7746
        %v7763 = vmul.f32 %v7702, %v7747
        %v7764 = vmul.f32 %v7703, %v7748
        %v7765 = vmul.f32 %v7704, %v7749
        %v7766 = vmul.f32 %v7705, %v7750
        %v7767 = vmul.f32 %v7706, %v7751
        %v7769 = vlaneseq
        %v7770 = vshrl.u32 %v7769, 7
        %v7771 = vsub.s32 0, %v7770
        %v7772 = vrot.slane %v7654, %v7771
        %v7774 = vmul.f32 %v7760, %v7772
        %v7775 = vmul.f32 %v7761, %v7772
        %v7776 = vmul.f32 %v7762, %v7772
        %v7777 = vmul.f32 %v7763, %v7772
        %v7778 = vmul.f32 %v7764, %v7772
        %v7779 = vmul.f32 %v7765, %v7772
        %v7780 = vmul.f32 %v7766, %v7772
        %v7781 = vmul.f32 %v7767, %v7772
        %v7783 = vlaneseq
        %v7784 = vshrl.u32 %v7783, 7
        %v7785 = vsub.s32 0, %v7784
        %v7786 = vrot.slane %v7655, %v7785
        %v7788 = vadd.f32 %v7774, %v7786
        %v7789 = vadd.f32 %v7775, %v7786
        %v7790 = vadd.f32 %v7776, %v7786
        %v7791 = vadd.f32 %v7777, %v7786
        %v7792 = vadd.f32 %v7778, %v7786
        %v7793 = vadd.f32 %v7779, %v7786
        %v7794 = vadd.f32 %v7780, %v7786
        %v7795 = vadd.f32 %v7781, %v7786
        %v7796 = vpack.c.bf16 %v7788, %v7788
        %v7797 = vpack.c.bf16 %v7789, %v7789
        %v7798 = vpack.c.bf16 %v7790, %v7790
        %v7799 = vpack.c.bf16 %v7791, %v7791
        %v7800 = vpack.c.bf16 %v7792, %v7792
        %v7801 = vpack.c.bf16 %v7793, %v7793
        %v7802 = vpack.c.bf16 %v7794, %v7794
        %v7803 = vpack.c.bf16 %v7795, %v7795
        %v7804 = vld [vmem:[%s19] sm:$0xf]
        %v7805 = vld [vmem:[%s19 + $0x4] sm:$0xf]
        %v7806 = vld [vmem:[%s19 + $0x8] sm:$0xf]
        %v7807 = vld [vmem:[%s19 + $0xc] sm:$0xf]
        %v7816 = vunpack.c.l.b16 %v7796
        %v7817 = vunpack.c.l.b16 %v7797
        %v7818 = vunpack.c.l.b16 %v7798
        %v7819 = vunpack.c.l.b16 %v7799
        %v7820 = vunpack.c.l.b16 %v7800
        %v7821 = vunpack.c.l.b16 %v7801
        %v7822 = vunpack.c.l.b16 %v7802
        %v7823 = vunpack.c.l.b16 %v7803
        %v7824 = vrot.slane %v7817, 7
        %v7825 = vsel %vm7664, %v7824, %v7816
        %v7826 = vrot.slane %v7818, 6
        %v7827 = vsel %vm7666, %v7826, %v7825
        %v7828 = vrot.slane %v7819, 5
        %v7829 = vsel %vm7668, %v7828, %v7827
        %v7830 = vrot.slane %v7820, 4
        %v7831 = vsel %vm7670, %v7830, %v7829
        %v7832 = vrot.slane %v7821, 3
        %v7833 = vsel %vm7672, %v7832, %v7831
        %v7834 = vrot.slane %v7822, 2
        %v7835 = vsel %vm7674, %v7834, %v7833
        %v7836 = vrot.slane %v7823, 1
        %v7837 = vsel %vm7676, %v7836, %v7835
        %v7838 = vpack.c.b16 %v7837, %v7837
        %v7843 = vunpack.c.l.b16 %v7804
        %v7844 = vunpack.c.l.b16 %v7805
        %v7845 = vunpack.c.l.b16 %v7806
        %v7846 = vunpack.c.l.b16 %v7807
        %v7847 = vpack.c.b16 %v7844, %v7843
        %v7848 = vpack.c.b16 %v7846, %v7845
        %v7852 = vsel %vm863, %v7838, 0
        %7854 = vmatprep.subr.bf16.mxu0 0
        %7855 = vmatpush1.bf16.msra.mxu0 0
        %7856 = vmatprep.subr.bf16.mxu0 0
        %7857 = vmatpush1.bf16.msra.mxu0 0
        %7858 = vmatprep.subr.bf16.mxu0 0
        %7859 = vmatpush1.bf16.msra.mxu0 0
        %7860 = vmatprep.subr.bf16.mxu0 0
        %7861 = vmatpush1.bf16.msra.mxu0 0
        %7862 = vmatprep.subr.bf16.mxu0 0
        %7863 = vmatpush1.bf16.msra.mxu0 0
        %7864 = vmatprep.subr.bf16.mxu0 0
        %7865 = vmatpush1.bf16.msra.mxu0 0
        %7866 = vmatprep.subr.bf16.mxu0 0
        %7867 = vmatpush1.bf16.msra.mxu0 %v7848
        %7868 = vmatprep.subr.bf16.mxu0 0
        %7869 = vmatpush1.bf16.msra.mxu0 %v7847
        %7870 = vmatprep.subr.bf16.mxu0 0
        %7871 = vmatpush2.bf16.msra.mxu0 0
        %7872 = vmatprep.subr.bf16.mxu0 0
        %7873 = vmatpush2.bf16.msra.mxu0 0
        %7874 = vmatprep.subr.bf16.mxu0 0
        %7875 = vmatpush2.bf16.msra.mxu0 0
        %7876 = vmatprep.subr.bf16.mxu0 0
        %7877 = vmatpush2.bf16.msra.mxu0 0
        %7878 = vmatprep.subr.bf16.mxu0 0
        %7879 = vmatpush2.bf16.msra.mxu0 0
        %7880 = vmatprep.subr.bf16.mxu0 0
        %7881 = vmatpush2.bf16.msra.mxu0 0
        %7882 = vmatprep.subr.bf16.mxu0 0
        %7883 = vmatpush2.bf16.msra.mxu0 0
        %7884 = vmatprep.subr.bf16.mxu0 0
        %7885 = vmatpush2.bf16.msra.mxu0 0
        %7886 = vmatprep.mubr.bf16.mxu0 0
        %7887 = vmatmul.mubr.bf16.gmra.mxu0 %v7852
        %v7888 = vpop.f32.mrf.mxu0
        %v7889 = vadd.f32 0.0, %v7888
        %v7890 = vpop.f32.mrf.mxu0
        %v7891 = vpop.f32.mrf.mxu0
        %v7892 = vpop.f32.mrf.mxu0
        %7893 = vdwg.mxu0
        %7894 = vst [vmem:[%s625] sm:$0xff] %v7889
        %s7895 = sand.u32 %s467, 1
        %s7896 = scalar_lea.sflag [#allocation3], %s7895
        %s7897 = sand.u32 %s467, 1
        %s7898 = smul.addr %s7897, 8
        %s7899 = scalar_lea.vmem [#allocation2], %s7898
        // Predicated region
        $region101: #{clip_get_image_features.1} parent=99 // pred_check
          %p7900 = pneg %p477
        $region102: #{clip_get_image_features.1} parent=99 // pred_check_branch
          %7902 = sbr.rel (%p7900) target = $region104
        $region103: #{clip_get_image_features.1} parent=99 // pred_region
          %s7904 = ssub.s32 128, 128
          %7905 = vsyncadd %s7896, %s7904
          %s7906 = smul.addr %s34, 128
          %s7907 = scalar_lea.hbm %s20, %s7906
          %s7909 = sshll.u32 %s7899, 4
          %s7910 = int_to_ptr.vmem [resolvable:$true] %s7909
          %7912 = dma.vmem_to_hbm [thread:$0]  %s7910, 128, %s7907, %s7896
        $region104: #{clip_get_image_features.1} parent=99 // pred_fallthru
          _
      $region100: #{clip_get_image_features.1} parent=5 // pred_fallthru
        _
      %p7913 = scmp.le.s32.totalorder 2, %s29
      // Predicated region
      $region105: #{clip_get_image_features.1} parent=5 // pred_check
        %p7914 = pneg %p7913
      $region106: #{clip_get_image_features.1} parent=5 // pred_check_branch
        %7916 = sbr.rel (%p7914) target = $region108
      $region107: #{clip_get_image_features.1} parent=5 // pred_region
        %s7917 = ssub.s32 %s29, 2
        // Predicated region
        $region109: #{clip_get_image_features.1} parent=107 // pred_check
          %p7918 = pneg %p483
        $region110: #{clip_get_image_features.1} parent=107 // pred_check_branch
          %7920 = sbr.rel (%p7918) target = $region112
        $region111: #{clip_get_image_features.1} parent=107 // pred_region
          %s7921 = sand.u32 %s468, 1
          %s7922 = scalar_lea.sflag [#allocation3], %s7921
          %s7923 = sand.u32 %s468, 1
          %s7924 = smul.addr %s7923, 8
          %s7925 = scalar_lea.vmem [#allocation2], %s7924
          %7926 = dma.done %s7922, 128
        $region112: #{clip_get_image_features.1} parent=107 // pred_fallthru
          _
      $region108: #{clip_get_image_features.1} parent=5 // pred_fallthru
        _
    $region6: #{clip_get_image_features.1} parent=1 // loop_footer
      %s33 = sadd.s32 1, %s29
    $region7: #{clip_get_image_features.1} parent=1 // loop_footer_branch
      %28 = sbr.rel target = $region3
    $region8: #{clip_get_image_features.1} parent=1 // loop_exit
      _
    %7927 = vsyncpa [#allocation3], 1
    %s7928 = scalar_lea.sflag [#allocation3], 1
    %7929 = vsyncpa %s7928, 1

</llo_original>
